<compile_context>
chip_gen: v5e
topology: v5e:2x2
jax: 0.10.0
libtpu: 0.0.40
codegen_flags: <defaults>
</compile_context>

<pallas_src>
import math
import functools

import jax
import jax.numpy as jnp
from jax import lax
from jax.experimental import pallas as pl
from jax.experimental.pallas import tpu as pltpu

# ----------------------------- config (small) -------------------------------
VOC_SIZE = 16          # voc_src.size == voc_trg.size (emb_weight_sharing=True)
MAX_LEN  = 8           # voc.max_len
D_EMB = D_MODEL = 32
N_LAYERS = 2
N_HEAD   = 4
D_K      = D_MODEL // N_HEAD
D_INNER  = 64
PAD_IDX  = 0
LN_EPS   = 1e-6
X_LOGIT_SCALE = 1.0    # prj_weight_sharing=False
ATTN_SCALE = 1.0 / math.sqrt(D_K)

VMEM = pl.BlockSpec(memory_space=pltpu.MemorySpace.VMEM)

# Row layout of the packed (D_MODEL,) vector table (LN gammas/betas + biases).
_ENC_LN_G, _ENC_LN_B, _DEC_LN_G, _DEC_LN_B = 0, 1, 2, 3
_ENC_BASE = 4                 # per enc layer: [aln_g, aln_b, ffn_b2, fln_g, fln_b]
_ENC_STRIDE = 5
_DEC_BASE = _ENC_BASE + N_LAYERS * _ENC_STRIDE
_DEC_STRIDE = 7               # per dec layer: [sln_g, sln_b, cln_g, cln_b, b2, fln_g, fln_b]
_N_VECS_D = _DEC_BASE + N_LAYERS * _DEC_STRIDE


# ------------------------------ fused kernel ---------------------------------
def _transformer_kernel(
    ids_ref,       # (2*SEG + B*Lt, 1) int32: [tok ids ; VOC+pos ids ; gold ids]
    keys_ref,      # (2*B, S) int32: [src rows ; trg_in rows padded to S]
    tab_ref,       # (VOC+MAX_LEN+VOC, D) f32: [tok_emb ; pos_tab ; prj_w^T]
    vd_ref,        # (_N_VECS_D, D) f32 packed LN/bias vectors
    vi_ref,        # (2*N_LAYERS, D_INNER) f32 FFN b1 vectors
    qkv_ref,       # (3*N_LAYERS, D, 3D) fused QKV (Q cols pre-scaled)
    wo_ref,        # (3*N_LAYERS, D, D)
    w1_ref,        # (2*N_LAYERS, D, D_INNER)
    w2_ref,        # (2*N_LAYERS, D_INNER, D)
    out_ref,       # (B, Lt) gathered log-probs (lane-dense)
    *, B, S, Lt, SEG,
):
    f32 = jnp.float32
    D = D_MODEL
    n_enc = B * S
    n_dec = B * Lt
    Re = n_enc + n_dec

    emb_tab = tab_ref[0:VOC_SIZE + MAX_LEN, :]                       # (24, D)
    prj_wT = tab_ref[VOC_SIZE + MAX_LEN:VOC_SIZE + MAX_LEN + VOC_SIZE, :]  # (VOC, D)

    def vd(i):
        return vd_ref[i:i + 1, :]                                    # (1, D)

    def ln(x, gi, bi):
        mu = jnp.mean(x, axis=-1, keepdims=True)
        var = jnp.mean(jnp.square(x - mu), axis=-1, keepdims=True)
        return (x - mu) * lax.rsqrt(var + LN_EPS) * vd(gi) + vd(bi)

    # ---- fused token + position embedding (enc + dec, ONE MXU pass) --------
    tok_col = ids_ref[0:Re, :]                                       # (Re, 1)
    pos_col = ids_ref[SEG:SEG + Re, :]                               # (Re, 1) = VOC + pos
    lane = lax.broadcasted_iota(jnp.int32, (Re, VOC_SIZE + MAX_LEN), 1)
    onehot = ((lane == tok_col) | (lane == pos_col)).astype(f32)
    emb = jnp.dot(onehot, emb_tab, preferred_element_type=f32)       # (Re, D)

    x = ln(emb[0:n_enc, :], _ENC_LN_G, _ENC_LN_B)                    # (B*S, D)
    y = ln(emb[n_enc:Re, :], _DEC_LN_G, _DEC_LN_B)                   # (B*Lt, D)

    # ---- per-batch masks built once from raw int32 token ids ---------------
    causal = (lax.broadcasted_iota(jnp.int32, (Lt, Lt), 1)
              <= lax.broadcasted_iota(jnp.int32, (Lt, Lt), 0))
    src_ok, self_mask = [], []
    for b in range(B):
        sk = keys_ref[b:b + 1, 0:S] != PAD_IDX                       # (1, S)
        tk = keys_ref[B + b:B + b + 1, 0:Lt] != PAD_IDX              # (1, Lt)
        src_ok.append(sk)
        self_mask.append(causal & tk)

    def mha(xq, xkv, Lq, Lk, w_qkv, w_o, gi, bi, masks, cross):
        # Projections run once on the whole batch-flattened slab.
        if cross:
            q_all = jnp.dot(xq, w_qkv[:, :D], preferred_element_type=f32)
            kv = jnp.dot(xkv, w_qkv[:, D:], preferred_element_type=f32)
            k_all, v_all = kv[:, :D], kv[:, D:]
        else:
            qkv = jnp.dot(xq, w_qkv, preferred_element_type=f32)
            q_all, k_all, v_all = qkv[:, :D], qkv[:, D:2 * D], qkv[:, 2 * D:]
        outs = []
        for b in range(B):
            q_b = q_all[b * Lq:(b + 1) * Lq, :]
            k_b = k_all[b * Lk:(b + 1) * Lk, :]
            v_b = v_all[b * Lk:(b + 1) * Lk, :]
            m = masks[b]
            heads = []
            for h in range(N_HEAD):
                lo, hi = h * D_K, (h + 1) * D_K
                # NT dot: scores for one (batch, head); scale folded into Q weight
                s = lax.dot_general(q_b[:, lo:hi], k_b[:, lo:hi],
                                    (((1,), (1,)), ((), ())),
                                    preferred_element_type=f32)      # (Lq, Lk)
                s = jnp.where(m, s, -1e9)
                s = s - jnp.max(s, axis=-1, keepdims=True)
                p = jnp.exp(s)
                p = p / jnp.sum(p, axis=-1, keepdims=True)           # exact softmax
                heads.append(jnp.dot(p, v_b[:, lo:hi],
                                     preferred_element_type=f32))    # (Lq, Dk)
            outs.append(jnp.concatenate(heads, axis=1))              # (Lq, D)
        o = jnp.concatenate(outs, axis=0)                            # (B*Lq, D)
        o = jnp.dot(o, w_o, preferred_element_type=f32)              # single Wo matmul
        return ln(o + xq, gi, bi)                                    # residual + LN

    def ffn(x_, w1, b1i, w2, b2i, gi, bi):
        h = jnp.dot(x_, w1, preferred_element_type=f32) + vi_ref[b1i:b1i + 1, :]
        h = jnp.maximum(h, 0.0)
        h = jnp.dot(h, w2, preferred_element_type=f32) + vd(b2i)
        return ln(h + x_, gi, bi)

    # ------------------------------ encoder ----------------------------------
    for l in range(N_LAYERS):
        base = _ENC_BASE + _ENC_STRIDE * l
        x = mha(x, x, S, S, qkv_ref[l], wo_ref[l], base + 0, base + 1,
                src_ok, cross=False)
        x = ffn(x, w1_ref[l], l, w2_ref[l], base + 2, base + 3, base + 4)
    memory = x

    # ------------------------------ decoder ----------------------------------
    for l in range(N_LAYERS):
        base = _DEC_BASE + _DEC_STRIDE * l
        y = mha(y, y, Lt, Lt, qkv_ref[N_LAYERS + l], wo_ref[N_LAYERS + l],
                base + 0, base + 1, self_mask, cross=False)
        y = mha(y, memory, Lt, S, qkv_ref[2 * N_LAYERS + l], wo_ref[2 * N_LAYERS + l],
                base + 2, base + 3, src_ok, cross=True)
        y = ffn(y, w1_ref[N_LAYERS + l], N_LAYERS + l, w2_ref[N_LAYERS + l],
                base + 4, base + 5, base + 6)

    # ------------- prj_word + log_softmax + gather(gold ids) -----------------
    logits = lax.dot_general(y, prj_wT, (((1,), (1,)), ((), ())),
                             preferred_element_type=f32)             # (B*Lt, VOC)
    if X_LOGIT_SCALE != 1.0:                                         # elided (==1.0)
        logits = logits * X_LOGIT_SCALE
    z = logits - jnp.max(logits, axis=-1, keepdims=True)
    logp = z - jnp.log(jnp.sum(jnp.exp(z), axis=-1, keepdims=True))
    gold_col = ids_ref[2 * SEG:2 * SEG + n_dec, :]                   # (B*Lt, 1)
    sel = lax.broadcasted_iota(jnp.int32, (n_dec, VOC_SIZE), 1) == gold_col
    picked = jnp.sum(jnp.where(sel, logp, 0.0), axis=-1, keepdims=True)  # (B*Lt, 1)
    # lane-dense (B, Lt) output, written as one slab
    out_ref[...] = jnp.concatenate(
        [jnp.transpose(picked[b * Lt:(b + 1) * Lt, :]) for b in range(B)], axis=0)


# ----------------------------- param packing ---------------------------------
def _pack_params(params):
    """Pack all weights into 7 arrays; fold ATTN_SCALE into the Q columns."""
    enc, dec = params['enc_layers'], params['dec_layers']

    def fused_qkv(a):
        return jnp.concatenate([a['wq'] * ATTN_SCALE, a['wk'], a['wv']], axis=1)

    tables = jnp.concatenate(
        [params['token_emb'], params['pos_table'], params['prj_w'].T], axis=0)

    vd = [params['enc_ln_g'], params['enc_ln_b'],
          params['dec_ln_g'], params['dec_ln_b']]
    for l in enc:
        vd += [l['attn']['ln_g'], l['attn']['ln_b'],
               l['ffn']['b2'], l['ffn']['ln_g'], l['ffn']['ln_b']]
    for l in dec:
        vd += [l['self_attn']['ln_g'], l['self_attn']['ln_b'],
               l['cross_attn']['ln_g'], l['cross_attn']['ln_b'],
               l['ffn']['b2'], l['ffn']['ln_g'], l['ffn']['ln_b']]
    vecs_d = jnp.stack(vd, axis=0)
    assert vecs_d.shape[0] == _N_VECS_D

    vecs_i = jnp.stack([l['ffn']['b1'] for l in enc] +
                       [l['ffn']['b1'] for l in dec], axis=0)

    qkv_all = jnp.stack([fused_qkv(l['attn']) for l in enc] +
                        [fused_qkv(l['self_attn']) for l in dec] +
                        [fused_qkv(l['cross_attn']) for l in dec], axis=0)
    wo_all = jnp.stack([l['attn']['wo'] for l in enc] +
                       [l['self_attn']['wo'] for l in dec] +
                       [l['cross_attn']['wo'] for l in dec], axis=0)
    w1_all = jnp.stack([l['ffn']['w1'] for l in enc] +
                       [l['ffn']['w1'] for l in dec], axis=0)
    w2_all = jnp.stack([l['ffn']['w2'] for l in enc] +
                       [l['ffn']['w2'] for l in dec], axis=0)
    return tables, vecs_d, vecs_i, qkv_all, wo_all, w1_all, w2_all


# ------------------------------ forward glue ----------------------------------
def transformer_forward(params, src, trg):
    B, S = src.shape
    src = src.astype(jnp.int32)
    trg = trg.astype(jnp.int32)
    trg_in = trg[:, :-1]
    gold = trg[:, 1:]
    Lt = trg_in.shape[1]
    Re = B * S + B * Lt
    SEG = -(-Re // 8) * 8          # sublane-aligned segment stride

    # packed int operand #1: column blob [token ids ; VOC+pos ids ; gold ids]
    tok_flat = jnp.concatenate([src.reshape(-1), trg_in.reshape(-1)])
    pos_flat = jnp.concatenate(
        [jnp.tile(jnp.arange(S, dtype=jnp.int32), B),
         jnp.tile(jnp.arange(Lt, dtype=jnp.int32), B)]) + VOC_SIZE
    ids = jnp.zeros((2 * SEG + B * Lt, 1), jnp.int32)
    ids = ids.at[0:Re, 0].set(tok_flat)
    ids = ids.at[SEG:SEG + Re, 0].set(pos_flat)
    ids = ids.at[2 * SEG:2 * SEG + B * Lt, 0].set(gold.reshape(-1))

    # packed int operand #2: lane-layout key rows [src ; trg_in padded to S]
    trg_keys = jnp.full((B, S), PAD_IDX, jnp.int32).at[:, :Lt].set(trg_in)
    keys = jnp.concatenate([src, trg_keys], axis=0)

    weights = _pack_params(params)
    kern = functools.partial(_transformer_kernel, B=B, S=S, Lt=Lt, SEG=SEG)
    out = pl.pallas_call(
        kern,
        out_shape=jax.ShapeDtypeStruct((B, Lt), jnp.float32),
        in_specs=[VMEM] * (2 + len(weights)),
        out_specs=VMEM,
    )(ids, keys, *weights)
    return out                                               # (B, Lt)


# --------------------------- pure-JAX reference --------------------------------
def reference_forward(params, src, trg):
    def ln(x, g, b):
        mu = x.mean(-1, keepdims=True)
        var = jnp.square(x - mu).mean(-1, keepdims=True)
        return (x - mu) * lax.rsqrt(var + LN_EPS) * g + b

    def mha(p, xq, xkv, mask):
        B, Lq, D = xq.shape
        Lk = xkv.shape[1]
        q = (xq @ p['wq']).reshape(B, Lq, N_HEAD, D_K).transpose(0, 2, 1, 3)
        k = (xkv @ p['wk']).reshape(B, Lk, N_HEAD, D_K).transpose(0, 2, 1, 3)
        v = (xkv @ p['wv']).reshape(B, Lk, N_HEAD, D_K).transpose(0, 2, 1, 3)
        s = jnp.einsum('bhqd,bhkd->bhqk', q, k) * ATTN_SCALE
        s = jnp.where(mask[:, None, :, :], s, -1e9)
        a = jax.nn.softmax(s, axis=-1)
        o = jnp.einsum('bhqk,bhkd->bhqd', a, v).transpose(0, 2, 1, 3).reshape(B, Lq, D)
        return ln(o @ p['wo'] + xq, p['ln_g'], p['ln_b'])

    def ffn(p, x):
        h = jax.nn.relu(x @ p['w1'] + p['b1'])
        return ln(h @ p['w2'] + p['b2'] + x, p['ln_g'], p['ln_b'])

    B, S = src.shape
    src_mask = (src != PAD_IDX)[:, None, :]
    x = params['token_emb'][src] + params['pos_table'][:S][None]
    x = ln(x, params['enc_ln_g'], params['enc_ln_b'])
    for lp in params['enc_layers']:
        x = mha(lp['attn'], x, x, src_mask)
        x = ffn(lp['ffn'], x)
    memory = x

    trg_in = trg[:, :-1]
    Lt = trg_in.shape[1]
    causal = jnp.tril(jnp.ones((1, Lt, Lt), dtype=bool))
    trg_mask = (trg_in != PAD_IDX)[:, None, :] & causal
    y = params['token_emb'][trg_in] + params['pos_table'][:Lt][None]
    y = ln(y, params['dec_ln_g'], params['dec_ln_b'])
    for lp in params['dec_layers']:
        y = mha(lp['self_attn'], y, y, trg_mask)
        y = mha(lp['cross_attn'], y, memory, src_mask)
        y = ffn(lp['ffn'], y)

    logits = (y @ params['prj_w']) * X_LOGIT_SCALE
    logp = jax.nn.log_softmax(logits, axis=-1)
    return jnp.take_along_axis(logp, trg[:, 1:][:, :, None], axis=2)[..., 0]


# ------------------------------ params init -----------------------------------
def sinusoid_table(n_pos, d):
    pos = jnp.arange(n_pos, dtype=jnp.float32)[:, None]
    i = jnp.arange(d, dtype=jnp.float32)[None, :]
    angle = pos / jnp.power(10000.0, (2.0 * jnp.floor(i / 2.0)) / d)
    return jnp.where((jnp.arange(d) % 2)[None, :] == 0, jnp.sin(angle), jnp.cos(angle))


def init_params(key):
    keys = iter(jax.random.split(key, 256))

    def xav(shape):
        lim = math.sqrt(6.0 / (shape[0] + shape[1]))
        return jax.random.uniform(next(keys), shape, jnp.float32, -lim, lim)

    def attn_params():
        return dict(wq=xav((D_MODEL, N_HEAD * D_K)), wk=xav((D_MODEL, N_HEAD * D_K)),
                    wv=xav((D_MODEL, N_HEAD * D_K)), wo=xav((N_HEAD * D_K, D_MODEL)),
                    ln_g=jnp.ones((D_MODEL,), jnp.float32),
                    ln_b=jnp.zeros((D_MODEL,), jnp.float32))

    def ffn_params():
        return dict(w1=xav((D_MODEL, D_INNER)), b1=jnp.zeros((D_INNER,), jnp.float32),
                    w2=xav((D_INNER, D_MODEL)), b2=jnp.zeros((D_MODEL,), jnp.float32),
                    ln_g=jnp.ones((D_MODEL,), jnp.float32),
                    ln_b=jnp.zeros((D_MODEL,), jnp.float32))

    token_emb = xav((VOC_SIZE, D_EMB)).at[PAD_IDX].set(0.0)   # padding_idx=0 row
    return dict(
        token_emb=token_emb,                                  # shared enc/dec embedding
        pos_table=sinusoid_table(MAX_LEN, D_EMB),
        enc_ln_g=jnp.ones((D_EMB,), jnp.float32), enc_ln_b=jnp.zeros((D_EMB,), jnp.float32),
        dec_ln_g=jnp.ones((D_MODEL,), jnp.float32), dec_ln_b=jnp.zeros((D_MODEL,), jnp.float32),
        prj_w=xav((D_MODEL, VOC_SIZE)),                       # prj_word
        enc_layers=[dict(attn=attn_params(), ffn=ffn_params()) for _ in range(N_LAYERS)],
        dec_layers=[dict(self_attn=attn_params(), cross_attn=attn_params(),
                         ffn=ffn_params()) for _ in range(N_LAYERS)],
    )


# --------------------------------- main ----------------------------------------
if __name__ == "__main__":
    key = jax.random.PRNGKey(0)
    pkey, skey, tkey = jax.random.split(key, 3)
    params = init_params(pkey)

    B = 2
    src = jax.random.randint(skey, (B, MAX_LEN), 1, VOC_SIZE).astype(jnp.int32)
    trg = jax.random.randint(tkey, (B, MAX_LEN), 1, VOC_SIZE).astype(jnp.int32)
    # deterministic padding at the tails to exercise the pad masks
    src = src.at[0, 6:].set(PAD_IDX).at[1, 5:].set(PAD_IDX)
    trg = trg.at[1, 6:].set(PAD_IDX)

    out = jax.jit(transformer_forward)(params, src, trg)
    out = jax.block_until_ready(out)

    assert out.shape == (B, MAX_LEN - 1), out.shape
    assert bool(jnp.all(jnp.isfinite(out)))
    assert bool(jnp.all(out <= 0.0))      # log-probabilities

    # numerical cross-check against a plain-JAX reference (kernel softmax is
    # exact now; remaining diff is matmul precision path only)
    with jax.default_matmul_precision("highest"):
        ref = jax.jit(reference_forward)(params, src, trg)
    ref = jax.block_until_ready(ref)
    max_diff = float(jnp.max(jnp.abs(out - ref)))
    assert max_diff < 0.15, max_diff

    print("KERNEL_OK")
</pallas_src>

<mosaic_0001>
module attributes {stable_mosaic.version = 11 : i64} {
  func.func @_transformer_kernel(%arg0: memref<78x1xi32, #tpu.memory_space<vmem>>, %arg1: memref<4x8xi32, #tpu.memory_space<vmem>>, %arg2: memref<40x32xf32, #tpu.memory_space<vmem>>, %arg3: memref<28x32xf32, #tpu.memory_space<vmem>>, %arg4: memref<4x64xf32, #tpu.memory_space<vmem>>, %arg5: memref<6x32x96xf32, #tpu.memory_space<vmem>>, %arg6: memref<6x32x32xf32, #tpu.memory_space<vmem>>, %arg7: memref<4x32x64xf32, #tpu.memory_space<vmem>>, %arg8: memref<4x64x32xf32, #tpu.memory_space<vmem>>, %arg9: memref<2x7xf32, #tpu.memory_space<vmem>>) attributes {dimension_semantics = [], scalar_prefetch = 0 : i64, scratch_operands = 0 : i64, tpu.core_type = #tpu.core_type<tc>} {
    %c0 = arith.constant 0 : index
    %c0_0 = arith.constant 0 : index
    %0 = vector.load %arg2[%c0, %c0_0] : memref<40x32xf32, #tpu.memory_space<vmem>>, vector<24x32xf32>
    %c24 = arith.constant 24 : index
    %c0_1 = arith.constant 0 : index
    %1 = vector.load %arg2[%c24, %c0_1] : memref<40x32xf32, #tpu.memory_space<vmem>>, vector<16x32xf32>
    %c0_2 = arith.constant 0 : index
    %c0_3 = arith.constant 0 : index
    %2 = vector.load %arg0[%c0_2, %c0_3] : memref<78x1xi32, #tpu.memory_space<vmem>>, vector<30x1xi32>
    %c32 = arith.constant 32 : index
    %c0_4 = arith.constant 0 : index
    %3 = vector.load %arg0[%c32, %c0_4] : memref<78x1xi32, #tpu.memory_space<vmem>>, vector<30x1xi32>
    %4 = tpu.iota {dimensions = array<i32: 1>} : vector<30x24xi32>
    %5 = vector.broadcast %2 : vector<30x1xi32> to vector<30x24xi32>
    %6 = arith.cmpi eq, %4, %5 : vector<30x24xi32>
    %7 = vector.broadcast %3 : vector<30x1xi32> to vector<30x24xi32>
    %8 = arith.cmpi eq, %4, %7 : vector<30x24xi32>
    %9 = arith.ori %6, %8 : vector<30x24xi1>
    %10 = arith.extui %9 : vector<30x24xi1> to vector<30x24xi32>
    %11 = arith.sitofp %10 : vector<30x24xi32> to vector<30x24xf32>
    %cst = arith.constant dense<0.000000e+00> : vector<30x32xf32>
    %12 = tpu.matmul %11, %0, %cst {dimension_numbers = #tpu.dot_dimension_numbers<[1], [0], [0], [1], [0, 0, 1, 1], [], []>} : vector<30x24xf32>, vector<24x32xf32>, vector<30x32xf32> -> vector<30x32xf32>
    %13 = vector.extract_strided_slice %12 {offsets = [0, 0], sizes = [16, 32], strides = [1, 1]} : vector<30x32xf32> to vector<16x32xf32>
    %cst_5 = arith.constant dense<0.000000e+00> : vector<16xf32>
    %14 = vector.multi_reduction <add>, %13, %cst_5 [1] : vector<16x32xf32> to vector<16xf32>
    %15 = vector.shape_cast %14 : vector<16xf32> to vector<16x1xf32>
    %cst_6 = arith.constant 3.200000e+01 : f32
    %16 = vector.broadcast %cst_6 : f32 to vector<16x1xf32>
    %17 = arith.divf %15, %16 : vector<16x1xf32>
    %18 = vector.broadcast %17 : vector<16x1xf32> to vector<16x32xf32>
    %19 = arith.subf %13, %18 : vector<16x32xf32>
    %20 = arith.mulf %19, %19 : vector<16x32xf32>
    %cst_7 = arith.constant dense<0.000000e+00> : vector<16xf32>
    %21 = vector.multi_reduction <add>, %20, %cst_7 [1] : vector<16x32xf32> to vector<16xf32>
    %22 = vector.shape_cast %21 : vector<16xf32> to vector<16x1xf32>
    %cst_8 = arith.constant 3.200000e+01 : f32
    %23 = vector.broadcast %cst_8 : f32 to vector<16x1xf32>
    %24 = arith.divf %22, %23 : vector<16x1xf32>
    %25 = vector.broadcast %17 : vector<16x1xf32> to vector<16x32xf32>
    %26 = arith.subf %13, %25 : vector<16x32xf32>
    %cst_9 = arith.constant 9.99999997E-7 : f32
    %27 = vector.broadcast %cst_9 : f32 to vector<16x1xf32>
    %28 = arith.addf %24, %27 : vector<16x1xf32>
    %29 = math.rsqrt %28 : vector<16x1xf32>
    %30 = vector.broadcast %29 : vector<16x1xf32> to vector<16x32xf32>
    %31 = arith.mulf %26, %30 : vector<16x32xf32>
    %c0_10 = arith.constant 0 : index
    %c0_11 = arith.constant 0 : index
    %32 = vector.load %arg3[%c0_10, %c0_11] : memref<28x32xf32, #tpu.memory_space<vmem>>, vector<1x32xf32>
    %33 = vector.broadcast %32 : vector<1x32xf32> to vector<16x32xf32>
    %34 = arith.mulf %31, %33 : vector<16x32xf32>
    %c1 = arith.constant 1 : index
    %c0_12 = arith.constant 0 : index
    %35 = vector.load %arg3[%c1, %c0_12] : memref<28x32xf32, #tpu.memory_space<vmem>>, vector<1x32xf32>
    %36 = vector.broadcast %35 : vector<1x32xf32> to vector<16x32xf32>
    %37 = arith.addf %34, %36 : vector<16x32xf32>
    %38 = vector.extract_strided_slice %12 {offsets = [16, 0], sizes = [14, 32], strides = [1, 1]} : vector<30x32xf32> to vector<14x32xf32>
    %cst_13 = arith.constant dense<0.000000e+00> : vector<14xf32>
    %39 = vector.multi_reduction <add>, %38, %cst_13 [1] : vector<14x32xf32> to vector<14xf32>
    %40 = vector.shape_cast %39 : vector<14xf32> to vector<14x1xf32>
    %cst_14 = arith.constant 3.200000e+01 : f32
    %41 = vector.broadcast %cst_14 : f32 to vector<14x1xf32>
    %42 = arith.divf %40, %41 : vector<14x1xf32>
    %43 = vector.broadcast %42 : vector<14x1xf32> to vector<14x32xf32>
    %44 = arith.subf %38, %43 : vector<14x32xf32>
    %45 = arith.mulf %44, %44 : vector<14x32xf32>
    %cst_15 = arith.constant dense<0.000000e+00> : vector<14xf32>
    %46 = vector.multi_reduction <add>, %45, %cst_15 [1] : vector<14x32xf32> to vector<14xf32>
    %47 = vector.shape_cast %46 : vector<14xf32> to vector<14x1xf32>
    %cst_16 = arith.constant 3.200000e+01 : f32
    %48 = vector.broadcast %cst_16 : f32 to vector<14x1xf32>
    %49 = arith.divf %47, %48 : vector<14x1xf32>
    %50 = vector.broadcast %42 : vector<14x1xf32> to vector<14x32xf32>
    %51 = arith.subf %38, %50 : vector<14x32xf32>
    %cst_17 = arith.constant 9.99999997E-7 : f32
    %52 = vector.broadcast %cst_17 : f32 to vector<14x1xf32>
    %53 = arith.addf %49, %52 : vector<14x1xf32>
    %54 = math.rsqrt %53 : vector<14x1xf32>
    %55 = vector.broadcast %54 : vector<14x1xf32> to vector<14x32xf32>
    %56 = arith.mulf %51, %55 : vector<14x32xf32>
    %c2 = arith.constant 2 : index
    %c0_18 = arith.constant 0 : index
    %57 = vector.load %arg3[%c2, %c0_18] : memref<28x32xf32, #tpu.memory_space<vmem>>, vector<1x32xf32>
    %58 = vector.broadcast %57 : vector<1x32xf32> to vector<14x32xf32>
    %59 = arith.mulf %56, %58 : vector<14x32xf32>
    %c3 = arith.constant 3 : index
    %c0_19 = arith.constant 0 : index
    %60 = vector.load %arg3[%c3, %c0_19] : memref<28x32xf32, #tpu.memory_space<vmem>>, vector<1x32xf32>
    %61 = vector.broadcast %60 : vector<1x32xf32> to vector<14x32xf32>
    %62 = arith.addf %59, %61 : vector<14x32xf32>
    %63 = tpu.iota {dimensions = array<i32: 1>} : vector<7x7xi32>
    %64 = tpu.iota {dimensions = array<i32: 0>} : vector<7x7xi32>
    %65 = arith.cmpi sle, %63, %64 : vector<7x7xi32>
    %c0_20 = arith.constant 0 : index
    %c0_21 = arith.constant 0 : index
    %66 = vector.load %arg1[%c0_20, %c0_21] : memref<4x8xi32, #tpu.memory_space<vmem>>, vector<1x8xi32>
    %c0_i32 = arith.constant 0 : i32
    %67 = vector.broadcast %c0_i32 : i32 to vector<1x8xi32>
    %68 = arith.cmpi ne, %66, %67 : vector<1x8xi32>
    %c2_22 = arith.constant 2 : index
    %c0_23 = arith.constant 0 : index
    %69 = vector.load %arg1[%c2_22, %c0_23] : memref<4x8xi32, #tpu.memory_space<vmem>>, vector<1x7xi32>
    %c0_i32_24 = arith.constant 0 : i32
    %70 = vector.broadcast %c0_i32_24 : i32 to vector<1x7xi32>
    %71 = arith.cmpi ne, %69, %70 : vector<1x7xi32>
    %72 = vector.broadcast %71 : vector<1x7xi1> to vector<7x7xi1>
    %73 = arith.andi %65, %72 : vector<7x7xi1>
    %c1_25 = arith.constant 1 : index
    %c0_26 = arith.constant 0 : index
    %74 = vector.load %arg1[%c1_25, %c0_26] : memref<4x8xi32, #tpu.memory_space<vmem>>, vector<1x8xi32>
    %c0_i32_27 = arith.constant 0 : i32
    %75 = vector.broadcast %c0_i32_27 : i32 to vector<1x8xi32>
    %76 = arith.cmpi ne, %74, %75 : vector<1x8xi32>
    %c3_28 = arith.constant 3 : index
    %c0_29 = arith.constant 0 : index
    %77 = vector.load %arg1[%c3_28, %c0_29] : memref<4x8xi32, #tpu.memory_space<vmem>>, vector<1x7xi32>
    %c0_i32_30 = arith.constant 0 : i32
    %78 = vector.broadcast %c0_i32_30 : i32 to vector<1x7xi32>
    %79 = arith.cmpi ne, %77, %78 : vector<1x7xi32>
    %80 = vector.broadcast %79 : vector<1x7xi1> to vector<7x7xi1>
    %81 = arith.andi %65, %80 : vector<7x7xi1>
    %c0_31 = arith.constant 0 : index
    %c0_32 = arith.constant 0 : index
    %c0_33 = arith.constant 0 : index
    %82 = vector.load %arg5[%c0_31, %c0_32, %c0_33] : memref<6x32x96xf32, #tpu.memory_space<vmem>>, vector<1x32x96xf32>
    %83 = vector.shape_cast %82 : vector<1x32x96xf32> to vector<32x96xf32>
    %c0_34 = arith.constant 0 : index
    %c0_35 = arith.constant 0 : index
    %c0_36 = arith.constant 0 : index
    %84 = vector.load %arg6[%c0_34, %c0_35, %c0_36] : memref<6x32x32xf32, #tpu.memory_space<vmem>>, vector<1x32x32xf32>
    %85 = vector.shape_cast %84 : vector<1x32x32xf32> to vector<32x32xf32>
    %cst_37 = arith.constant dense<0.000000e+00> : vector<16x96xf32>
    %86 = tpu.matmul %37, %83, %cst_37 {dimension_numbers = #tpu.dot_dimension_numbers<[1], [0], [0], [1], [0, 0, 1, 1], [], []>} : vector<16x32xf32>, vector<32x96xf32>, vector<16x96xf32> -> vector<16x96xf32>
    %87 = vector.extract_strided_slice %86 {offsets = [0, 0], sizes = [16, 32], strides = [1, 1]} : vector<16x96xf32> to vector<16x32xf32>
    %88 = vector.extract_strided_slice %86 {offsets = [0, 32], sizes = [16, 32], strides = [1, 1]} : vector<16x96xf32> to vector<16x32xf32>
    %89 = vector.extract_strided_slice %86 {offsets = [0, 64], sizes = [16, 32], strides = [1, 1]} : vector<16x96xf32> to vector<16x32xf32>
    %90 = vector.extract_strided_slice %87 {offsets = [0, 0], sizes = [8, 32], strides = [1, 1]} : vector<16x32xf32> to vector<8x32xf32>
    %91 = vector.extract_strided_slice %88 {offsets = [0, 0], sizes = [8, 32], strides = [1, 1]} : vector<16x32xf32> to vector<8x32xf32>
    %92 = vector.extract_strided_slice %89 {offsets = [0, 0], sizes = [8, 32], strides = [1, 1]} : vector<16x32xf32> to vector<8x32xf32>
    %93 = vector.extract_strided_slice %90 {offsets = [0, 0], sizes = [8, 8], strides = [1, 1]} : vector<8x32xf32> to vector<8x8xf32>
    %94 = vector.extract_strided_slice %91 {offsets = [0, 0], sizes = [8, 8], strides = [1, 1]} : vector<8x32xf32> to vector<8x8xf32>
    %cst_38 = arith.constant dense<0.000000e+00> : vector<8x8xf32>
    %95 = tpu.matmul %93, %94, %cst_38 {dimension_numbers = #tpu.dot_dimension_numbers<[1], [1], [0], [0], [0, 0, 1, 0], [], []>} : vector<8x8xf32>, vector<8x8xf32>, vector<8x8xf32> -> vector<8x8xf32>
    %cst_39 = arith.constant -1.000000e+09 : f32
    %96 = vector.shape_cast %68 : vector<1x8xi1> to vector<1x8xi1>
    %97 = vector.broadcast %96 : vector<1x8xi1> to vector<8x8xi1>
    %98 = vector.broadcast %cst_39 : f32 to vector<8x8xf32>
    %99 = arith.select %97, %95, %98 : vector<8x8xi1>, vector<8x8xf32>
    %cst_40 = arith.constant dense<0xFF800000> : vector<8xf32>
    %100 = vector.multi_reduction <maximumf>, %99, %cst_40 [1] : vector<8x8xf32> to vector<8xf32>
    %101 = vector.shape_cast %100 : vector<8xf32> to vector<8x1xf32>
    %102 = vector.broadcast %101 : vector<8x1xf32> to vector<8x8xf32>
    %103 = arith.subf %99, %102 : vector<8x8xf32>
    %104 = math.exp %103 : vector<8x8xf32>
    %cst_41 = arith.constant dense<0.000000e+00> : vector<8xf32>
    %105 = vector.multi_reduction <add>, %104, %cst_41 [1] : vector<8x8xf32> to vector<8xf32>
    %106 = vector.shape_cast %105 : vector<8xf32> to vector<8x1xf32>
    %107 = vector.broadcast %106 : vector<8x1xf32> to vector<8x8xf32>
    %108 = arith.divf %104, %107 : vector<8x8xf32>
    %109 = vector.extract_strided_slice %92 {offsets = [0, 0], sizes = [8, 8], strides = [1, 1]} : vector<8x32xf32> to vector<8x8xf32>
    %cst_42 = arith.constant dense<0.000000e+00> : vector<8x8xf32>
    %110 = tpu.matmul %108, %109, %cst_42 {dimension_numbers = #tpu.dot_dimension_numbers<[1], [0], [0], [1], [0, 0, 1, 1], [], []>} : vector<8x8xf32>, vector<8x8xf32>, vector<8x8xf32> -> vector<8x8xf32>
    %111 = vector.extract_strided_slice %90 {offsets = [0, 8], sizes = [8, 8], strides = [1, 1]} : vector<8x32xf32> to vector<8x8xf32>
    %112 = vector.extract_strided_slice %91 {offsets = [0, 8], sizes = [8, 8], strides = [1, 1]} : vector<8x32xf32> to vector<8x8xf32>
    %cst_43 = arith.constant dense<0.000000e+00> : vector<8x8xf32>
    %113 = tpu.matmul %111, %112, %cst_43 {dimension_numbers = #tpu.dot_dimension_numbers<[1], [1], [0], [0], [0, 0, 1, 0], [], []>} : vector<8x8xf32>, vector<8x8xf32>, vector<8x8xf32> -> vector<8x8xf32>
    %cst_44 = arith.constant -1.000000e+09 : f32
    %114 = vector.shape_cast %68 : vector<1x8xi1> to vector<1x8xi1>
    %115 = vector.broadcast %114 : vector<1x8xi1> to vector<8x8xi1>
    %116 = vector.broadcast %cst_44 : f32 to vector<8x8xf32>
    %117 = arith.select %115, %113, %116 : vector<8x8xi1>, vector<8x8xf32>
    %cst_45 = arith.constant dense<0xFF800000> : vector<8xf32>
    %118 = vector.multi_reduction <maximumf>, %117, %cst_45 [1] : vector<8x8xf32> to vector<8xf32>
    %119 = vector.shape_cast %118 : vector<8xf32> to vector<8x1xf32>
    %120 = vector.broadcast %119 : vector<8x1xf32> to vector<8x8xf32>
    %121 = arith.subf %117, %120 : vector<8x8xf32>
    %122 = math.exp %121 : vector<8x8xf32>
    %cst_46 = arith.constant dense<0.000000e+00> : vector<8xf32>
    %123 = vector.multi_reduction <add>, %122, %cst_46 [1] : vector<8x8xf32> to vector<8xf32>
    %124 = vector.shape_cast %123 : vector<8xf32> to vector<8x1xf32>
    %125 = vector.broadcast %124 : vector<8x1xf32> to vector<8x8xf32>
    %126 = arith.divf %122, %125 : vector<8x8xf32>
    %127 = vector.extract_strided_slice %92 {offsets = [0, 8], sizes = [8, 8], strides = [1, 1]} : vector<8x32xf32> to vector<8x8xf32>
    %cst_47 = arith.constant dense<0.000000e+00> : vector<8x8xf32>
    %128 = tpu.matmul %126, %127, %cst_47 {dimension_numbers = #tpu.dot_dimension_numbers<[1], [0], [0], [1], [0, 0, 1, 1], [], []>} : vector<8x8xf32>, vector<8x8xf32>, vector<8x8xf32> -> vector<8x8xf32>
    %129 = vector.extract_strided_slice %90 {offsets = [0, 16], sizes = [8, 8], strides = [1, 1]} : vector<8x32xf32> to vector<8x8xf32>
    %130 = vector.extract_strided_slice %91 {offsets = [0, 16], sizes = [8, 8], strides = [1, 1]} : vector<8x32xf32> to vector<8x8xf32>
    %cst_48 = arith.constant dense<0.000000e+00> : vector<8x8xf32>
    %131 = tpu.matmul %129, %130, %cst_48 {dimension_numbers = #tpu.dot_dimension_numbers<[1], [1], [0], [0], [0, 0, 1, 0], [], []>} : vector<8x8xf32>, vector<8x8xf32>, vector<8x8xf32> -> vector<8x8xf32>
    %cst_49 = arith.constant -1.000000e+09 : f32
    %132 = vector.shape_cast %68 : vector<1x8xi1> to vector<1x8xi1>
    %133 = vector.broadcast %132 : vector<1x8xi1> to vector<8x8xi1>
    %134 = vector.broadcast %cst_49 : f32 to vector<8x8xf32>
    %135 = arith.select %133, %131, %134 : vector<8x8xi1>, vector<8x8xf32>
    %cst_50 = arith.constant dense<0xFF800000> : vector<8xf32>
    %136 = vector.multi_reduction <maximumf>, %135, %cst_50 [1] : vector<8x8xf32> to vector<8xf32>
    %137 = vector.shape_cast %136 : vector<8xf32> to vector<8x1xf32>
    %138 = vector.broadcast %137 : vector<8x1xf32> to vector<8x8xf32>
    %139 = arith.subf %135, %138 : vector<8x8xf32>
    %140 = math.exp %139 : vector<8x8xf32>
    %cst_51 = arith.constant dense<0.000000e+00> : vector<8xf32>
    %141 = vector.multi_reduction <add>, %140, %cst_51 [1] : vector<8x8xf32> to vector<8xf32>
    %142 = vector.shape_cast %141 : vector<8xf32> to vector<8x1xf32>
    %143 = vector.broadcast %142 : vector<8x1xf32> to vector<8x8xf32>
    %144 = arith.divf %140, %143 : vector<8x8xf32>
    %145 = vector.extract_strided_slice %92 {offsets = [0, 16], sizes = [8, 8], strides = [1, 1]} : vector<8x32xf32> to vector<8x8xf32>
    %cst_52 = arith.constant dense<0.000000e+00> : vector<8x8xf32>
    %146 = tpu.matmul %144, %145, %cst_52 {dimension_numbers = #tpu.dot_dimension_numbers<[1], [0], [0], [1], [0, 0, 1, 1], [], []>} : vector<8x8xf32>, vector<8x8xf32>, vector<8x8xf32> -> vector<8x8xf32>
    %147 = vector.extract_strided_slice %90 {offsets = [0, 24], sizes = [8, 8], strides = [1, 1]} : vector<8x32xf32> to vector<8x8xf32>
    %148 = vector.extract_strided_slice %91 {offsets = [0, 24], sizes = [8, 8], strides = [1, 1]} : vector<8x32xf32> to vector<8x8xf32>
    %cst_53 = arith.constant dense<0.000000e+00> : vector<8x8xf32>
    %149 = tpu.matmul %147, %148, %cst_53 {dimension_numbers = #tpu.dot_dimension_numbers<[1], [1], [0], [0], [0, 0, 1, 0], [], []>} : vector<8x8xf32>, vector<8x8xf32>, vector<8x8xf32> -> vector<8x8xf32>
    %cst_54 = arith.constant -1.000000e+09 : f32
    %150 = vector.shape_cast %68 : vector<1x8xi1> to vector<1x8xi1>
    %151 = vector.broadcast %150 : vector<1x8xi1> to vector<8x8xi1>
    %152 = vector.broadcast %cst_54 : f32 to vector<8x8xf32>
    %153 = arith.select %151, %149, %152 : vector<8x8xi1>, vector<8x8xf32>
    %cst_55 = arith.constant dense<0xFF800000> : vector<8xf32>
    %154 = vector.multi_reduction <maximumf>, %153, %cst_55 [1] : vector<8x8xf32> to vector<8xf32>
    %155 = vector.shape_cast %154 : vector<8xf32> to vector<8x1xf32>
    %156 = vector.broadcast %155 : vector<8x1xf32> to vector<8x8xf32>
    %157 = arith.subf %153, %156 : vector<8x8xf32>
    %158 = math.exp %157 : vector<8x8xf32>
    %cst_56 = arith.constant dense<0.000000e+00> : vector<8xf32>
    %159 = vector.multi_reduction <add>, %158, %cst_56 [1] : vector<8x8xf32> to vector<8xf32>
    %160 = vector.shape_cast %159 : vector<8xf32> to vector<8x1xf32>
    %161 = vector.broadcast %160 : vector<8x1xf32> to vector<8x8xf32>
    %162 = arith.divf %158, %161 : vector<8x8xf32>
    %163 = vector.extract_strided_slice %92 {offsets = [0, 24], sizes = [8, 8], strides = [1, 1]} : vector<8x32xf32> to vector<8x8xf32>
    %cst_57 = arith.constant dense<0.000000e+00> : vector<8x8xf32>
    %164 = tpu.matmul %162, %163, %cst_57 {dimension_numbers = #tpu.dot_dimension_numbers<[1], [0], [0], [1], [0, 0, 1, 1], [], []>} : vector<8x8xf32>, vector<8x8xf32>, vector<8x8xf32> -> vector<8x8xf32>
    %165 = tpu.concatenate %110, %128, %146, %164 in 1 : vector<8x8xf32>, vector<8x8xf32>, vector<8x8xf32>, vector<8x8xf32> -> vector<8x32xf32>
    %166 = vector.extract_strided_slice %87 {offsets = [8, 0], sizes = [8, 32], strides = [1, 1]} : vector<16x32xf32> to vector<8x32xf32>
    %167 = vector.extract_strided_slice %88 {offsets = [8, 0], sizes = [8, 32], strides = [1, 1]} : vector<16x32xf32> to vector<8x32xf32>
    %168 = vector.extract_strided_slice %89 {offsets = [8, 0], sizes = [8, 32], strides = [1, 1]} : vector<16x32xf32> to vector<8x32xf32>
    %169 = vector.extract_strided_slice %166 {offsets = [0, 0], sizes = [8, 8], strides = [1, 1]} : vector<8x32xf32> to vector<8x8xf32>
    %170 = vector.extract_strided_slice %167 {offsets = [0, 0], sizes = [8, 8], strides = [1, 1]} : vector<8x32xf32> to vector<8x8xf32>
    %cst_58 = arith.constant dense<0.000000e+00> : vector<8x8xf32>
    %171 = tpu.matmul %169, %170, %cst_58 {dimension_numbers = #tpu.dot_dimension_numbers<[1], [1], [0], [0], [0, 0, 1, 0], [], []>} : vector<8x8xf32>, vector<8x8xf32>, vector<8x8xf32> -> vector<8x8xf32>
    %cst_59 = arith.constant -1.000000e+09 : f32
    %172 = vector.shape_cast %76 : vector<1x8xi1> to vector<1x8xi1>
    %173 = vector.broadcast %172 : vector<1x8xi1> to vector<8x8xi1>
    %174 = vector.broadcast %cst_59 : f32 to vector<8x8xf32>
    %175 = arith.select %173, %171, %174 : vector<8x8xi1>, vector<8x8xf32>
    %cst_60 = arith.constant dense<0xFF800000> : vector<8xf32>
    %176 = vector.multi_reduction <maximumf>, %175, %cst_60 [1] : vector<8x8xf32> to vector<8xf32>
    %177 = vector.shape_cast %176 : vector<8xf32> to vector<8x1xf32>
    %178 = vector.broadcast %177 : vector<8x1xf32> to vector<8x8xf32>
    %179 = arith.subf %175, %178 : vector<8x8xf32>
    %180 = math.exp %179 : vector<8x8xf32>
    %cst_61 = arith.constant dense<0.000000e+00> : vector<8xf32>
    %181 = vector.multi_reduction <add>, %180, %cst_61 [1] : vector<8x8xf32> to vector<8xf32>
    %182 = vector.shape_cast %181 : vector<8xf32> to vector<8x1xf32>
    %183 = vector.broadcast %182 : vector<8x1xf32> to vector<8x8xf32>
    %184 = arith.divf %180, %183 : vector<8x8xf32>
    %185 = vector.extract_strided_slice %168 {offsets = [0, 0], sizes = [8, 8], strides = [1, 1]} : vector<8x32xf32> to vector<8x8xf32>
    %cst_62 = arith.constant dense<0.000000e+00> : vector<8x8xf32>
    %186 = tpu.matmul %184, %185, %cst_62 {dimension_numbers = #tpu.dot_dimension_numbers<[1], [0], [0], [1], [0, 0, 1, 1], [], []>} : vector<8x8xf32>, vector<8x8xf32>, vector<8x8xf32> -> vector<8x8xf32>
    %187 = vector.extract_strided_slice %166 {offsets = [0, 8], sizes = [8, 8], strides = [1, 1]} : vector<8x32xf32> to vector<8x8xf32>
    %188 = vector.extract_strided_slice %167 {offsets = [0, 8], sizes = [8, 8], strides = [1, 1]} : vector<8x32xf32> to vector<8x8xf32>
    %cst_63 = arith.constant dense<0.000000e+00> : vector<8x8xf32>
    %189 = tpu.matmul %187, %188, %cst_63 {dimension_numbers = #tpu.dot_dimension_numbers<[1], [1], [0], [0], [0, 0, 1, 0], [], []>} : vector<8x8xf32>, vector<8x8xf32>, vector<8x8xf32> -> vector<8x8xf32>
    %cst_64 = arith.constant -1.000000e+09 : f32
    %190 = vector.shape_cast %76 : vector<1x8xi1> to vector<1x8xi1>
    %191 = vector.broadcast %190 : vector<1x8xi1> to vector<8x8xi1>
    %192 = vector.broadcast %cst_64 : f32 to vector<8x8xf32>
    %193 = arith.select %191, %189, %192 : vector<8x8xi1>, vector<8x8xf32>
    %cst_65 = arith.constant dense<0xFF800000> : vector<8xf32>
    %194 = vector.multi_reduction <maximumf>, %193, %cst_65 [1] : vector<8x8xf32> to vector<8xf32>
    %195 = vector.shape_cast %194 : vector<8xf32> to vector<8x1xf32>
    %196 = vector.broadcast %195 : vector<8x1xf32> to vector<8x8xf32>
    %197 = arith.subf %193, %196 : vector<8x8xf32>
    %198 = math.exp %197 : vector<8x8xf32>
    %cst_66 = arith.constant dense<0.000000e+00> : vector<8xf32>
    %199 = vector.multi_reduction <add>, %198, %cst_66 [1] : vector<8x8xf32> to vector<8xf32>
    %200 = vector.shape_cast %199 : vector<8xf32> to vector<8x1xf32>
    %201 = vector.broadcast %200 : vector<8x1xf32> to vector<8x8xf32>
    %202 = arith.divf %198, %201 : vector<8x8xf32>
    %203 = vector.extract_strided_slice %168 {offsets = [0, 8], sizes = [8, 8], strides = [1, 1]} : vector<8x32xf32> to vector<8x8xf32>
    %cst_67 = arith.constant dense<0.000000e+00> : vector<8x8xf32>
    %204 = tpu.matmul %202, %203, %cst_67 {dimension_numbers = #tpu.dot_dimension_numbers<[1], [0], [0], [1], [0, 0, 1, 1], [], []>} : vector<8x8xf32>, vector<8x8xf32>, vector<8x8xf32> -> vector<8x8xf32>
    %205 = vector.extract_strided_slice %166 {offsets = [0, 16], sizes = [8, 8], strides = [1, 1]} : vector<8x32xf32> to vector<8x8xf32>
    %206 = vector.extract_strided_slice %167 {offsets = [0, 16], sizes = [8, 8], strides = [1, 1]} : vector<8x32xf32> to vector<8x8xf32>
    %cst_68 = arith.constant dense<0.000000e+00> : vector<8x8xf32>
    %207 = tpu.matmul %205, %206, %cst_68 {dimension_numbers = #tpu.dot_dimension_numbers<[1], [1], [0], [0], [0, 0, 1, 0], [], []>} : vector<8x8xf32>, vector<8x8xf32>, vector<8x8xf32> -> vector<8x8xf32>
    %cst_69 = arith.constant -1.000000e+09 : f32
    %208 = vector.shape_cast %76 : vector<1x8xi1> to vector<1x8xi1>
    %209 = vector.broadcast %208 : vector<1x8xi1> to vector<8x8xi1>
    %210 = vector.broadcast %cst_69 : f32 to vector<8x8xf32>
    %211 = arith.select %209, %207, %210 : vector<8x8xi1>, vector<8x8xf32>
    %cst_70 = arith.constant dense<0xFF800000> : vector<8xf32>
    %212 = vector.multi_reduction <maximumf>, %211, %cst_70 [1] : vector<8x8xf32> to vector<8xf32>
    %213 = vector.shape_cast %212 : vector<8xf32> to vector<8x1xf32>
    %214 = vector.broadcast %213 : vector<8x1xf32> to vector<8x8xf32>
    %215 = arith.subf %211, %214 : vector<8x8xf32>
    %216 = math.exp %215 : vector<8x8xf32>
    %cst_71 = arith.constant dense<0.000000e+00> : vector<8xf32>
    %217 = vector.multi_reduction <add>, %216, %cst_71 [1] : vector<8x8xf32> to vector<8xf32>
    %218 = vector.shape_cast %217 : vector<8xf32> to vector<8x1xf32>
    %219 = vector.broadcast %218 : vector<8x1xf32> to vector<8x8xf32>
    %220 = arith.divf %216, %219 : vector<8x8xf32>
    %221 = vector.extract_strided_slice %168 {offsets = [0, 16], sizes = [8, 8], strides = [1, 1]} : vector<8x32xf32> to vector<8x8xf32>
    %cst_72 = arith.constant dense<0.000000e+00> : vector<8x8xf32>
    %222 = tpu.matmul %220, %221, %cst_72 {dimension_numbers = #tpu.dot_dimension_numbers<[1], [0], [0], [1], [0, 0, 1, 1], [], []>} : vector<8x8xf32>, vector<8x8xf32>, vector<8x8xf32> -> vector<8x8xf32>
    %223 = vector.extract_strided_slice %166 {offsets = [0, 24], sizes = [8, 8], strides = [1, 1]} : vector<8x32xf32> to vector<8x8xf32>
    %224 = vector.extract_strided_slice %167 {offsets = [0, 24], sizes = [8, 8], strides = [1, 1]} : vector<8x32xf32> to vector<8x8xf32>
    %cst_73 = arith.constant dense<0.000000e+00> : vector<8x8xf32>
    %225 = tpu.matmul %223, %224, %cst_73 {dimension_numbers = #tpu.dot_dimension_numbers<[1], [1], [0], [0], [0, 0, 1, 0], [], []>} : vector<8x8xf32>, vector<8x8xf32>, vector<8x8xf32> -> vector<8x8xf32>
    %cst_74 = arith.constant -1.000000e+09 : f32
    %226 = vector.shape_cast %76 : vector<1x8xi1> to vector<1x8xi1>
    %227 = vector.broadcast %226 : vector<1x8xi1> to vector<8x8xi1>
    %228 = vector.broadcast %cst_74 : f32 to vector<8x8xf32>
    %229 = arith.select %227, %225, %228 : vector<8x8xi1>, vector<8x8xf32>
    %cst_75 = arith.constant dense<0xFF800000> : vector<8xf32>
    %230 = vector.multi_reduction <maximumf>, %229, %cst_75 [1] : vector<8x8xf32> to vector<8xf32>
    %231 = vector.shape_cast %230 : vector<8xf32> to vector<8x1xf32>
    %232 = vector.broadcast %231 : vector<8x1xf32> to vector<8x8xf32>
    %233 = arith.subf %229, %232 : vector<8x8xf32>
    %234 = math.exp %233 : vector<8x8xf32>
    %cst_76 = arith.constant dense<0.000000e+00> : vector<8xf32>
    %235 = vector.multi_reduction <add>, %234, %cst_76 [1] : vector<8x8xf32> to vector<8xf32>
    %236 = vector.shape_cast %235 : vector<8xf32> to vector<8x1xf32>
    %237 = vector.broadcast %236 : vector<8x1xf32> to vector<8x8xf32>
    %238 = arith.divf %234, %237 : vector<8x8xf32>
    %239 = vector.extract_strided_slice %168 {offsets = [0, 24], sizes = [8, 8], strides = [1, 1]} : vector<8x32xf32> to vector<8x8xf32>
    %cst_77 = arith.constant dense<0.000000e+00> : vector<8x8xf32>
    %240 = tpu.matmul %238, %239, %cst_77 {dimension_numbers = #tpu.dot_dimension_numbers<[1], [0], [0], [1], [0, 0, 1, 1], [], []>} : vector<8x8xf32>, vector<8x8xf32>, vector<8x8xf32> -> vector<8x8xf32>
    %241 = tpu.concatenate %186, %204, %222, %240 in 1 : vector<8x8xf32>, vector<8x8xf32>, vector<8x8xf32>, vector<8x8xf32> -> vector<8x32xf32>
    %242 = tpu.concatenate %165, %241 in 0 : vector<8x32xf32>, vector<8x32xf32> -> vector<16x32xf32>
    %cst_78 = arith.constant dense<0.000000e+00> : vector<16x32xf32>
    %243 = tpu.matmul %242, %85, %cst_78 {dimension_numbers = #tpu.dot_dimension_numbers<[1], [0], [0], [1], [0, 0, 1, 1], [], []>} : vector<16x32xf32>, vector<32x32xf32>, vector<16x32xf32> -> vector<16x32xf32>
    %244 = arith.addf %243, %37 : vector<16x32xf32>
    %cst_79 = arith.constant dense<0.000000e+00> : vector<16xf32>
    %245 = vector.multi_reduction <add>, %244, %cst_79 [1] : vector<16x32xf32> to vector<16xf32>
    %246 = vector.shape_cast %245 : vector<16xf32> to vector<16x1xf32>
    %cst_80 = arith.constant 3.200000e+01 : f32
    %247 = vector.broadcast %cst_80 : f32 to vector<16x1xf32>
    %248 = arith.divf %246, %247 : vector<16x1xf32>
    %249 = vector.broadcast %248 : vector<16x1xf32> to vector<16x32xf32>
    %250 = arith.subf %244, %249 : vector<16x32xf32>
    %251 = arith.mulf %250, %250 : vector<16x32xf32>
    %cst_81 = arith.constant dense<0.000000e+00> : vector<16xf32>
    %252 = vector.multi_reduction <add>, %251, %cst_81 [1] : vector<16x32xf32> to vector<16xf32>
    %253 = vector.shape_cast %252 : vector<16xf32> to vector<16x1xf32>
    %cst_82 = arith.constant 3.200000e+01 : f32
    %254 = vector.broadcast %cst_82 : f32 to vector<16x1xf32>
    %255 = arith.divf %253, %254 : vector<16x1xf32>
    %256 = vector.broadcast %248 : vector<16x1xf32> to vector<16x32xf32>
    %257 = arith.subf %244, %256 : vector<16x32xf32>
    %cst_83 = arith.constant 9.99999997E-7 : f32
    %258 = vector.broadcast %cst_83 : f32 to vector<16x1xf32>
    %259 = arith.addf %255, %258 : vector<16x1xf32>
    %260 = math.rsqrt %259 : vector<16x1xf32>
    %261 = vector.broadcast %260 : vector<16x1xf32> to vector<16x32xf32>
    %262 = arith.mulf %257, %261 : vector<16x32xf32>
    %c4 = arith.constant 4 : index
    %c0_84 = arith.constant 0 : index
    %263 = vector.load %arg3[%c4, %c0_84] : memref<28x32xf32, #tpu.memory_space<vmem>>, vector<1x32xf32>
    %264 = vector.broadcast %263 : vector<1x32xf32> to vector<16x32xf32>
    %265 = arith.mulf %262, %264 : vector<16x32xf32>
    %c5 = arith.constant 5 : index
    %c0_85 = arith.constant 0 : index
    %266 = vector.load %arg3[%c5, %c0_85] : memref<28x32xf32, #tpu.memory_space<vmem>>, vector<1x32xf32>
    %267 = vector.broadcast %266 : vector<1x32xf32> to vector<16x32xf32>
    %268 = arith.addf %265, %267 : vector<16x32xf32>
    %c0_86 = arith.constant 0 : index
    %c0_87 = arith.constant 0 : index
    %c0_88 = arith.constant 0 : index
    %269 = vector.load %arg7[%c0_86, %c0_87, %c0_88] : memref<4x32x64xf32, #tpu.memory_space<vmem>>, vector<1x32x64xf32>
    %270 = vector.shape_cast %269 : vector<1x32x64xf32> to vector<32x64xf32>
    %c0_89 = arith.constant 0 : index
    %c0_90 = arith.constant 0 : index
    %c0_91 = arith.constant 0 : index
    %271 = vector.load %arg8[%c0_89, %c0_90, %c0_91] : memref<4x64x32xf32, #tpu.memory_space<vmem>>, vector<1x64x32xf32>
    %272 = vector.shape_cast %271 : vector<1x64x32xf32> to vector<64x32xf32>
    %cst_92 = arith.constant dense<0.000000e+00> : vector<16x64xf32>
    %273 = tpu.matmul %268, %270, %cst_92 {dimension_numbers = #tpu.dot_dimension_numbers<[1], [0], [0], [1], [0, 0, 1, 1], [], []>} : vector<16x32xf32>, vector<32x64xf32>, vector<16x64xf32> -> vector<16x64xf32>
    %c0_93 = arith.constant 0 : index
    %c0_94 = arith.constant 0 : index
    %274 = vector.load %arg4[%c0_93, %c0_94] : memref<4x64xf32, #tpu.memory_space<vmem>>, vector<1x64xf32>
    %275 = vector.broadcast %274 : vector<1x64xf32> to vector<16x64xf32>
    %276 = arith.addf %273, %275 : vector<16x64xf32>
    %cst_95 = arith.constant 0.000000e+00 : f32
    %277 = vector.broadcast %cst_95 : f32 to vector<16x64xf32>
    %278 = arith.maximumf %276, %277 : vector<16x64xf32>
    %cst_96 = arith.constant dense<0.000000e+00> : vector<16x32xf32>
    %279 = tpu.matmul %278, %272, %cst_96 {dimension_numbers = #tpu.dot_dimension_numbers<[1], [0], [0], [1], [0, 0, 1, 1], [], []>} : vector<16x64xf32>, vector<64x32xf32>, vector<16x32xf32> -> vector<16x32xf32>
    %c6 = arith.constant 6 : index
    %c0_97 = arith.constant 0 : index
    %280 = vector.load %arg3[%c6, %c0_97] : memref<28x32xf32, #tpu.memory_space<vmem>>, vector<1x32xf32>
    %281 = vector.broadcast %280 : vector<1x32xf32> to vector<16x32xf32>
    %282 = arith.addf %279, %281 : vector<16x32xf32>
    %283 = arith.addf %282, %268 : vector<16x32xf32>
    %cst_98 = arith.constant dense<0.000000e+00> : vector<16xf32>
    %284 = vector.multi_reduction <add>, %283, %cst_98 [1] : vector<16x32xf32> to vector<16xf32>
    %285 = vector.shape_cast %284 : vector<16xf32> to vector<16x1xf32>
    %cst_99 = arith.constant 3.200000e+01 : f32
    %286 = vector.broadcast %cst_99 : f32 to vector<16x1xf32>
    %287 = arith.divf %285, %286 : vector<16x1xf32>
    %288 = vector.broadcast %287 : vector<16x1xf32> to vector<16x32xf32>
    %289 = arith.subf %283, %288 : vector<16x32xf32>
    %290 = arith.mulf %289, %289 : vector<16x32xf32>
    %cst_100 = arith.constant dense<0.000000e+00> : vector<16xf32>
    %291 = vector.multi_reduction <add>, %290, %cst_100 [1] : vector<16x32xf32> to vector<16xf32>
    %292 = vector.shape_cast %291 : vector<16xf32> to vector<16x1xf32>
    %cst_101 = arith.constant 3.200000e+01 : f32
    %293 = vector.broadcast %cst_101 : f32 to vector<16x1xf32>
    %294 = arith.divf %292, %293 : vector<16x1xf32>
    %295 = vector.broadcast %287 : vector<16x1xf32> to vector<16x32xf32>
    %296 = arith.subf %283, %295 : vector<16x32xf32>
    %cst_102 = arith.constant 9.99999997E-7 : f32
    %297 = vector.broadcast %cst_102 : f32 to vector<16x1xf32>
    %298 = arith.addf %294, %297 : vector<16x1xf32>
    %299 = math.rsqrt %298 : vector<16x1xf32>
    %300 = vector.broadcast %299 : vector<16x1xf32> to vector<16x32xf32>
    %301 = arith.mulf %296, %300 : vector<16x32xf32>
    %c7 = arith.constant 7 : index
    %c0_103 = arith.constant 0 : index
    %302 = vector.load %arg3[%c7, %c0_103] : memref<28x32xf32, #tpu.memory_space<vmem>>, vector<1x32xf32>
    %303 = vector.broadcast %302 : vector<1x32xf32> to vector<16x32xf32>
    %304 = arith.mulf %301, %303 : vector<16x32xf32>
    %c8 = arith.constant 8 : index
    %c0_104 = arith.constant 0 : index
    %305 = vector.load %arg3[%c8, %c0_104] : memref<28x32xf32, #tpu.memory_space<vmem>>, vector<1x32xf32>
    %306 = vector.broadcast %305 : vector<1x32xf32> to vector<16x32xf32>
    %307 = arith.addf %304, %306 : vector<16x32xf32>
    %c1_105 = arith.constant 1 : index
    %c0_106 = arith.constant 0 : index
    %c0_107 = arith.constant 0 : index
    %308 = vector.load %arg5[%c1_105, %c0_106, %c0_107] : memref<6x32x96xf32, #tpu.memory_space<vmem>>, vector<1x32x96xf32>
    %309 = vector.shape_cast %308 : vector<1x32x96xf32> to vector<32x96xf32>
    %c1_108 = arith.constant 1 : index
    %c0_109 = arith.constant 0 : index
    %c0_110 = arith.constant 0 : index
    %310 = vector.load %arg6[%c1_108, %c0_109, %c0_110] : memref<6x32x32xf32, #tpu.memory_space<vmem>>, vector<1x32x32xf32>
    %311 = vector.shape_cast %310 : vector<1x32x32xf32> to vector<32x32xf32>
    %cst_111 = arith.constant dense<0.000000e+00> : vector<16x96xf32>
    %312 = tpu.matmul %307, %309, %cst_111 {dimension_numbers = #tpu.dot_dimension_numbers<[1], [0], [0], [1], [0, 0, 1, 1], [], []>} : vector<16x32xf32>, vector<32x96xf32>, vector<16x96xf32> -> vector<16x96xf32>
    %313 = vector.extract_strided_slice %312 {offsets = [0, 0], sizes = [16, 32], strides = [1, 1]} : vector<16x96xf32> to vector<16x32xf32>
    %314 = vector.extract_strided_slice %312 {offsets = [0, 32], sizes = [16, 32], strides = [1, 1]} : vector<16x96xf32> to vector<16x32xf32>
    %315 = vector.extract_strided_slice %312 {offsets = [0, 64], sizes = [16, 32], strides = [1, 1]} : vector<16x96xf32> to vector<16x32xf32>
    %316 = vector.extract_strided_slice %313 {offsets = [0, 0], sizes = [8, 32], strides = [1, 1]} : vector<16x32xf32> to vector<8x32xf32>
    %317 = vector.extract_strided_slice %314 {offsets = [0, 0], sizes = [8, 32], strides = [1, 1]} : vector<16x32xf32> to vector<8x32xf32>
    %318 = vector.extract_strided_slice %315 {offsets = [0, 0], sizes = [8, 32], strides = [1, 1]} : vector<16x32xf32> to vector<8x32xf32>
    %319 = vector.extract_strided_slice %316 {offsets = [0, 0], sizes = [8, 8], strides = [1, 1]} : vector<8x32xf32> to vector<8x8xf32>
    %320 = vector.extract_strided_slice %317 {offsets = [0, 0], sizes = [8, 8], strides = [1, 1]} : vector<8x32xf32> to vector<8x8xf32>
    %cst_112 = arith.constant dense<0.000000e+00> : vector<8x8xf32>
    %321 = tpu.matmul %319, %320, %cst_112 {dimension_numbers = #tpu.dot_dimension_numbers<[1], [1], [0], [0], [0, 0, 1, 0], [], []>} : vector<8x8xf32>, vector<8x8xf32>, vector<8x8xf32> -> vector<8x8xf32>
    %cst_113 = arith.constant -1.000000e+09 : f32
    %322 = vector.shape_cast %68 : vector<1x8xi1> to vector<1x8xi1>
    %323 = vector.broadcast %322 : vector<1x8xi1> to vector<8x8xi1>
    %324 = vector.broadcast %cst_113 : f32 to vector<8x8xf32>
    %325 = arith.select %323, %321, %324 : vector<8x8xi1>, vector<8x8xf32>
    %cst_114 = arith.constant dense<0xFF800000> : vector<8xf32>
    %326 = vector.multi_reduction <maximumf>, %325, %cst_114 [1] : vector<8x8xf32> to vector<8xf32>
    %327 = vector.shape_cast %326 : vector<8xf32> to vector<8x1xf32>
    %328 = vector.broadcast %327 : vector<8x1xf32> to vector<8x8xf32>
    %329 = arith.subf %325, %328 : vector<8x8xf32>
    %330 = math.exp %329 : vector<8x8xf32>
    %cst_115 = arith.constant dense<0.000000e+00> : vector<8xf32>
    %331 = vector.multi_reduction <add>, %330, %cst_115 [1] : vector<8x8xf32> to vector<8xf32>
    %332 = vector.shape_cast %331 : vector<8xf32> to vector<8x1xf32>
    %333 = vector.broadcast %332 : vector<8x1xf32> to vector<8x8xf32>
    %334 = arith.divf %330, %333 : vector<8x8xf32>
    %335 = vector.extract_strided_slice %318 {offsets = [0, 0], sizes = [8, 8], strides = [1, 1]} : vector<8x32xf32> to vector<8x8xf32>
    %cst_116 = arith.constant dense<0.000000e+00> : vector<8x8xf32>
    %336 = tpu.matmul %334, %335, %cst_116 {dimension_numbers = #tpu.dot_dimension_numbers<[1], [0], [0], [1], [0, 0, 1, 1], [], []>} : vector<8x8xf32>, vector<8x8xf32>, vector<8x8xf32> -> vector<8x8xf32>
    %337 = vector.extract_strided_slice %316 {offsets = [0, 8], sizes = [8, 8], strides = [1, 1]} : vector<8x32xf32> to vector<8x8xf32>
    %338 = vector.extract_strided_slice %317 {offsets = [0, 8], sizes = [8, 8], strides = [1, 1]} : vector<8x32xf32> to vector<8x8xf32>
    %cst_117 = arith.constant dense<0.000000e+00> : vector<8x8xf32>
    %339 = tpu.matmul %337, %338, %cst_117 {dimension_numbers = #tpu.dot_dimension_numbers<[1], [1], [0], [0], [0, 0, 1, 0], [], []>} : vector<8x8xf32>, vector<8x8xf32>, vector<8x8xf32> -> vector<8x8xf32>
    %cst_118 = arith.constant -1.000000e+09 : f32
    %340 = vector.shape_cast %68 : vector<1x8xi1> to vector<1x8xi1>
    %341 = vector.broadcast %340 : vector<1x8xi1> to vector<8x8xi1>
    %342 = vector.broadcast %cst_118 : f32 to vector<8x8xf32>
    %343 = arith.select %341, %339, %342 : vector<8x8xi1>, vector<8x8xf32>
    %cst_119 = arith.constant dense<0xFF800000> : vector<8xf32>
    %344 = vector.multi_reduction <maximumf>, %343, %cst_119 [1] : vector<8x8xf32> to vector<8xf32>
    %345 = vector.shape_cast %344 : vector<8xf32> to vector<8x1xf32>
    %346 = vector.broadcast %345 : vector<8x1xf32> to vector<8x8xf32>
    %347 = arith.subf %343, %346 : vector<8x8xf32>
    %348 = math.exp %347 : vector<8x8xf32>
    %cst_120 = arith.constant dense<0.000000e+00> : vector<8xf32>
    %349 = vector.multi_reduction <add>, %348, %cst_120 [1] : vector<8x8xf32> to vector<8xf32>
    %350 = vector.shape_cast %349 : vector<8xf32> to vector<8x1xf32>
    %351 = vector.broadcast %350 : vector<8x1xf32> to vector<8x8xf32>
    %352 = arith.divf %348, %351 : vector<8x8xf32>
    %353 = vector.extract_strided_slice %318 {offsets = [0, 8], sizes = [8, 8], strides = [1, 1]} : vector<8x32xf32> to vector<8x8xf32>
    %cst_121 = arith.constant dense<0.000000e+00> : vector<8x8xf32>
    %354 = tpu.matmul %352, %353, %cst_121 {dimension_numbers = #tpu.dot_dimension_numbers<[1], [0], [0], [1], [0, 0, 1, 1], [], []>} : vector<8x8xf32>, vector<8x8xf32>, vector<8x8xf32> -> vector<8x8xf32>
    %355 = vector.extract_strided_slice %316 {offsets = [0, 16], sizes = [8, 8], strides = [1, 1]} : vector<8x32xf32> to vector<8x8xf32>
    %356 = vector.extract_strided_slice %317 {offsets = [0, 16], sizes = [8, 8], strides = [1, 1]} : vector<8x32xf32> to vector<8x8xf32>
    %cst_122 = arith.constant dense<0.000000e+00> : vector<8x8xf32>
    %357 = tpu.matmul %355, %356, %cst_122 {dimension_numbers = #tpu.dot_dimension_numbers<[1], [1], [0], [0], [0, 0, 1, 0], [], []>} : vector<8x8xf32>, vector<8x8xf32>, vector<8x8xf32> -> vector<8x8xf32>
    %cst_123 = arith.constant -1.000000e+09 : f32
    %358 = vector.shape_cast %68 : vector<1x8xi1> to vector<1x8xi1>
    %359 = vector.broadcast %358 : vector<1x8xi1> to vector<8x8xi1>
    %360 = vector.broadcast %cst_123 : f32 to vector<8x8xf32>
    %361 = arith.select %359, %357, %360 : vector<8x8xi1>, vector<8x8xf32>
    %cst_124 = arith.constant dense<0xFF800000> : vector<8xf32>
    %362 = vector.multi_reduction <maximumf>, %361, %cst_124 [1] : vector<8x8xf32> to vector<8xf32>
    %363 = vector.shape_cast %362 : vector<8xf32> to vector<8x1xf32>
    %364 = vector.broadcast %363 : vector<8x1xf32> to vector<8x8xf32>
    %365 = arith.subf %361, %364 : vector<8x8xf32>
    %366 = math.exp %365 : vector<8x8xf32>
    %cst_125 = arith.constant dense<0.000000e+00> : vector<8xf32>
    %367 = vector.multi_reduction <add>, %366, %cst_125 [1] : vector<8x8xf32> to vector<8xf32>
    %368 = vector.shape_cast %367 : vector<8xf32> to vector<8x1xf32>
    %369 = vector.broadcast %368 : vector<8x1xf32> to vector<8x8xf32>
    %370 = arith.divf %366, %369 : vector<8x8xf32>
    %371 = vector.extract_strided_slice %318 {offsets = [0, 16], sizes = [8, 8], strides = [1, 1]} : vector<8x32xf32> to vector<8x8xf32>
    %cst_126 = arith.constant dense<0.000000e+00> : vector<8x8xf32>
    %372 = tpu.matmul %370, %371, %cst_126 {dimension_numbers = #tpu.dot_dimension_numbers<[1], [0], [0], [1], [0, 0, 1, 1], [], []>} : vector<8x8xf32>, vector<8x8xf32>, vector<8x8xf32> -> vector<8x8xf32>
    %373 = vector.extract_strided_slice %316 {offsets = [0, 24], sizes = [8, 8], strides = [1, 1]} : vector<8x32xf32> to vector<8x8xf32>
    %374 = vector.extract_strided_slice %317 {offsets = [0, 24], sizes = [8, 8], strides = [1, 1]} : vector<8x32xf32> to vector<8x8xf32>
    %cst_127 = arith.constant dense<0.000000e+00> : vector<8x8xf32>
    %375 = tpu.matmul %373, %374, %cst_127 {dimension_numbers = #tpu.dot_dimension_numbers<[1], [1], [0], [0], [0, 0, 1, 0], [], []>} : vector<8x8xf32>, vector<8x8xf32>, vector<8x8xf32> -> vector<8x8xf32>
    %cst_128 = arith.constant -1.000000e+09 : f32
    %376 = vector.shape_cast %68 : vector<1x8xi1> to vector<1x8xi1>
    %377 = vector.broadcast %376 : vector<1x8xi1> to vector<8x8xi1>
    %378 = vector.broadcast %cst_128 : f32 to vector<8x8xf32>
    %379 = arith.select %377, %375, %378 : vector<8x8xi1>, vector<8x8xf32>
    %cst_129 = arith.constant dense<0xFF800000> : vector<8xf32>
    %380 = vector.multi_reduction <maximumf>, %379, %cst_129 [1] : vector<8x8xf32> to vector<8xf32>
    %381 = vector.shape_cast %380 : vector<8xf32> to vector<8x1xf32>
    %382 = vector.broadcast %381 : vector<8x1xf32> to vector<8x8xf32>
    %383 = arith.subf %379, %382 : vector<8x8xf32>
    %384 = math.exp %383 : vector<8x8xf32>
    %cst_130 = arith.constant dense<0.000000e+00> : vector<8xf32>
    %385 = vector.multi_reduction <add>, %384, %cst_130 [1] : vector<8x8xf32> to vector<8xf32>
    %386 = vector.shape_cast %385 : vector<8xf32> to vector<8x1xf32>
    %387 = vector.broadcast %386 : vector<8x1xf32> to vector<8x8xf32>
    %388 = arith.divf %384, %387 : vector<8x8xf32>
    %389 = vector.extract_strided_slice %318 {offsets = [0, 24], sizes = [8, 8], strides = [1, 1]} : vector<8x32xf32> to vector<8x8xf32>
    %cst_131 = arith.constant dense<0.000000e+00> : vector<8x8xf32>
    %390 = tpu.matmul %388, %389, %cst_131 {dimension_numbers = #tpu.dot_dimension_numbers<[1], [0], [0], [1], [0, 0, 1, 1], [], []>} : vector<8x8xf32>, vector<8x8xf32>, vector<8x8xf32> -> vector<8x8xf32>
    %391 = tpu.concatenate %336, %354, %372, %390 in 1 : vector<8x8xf32>, vector<8x8xf32>, vector<8x8xf32>, vector<8x8xf32> -> vector<8x32xf32>
    %392 = vector.extract_strided_slice %313 {offsets = [8, 0], sizes = [8, 32], strides = [1, 1]} : vector<16x32xf32> to vector<8x32xf32>
    %393 = vector.extract_strided_slice %314 {offsets = [8, 0], sizes = [8, 32], strides = [1, 1]} : vector<16x32xf32> to vector<8x32xf32>
    %394 = vector.extract_strided_slice %315 {offsets = [8, 0], sizes = [8, 32], strides = [1, 1]} : vector<16x32xf32> to vector<8x32xf32>
    %395 = vector.extract_strided_slice %392 {offsets = [0, 0], sizes = [8, 8], strides = [1, 1]} : vector<8x32xf32> to vector<8x8xf32>
    %396 = vector.extract_strided_slice %393 {offsets = [0, 0], sizes = [8, 8], strides = [1, 1]} : vector<8x32xf32> to vector<8x8xf32>
    %cst_132 = arith.constant dense<0.000000e+00> : vector<8x8xf32>
    %397 = tpu.matmul %395, %396, %cst_132 {dimension_numbers = #tpu.dot_dimension_numbers<[1], [1], [0], [0], [0, 0, 1, 0], [], []>} : vector<8x8xf32>, vector<8x8xf32>, vector<8x8xf32> -> vector<8x8xf32>
    %cst_133 = arith.constant -1.000000e+09 : f32
    %398 = vector.shape_cast %76 : vector<1x8xi1> to vector<1x8xi1>
    %399 = vector.broadcast %398 : vector<1x8xi1> to vector<8x8xi1>
    %400 = vector.broadcast %cst_133 : f32 to vector<8x8xf32>
    %401 = arith.select %399, %397, %400 : vector<8x8xi1>, vector<8x8xf32>
    %cst_134 = arith.constant dense<0xFF800000> : vector<8xf32>
    %402 = vector.multi_reduction <maximumf>, %401, %cst_134 [1] : vector<8x8xf32> to vector<8xf32>
    %403 = vector.shape_cast %402 : vector<8xf32> to vector<8x1xf32>
    %404 = vector.broadcast %403 : vector<8x1xf32> to vector<8x8xf32>
    %405 = arith.subf %401, %404 : vector<8x8xf32>
    %406 = math.exp %405 : vector<8x8xf32>
    %cst_135 = arith.constant dense<0.000000e+00> : vector<8xf32>
    %407 = vector.multi_reduction <add>, %406, %cst_135 [1] : vector<8x8xf32> to vector<8xf32>
    %408 = vector.shape_cast %407 : vector<8xf32> to vector<8x1xf32>
    %409 = vector.broadcast %408 : vector<8x1xf32> to vector<8x8xf32>
    %410 = arith.divf %406, %409 : vector<8x8xf32>
    %411 = vector.extract_strided_slice %394 {offsets = [0, 0], sizes = [8, 8], strides = [1, 1]} : vector<8x32xf32> to vector<8x8xf32>
    %cst_136 = arith.constant dense<0.000000e+00> : vector<8x8xf32>
    %412 = tpu.matmul %410, %411, %cst_136 {dimension_numbers = #tpu.dot_dimension_numbers<[1], [0], [0], [1], [0, 0, 1, 1], [], []>} : vector<8x8xf32>, vector<8x8xf32>, vector<8x8xf32> -> vector<8x8xf32>
    %413 = vector.extract_strided_slice %392 {offsets = [0, 8], sizes = [8, 8], strides = [1, 1]} : vector<8x32xf32> to vector<8x8xf32>
    %414 = vector.extract_strided_slice %393 {offsets = [0, 8], sizes = [8, 8], strides = [1, 1]} : vector<8x32xf32> to vector<8x8xf32>
    %cst_137 = arith.constant dense<0.000000e+00> : vector<8x8xf32>
    %415 = tpu.matmul %413, %414, %cst_137 {dimension_numbers = #tpu.dot_dimension_numbers<[1], [1], [0], [0], [0, 0, 1, 0], [], []>} : vector<8x8xf32>, vector<8x8xf32>, vector<8x8xf32> -> vector<8x8xf32>
    %cst_138 = arith.constant -1.000000e+09 : f32
    %416 = vector.shape_cast %76 : vector<1x8xi1> to vector<1x8xi1>
    %417 = vector.broadcast %416 : vector<1x8xi1> to vector<8x8xi1>
    %418 = vector.broadcast %cst_138 : f32 to vector<8x8xf32>
    %419 = arith.select %417, %415, %418 : vector<8x8xi1>, vector<8x8xf32>
    %cst_139 = arith.constant dense<0xFF800000> : vector<8xf32>
    %420 = vector.multi_reduction <maximumf>, %419, %cst_139 [1] : vector<8x8xf32> to vector<8xf32>
    %421 = vector.shape_cast %420 : vector<8xf32> to vector<8x1xf32>
    %422 = vector.broadcast %421 : vector<8x1xf32> to vector<8x8xf32>
    %423 = arith.subf %419, %422 : vector<8x8xf32>
    %424 = math.exp %423 : vector<8x8xf32>
    %cst_140 = arith.constant dense<0.000000e+00> : vector<8xf32>
    %425 = vector.multi_reduction <add>, %424, %cst_140 [1] : vector<8x8xf32> to vector<8xf32>
    %426 = vector.shape_cast %425 : vector<8xf32> to vector<8x1xf32>
    %427 = vector.broadcast %426 : vector<8x1xf32> to vector<8x8xf32>
    %428 = arith.divf %424, %427 : vector<8x8xf32>
    %429 = vector.extract_strided_slice %394 {offsets = [0, 8], sizes = [8, 8], strides = [1, 1]} : vector<8x32xf32> to vector<8x8xf32>
    %cst_141 = arith.constant dense<0.000000e+00> : vector<8x8xf32>
    %430 = tpu.matmul %428, %429, %cst_141 {dimension_numbers = #tpu.dot_dimension_numbers<[1], [0], [0], [1], [0, 0, 1, 1], [], []>} : vector<8x8xf32>, vector<8x8xf32>, vector<8x8xf32> -> vector<8x8xf32>
    %431 = vector.extract_strided_slice %392 {offsets = [0, 16], sizes = [8, 8], strides = [1, 1]} : vector<8x32xf32> to vector<8x8xf32>
    %432 = vector.extract_strided_slice %393 {offsets = [0, 16], sizes = [8, 8], strides = [1, 1]} : vector<8x32xf32> to vector<8x8xf32>
    %cst_142 = arith.constant dense<0.000000e+00> : vector<8x8xf32>
    %433 = tpu.matmul %431, %432, %cst_142 {dimension_numbers = #tpu.dot_dimension_numbers<[1], [1], [0], [0], [0, 0, 1, 0], [], []>} : vector<8x8xf32>, vector<8x8xf32>, vector<8x8xf32> -> vector<8x8xf32>
    %cst_143 = arith.constant -1.000000e+09 : f32
    %434 = vector.shape_cast %76 : vector<1x8xi1> to vector<1x8xi1>
    %435 = vector.broadcast %434 : vector<1x8xi1> to vector<8x8xi1>
    %436 = vector.broadcast %cst_143 : f32 to vector<8x8xf32>
    %437 = arith.select %435, %433, %436 : vector<8x8xi1>, vector<8x8xf32>
    %cst_144 = arith.constant dense<0xFF800000> : vector<8xf32>
    %438 = vector.multi_reduction <maximumf>, %437, %cst_144 [1] : vector<8x8xf32> to vector<8xf32>
    %439 = vector.shape_cast %438 : vector<8xf32> to vector<8x1xf32>
    %440 = vector.broadcast %439 : vector<8x1xf32> to vector<8x8xf32>
    %441 = arith.subf %437, %440 : vector<8x8xf32>
    %442 = math.exp %441 : vector<8x8xf32>
    %cst_145 = arith.constant dense<0.000000e+00> : vector<8xf32>
    %443 = vector.multi_reduction <add>, %442, %cst_145 [1] : vector<8x8xf32> to vector<8xf32>
    %444 = vector.shape_cast %443 : vector<8xf32> to vector<8x1xf32>
    %445 = vector.broadcast %444 : vector<8x1xf32> to vector<8x8xf32>
    %446 = arith.divf %442, %445 : vector<8x8xf32>
    %447 = vector.extract_strided_slice %394 {offsets = [0, 16], sizes = [8, 8], strides = [1, 1]} : vector<8x32xf32> to vector<8x8xf32>
    %cst_146 = arith.constant dense<0.000000e+00> : vector<8x8xf32>
    %448 = tpu.matmul %446, %447, %cst_146 {dimension_numbers = #tpu.dot_dimension_numbers<[1], [0], [0], [1], [0, 0, 1, 1], [], []>} : vector<8x8xf32>, vector<8x8xf32>, vector<8x8xf32> -> vector<8x8xf32>
    %449 = vector.extract_strided_slice %392 {offsets = [0, 24], sizes = [8, 8], strides = [1, 1]} : vector<8x32xf32> to vector<8x8xf32>
    %450 = vector.extract_strided_slice %393 {offsets = [0, 24], sizes = [8, 8], strides = [1, 1]} : vector<8x32xf32> to vector<8x8xf32>
    %cst_147 = arith.constant dense<0.000000e+00> : vector<8x8xf32>
    %451 = tpu.matmul %449, %450, %cst_147 {dimension_numbers = #tpu.dot_dimension_numbers<[1], [1], [0], [0], [0, 0, 1, 0], [], []>} : vector<8x8xf32>, vector<8x8xf32>, vector<8x8xf32> -> vector<8x8xf32>
    %cst_148 = arith.constant -1.000000e+09 : f32
    %452 = vector.shape_cast %76 : vector<1x8xi1> to vector<1x8xi1>
    %453 = vector.broadcast %452 : vector<1x8xi1> to vector<8x8xi1>
    %454 = vector.broadcast %cst_148 : f32 to vector<8x8xf32>
    %455 = arith.select %453, %451, %454 : vector<8x8xi1>, vector<8x8xf32>
    %cst_149 = arith.constant dense<0xFF800000> : vector<8xf32>
    %456 = vector.multi_reduction <maximumf>, %455, %cst_149 [1] : vector<8x8xf32> to vector<8xf32>
    %457 = vector.shape_cast %456 : vector<8xf32> to vector<8x1xf32>
    %458 = vector.broadcast %457 : vector<8x1xf32> to vector<8x8xf32>
    %459 = arith.subf %455, %458 : vector<8x8xf32>
    %460 = math.exp %459 : vector<8x8xf32>
    %cst_150 = arith.constant dense<0.000000e+00> : vector<8xf32>
    %461 = vector.multi_reduction <add>, %460, %cst_150 [1] : vector<8x8xf32> to vector<8xf32>
    %462 = vector.shape_cast %461 : vector<8xf32> to vector<8x1xf32>
    %463 = vector.broadcast %462 : vector<8x1xf32> to vector<8x8xf32>
    %464 = arith.divf %460, %463 : vector<8x8xf32>
    %465 = vector.extract_strided_slice %394 {offsets = [0, 24], sizes = [8, 8], strides = [1, 1]} : vector<8x32xf32> to vector<8x8xf32>
    %cst_151 = arith.constant dense<0.000000e+00> : vector<8x8xf32>
    %466 = tpu.matmul %464, %465, %cst_151 {dimension_numbers = #tpu.dot_dimension_numbers<[1], [0], [0], [1], [0, 0, 1, 1], [], []>} : vector<8x8xf32>, vector<8x8xf32>, vector<8x8xf32> -> vector<8x8xf32>
    %467 = tpu.concatenate %412, %430, %448, %466 in 1 : vector<8x8xf32>, vector<8x8xf32>, vector<8x8xf32>, vector<8x8xf32> -> vector<8x32xf32>
    %468 = tpu.concatenate %391, %467 in 0 : vector<8x32xf32>, vector<8x32xf32> -> vector<16x32xf32>
    %cst_152 = arith.constant dense<0.000000e+00> : vector<16x32xf32>
    %469 = tpu.matmul %468, %311, %cst_152 {dimension_numbers = #tpu.dot_dimension_numbers<[1], [0], [0], [1], [0, 0, 1, 1], [], []>} : vector<16x32xf32>, vector<32x32xf32>, vector<16x32xf32> -> vector<16x32xf32>
    %470 = arith.addf %469, %307 : vector<16x32xf32>
    %cst_153 = arith.constant dense<0.000000e+00> : vector<16xf32>
    %471 = vector.multi_reduction <add>, %470, %cst_153 [1] : vector<16x32xf32> to vector<16xf32>
    %472 = vector.shape_cast %471 : vector<16xf32> to vector<16x1xf32>
    %cst_154 = arith.constant 3.200000e+01 : f32
    %473 = vector.broadcast %cst_154 : f32 to vector<16x1xf32>
    %474 = arith.divf %472, %473 : vector<16x1xf32>
    %475 = vector.broadcast %474 : vector<16x1xf32> to vector<16x32xf32>
    %476 = arith.subf %470, %475 : vector<16x32xf32>
    %477 = arith.mulf %476, %476 : vector<16x32xf32>
    %cst_155 = arith.constant dense<0.000000e+00> : vector<16xf32>
    %478 = vector.multi_reduction <add>, %477, %cst_155 [1] : vector<16x32xf32> to vector<16xf32>
    %479 = vector.shape_cast %478 : vector<16xf32> to vector<16x1xf32>
    %cst_156 = arith.constant 3.200000e+01 : f32
    %480 = vector.broadcast %cst_156 : f32 to vector<16x1xf32>
    %481 = arith.divf %479, %480 : vector<16x1xf32>
    %482 = vector.broadcast %474 : vector<16x1xf32> to vector<16x32xf32>
    %483 = arith.subf %470, %482 : vector<16x32xf32>
    %cst_157 = arith.constant 9.99999997E-7 : f32
    %484 = vector.broadcast %cst_157 : f32 to vector<16x1xf32>
    %485 = arith.addf %481, %484 : vector<16x1xf32>
    %486 = math.rsqrt %485 : vector<16x1xf32>
    %487 = vector.broadcast %486 : vector<16x1xf32> to vector<16x32xf32>
    %488 = arith.mulf %483, %487 : vector<16x32xf32>
    %c9 = arith.constant 9 : index
    %c0_158 = arith.constant 0 : index
    %489 = vector.load %arg3[%c9, %c0_158] : memref<28x32xf32, #tpu.memory_space<vmem>>, vector<1x32xf32>
    %490 = vector.broadcast %489 : vector<1x32xf32> to vector<16x32xf32>
    %491 = arith.mulf %488, %490 : vector<16x32xf32>
    %c10 = arith.constant 10 : index
    %c0_159 = arith.constant 0 : index
    %492 = vector.load %arg3[%c10, %c0_159] : memref<28x32xf32, #tpu.memory_space<vmem>>, vector<1x32xf32>
    %493 = vector.broadcast %492 : vector<1x32xf32> to vector<16x32xf32>
    %494 = arith.addf %491, %493 : vector<16x32xf32>
    %c1_160 = arith.constant 1 : index
    %c0_161 = arith.constant 0 : index
    %c0_162 = arith.constant 0 : index
    %495 = vector.load %arg7[%c1_160, %c0_161, %c0_162] : memref<4x32x64xf32, #tpu.memory_space<vmem>>, vector<1x32x64xf32>
    %496 = vector.shape_cast %495 : vector<1x32x64xf32> to vector<32x64xf32>
    %c1_163 = arith.constant 1 : index
    %c0_164 = arith.constant 0 : index
    %c0_165 = arith.constant 0 : index
    %497 = vector.load %arg8[%c1_163, %c0_164, %c0_165] : memref<4x64x32xf32, #tpu.memory_space<vmem>>, vector<1x64x32xf32>
    %498 = vector.shape_cast %497 : vector<1x64x32xf32> to vector<64x32xf32>
    %cst_166 = arith.constant dense<0.000000e+00> : vector<16x64xf32>
    %499 = tpu.matmul %494, %496, %cst_166 {dimension_numbers = #tpu.dot_dimension_numbers<[1], [0], [0], [1], [0, 0, 1, 1], [], []>} : vector<16x32xf32>, vector<32x64xf32>, vector<16x64xf32> -> vector<16x64xf32>
    %c1_167 = arith.constant 1 : index
    %c0_168 = arith.constant 0 : index
    %500 = vector.load %arg4[%c1_167, %c0_168] : memref<4x64xf32, #tpu.memory_space<vmem>>, vector<1x64xf32>
    %501 = vector.broadcast %500 : vector<1x64xf32> to vector<16x64xf32>
    %502 = arith.addf %499, %501 : vector<16x64xf32>
    %cst_169 = arith.constant 0.000000e+00 : f32
    %503 = vector.broadcast %cst_169 : f32 to vector<16x64xf32>
    %504 = arith.maximumf %502, %503 : vector<16x64xf32>
    %cst_170 = arith.constant dense<0.000000e+00> : vector<16x32xf32>
    %505 = tpu.matmul %504, %498, %cst_170 {dimension_numbers = #tpu.dot_dimension_numbers<[1], [0], [0], [1], [0, 0, 1, 1], [], []>} : vector<16x64xf32>, vector<64x32xf32>, vector<16x32xf32> -> vector<16x32xf32>
    %c11 = arith.constant 11 : index
    %c0_171 = arith.constant 0 : index
    %506 = vector.load %arg3[%c11, %c0_171] : memref<28x32xf32, #tpu.memory_space<vmem>>, vector<1x32xf32>
    %507 = vector.broadcast %506 : vector<1x32xf32> to vector<16x32xf32>
    %508 = arith.addf %505, %507 : vector<16x32xf32>
    %509 = arith.addf %508, %494 : vector<16x32xf32>
    %cst_172 = arith.constant dense<0.000000e+00> : vector<16xf32>
    %510 = vector.multi_reduction <add>, %509, %cst_172 [1] : vector<16x32xf32> to vector<16xf32>
    %511 = vector.shape_cast %510 : vector<16xf32> to vector<16x1xf32>
    %cst_173 = arith.constant 3.200000e+01 : f32
    %512 = vector.broadcast %cst_173 : f32 to vector<16x1xf32>
    %513 = arith.divf %511, %512 : vector<16x1xf32>
    %514 = vector.broadcast %513 : vector<16x1xf32> to vector<16x32xf32>
    %515 = arith.subf %509, %514 : vector<16x32xf32>
    %516 = arith.mulf %515, %515 : vector<16x32xf32>
    %cst_174 = arith.constant dense<0.000000e+00> : vector<16xf32>
    %517 = vector.multi_reduction <add>, %516, %cst_174 [1] : vector<16x32xf32> to vector<16xf32>
    %518 = vector.shape_cast %517 : vector<16xf32> to vector<16x1xf32>
    %cst_175 = arith.constant 3.200000e+01 : f32
    %519 = vector.broadcast %cst_175 : f32 to vector<16x1xf32>
    %520 = arith.divf %518, %519 : vector<16x1xf32>
    %521 = vector.broadcast %513 : vector<16x1xf32> to vector<16x32xf32>
    %522 = arith.subf %509, %521 : vector<16x32xf32>
    %cst_176 = arith.constant 9.99999997E-7 : f32
    %523 = vector.broadcast %cst_176 : f32 to vector<16x1xf32>
    %524 = arith.addf %520, %523 : vector<16x1xf32>
    %525 = math.rsqrt %524 : vector<16x1xf32>
    %526 = vector.broadcast %525 : vector<16x1xf32> to vector<16x32xf32>
    %527 = arith.mulf %522, %526 : vector<16x32xf32>
    %c12 = arith.constant 12 : index
    %c0_177 = arith.constant 0 : index
    %528 = vector.load %arg3[%c12, %c0_177] : memref<28x32xf32, #tpu.memory_space<vmem>>, vector<1x32xf32>
    %529 = vector.broadcast %528 : vector<1x32xf32> to vector<16x32xf32>
    %530 = arith.mulf %527, %529 : vector<16x32xf32>
    %c13 = arith.constant 13 : index
    %c0_178 = arith.constant 0 : index
    %531 = vector.load %arg3[%c13, %c0_178] : memref<28x32xf32, #tpu.memory_space<vmem>>, vector<1x32xf32>
    %532 = vector.broadcast %531 : vector<1x32xf32> to vector<16x32xf32>
    %533 = arith.addf %530, %532 : vector<16x32xf32>
    %c2_179 = arith.constant 2 : index
    %c0_180 = arith.constant 0 : index
    %c0_181 = arith.constant 0 : index
    %534 = vector.load %arg5[%c2_179, %c0_180, %c0_181] : memref<6x32x96xf32, #tpu.memory_space<vmem>>, vector<1x32x96xf32>
    %535 = vector.shape_cast %534 : vector<1x32x96xf32> to vector<32x96xf32>
    %c2_182 = arith.constant 2 : index
    %c0_183 = arith.constant 0 : index
    %c0_184 = arith.constant 0 : index
    %536 = vector.load %arg6[%c2_182, %c0_183, %c0_184] : memref<6x32x32xf32, #tpu.memory_space<vmem>>, vector<1x32x32xf32>
    %537 = vector.shape_cast %536 : vector<1x32x32xf32> to vector<32x32xf32>
    %cst_185 = arith.constant dense<0.000000e+00> : vector<14x96xf32>
    %538 = tpu.matmul %62, %535, %cst_185 {dimension_numbers = #tpu.dot_dimension_numbers<[1], [0], [0], [1], [0, 0, 1, 1], [], []>} : vector<14x32xf32>, vector<32x96xf32>, vector<14x96xf32> -> vector<14x96xf32>
    %539 = vector.extract_strided_slice %538 {offsets = [0, 0], sizes = [14, 32], strides = [1, 1]} : vector<14x96xf32> to vector<14x32xf32>
    %540 = vector.extract_strided_slice %538 {offsets = [0, 32], sizes = [14, 32], strides = [1, 1]} : vector<14x96xf32> to vector<14x32xf32>
    %541 = vector.extract_strided_slice %538 {offsets = [0, 64], sizes = [14, 32], strides = [1, 1]} : vector<14x96xf32> to vector<14x32xf32>
    %542 = vector.extract_strided_slice %539 {offsets = [0, 0], sizes = [7, 32], strides = [1, 1]} : vector<14x32xf32> to vector<7x32xf32>
    %543 = vector.extract_strided_slice %540 {offsets = [0, 0], sizes = [7, 32], strides = [1, 1]} : vector<14x32xf32> to vector<7x32xf32>
    %544 = vector.extract_strided_slice %541 {offsets = [0, 0], sizes = [7, 32], strides = [1, 1]} : vector<14x32xf32> to vector<7x32xf32>
    %545 = vector.extract_strided_slice %542 {offsets = [0, 0], sizes = [7, 8], strides = [1, 1]} : vector<7x32xf32> to vector<7x8xf32>
    %546 = vector.extract_strided_slice %543 {offsets = [0, 0], sizes = [7, 8], strides = [1, 1]} : vector<7x32xf32> to vector<7x8xf32>
    %cst_186 = arith.constant dense<0.000000e+00> : vector<7x7xf32>
    %547 = tpu.matmul %545, %546, %cst_186 {dimension_numbers = #tpu.dot_dimension_numbers<[1], [1], [0], [0], [0, 0, 1, 0], [], []>} : vector<7x8xf32>, vector<7x8xf32>, vector<7x7xf32> -> vector<7x7xf32>
    %cst_187 = arith.constant -1.000000e+09 : f32
    %548 = vector.broadcast %cst_187 : f32 to vector<7x7xf32>
    %549 = arith.select %73, %547, %548 : vector<7x7xi1>, vector<7x7xf32>
    %cst_188 = arith.constant dense<0xFF800000> : vector<7xf32>
    %550 = vector.multi_reduction <maximumf>, %549, %cst_188 [1] : vector<7x7xf32> to vector<7xf32>
    %551 = vector.shape_cast %550 : vector<7xf32> to vector<7x1xf32>
    %552 = vector.broadcast %551 : vector<7x1xf32> to vector<7x7xf32>
    %553 = arith.subf %549, %552 : vector<7x7xf32>
    %554 = math.exp %553 : vector<7x7xf32>
    %cst_189 = arith.constant dense<0.000000e+00> : vector<7xf32>
    %555 = vector.multi_reduction <add>, %554, %cst_189 [1] : vector<7x7xf32> to vector<7xf32>
    %556 = vector.shape_cast %555 : vector<7xf32> to vector<7x1xf32>
    %557 = vector.broadcast %556 : vector<7x1xf32> to vector<7x7xf32>
    %558 = arith.divf %554, %557 : vector<7x7xf32>
    %559 = vector.extract_strided_slice %544 {offsets = [0, 0], sizes = [7, 8], strides = [1, 1]} : vector<7x32xf32> to vector<7x8xf32>
    %cst_190 = arith.constant dense<0.000000e+00> : vector<7x8xf32>
    %560 = tpu.matmul %558, %559, %cst_190 {dimension_numbers = #tpu.dot_dimension_numbers<[1], [0], [0], [1], [0, 0, 1, 1], [], []>} : vector<7x7xf32>, vector<7x8xf32>, vector<7x8xf32> -> vector<7x8xf32>
    %561 = vector.extract_strided_slice %542 {offsets = [0, 8], sizes = [7, 8], strides = [1, 1]} : vector<7x32xf32> to vector<7x8xf32>
    %562 = vector.extract_strided_slice %543 {offsets = [0, 8], sizes = [7, 8], strides = [1, 1]} : vector<7x32xf32> to vector<7x8xf32>
    %cst_191 = arith.constant dense<0.000000e+00> : vector<7x7xf32>
    %563 = tpu.matmul %561, %562, %cst_191 {dimension_numbers = #tpu.dot_dimension_numbers<[1], [1], [0], [0], [0, 0, 1, 0], [], []>} : vector<7x8xf32>, vector<7x8xf32>, vector<7x7xf32> -> vector<7x7xf32>
    %cst_192 = arith.constant -1.000000e+09 : f32
    %564 = vector.broadcast %cst_192 : f32 to vector<7x7xf32>
    %565 = arith.select %73, %563, %564 : vector<7x7xi1>, vector<7x7xf32>
    %cst_193 = arith.constant dense<0xFF800000> : vector<7xf32>
    %566 = vector.multi_reduction <maximumf>, %565, %cst_193 [1] : vector<7x7xf32> to vector<7xf32>
    %567 = vector.shape_cast %566 : vector<7xf32> to vector<7x1xf32>
    %568 = vector.broadcast %567 : vector<7x1xf32> to vector<7x7xf32>
    %569 = arith.subf %565, %568 : vector<7x7xf32>
    %570 = math.exp %569 : vector<7x7xf32>
    %cst_194 = arith.constant dense<0.000000e+00> : vector<7xf32>
    %571 = vector.multi_reduction <add>, %570, %cst_194 [1] : vector<7x7xf32> to vector<7xf32>
    %572 = vector.shape_cast %571 : vector<7xf32> to vector<7x1xf32>
    %573 = vector.broadcast %572 : vector<7x1xf32> to vector<7x7xf32>
    %574 = arith.divf %570, %573 : vector<7x7xf32>
    %575 = vector.extract_strided_slice %544 {offsets = [0, 8], sizes = [7, 8], strides = [1, 1]} : vector<7x32xf32> to vector<7x8xf32>
    %cst_195 = arith.constant dense<0.000000e+00> : vector<7x8xf32>
    %576 = tpu.matmul %574, %575, %cst_195 {dimension_numbers = #tpu.dot_dimension_numbers<[1], [0], [0], [1], [0, 0, 1, 1], [], []>} : vector<7x7xf32>, vector<7x8xf32>, vector<7x8xf32> -> vector<7x8xf32>
    %577 = vector.extract_strided_slice %542 {offsets = [0, 16], sizes = [7, 8], strides = [1, 1]} : vector<7x32xf32> to vector<7x8xf32>
    %578 = vector.extract_strided_slice %543 {offsets = [0, 16], sizes = [7, 8], strides = [1, 1]} : vector<7x32xf32> to vector<7x8xf32>
    %cst_196 = arith.constant dense<0.000000e+00> : vector<7x7xf32>
    %579 = tpu.matmul %577, %578, %cst_196 {dimension_numbers = #tpu.dot_dimension_numbers<[1], [1], [0], [0], [0, 0, 1, 0], [], []>} : vector<7x8xf32>, vector<7x8xf32>, vector<7x7xf32> -> vector<7x7xf32>
    %cst_197 = arith.constant -1.000000e+09 : f32
    %580 = vector.broadcast %cst_197 : f32 to vector<7x7xf32>
    %581 = arith.select %73, %579, %580 : vector<7x7xi1>, vector<7x7xf32>
    %cst_198 = arith.constant dense<0xFF800000> : vector<7xf32>
    %582 = vector.multi_reduction <maximumf>, %581, %cst_198 [1] : vector<7x7xf32> to vector<7xf32>
    %583 = vector.shape_cast %582 : vector<7xf32> to vector<7x1xf32>
    %584 = vector.broadcast %583 : vector<7x1xf32> to vector<7x7xf32>
    %585 = arith.subf %581, %584 : vector<7x7xf32>
    %586 = math.exp %585 : vector<7x7xf32>
    %cst_199 = arith.constant dense<0.000000e+00> : vector<7xf32>
    %587 = vector.multi_reduction <add>, %586, %cst_199 [1] : vector<7x7xf32> to vector<7xf32>
    %588 = vector.shape_cast %587 : vector<7xf32> to vector<7x1xf32>
    %589 = vector.broadcast %588 : vector<7x1xf32> to vector<7x7xf32>
    %590 = arith.divf %586, %589 : vector<7x7xf32>
    %591 = vector.extract_strided_slice %544 {offsets = [0, 16], sizes = [7, 8], strides = [1, 1]} : vector<7x32xf32> to vector<7x8xf32>
    %cst_200 = arith.constant dense<0.000000e+00> : vector<7x8xf32>
    %592 = tpu.matmul %590, %591, %cst_200 {dimension_numbers = #tpu.dot_dimension_numbers<[1], [0], [0], [1], [0, 0, 1, 1], [], []>} : vector<7x7xf32>, vector<7x8xf32>, vector<7x8xf32> -> vector<7x8xf32>
    %593 = vector.extract_strided_slice %542 {offsets = [0, 24], sizes = [7, 8], strides = [1, 1]} : vector<7x32xf32> to vector<7x8xf32>
    %594 = vector.extract_strided_slice %543 {offsets = [0, 24], sizes = [7, 8], strides = [1, 1]} : vector<7x32xf32> to vector<7x8xf32>
    %cst_201 = arith.constant dense<0.000000e+00> : vector<7x7xf32>
    %595 = tpu.matmul %593, %594, %cst_201 {dimension_numbers = #tpu.dot_dimension_numbers<[1], [1], [0], [0], [0, 0, 1, 0], [], []>} : vector<7x8xf32>, vector<7x8xf32>, vector<7x7xf32> -> vector<7x7xf32>
    %cst_202 = arith.constant -1.000000e+09 : f32
    %596 = vector.broadcast %cst_202 : f32 to vector<7x7xf32>
    %597 = arith.select %73, %595, %596 : vector<7x7xi1>, vector<7x7xf32>
    %cst_203 = arith.constant dense<0xFF800000> : vector<7xf32>
    %598 = vector.multi_reduction <maximumf>, %597, %cst_203 [1] : vector<7x7xf32> to vector<7xf32>
    %599 = vector.shape_cast %598 : vector<7xf32> to vector<7x1xf32>
    %600 = vector.broadcast %599 : vector<7x1xf32> to vector<7x7xf32>
    %601 = arith.subf %597, %600 : vector<7x7xf32>
    %602 = math.exp %601 : vector<7x7xf32>
    %cst_204 = arith.constant dense<0.000000e+00> : vector<7xf32>
    %603 = vector.multi_reduction <add>, %602, %cst_204 [1] : vector<7x7xf32> to vector<7xf32>
    %604 = vector.shape_cast %603 : vector<7xf32> to vector<7x1xf32>
    %605 = vector.broadcast %604 : vector<7x1xf32> to vector<7x7xf32>
    %606 = arith.divf %602, %605 : vector<7x7xf32>
    %607 = vector.extract_strided_slice %544 {offsets = [0, 24], sizes = [7, 8], strides = [1, 1]} : vector<7x32xf32> to vector<7x8xf32>
    %cst_205 = arith.constant dense<0.000000e+00> : vector<7x8xf32>
    %608 = tpu.matmul %606, %607, %cst_205 {dimension_numbers = #tpu.dot_dimension_numbers<[1], [0], [0], [1], [0, 0, 1, 1], [], []>} : vector<7x7xf32>, vector<7x8xf32>, vector<7x8xf32> -> vector<7x8xf32>
    %609 = tpu.concatenate %560, %576, %592, %608 in 1 : vector<7x8xf32>, vector<7x8xf32>, vector<7x8xf32>, vector<7x8xf32> -> vector<7x32xf32>
    %610 = vector.extract_strided_slice %539 {offsets = [7, 0], sizes = [7, 32], strides = [1, 1]} : vector<14x32xf32> to vector<7x32xf32>
    %611 = vector.extract_strided_slice %540 {offsets = [7, 0], sizes = [7, 32], strides = [1, 1]} : vector<14x32xf32> to vector<7x32xf32>
    %612 = vector.extract_strided_slice %541 {offsets = [7, 0], sizes = [7, 32], strides = [1, 1]} : vector<14x32xf32> to vector<7x32xf32>
    %613 = vector.extract_strided_slice %610 {offsets = [0, 0], sizes = [7, 8], strides = [1, 1]} : vector<7x32xf32> to vector<7x8xf32>
    %614 = vector.extract_strided_slice %611 {offsets = [0, 0], sizes = [7, 8], strides = [1, 1]} : vector<7x32xf32> to vector<7x8xf32>
    %cst_206 = arith.constant dense<0.000000e+00> : vector<7x7xf32>
    %615 = tpu.matmul %613, %614, %cst_206 {dimension_numbers = #tpu.dot_dimension_numbers<[1], [1], [0], [0], [0, 0, 1, 0], [], []>} : vector<7x8xf32>, vector<7x8xf32>, vector<7x7xf32> -> vector<7x7xf32>
    %cst_207 = arith.constant -1.000000e+09 : f32
    %616 = vector.broadcast %cst_207 : f32 to vector<7x7xf32>
    %617 = arith.select %81, %615, %616 : vector<7x7xi1>, vector<7x7xf32>
    %cst_208 = arith.constant dense<0xFF800000> : vector<7xf32>
    %618 = vector.multi_reduction <maximumf>, %617, %cst_208 [1] : vector<7x7xf32> to vector<7xf32>
    %619 = vector.shape_cast %618 : vector<7xf32> to vector<7x1xf32>
    %620 = vector.broadcast %619 : vector<7x1xf32> to vector<7x7xf32>
    %621 = arith.subf %617, %620 : vector<7x7xf32>
    %622 = math.exp %621 : vector<7x7xf32>
    %cst_209 = arith.constant dense<0.000000e+00> : vector<7xf32>
    %623 = vector.multi_reduction <add>, %622, %cst_209 [1] : vector<7x7xf32> to vector<7xf32>
    %624 = vector.shape_cast %623 : vector<7xf32> to vector<7x1xf32>
    %625 = vector.broadcast %624 : vector<7x1xf32> to vector<7x7xf32>
    %626 = arith.divf %622, %625 : vector<7x7xf32>
    %627 = vector.extract_strided_slice %612 {offsets = [0, 0], sizes = [7, 8], strides = [1, 1]} : vector<7x32xf32> to vector<7x8xf32>
    %cst_210 = arith.constant dense<0.000000e+00> : vector<7x8xf32>
    %628 = tpu.matmul %626, %627, %cst_210 {dimension_numbers = #tpu.dot_dimension_numbers<[1], [0], [0], [1], [0, 0, 1, 1], [], []>} : vector<7x7xf32>, vector<7x8xf32>, vector<7x8xf32> -> vector<7x8xf32>
    %629 = vector.extract_strided_slice %610 {offsets = [0, 8], sizes = [7, 8], strides = [1, 1]} : vector<7x32xf32> to vector<7x8xf32>
    %630 = vector.extract_strided_slice %611 {offsets = [0, 8], sizes = [7, 8], strides = [1, 1]} : vector<7x32xf32> to vector<7x8xf32>
    %cst_211 = arith.constant dense<0.000000e+00> : vector<7x7xf32>
    %631 = tpu.matmul %629, %630, %cst_211 {dimension_numbers = #tpu.dot_dimension_numbers<[1], [1], [0], [0], [0, 0, 1, 0], [], []>} : vector<7x8xf32>, vector<7x8xf32>, vector<7x7xf32> -> vector<7x7xf32>
    %cst_212 = arith.constant -1.000000e+09 : f32
    %632 = vector.broadcast %cst_212 : f32 to vector<7x7xf32>
    %633 = arith.select %81, %631, %632 : vector<7x7xi1>, vector<7x7xf32>
    %cst_213 = arith.constant dense<0xFF800000> : vector<7xf32>
    %634 = vector.multi_reduction <maximumf>, %633, %cst_213 [1] : vector<7x7xf32> to vector<7xf32>
    %635 = vector.shape_cast %634 : vector<7xf32> to vector<7x1xf32>
    %636 = vector.broadcast %635 : vector<7x1xf32> to vector<7x7xf32>
    %637 = arith.subf %633, %636 : vector<7x7xf32>
    %638 = math.exp %637 : vector<7x7xf32>
    %cst_214 = arith.constant dense<0.000000e+00> : vector<7xf32>
    %639 = vector.multi_reduction <add>, %638, %cst_214 [1] : vector<7x7xf32> to vector<7xf32>
    %640 = vector.shape_cast %639 : vector<7xf32> to vector<7x1xf32>
    %641 = vector.broadcast %640 : vector<7x1xf32> to vector<7x7xf32>
    %642 = arith.divf %638, %641 : vector<7x7xf32>
    %643 = vector.extract_strided_slice %612 {offsets = [0, 8], sizes = [7, 8], strides = [1, 1]} : vector<7x32xf32> to vector<7x8xf32>
    %cst_215 = arith.constant dense<0.000000e+00> : vector<7x8xf32>
    %644 = tpu.matmul %642, %643, %cst_215 {dimension_numbers = #tpu.dot_dimension_numbers<[1], [0], [0], [1], [0, 0, 1, 1], [], []>} : vector<7x7xf32>, vector<7x8xf32>, vector<7x8xf32> -> vector<7x8xf32>
    %645 = vector.extract_strided_slice %610 {offsets = [0, 16], sizes = [7, 8], strides = [1, 1]} : vector<7x32xf32> to vector<7x8xf32>
    %646 = vector.extract_strided_slice %611 {offsets = [0, 16], sizes = [7, 8], strides = [1, 1]} : vector<7x32xf32> to vector<7x8xf32>
    %cst_216 = arith.constant dense<0.000000e+00> : vector<7x7xf32>
    %647 = tpu.matmul %645, %646, %cst_216 {dimension_numbers = #tpu.dot_dimension_numbers<[1], [1], [0], [0], [0, 0, 1, 0], [], []>} : vector<7x8xf32>, vector<7x8xf32>, vector<7x7xf32> -> vector<7x7xf32>
    %cst_217 = arith.constant -1.000000e+09 : f32
    %648 = vector.broadcast %cst_217 : f32 to vector<7x7xf32>
    %649 = arith.select %81, %647, %648 : vector<7x7xi1>, vector<7x7xf32>
    %cst_218 = arith.constant dense<0xFF800000> : vector<7xf32>
    %650 = vector.multi_reduction <maximumf>, %649, %cst_218 [1] : vector<7x7xf32> to vector<7xf32>
    %651 = vector.shape_cast %650 : vector<7xf32> to vector<7x1xf32>
    %652 = vector.broadcast %651 : vector<7x1xf32> to vector<7x7xf32>
    %653 = arith.subf %649, %652 : vector<7x7xf32>
    %654 = math.exp %653 : vector<7x7xf32>
    %cst_219 = arith.constant dense<0.000000e+00> : vector<7xf32>
    %655 = vector.multi_reduction <add>, %654, %cst_219 [1] : vector<7x7xf32> to vector<7xf32>
    %656 = vector.shape_cast %655 : vector<7xf32> to vector<7x1xf32>
    %657 = vector.broadcast %656 : vector<7x1xf32> to vector<7x7xf32>
    %658 = arith.divf %654, %657 : vector<7x7xf32>
    %659 = vector.extract_strided_slice %612 {offsets = [0, 16], sizes = [7, 8], strides = [1, 1]} : vector<7x32xf32> to vector<7x8xf32>
    %cst_220 = arith.constant dense<0.000000e+00> : vector<7x8xf32>
    %660 = tpu.matmul %658, %659, %cst_220 {dimension_numbers = #tpu.dot_dimension_numbers<[1], [0], [0], [1], [0, 0, 1, 1], [], []>} : vector<7x7xf32>, vector<7x8xf32>, vector<7x8xf32> -> vector<7x8xf32>
    %661 = vector.extract_strided_slice %610 {offsets = [0, 24], sizes = [7, 8], strides = [1, 1]} : vector<7x32xf32> to vector<7x8xf32>
    %662 = vector.extract_strided_slice %611 {offsets = [0, 24], sizes = [7, 8], strides = [1, 1]} : vector<7x32xf32> to vector<7x8xf32>
    %cst_221 = arith.constant dense<0.000000e+00> : vector<7x7xf32>
    %663 = tpu.matmul %661, %662, %cst_221 {dimension_numbers = #tpu.dot_dimension_numbers<[1], [1], [0], [0], [0, 0, 1, 0], [], []>} : vector<7x8xf32>, vector<7x8xf32>, vector<7x7xf32> -> vector<7x7xf32>
    %cst_222 = arith.constant -1.000000e+09 : f32
    %664 = vector.broadcast %cst_222 : f32 to vector<7x7xf32>
    %665 = arith.select %81, %663, %664 : vector<7x7xi1>, vector<7x7xf32>
    %cst_223 = arith.constant dense<0xFF800000> : vector<7xf32>
    %666 = vector.multi_reduction <maximumf>, %665, %cst_223 [1] : vector<7x7xf32> to vector<7xf32>
    %667 = vector.shape_cast %666 : vector<7xf32> to vector<7x1xf32>
    %668 = vector.broadcast %667 : vector<7x1xf32> to vector<7x7xf32>
    %669 = arith.subf %665, %668 : vector<7x7xf32>
    %670 = math.exp %669 : vector<7x7xf32>
    %cst_224 = arith.constant dense<0.000000e+00> : vector<7xf32>
    %671 = vector.multi_reduction <add>, %670, %cst_224 [1] : vector<7x7xf32> to vector<7xf32>
    %672 = vector.shape_cast %671 : vector<7xf32> to vector<7x1xf32>
    %673 = vector.broadcast %672 : vector<7x1xf32> to vector<7x7xf32>
    %674 = arith.divf %670, %673 : vector<7x7xf32>
    %675 = vector.extract_strided_slice %612 {offsets = [0, 24], sizes = [7, 8], strides = [1, 1]} : vector<7x32xf32> to vector<7x8xf32>
    %cst_225 = arith.constant dense<0.000000e+00> : vector<7x8xf32>
    %676 = tpu.matmul %674, %675, %cst_225 {dimension_numbers = #tpu.dot_dimension_numbers<[1], [0], [0], [1], [0, 0, 1, 1], [], []>} : vector<7x7xf32>, vector<7x8xf32>, vector<7x8xf32> -> vector<7x8xf32>
    %677 = tpu.concatenate %628, %644, %660, %676 in 1 : vector<7x8xf32>, vector<7x8xf32>, vector<7x8xf32>, vector<7x8xf32> -> vector<7x32xf32>
    %678 = tpu.concatenate %609, %677 in 0 : vector<7x32xf32>, vector<7x32xf32> -> vector<14x32xf32>
    %cst_226 = arith.constant dense<0.000000e+00> : vector<14x32xf32>
    %679 = tpu.matmul %678, %537, %cst_226 {dimension_numbers = #tpu.dot_dimension_numbers<[1], [0], [0], [1], [0, 0, 1, 1], [], []>} : vector<14x32xf32>, vector<32x32xf32>, vector<14x32xf32> -> vector<14x32xf32>
    %680 = arith.addf %679, %62 : vector<14x32xf32>
    %cst_227 = arith.constant dense<0.000000e+00> : vector<14xf32>
    %681 = vector.multi_reduction <add>, %680, %cst_227 [1] : vector<14x32xf32> to vector<14xf32>
    %682 = vector.shape_cast %681 : vector<14xf32> to vector<14x1xf32>
    %cst_228 = arith.constant 3.200000e+01 : f32
    %683 = vector.broadcast %cst_228 : f32 to vector<14x1xf32>
    %684 = arith.divf %682, %683 : vector<14x1xf32>
    %685 = vector.broadcast %684 : vector<14x1xf32> to vector<14x32xf32>
    %686 = arith.subf %680, %685 : vector<14x32xf32>
    %687 = arith.mulf %686, %686 : vector<14x32xf32>
    %cst_229 = arith.constant dense<0.000000e+00> : vector<14xf32>
    %688 = vector.multi_reduction <add>, %687, %cst_229 [1] : vector<14x32xf32> to vector<14xf32>
    %689 = vector.shape_cast %688 : vector<14xf32> to vector<14x1xf32>
    %cst_230 = arith.constant 3.200000e+01 : f32
    %690 = vector.broadcast %cst_230 : f32 to vector<14x1xf32>
    %691 = arith.divf %689, %690 : vector<14x1xf32>
    %692 = vector.broadcast %684 : vector<14x1xf32> to vector<14x32xf32>
    %693 = arith.subf %680, %692 : vector<14x32xf32>
    %cst_231 = arith.constant 9.99999997E-7 : f32
    %694 = vector.broadcast %cst_231 : f32 to vector<14x1xf32>
    %695 = arith.addf %691, %694 : vector<14x1xf32>
    %696 = math.rsqrt %695 : vector<14x1xf32>
    %697 = vector.broadcast %696 : vector<14x1xf32> to vector<14x32xf32>
    %698 = arith.mulf %693, %697 : vector<14x32xf32>
    %c14 = arith.constant 14 : index
    %c0_232 = arith.constant 0 : index
    %699 = vector.load %arg3[%c14, %c0_232] : memref<28x32xf32, #tpu.memory_space<vmem>>, vector<1x32xf32>
    %700 = vector.broadcast %699 : vector<1x32xf32> to vector<14x32xf32>
    %701 = arith.mulf %698, %700 : vector<14x32xf32>
    %c15 = arith.constant 15 : index
    %c0_233 = arith.constant 0 : index
    %702 = vector.load %arg3[%c15, %c0_233] : memref<28x32xf32, #tpu.memory_space<vmem>>, vector<1x32xf32>
    %703 = vector.broadcast %702 : vector<1x32xf32> to vector<14x32xf32>
    %704 = arith.addf %701, %703 : vector<14x32xf32>
    %c4_234 = arith.constant 4 : index
    %c0_235 = arith.constant 0 : index
    %c0_236 = arith.constant 0 : index
    %705 = vector.load %arg5[%c4_234, %c0_235, %c0_236] : memref<6x32x96xf32, #tpu.memory_space<vmem>>, vector<1x32x96xf32>
    %706 = vector.shape_cast %705 : vector<1x32x96xf32> to vector<32x96xf32>
    %c4_237 = arith.constant 4 : index
    %c0_238 = arith.constant 0 : index
    %c0_239 = arith.constant 0 : index
    %707 = vector.load %arg6[%c4_237, %c0_238, %c0_239] : memref<6x32x32xf32, #tpu.memory_space<vmem>>, vector<1x32x32xf32>
    %708 = vector.shape_cast %707 : vector<1x32x32xf32> to vector<32x32xf32>
    %709 = vector.extract_strided_slice %706 {offsets = [0, 0], sizes = [32, 32], strides = [1, 1]} : vector<32x96xf32> to vector<32x32xf32>
    %cst_240 = arith.constant dense<0.000000e+00> : vector<14x32xf32>
    %710 = tpu.matmul %704, %709, %cst_240 {dimension_numbers = #tpu.dot_dimension_numbers<[1], [0], [0], [1], [0, 0, 1, 1], [], []>} : vector<14x32xf32>, vector<32x32xf32>, vector<14x32xf32> -> vector<14x32xf32>
    %711 = vector.extract_strided_slice %706 {offsets = [0, 32], sizes = [32, 64], strides = [1, 1]} : vector<32x96xf32> to vector<32x64xf32>
    %cst_241 = arith.constant dense<0.000000e+00> : vector<16x64xf32>
    %712 = tpu.matmul %533, %711, %cst_241 {dimension_numbers = #tpu.dot_dimension_numbers<[1], [0], [0], [1], [0, 0, 1, 1], [], []>} : vector<16x32xf32>, vector<32x64xf32>, vector<16x64xf32> -> vector<16x64xf32>
    %713 = vector.extract_strided_slice %712 {offsets = [0, 0], sizes = [16, 32], strides = [1, 1]} : vector<16x64xf32> to vector<16x32xf32>
    %714 = vector.extract_strided_slice %712 {offsets = [0, 32], sizes = [16, 32], strides = [1, 1]} : vector<16x64xf32> to vector<16x32xf32>
    %715 = vector.extract_strided_slice %710 {offsets = [0, 0], sizes = [7, 32], strides = [1, 1]} : vector<14x32xf32> to vector<7x32xf32>
    %716 = vector.extract_strided_slice %713 {offsets = [0, 0], sizes = [8, 32], strides = [1, 1]} : vector<16x32xf32> to vector<8x32xf32>
    %717 = vector.extract_strided_slice %714 {offsets = [0, 0], sizes = [8, 32], strides = [1, 1]} : vector<16x32xf32> to vector<8x32xf32>
    %718 = vector.extract_strided_slice %715 {offsets = [0, 0], sizes = [7, 8], strides = [1, 1]} : vector<7x32xf32> to vector<7x8xf32>
    %719 = vector.extract_strided_slice %716 {offsets = [0, 0], sizes = [8, 8], strides = [1, 1]} : vector<8x32xf32> to vector<8x8xf32>
    %cst_242 = arith.constant dense<0.000000e+00> : vector<7x8xf32>
    %720 = tpu.matmul %718, %719, %cst_242 {dimension_numbers = #tpu.dot_dimension_numbers<[1], [1], [0], [0], [0, 0, 1, 0], [], []>} : vector<7x8xf32>, vector<8x8xf32>, vector<7x8xf32> -> vector<7x8xf32>
    %cst_243 = arith.constant -1.000000e+09 : f32
    %721 = vector.shape_cast %68 : vector<1x8xi1> to vector<1x8xi1>
    %722 = vector.broadcast %721 : vector<1x8xi1> to vector<7x8xi1>
    %723 = vector.broadcast %cst_243 : f32 to vector<7x8xf32>
    %724 = arith.select %722, %720, %723 : vector<7x8xi1>, vector<7x8xf32>
    %cst_244 = arith.constant dense<0xFF800000> : vector<7xf32>
    %725 = vector.multi_reduction <maximumf>, %724, %cst_244 [1] : vector<7x8xf32> to vector<7xf32>
    %726 = vector.shape_cast %725 : vector<7xf32> to vector<7x1xf32>
    %727 = vector.broadcast %726 : vector<7x1xf32> to vector<7x8xf32>
    %728 = arith.subf %724, %727 : vector<7x8xf32>
    %729 = math.exp %728 : vector<7x8xf32>
    %cst_245 = arith.constant dense<0.000000e+00> : vector<7xf32>
    %730 = vector.multi_reduction <add>, %729, %cst_245 [1] : vector<7x8xf32> to vector<7xf32>
    %731 = vector.shape_cast %730 : vector<7xf32> to vector<7x1xf32>
    %732 = vector.broadcast %731 : vector<7x1xf32> to vector<7x8xf32>
    %733 = arith.divf %729, %732 : vector<7x8xf32>
    %734 = vector.extract_strided_slice %717 {offsets = [0, 0], sizes = [8, 8], strides = [1, 1]} : vector<8x32xf32> to vector<8x8xf32>
    %cst_246 = arith.constant dense<0.000000e+00> : vector<7x8xf32>
    %735 = tpu.matmul %733, %734, %cst_246 {dimension_numbers = #tpu.dot_dimension_numbers<[1], [0], [0], [1], [0, 0, 1, 1], [], []>} : vector<7x8xf32>, vector<8x8xf32>, vector<7x8xf32> -> vector<7x8xf32>
    %736 = vector.extract_strided_slice %715 {offsets = [0, 8], sizes = [7, 8], strides = [1, 1]} : vector<7x32xf32> to vector<7x8xf32>
    %737 = vector.extract_strided_slice %716 {offsets = [0, 8], sizes = [8, 8], strides = [1, 1]} : vector<8x32xf32> to vector<8x8xf32>
    %cst_247 = arith.constant dense<0.000000e+00> : vector<7x8xf32>
    %738 = tpu.matmul %736, %737, %cst_247 {dimension_numbers = #tpu.dot_dimension_numbers<[1], [1], [0], [0], [0, 0, 1, 0], [], []>} : vector<7x8xf32>, vector<8x8xf32>, vector<7x8xf32> -> vector<7x8xf32>
    %cst_248 = arith.constant -1.000000e+09 : f32
    %739 = vector.shape_cast %68 : vector<1x8xi1> to vector<1x8xi1>
    %740 = vector.broadcast %739 : vector<1x8xi1> to vector<7x8xi1>
    %741 = vector.broadcast %cst_248 : f32 to vector<7x8xf32>
    %742 = arith.select %740, %738, %741 : vector<7x8xi1>, vector<7x8xf32>
    %cst_249 = arith.constant dense<0xFF800000> : vector<7xf32>
    %743 = vector.multi_reduction <maximumf>, %742, %cst_249 [1] : vector<7x8xf32> to vector<7xf32>
    %744 = vector.shape_cast %743 : vector<7xf32> to vector<7x1xf32>
    %745 = vector.broadcast %744 : vector<7x1xf32> to vector<7x8xf32>
    %746 = arith.subf %742, %745 : vector<7x8xf32>
    %747 = math.exp %746 : vector<7x8xf32>
    %cst_250 = arith.constant dense<0.000000e+00> : vector<7xf32>
    %748 = vector.multi_reduction <add>, %747, %cst_250 [1] : vector<7x8xf32> to vector<7xf32>
    %749 = vector.shape_cast %748 : vector<7xf32> to vector<7x1xf32>
    %750 = vector.broadcast %749 : vector<7x1xf32> to vector<7x8xf32>
    %751 = arith.divf %747, %750 : vector<7x8xf32>
    %752 = vector.extract_strided_slice %717 {offsets = [0, 8], sizes = [8, 8], strides = [1, 1]} : vector<8x32xf32> to vector<8x8xf32>
    %cst_251 = arith.constant dense<0.000000e+00> : vector<7x8xf32>
    %753 = tpu.matmul %751, %752, %cst_251 {dimension_numbers = #tpu.dot_dimension_numbers<[1], [0], [0], [1], [0, 0, 1, 1], [], []>} : vector<7x8xf32>, vector<8x8xf32>, vector<7x8xf32> -> vector<7x8xf32>
    %754 = vector.extract_strided_slice %715 {offsets = [0, 16], sizes = [7, 8], strides = [1, 1]} : vector<7x32xf32> to vector<7x8xf32>
    %755 = vector.extract_strided_slice %716 {offsets = [0, 16], sizes = [8, 8], strides = [1, 1]} : vector<8x32xf32> to vector<8x8xf32>
    %cst_252 = arith.constant dense<0.000000e+00> : vector<7x8xf32>
    %756 = tpu.matmul %754, %755, %cst_252 {dimension_numbers = #tpu.dot_dimension_numbers<[1], [1], [0], [0], [0, 0, 1, 0], [], []>} : vector<7x8xf32>, vector<8x8xf32>, vector<7x8xf32> -> vector<7x8xf32>
    %cst_253 = arith.constant -1.000000e+09 : f32
    %757 = vector.shape_cast %68 : vector<1x8xi1> to vector<1x8xi1>
    %758 = vector.broadcast %757 : vector<1x8xi1> to vector<7x8xi1>
    %759 = vector.broadcast %cst_253 : f32 to vector<7x8xf32>
    %760 = arith.select %758, %756, %759 : vector<7x8xi1>, vector<7x8xf32>
    %cst_254 = arith.constant dense<0xFF800000> : vector<7xf32>
    %761 = vector.multi_reduction <maximumf>, %760, %cst_254 [1] : vector<7x8xf32> to vector<7xf32>
    %762 = vector.shape_cast %761 : vector<7xf32> to vector<7x1xf32>
    %763 = vector.broadcast %762 : vector<7x1xf32> to vector<7x8xf32>
    %764 = arith.subf %760, %763 : vector<7x8xf32>
    %765 = math.exp %764 : vector<7x8xf32>
    %cst_255 = arith.constant dense<0.000000e+00> : vector<7xf32>
    %766 = vector.multi_reduction <add>, %765, %cst_255 [1] : vector<7x8xf32> to vector<7xf32>
    %767 = vector.shape_cast %766 : vector<7xf32> to vector<7x1xf32>
    %768 = vector.broadcast %767 : vector<7x1xf32> to vector<7x8xf32>
    %769 = arith.divf %765, %768 : vector<7x8xf32>
    %770 = vector.extract_strided_slice %717 {offsets = [0, 16], sizes = [8, 8], strides = [1, 1]} : vector<8x32xf32> to vector<8x8xf32>
    %cst_256 = arith.constant dense<0.000000e+00> : vector<7x8xf32>
    %771 = tpu.matmul %769, %770, %cst_256 {dimension_numbers = #tpu.dot_dimension_numbers<[1], [0], [0], [1], [0, 0, 1, 1], [], []>} : vector<7x8xf32>, vector<8x8xf32>, vector<7x8xf32> -> vector<7x8xf32>
    %772 = vector.extract_strided_slice %715 {offsets = [0, 24], sizes = [7, 8], strides = [1, 1]} : vector<7x32xf32> to vector<7x8xf32>
    %773 = vector.extract_strided_slice %716 {offsets = [0, 24], sizes = [8, 8], strides = [1, 1]} : vector<8x32xf32> to vector<8x8xf32>
    %cst_257 = arith.constant dense<0.000000e+00> : vector<7x8xf32>
    %774 = tpu.matmul %772, %773, %cst_257 {dimension_numbers = #tpu.dot_dimension_numbers<[1], [1], [0], [0], [0, 0, 1, 0], [], []>} : vector<7x8xf32>, vector<8x8xf32>, vector<7x8xf32> -> vector<7x8xf32>
    %cst_258 = arith.constant -1.000000e+09 : f32
    %775 = vector.shape_cast %68 : vector<1x8xi1> to vector<1x8xi1>
    %776 = vector.broadcast %775 : vector<1x8xi1> to vector<7x8xi1>
    %777 = vector.broadcast %cst_258 : f32 to vector<7x8xf32>
    %778 = arith.select %776, %774, %777 : vector<7x8xi1>, vector<7x8xf32>
    %cst_259 = arith.constant dense<0xFF800000> : vector<7xf32>
    %779 = vector.multi_reduction <maximumf>, %778, %cst_259 [1] : vector<7x8xf32> to vector<7xf32>
    %780 = vector.shape_cast %779 : vector<7xf32> to vector<7x1xf32>
    %781 = vector.broadcast %780 : vector<7x1xf32> to vector<7x8xf32>
    %782 = arith.subf %778, %781 : vector<7x8xf32>
    %783 = math.exp %782 : vector<7x8xf32>
    %cst_260 = arith.constant dense<0.000000e+00> : vector<7xf32>
    %784 = vector.multi_reduction <add>, %783, %cst_260 [1] : vector<7x8xf32> to vector<7xf32>
    %785 = vector.shape_cast %784 : vector<7xf32> to vector<7x1xf32>
    %786 = vector.broadcast %785 : vector<7x1xf32> to vector<7x8xf32>
    %787 = arith.divf %783, %786 : vector<7x8xf32>
    %788 = vector.extract_strided_slice %717 {offsets = [0, 24], sizes = [8, 8], strides = [1, 1]} : vector<8x32xf32> to vector<8x8xf32>
    %cst_261 = arith.constant dense<0.000000e+00> : vector<7x8xf32>
    %789 = tpu.matmul %787, %788, %cst_261 {dimension_numbers = #tpu.dot_dimension_numbers<[1], [0], [0], [1], [0, 0, 1, 1], [], []>} : vector<7x8xf32>, vector<8x8xf32>, vector<7x8xf32> -> vector<7x8xf32>
    %790 = tpu.concatenate %735, %753, %771, %789 in 1 : vector<7x8xf32>, vector<7x8xf32>, vector<7x8xf32>, vector<7x8xf32> -> vector<7x32xf32>
    %791 = vector.extract_strided_slice %710 {offsets = [7, 0], sizes = [7, 32], strides = [1, 1]} : vector<14x32xf32> to vector<7x32xf32>
    %792 = vector.extract_strided_slice %713 {offsets = [8, 0], sizes = [8, 32], strides = [1, 1]} : vector<16x32xf32> to vector<8x32xf32>
    %793 = vector.extract_strided_slice %714 {offsets = [8, 0], sizes = [8, 32], strides = [1, 1]} : vector<16x32xf32> to vector<8x32xf32>
    %794 = vector.extract_strided_slice %791 {offsets = [0, 0], sizes = [7, 8], strides = [1, 1]} : vector<7x32xf32> to vector<7x8xf32>
    %795 = vector.extract_strided_slice %792 {offsets = [0, 0], sizes = [8, 8], strides = [1, 1]} : vector<8x32xf32> to vector<8x8xf32>
    %cst_262 = arith.constant dense<0.000000e+00> : vector<7x8xf32>
    %796 = tpu.matmul %794, %795, %cst_262 {dimension_numbers = #tpu.dot_dimension_numbers<[1], [1], [0], [0], [0, 0, 1, 0], [], []>} : vector<7x8xf32>, vector<8x8xf32>, vector<7x8xf32> -> vector<7x8xf32>
    %cst_263 = arith.constant -1.000000e+09 : f32
    %797 = vector.shape_cast %76 : vector<1x8xi1> to vector<1x8xi1>
    %798 = vector.broadcast %797 : vector<1x8xi1> to vector<7x8xi1>
    %799 = vector.broadcast %cst_263 : f32 to vector<7x8xf32>
    %800 = arith.select %798, %796, %799 : vector<7x8xi1>, vector<7x8xf32>
    %cst_264 = arith.constant dense<0xFF800000> : vector<7xf32>
    %801 = vector.multi_reduction <maximumf>, %800, %cst_264 [1] : vector<7x8xf32> to vector<7xf32>
    %802 = vector.shape_cast %801 : vector<7xf32> to vector<7x1xf32>
    %803 = vector.broadcast %802 : vector<7x1xf32> to vector<7x8xf32>
    %804 = arith.subf %800, %803 : vector<7x8xf32>
    %805 = math.exp %804 : vector<7x8xf32>
    %cst_265 = arith.constant dense<0.000000e+00> : vector<7xf32>
    %806 = vector.multi_reduction <add>, %805, %cst_265 [1] : vector<7x8xf32> to vector<7xf32>
    %807 = vector.shape_cast %806 : vector<7xf32> to vector<7x1xf32>
    %808 = vector.broadcast %807 : vector<7x1xf32> to vector<7x8xf32>
    %809 = arith.divf %805, %808 : vector<7x8xf32>
    %810 = vector.extract_strided_slice %793 {offsets = [0, 0], sizes = [8, 8], strides = [1, 1]} : vector<8x32xf32> to vector<8x8xf32>
    %cst_266 = arith.constant dense<0.000000e+00> : vector<7x8xf32>
    %811 = tpu.matmul %809, %810, %cst_266 {dimension_numbers = #tpu.dot_dimension_numbers<[1], [0], [0], [1], [0, 0, 1, 1], [], []>} : vector<7x8xf32>, vector<8x8xf32>, vector<7x8xf32> -> vector<7x8xf32>
    %812 = vector.extract_strided_slice %791 {offsets = [0, 8], sizes = [7, 8], strides = [1, 1]} : vector<7x32xf32> to vector<7x8xf32>
    %813 = vector.extract_strided_slice %792 {offsets = [0, 8], sizes = [8, 8], strides = [1, 1]} : vector<8x32xf32> to vector<8x8xf32>
    %cst_267 = arith.constant dense<0.000000e+00> : vector<7x8xf32>
    %814 = tpu.matmul %812, %813, %cst_267 {dimension_numbers = #tpu.dot_dimension_numbers<[1], [1], [0], [0], [0, 0, 1, 0], [], []>} : vector<7x8xf32>, vector<8x8xf32>, vector<7x8xf32> -> vector<7x8xf32>
    %cst_268 = arith.constant -1.000000e+09 : f32
    %815 = vector.shape_cast %76 : vector<1x8xi1> to vector<1x8xi1>
    %816 = vector.broadcast %815 : vector<1x8xi1> to vector<7x8xi1>
    %817 = vector.broadcast %cst_268 : f32 to vector<7x8xf32>
    %818 = arith.select %816, %814, %817 : vector<7x8xi1>, vector<7x8xf32>
    %cst_269 = arith.constant dense<0xFF800000> : vector<7xf32>
    %819 = vector.multi_reduction <maximumf>, %818, %cst_269 [1] : vector<7x8xf32> to vector<7xf32>
    %820 = vector.shape_cast %819 : vector<7xf32> to vector<7x1xf32>
    %821 = vector.broadcast %820 : vector<7x1xf32> to vector<7x8xf32>
    %822 = arith.subf %818, %821 : vector<7x8xf32>
    %823 = math.exp %822 : vector<7x8xf32>
    %cst_270 = arith.constant dense<0.000000e+00> : vector<7xf32>
    %824 = vector.multi_reduction <add>, %823, %cst_270 [1] : vector<7x8xf32> to vector<7xf32>
    %825 = vector.shape_cast %824 : vector<7xf32> to vector<7x1xf32>
    %826 = vector.broadcast %825 : vector<7x1xf32> to vector<7x8xf32>
    %827 = arith.divf %823, %826 : vector<7x8xf32>
    %828 = vector.extract_strided_slice %793 {offsets = [0, 8], sizes = [8, 8], strides = [1, 1]} : vector<8x32xf32> to vector<8x8xf32>
    %cst_271 = arith.constant dense<0.000000e+00> : vector<7x8xf32>
    %829 = tpu.matmul %827, %828, %cst_271 {dimension_numbers = #tpu.dot_dimension_numbers<[1], [0], [0], [1], [0, 0, 1, 1], [], []>} : vector<7x8xf32>, vector<8x8xf32>, vector<7x8xf32> -> vector<7x8xf32>
    %830 = vector.extract_strided_slice %791 {offsets = [0, 16], sizes = [7, 8], strides = [1, 1]} : vector<7x32xf32> to vector<7x8xf32>
    %831 = vector.extract_strided_slice %792 {offsets = [0, 16], sizes = [8, 8], strides = [1, 1]} : vector<8x32xf32> to vector<8x8xf32>
    %cst_272 = arith.constant dense<0.000000e+00> : vector<7x8xf32>
    %832 = tpu.matmul %830, %831, %cst_272 {dimension_numbers = #tpu.dot_dimension_numbers<[1], [1], [0], [0], [0, 0, 1, 0], [], []>} : vector<7x8xf32>, vector<8x8xf32>, vector<7x8xf32> -> vector<7x8xf32>
    %cst_273 = arith.constant -1.000000e+09 : f32
    %833 = vector.shape_cast %76 : vector<1x8xi1> to vector<1x8xi1>
    %834 = vector.broadcast %833 : vector<1x8xi1> to vector<7x8xi1>
    %835 = vector.broadcast %cst_273 : f32 to vector<7x8xf32>
    %836 = arith.select %834, %832, %835 : vector<7x8xi1>, vector<7x8xf32>
    %cst_274 = arith.constant dense<0xFF800000> : vector<7xf32>
    %837 = vector.multi_reduction <maximumf>, %836, %cst_274 [1] : vector<7x8xf32> to vector<7xf32>
    %838 = vector.shape_cast %837 : vector<7xf32> to vector<7x1xf32>
    %839 = vector.broadcast %838 : vector<7x1xf32> to vector<7x8xf32>
    %840 = arith.subf %836, %839 : vector<7x8xf32>
    %841 = math.exp %840 : vector<7x8xf32>
    %cst_275 = arith.constant dense<0.000000e+00> : vector<7xf32>
    %842 = vector.multi_reduction <add>, %841, %cst_275 [1] : vector<7x8xf32> to vector<7xf32>
    %843 = vector.shape_cast %842 : vector<7xf32> to vector<7x1xf32>
    %844 = vector.broadcast %843 : vector<7x1xf32> to vector<7x8xf32>
    %845 = arith.divf %841, %844 : vector<7x8xf32>
    %846 = vector.extract_strided_slice %793 {offsets = [0, 16], sizes = [8, 8], strides = [1, 1]} : vector<8x32xf32> to vector<8x8xf32>
    %cst_276 = arith.constant dense<0.000000e+00> : vector<7x8xf32>
    %847 = tpu.matmul %845, %846, %cst_276 {dimension_numbers = #tpu.dot_dimension_numbers<[1], [0], [0], [1], [0, 0, 1, 1], [], []>} : vector<7x8xf32>, vector<8x8xf32>, vector<7x8xf32> -> vector<7x8xf32>
    %848 = vector.extract_strided_slice %791 {offsets = [0, 24], sizes = [7, 8], strides = [1, 1]} : vector<7x32xf32> to vector<7x8xf32>
    %849 = vector.extract_strided_slice %792 {offsets = [0, 24], sizes = [8, 8], strides = [1, 1]} : vector<8x32xf32> to vector<8x8xf32>
    %cst_277 = arith.constant dense<0.000000e+00> : vector<7x8xf32>
    %850 = tpu.matmul %848, %849, %cst_277 {dimension_numbers = #tpu.dot_dimension_numbers<[1], [1], [0], [0], [0, 0, 1, 0], [], []>} : vector<7x8xf32>, vector<8x8xf32>, vector<7x8xf32> -> vector<7x8xf32>
    %cst_278 = arith.constant -1.000000e+09 : f32
    %851 = vector.shape_cast %76 : vector<1x8xi1> to vector<1x8xi1>
    %852 = vector.broadcast %851 : vector<1x8xi1> to vector<7x8xi1>
    %853 = vector.broadcast %cst_278 : f32 to vector<7x8xf32>
    %854 = arith.select %852, %850, %853 : vector<7x8xi1>, vector<7x8xf32>
    %cst_279 = arith.constant dense<0xFF800000> : vector<7xf32>
    %855 = vector.multi_reduction <maximumf>, %854, %cst_279 [1] : vector<7x8xf32> to vector<7xf32>
    %856 = vector.shape_cast %855 : vector<7xf32> to vector<7x1xf32>
    %857 = vector.broadcast %856 : vector<7x1xf32> to vector<7x8xf32>
    %858 = arith.subf %854, %857 : vector<7x8xf32>
    %859 = math.exp %858 : vector<7x8xf32>
    %cst_280 = arith.constant dense<0.000000e+00> : vector<7xf32>
    %860 = vector.multi_reduction <add>, %859, %cst_280 [1] : vector<7x8xf32> to vector<7xf32>
    %861 = vector.shape_cast %860 : vector<7xf32> to vector<7x1xf32>
    %862 = vector.broadcast %861 : vector<7x1xf32> to vector<7x8xf32>
    %863 = arith.divf %859, %862 : vector<7x8xf32>
    %864 = vector.extract_strided_slice %793 {offsets = [0, 24], sizes = [8, 8], strides = [1, 1]} : vector<8x32xf32> to vector<8x8xf32>
    %cst_281 = arith.constant dense<0.000000e+00> : vector<7x8xf32>
    %865 = tpu.matmul %863, %864, %cst_281 {dimension_numbers = #tpu.dot_dimension_numbers<[1], [0], [0], [1], [0, 0, 1, 1], [], []>} : vector<7x8xf32>, vector<8x8xf32>, vector<7x8xf32> -> vector<7x8xf32>
    %866 = tpu.concatenate %811, %829, %847, %865 in 1 : vector<7x8xf32>, vector<7x8xf32>, vector<7x8xf32>, vector<7x8xf32> -> vector<7x32xf32>
    %867 = tpu.concatenate %790, %866 in 0 : vector<7x32xf32>, vector<7x32xf32> -> vector<14x32xf32>
    %cst_282 = arith.constant dense<0.000000e+00> : vector<14x32xf32>
    %868 = tpu.matmul %867, %708, %cst_282 {dimension_numbers = #tpu.dot_dimension_numbers<[1], [0], [0], [1], [0, 0, 1, 1], [], []>} : vector<14x32xf32>, vector<32x32xf32>, vector<14x32xf32> -> vector<14x32xf32>
    %869 = arith.addf %868, %704 : vector<14x32xf32>
    %cst_283 = arith.constant dense<0.000000e+00> : vector<14xf32>
    %870 = vector.multi_reduction <add>, %869, %cst_283 [1] : vector<14x32xf32> to vector<14xf32>
    %871 = vector.shape_cast %870 : vector<14xf32> to vector<14x1xf32>
    %cst_284 = arith.constant 3.200000e+01 : f32
    %872 = vector.broadcast %cst_284 : f32 to vector<14x1xf32>
    %873 = arith.divf %871, %872 : vector<14x1xf32>
    %874 = vector.broadcast %873 : vector<14x1xf32> to vector<14x32xf32>
    %875 = arith.subf %869, %874 : vector<14x32xf32>
    %876 = arith.mulf %875, %875 : vector<14x32xf32>
    %cst_285 = arith.constant dense<0.000000e+00> : vector<14xf32>
    %877 = vector.multi_reduction <add>, %876, %cst_285 [1] : vector<14x32xf32> to vector<14xf32>
    %878 = vector.shape_cast %877 : vector<14xf32> to vector<14x1xf32>
    %cst_286 = arith.constant 3.200000e+01 : f32
    %879 = vector.broadcast %cst_286 : f32 to vector<14x1xf32>
    %880 = arith.divf %878, %879 : vector<14x1xf32>
    %881 = vector.broadcast %873 : vector<14x1xf32> to vector<14x32xf32>
    %882 = arith.subf %869, %881 : vector<14x32xf32>
    %cst_287 = arith.constant 9.99999997E-7 : f32
    %883 = vector.broadcast %cst_287 : f32 to vector<14x1xf32>
    %884 = arith.addf %880, %883 : vector<14x1xf32>
    %885 = math.rsqrt %884 : vector<14x1xf32>
    %886 = vector.broadcast %885 : vector<14x1xf32> to vector<14x32xf32>
    %887 = arith.mulf %882, %886 : vector<14x32xf32>
    %c16 = arith.constant 16 : index
    %c0_288 = arith.constant 0 : index
    %888 = vector.load %arg3[%c16, %c0_288] : memref<28x32xf32, #tpu.memory_space<vmem>>, vector<1x32xf32>
    %889 = vector.broadcast %888 : vector<1x32xf32> to vector<14x32xf32>
    %890 = arith.mulf %887, %889 : vector<14x32xf32>
    %c17 = arith.constant 17 : index
    %c0_289 = arith.constant 0 : index
    %891 = vector.load %arg3[%c17, %c0_289] : memref<28x32xf32, #tpu.memory_space<vmem>>, vector<1x32xf32>
    %892 = vector.broadcast %891 : vector<1x32xf32> to vector<14x32xf32>
    %893 = arith.addf %890, %892 : vector<14x32xf32>
    %c2_290 = arith.constant 2 : index
    %c0_291 = arith.constant 0 : index
    %c0_292 = arith.constant 0 : index
    %894 = vector.load %arg7[%c2_290, %c0_291, %c0_292] : memref<4x32x64xf32, #tpu.memory_space<vmem>>, vector<1x32x64xf32>
    %895 = vector.shape_cast %894 : vector<1x32x64xf32> to vector<32x64xf32>
    %c2_293 = arith.constant 2 : index
    %c0_294 = arith.constant 0 : index
    %c0_295 = arith.constant 0 : index
    %896 = vector.load %arg8[%c2_293, %c0_294, %c0_295] : memref<4x64x32xf32, #tpu.memory_space<vmem>>, vector<1x64x32xf32>
    %897 = vector.shape_cast %896 : vector<1x64x32xf32> to vector<64x32xf32>
    %cst_296 = arith.constant dense<0.000000e+00> : vector<14x64xf32>
    %898 = tpu.matmul %893, %895, %cst_296 {dimension_numbers = #tpu.dot_dimension_numbers<[1], [0], [0], [1], [0, 0, 1, 1], [], []>} : vector<14x32xf32>, vector<32x64xf32>, vector<14x64xf32> -> vector<14x64xf32>
    %c2_297 = arith.constant 2 : index
    %c0_298 = arith.constant 0 : index
    %899 = vector.load %arg4[%c2_297, %c0_298] : memref<4x64xf32, #tpu.memory_space<vmem>>, vector<1x64xf32>
    %900 = vector.broadcast %899 : vector<1x64xf32> to vector<14x64xf32>
    %901 = arith.addf %898, %900 : vector<14x64xf32>
    %cst_299 = arith.constant 0.000000e+00 : f32
    %902 = vector.broadcast %cst_299 : f32 to vector<14x64xf32>
    %903 = arith.maximumf %901, %902 : vector<14x64xf32>
    %cst_300 = arith.constant dense<0.000000e+00> : vector<14x32xf32>
    %904 = tpu.matmul %903, %897, %cst_300 {dimension_numbers = #tpu.dot_dimension_numbers<[1], [0], [0], [1], [0, 0, 1, 1], [], []>} : vector<14x64xf32>, vector<64x32xf32>, vector<14x32xf32> -> vector<14x32xf32>
    %c18 = arith.constant 18 : index
    %c0_301 = arith.constant 0 : index
    %905 = vector.load %arg3[%c18, %c0_301] : memref<28x32xf32, #tpu.memory_space<vmem>>, vector<1x32xf32>
    %906 = vector.broadcast %905 : vector<1x32xf32> to vector<14x32xf32>
    %907 = arith.addf %904, %906 : vector<14x32xf32>
    %908 = arith.addf %907, %893 : vector<14x32xf32>
    %cst_302 = arith.constant dense<0.000000e+00> : vector<14xf32>
    %909 = vector.multi_reduction <add>, %908, %cst_302 [1] : vector<14x32xf32> to vector<14xf32>
    %910 = vector.shape_cast %909 : vector<14xf32> to vector<14x1xf32>
    %cst_303 = arith.constant 3.200000e+01 : f32
    %911 = vector.broadcast %cst_303 : f32 to vector<14x1xf32>
    %912 = arith.divf %910, %911 : vector<14x1xf32>
    %913 = vector.broadcast %912 : vector<14x1xf32> to vector<14x32xf32>
    %914 = arith.subf %908, %913 : vector<14x32xf32>
    %915 = arith.mulf %914, %914 : vector<14x32xf32>
    %cst_304 = arith.constant dense<0.000000e+00> : vector<14xf32>
    %916 = vector.multi_reduction <add>, %915, %cst_304 [1] : vector<14x32xf32> to vector<14xf32>
    %917 = vector.shape_cast %916 : vector<14xf32> to vector<14x1xf32>
    %cst_305 = arith.constant 3.200000e+01 : f32
    %918 = vector.broadcast %cst_305 : f32 to vector<14x1xf32>
    %919 = arith.divf %917, %918 : vector<14x1xf32>
    %920 = vector.broadcast %912 : vector<14x1xf32> to vector<14x32xf32>
    %921 = arith.subf %908, %920 : vector<14x32xf32>
    %cst_306 = arith.constant 9.99999997E-7 : f32
    %922 = vector.broadcast %cst_306 : f32 to vector<14x1xf32>
    %923 = arith.addf %919, %922 : vector<14x1xf32>
    %924 = math.rsqrt %923 : vector<14x1xf32>
    %925 = vector.broadcast %924 : vector<14x1xf32> to vector<14x32xf32>
    %926 = arith.mulf %921, %925 : vector<14x32xf32>
    %c19 = arith.constant 19 : index
    %c0_307 = arith.constant 0 : index
    %927 = vector.load %arg3[%c19, %c0_307] : memref<28x32xf32, #tpu.memory_space<vmem>>, vector<1x32xf32>
    %928 = vector.broadcast %927 : vector<1x32xf32> to vector<14x32xf32>
    %929 = arith.mulf %926, %928 : vector<14x32xf32>
    %c20 = arith.constant 20 : index
    %c0_308 = arith.constant 0 : index
    %930 = vector.load %arg3[%c20, %c0_308] : memref<28x32xf32, #tpu.memory_space<vmem>>, vector<1x32xf32>
    %931 = vector.broadcast %930 : vector<1x32xf32> to vector<14x32xf32>
    %932 = arith.addf %929, %931 : vector<14x32xf32>
    %c3_309 = arith.constant 3 : index
    %c0_310 = arith.constant 0 : index
    %c0_311 = arith.constant 0 : index
    %933 = vector.load %arg5[%c3_309, %c0_310, %c0_311] : memref<6x32x96xf32, #tpu.memory_space<vmem>>, vector<1x32x96xf32>
    %934 = vector.shape_cast %933 : vector<1x32x96xf32> to vector<32x96xf32>
    %c3_312 = arith.constant 3 : index
    %c0_313 = arith.constant 0 : index
    %c0_314 = arith.constant 0 : index
    %935 = vector.load %arg6[%c3_312, %c0_313, %c0_314] : memref<6x32x32xf32, #tpu.memory_space<vmem>>, vector<1x32x32xf32>
    %936 = vector.shape_cast %935 : vector<1x32x32xf32> to vector<32x32xf32>
    %cst_315 = arith.constant dense<0.000000e+00> : vector<14x96xf32>
    %937 = tpu.matmul %932, %934, %cst_315 {dimension_numbers = #tpu.dot_dimension_numbers<[1], [0], [0], [1], [0, 0, 1, 1], [], []>} : vector<14x32xf32>, vector<32x96xf32>, vector<14x96xf32> -> vector<14x96xf32>
    %938 = vector.extract_strided_slice %937 {offsets = [0, 0], sizes = [14, 32], strides = [1, 1]} : vector<14x96xf32> to vector<14x32xf32>
    %939 = vector.extract_strided_slice %937 {offsets = [0, 32], sizes = [14, 32], strides = [1, 1]} : vector<14x96xf32> to vector<14x32xf32>
    %940 = vector.extract_strided_slice %937 {offsets = [0, 64], sizes = [14, 32], strides = [1, 1]} : vector<14x96xf32> to vector<14x32xf32>
    %941 = vector.extract_strided_slice %938 {offsets = [0, 0], sizes = [7, 32], strides = [1, 1]} : vector<14x32xf32> to vector<7x32xf32>
    %942 = vector.extract_strided_slice %939 {offsets = [0, 0], sizes = [7, 32], strides = [1, 1]} : vector<14x32xf32> to vector<7x32xf32>
    %943 = vector.extract_strided_slice %940 {offsets = [0, 0], sizes = [7, 32], strides = [1, 1]} : vector<14x32xf32> to vector<7x32xf32>
    %944 = vector.extract_strided_slice %941 {offsets = [0, 0], sizes = [7, 8], strides = [1, 1]} : vector<7x32xf32> to vector<7x8xf32>
    %945 = vector.extract_strided_slice %942 {offsets = [0, 0], sizes = [7, 8], strides = [1, 1]} : vector<7x32xf32> to vector<7x8xf32>
    %cst_316 = arith.constant dense<0.000000e+00> : vector<7x7xf32>
    %946 = tpu.matmul %944, %945, %cst_316 {dimension_numbers = #tpu.dot_dimension_numbers<[1], [1], [0], [0], [0, 0, 1, 0], [], []>} : vector<7x8xf32>, vector<7x8xf32>, vector<7x7xf32> -> vector<7x7xf32>
    %cst_317 = arith.constant -1.000000e+09 : f32
    %947 = vector.broadcast %cst_317 : f32 to vector<7x7xf32>
    %948 = arith.select %73, %946, %947 : vector<7x7xi1>, vector<7x7xf32>
    %cst_318 = arith.constant dense<0xFF800000> : vector<7xf32>
    %949 = vector.multi_reduction <maximumf>, %948, %cst_318 [1] : vector<7x7xf32> to vector<7xf32>
    %950 = vector.shape_cast %949 : vector<7xf32> to vector<7x1xf32>
    %951 = vector.broadcast %950 : vector<7x1xf32> to vector<7x7xf32>
    %952 = arith.subf %948, %951 : vector<7x7xf32>
    %953 = math.exp %952 : vector<7x7xf32>
    %cst_319 = arith.constant dense<0.000000e+00> : vector<7xf32>
    %954 = vector.multi_reduction <add>, %953, %cst_319 [1] : vector<7x7xf32> to vector<7xf32>
    %955 = vector.shape_cast %954 : vector<7xf32> to vector<7x1xf32>
    %956 = vector.broadcast %955 : vector<7x1xf32> to vector<7x7xf32>
    %957 = arith.divf %953, %956 : vector<7x7xf32>
    %958 = vector.extract_strided_slice %943 {offsets = [0, 0], sizes = [7, 8], strides = [1, 1]} : vector<7x32xf32> to vector<7x8xf32>
    %cst_320 = arith.constant dense<0.000000e+00> : vector<7x8xf32>
    %959 = tpu.matmul %957, %958, %cst_320 {dimension_numbers = #tpu.dot_dimension_numbers<[1], [0], [0], [1], [0, 0, 1, 1], [], []>} : vector<7x7xf32>, vector<7x8xf32>, vector<7x8xf32> -> vector<7x8xf32>
    %960 = vector.extract_strided_slice %941 {offsets = [0, 8], sizes = [7, 8], strides = [1, 1]} : vector<7x32xf32> to vector<7x8xf32>
    %961 = vector.extract_strided_slice %942 {offsets = [0, 8], sizes = [7, 8], strides = [1, 1]} : vector<7x32xf32> to vector<7x8xf32>
    %cst_321 = arith.constant dense<0.000000e+00> : vector<7x7xf32>
    %962 = tpu.matmul %960, %961, %cst_321 {dimension_numbers = #tpu.dot_dimension_numbers<[1], [1], [0], [0], [0, 0, 1, 0], [], []>} : vector<7x8xf32>, vector<7x8xf32>, vector<7x7xf32> -> vector<7x7xf32>
    %cst_322 = arith.constant -1.000000e+09 : f32
    %963 = vector.broadcast %cst_322 : f32 to vector<7x7xf32>
    %964 = arith.select %73, %962, %963 : vector<7x7xi1>, vector<7x7xf32>
    %cst_323 = arith.constant dense<0xFF800000> : vector<7xf32>
    %965 = vector.multi_reduction <maximumf>, %964, %cst_323 [1] : vector<7x7xf32> to vector<7xf32>
    %966 = vector.shape_cast %965 : vector<7xf32> to vector<7x1xf32>
    %967 = vector.broadcast %966 : vector<7x1xf32> to vector<7x7xf32>
    %968 = arith.subf %964, %967 : vector<7x7xf32>
    %969 = math.exp %968 : vector<7x7xf32>
    %cst_324 = arith.constant dense<0.000000e+00> : vector<7xf32>
    %970 = vector.multi_reduction <add>, %969, %cst_324 [1] : vector<7x7xf32> to vector<7xf32>
    %971 = vector.shape_cast %970 : vector<7xf32> to vector<7x1xf32>
    %972 = vector.broadcast %971 : vector<7x1xf32> to vector<7x7xf32>
    %973 = arith.divf %969, %972 : vector<7x7xf32>
    %974 = vector.extract_strided_slice %943 {offsets = [0, 8], sizes = [7, 8], strides = [1, 1]} : vector<7x32xf32> to vector<7x8xf32>
    %cst_325 = arith.constant dense<0.000000e+00> : vector<7x8xf32>
    %975 = tpu.matmul %973, %974, %cst_325 {dimension_numbers = #tpu.dot_dimension_numbers<[1], [0], [0], [1], [0, 0, 1, 1], [], []>} : vector<7x7xf32>, vector<7x8xf32>, vector<7x8xf32> -> vector<7x8xf32>
    %976 = vector.extract_strided_slice %941 {offsets = [0, 16], sizes = [7, 8], strides = [1, 1]} : vector<7x32xf32> to vector<7x8xf32>
    %977 = vector.extract_strided_slice %942 {offsets = [0, 16], sizes = [7, 8], strides = [1, 1]} : vector<7x32xf32> to vector<7x8xf32>
    %cst_326 = arith.constant dense<0.000000e+00> : vector<7x7xf32>
    %978 = tpu.matmul %976, %977, %cst_326 {dimension_numbers = #tpu.dot_dimension_numbers<[1], [1], [0], [0], [0, 0, 1, 0], [], []>} : vector<7x8xf32>, vector<7x8xf32>, vector<7x7xf32> -> vector<7x7xf32>
    %cst_327 = arith.constant -1.000000e+09 : f32
    %979 = vector.broadcast %cst_327 : f32 to vector<7x7xf32>
    %980 = arith.select %73, %978, %979 : vector<7x7xi1>, vector<7x7xf32>
    %cst_328 = arith.constant dense<0xFF800000> : vector<7xf32>
    %981 = vector.multi_reduction <maximumf>, %980, %cst_328 [1] : vector<7x7xf32> to vector<7xf32>
    %982 = vector.shape_cast %981 : vector<7xf32> to vector<7x1xf32>
    %983 = vector.broadcast %982 : vector<7x1xf32> to vector<7x7xf32>
    %984 = arith.subf %980, %983 : vector<7x7xf32>
    %985 = math.exp %984 : vector<7x7xf32>
    %cst_329 = arith.constant dense<0.000000e+00> : vector<7xf32>
    %986 = vector.multi_reduction <add>, %985, %cst_329 [1] : vector<7x7xf32> to vector<7xf32>
    %987 = vector.shape_cast %986 : vector<7xf32> to vector<7x1xf32>
    %988 = vector.broadcast %987 : vector<7x1xf32> to vector<7x7xf32>
    %989 = arith.divf %985, %988 : vector<7x7xf32>
    %990 = vector.extract_strided_slice %943 {offsets = [0, 16], sizes = [7, 8], strides = [1, 1]} : vector<7x32xf32> to vector<7x8xf32>
    %cst_330 = arith.constant dense<0.000000e+00> : vector<7x8xf32>
    %991 = tpu.matmul %989, %990, %cst_330 {dimension_numbers = #tpu.dot_dimension_numbers<[1], [0], [0], [1], [0, 0, 1, 1], [], []>} : vector<7x7xf32>, vector<7x8xf32>, vector<7x8xf32> -> vector<7x8xf32>
    %992 = vector.extract_strided_slice %941 {offsets = [0, 24], sizes = [7, 8], strides = [1, 1]} : vector<7x32xf32> to vector<7x8xf32>
    %993 = vector.extract_strided_slice %942 {offsets = [0, 24], sizes = [7, 8], strides = [1, 1]} : vector<7x32xf32> to vector<7x8xf32>
    %cst_331 = arith.constant dense<0.000000e+00> : vector<7x7xf32>
    %994 = tpu.matmul %992, %993, %cst_331 {dimension_numbers = #tpu.dot_dimension_numbers<[1], [1], [0], [0], [0, 0, 1, 0], [], []>} : vector<7x8xf32>, vector<7x8xf32>, vector<7x7xf32> -> vector<7x7xf32>
    %cst_332 = arith.constant -1.000000e+09 : f32
    %995 = vector.broadcast %cst_332 : f32 to vector<7x7xf32>
    %996 = arith.select %73, %994, %995 : vector<7x7xi1>, vector<7x7xf32>
    %cst_333 = arith.constant dense<0xFF800000> : vector<7xf32>
    %997 = vector.multi_reduction <maximumf>, %996, %cst_333 [1] : vector<7x7xf32> to vector<7xf32>
    %998 = vector.shape_cast %997 : vector<7xf32> to vector<7x1xf32>
    %999 = vector.broadcast %998 : vector<7x1xf32> to vector<7x7xf32>
    %1000 = arith.subf %996, %999 : vector<7x7xf32>
    %1001 = math.exp %1000 : vector<7x7xf32>
    %cst_334 = arith.constant dense<0.000000e+00> : vector<7xf32>
    %1002 = vector.multi_reduction <add>, %1001, %cst_334 [1] : vector<7x7xf32> to vector<7xf32>
    %1003 = vector.shape_cast %1002 : vector<7xf32> to vector<7x1xf32>
    %1004 = vector.broadcast %1003 : vector<7x1xf32> to vector<7x7xf32>
    %1005 = arith.divf %1001, %1004 : vector<7x7xf32>
    %1006 = vector.extract_strided_slice %943 {offsets = [0, 24], sizes = [7, 8], strides = [1, 1]} : vector<7x32xf32> to vector<7x8xf32>
    %cst_335 = arith.constant dense<0.000000e+00> : vector<7x8xf32>
    %1007 = tpu.matmul %1005, %1006, %cst_335 {dimension_numbers = #tpu.dot_dimension_numbers<[1], [0], [0], [1], [0, 0, 1, 1], [], []>} : vector<7x7xf32>, vector<7x8xf32>, vector<7x8xf32> -> vector<7x8xf32>
    %1008 = tpu.concatenate %959, %975, %991, %1007 in 1 : vector<7x8xf32>, vector<7x8xf32>, vector<7x8xf32>, vector<7x8xf32> -> vector<7x32xf32>
    %1009 = vector.extract_strided_slice %938 {offsets = [7, 0], sizes = [7, 32], strides = [1, 1]} : vector<14x32xf32> to vector<7x32xf32>
    %1010 = vector.extract_strided_slice %939 {offsets = [7, 0], sizes = [7, 32], strides = [1, 1]} : vector<14x32xf32> to vector<7x32xf32>
    %1011 = vector.extract_strided_slice %940 {offsets = [7, 0], sizes = [7, 32], strides = [1, 1]} : vector<14x32xf32> to vector<7x32xf32>
    %1012 = vector.extract_strided_slice %1009 {offsets = [0, 0], sizes = [7, 8], strides = [1, 1]} : vector<7x32xf32> to vector<7x8xf32>
    %1013 = vector.extract_strided_slice %1010 {offsets = [0, 0], sizes = [7, 8], strides = [1, 1]} : vector<7x32xf32> to vector<7x8xf32>
    %cst_336 = arith.constant dense<0.000000e+00> : vector<7x7xf32>
    %1014 = tpu.matmul %1012, %1013, %cst_336 {dimension_numbers = #tpu.dot_dimension_numbers<[1], [1], [0], [0], [0, 0, 1, 0], [], []>} : vector<7x8xf32>, vector<7x8xf32>, vector<7x7xf32> -> vector<7x7xf32>
    %cst_337 = arith.constant -1.000000e+09 : f32
    %1015 = vector.broadcast %cst_337 : f32 to vector<7x7xf32>
    %1016 = arith.select %81, %1014, %1015 : vector<7x7xi1>, vector<7x7xf32>
    %cst_338 = arith.constant dense<0xFF800000> : vector<7xf32>
    %1017 = vector.multi_reduction <maximumf>, %1016, %cst_338 [1] : vector<7x7xf32> to vector<7xf32>
    %1018 = vector.shape_cast %1017 : vector<7xf32> to vector<7x1xf32>
    %1019 = vector.broadcast %1018 : vector<7x1xf32> to vector<7x7xf32>
    %1020 = arith.subf %1016, %1019 : vector<7x7xf32>
    %1021 = math.exp %1020 : vector<7x7xf32>
    %cst_339 = arith.constant dense<0.000000e+00> : vector<7xf32>
    %1022 = vector.multi_reduction <add>, %1021, %cst_339 [1] : vector<7x7xf32> to vector<7xf32>
    %1023 = vector.shape_cast %1022 : vector<7xf32> to vector<7x1xf32>
    %1024 = vector.broadcast %1023 : vector<7x1xf32> to vector<7x7xf32>
    %1025 = arith.divf %1021, %1024 : vector<7x7xf32>
    %1026 = vector.extract_strided_slice %1011 {offsets = [0, 0], sizes = [7, 8], strides = [1, 1]} : vector<7x32xf32> to vector<7x8xf32>
    %cst_340 = arith.constant dense<0.000000e+00> : vector<7x8xf32>
    %1027 = tpu.matmul %1025, %1026, %cst_340 {dimension_numbers = #tpu.dot_dimension_numbers<[1], [0], [0], [1], [0, 0, 1, 1], [], []>} : vector<7x7xf32>, vector<7x8xf32>, vector<7x8xf32> -> vector<7x8xf32>
    %1028 = vector.extract_strided_slice %1009 {offsets = [0, 8], sizes = [7, 8], strides = [1, 1]} : vector<7x32xf32> to vector<7x8xf32>
    %1029 = vector.extract_strided_slice %1010 {offsets = [0, 8], sizes = [7, 8], strides = [1, 1]} : vector<7x32xf32> to vector<7x8xf32>
    %cst_341 = arith.constant dense<0.000000e+00> : vector<7x7xf32>
    %1030 = tpu.matmul %1028, %1029, %cst_341 {dimension_numbers = #tpu.dot_dimension_numbers<[1], [1], [0], [0], [0, 0, 1, 0], [], []>} : vector<7x8xf32>, vector<7x8xf32>, vector<7x7xf32> -> vector<7x7xf32>
    %cst_342 = arith.constant -1.000000e+09 : f32
    %1031 = vector.broadcast %cst_342 : f32 to vector<7x7xf32>
    %1032 = arith.select %81, %1030, %1031 : vector<7x7xi1>, vector<7x7xf32>
    %cst_343 = arith.constant dense<0xFF800000> : vector<7xf32>
    %1033 = vector.multi_reduction <maximumf>, %1032, %cst_343 [1] : vector<7x7xf32> to vector<7xf32>
    %1034 = vector.shape_cast %1033 : vector<7xf32> to vector<7x1xf32>
    %1035 = vector.broadcast %1034 : vector<7x1xf32> to vector<7x7xf32>
    %1036 = arith.subf %1032, %1035 : vector<7x7xf32>
    %1037 = math.exp %1036 : vector<7x7xf32>
    %cst_344 = arith.constant dense<0.000000e+00> : vector<7xf32>
    %1038 = vector.multi_reduction <add>, %1037, %cst_344 [1] : vector<7x7xf32> to vector<7xf32>
    %1039 = vector.shape_cast %1038 : vector<7xf32> to vector<7x1xf32>
    %1040 = vector.broadcast %1039 : vector<7x1xf32> to vector<7x7xf32>
    %1041 = arith.divf %1037, %1040 : vector<7x7xf32>
    %1042 = vector.extract_strided_slice %1011 {offsets = [0, 8], sizes = [7, 8], strides = [1, 1]} : vector<7x32xf32> to vector<7x8xf32>
    %cst_345 = arith.constant dense<0.000000e+00> : vector<7x8xf32>
    %1043 = tpu.matmul %1041, %1042, %cst_345 {dimension_numbers = #tpu.dot_dimension_numbers<[1], [0], [0], [1], [0, 0, 1, 1], [], []>} : vector<7x7xf32>, vector<7x8xf32>, vector<7x8xf32> -> vector<7x8xf32>
    %1044 = vector.extract_strided_slice %1009 {offsets = [0, 16], sizes = [7, 8], strides = [1, 1]} : vector<7x32xf32> to vector<7x8xf32>
    %1045 = vector.extract_strided_slice %1010 {offsets = [0, 16], sizes = [7, 8], strides = [1, 1]} : vector<7x32xf32> to vector<7x8xf32>
    %cst_346 = arith.constant dense<0.000000e+00> : vector<7x7xf32>
    %1046 = tpu.matmul %1044, %1045, %cst_346 {dimension_numbers = #tpu.dot_dimension_numbers<[1], [1], [0], [0], [0, 0, 1, 0], [], []>} : vector<7x8xf32>, vector<7x8xf32>, vector<7x7xf32> -> vector<7x7xf32>
    %cst_347 = arith.constant -1.000000e+09 : f32
    %1047 = vector.broadcast %cst_347 : f32 to vector<7x7xf32>
    %1048 = arith.select %81, %1046, %1047 : vector<7x7xi1>, vector<7x7xf32>
    %cst_348 = arith.constant dense<0xFF800000> : vector<7xf32>
    %1049 = vector.multi_reduction <maximumf>, %1048, %cst_348 [1] : vector<7x7xf32> to vector<7xf32>
    %1050 = vector.shape_cast %1049 : vector<7xf32> to vector<7x1xf32>
    %1051 = vector.broadcast %1050 : vector<7x1xf32> to vector<7x7xf32>
    %1052 = arith.subf %1048, %1051 : vector<7x7xf32>
    %1053 = math.exp %1052 : vector<7x7xf32>
    %cst_349 = arith.constant dense<0.000000e+00> : vector<7xf32>
    %1054 = vector.multi_reduction <add>, %1053, %cst_349 [1] : vector<7x7xf32> to vector<7xf32>
    %1055 = vector.shape_cast %1054 : vector<7xf32> to vector<7x1xf32>
    %1056 = vector.broadcast %1055 : vector<7x1xf32> to vector<7x7xf32>
    %1057 = arith.divf %1053, %1056 : vector<7x7xf32>
    %1058 = vector.extract_strided_slice %1011 {offsets = [0, 16], sizes = [7, 8], strides = [1, 1]} : vector<7x32xf32> to vector<7x8xf32>
    %cst_350 = arith.constant dense<0.000000e+00> : vector<7x8xf32>
    %1059 = tpu.matmul %1057, %1058, %cst_350 {dimension_numbers = #tpu.dot_dimension_numbers<[1], [0], [0], [1], [0, 0, 1, 1], [], []>} : vector<7x7xf32>, vector<7x8xf32>, vector<7x8xf32> -> vector<7x8xf32>
    %1060 = vector.extract_strided_slice %1009 {offsets = [0, 24], sizes = [7, 8], strides = [1, 1]} : vector<7x32xf32> to vector<7x8xf32>
    %1061 = vector.extract_strided_slice %1010 {offsets = [0, 24], sizes = [7, 8], strides = [1, 1]} : vector<7x32xf32> to vector<7x8xf32>
    %cst_351 = arith.constant dense<0.000000e+00> : vector<7x7xf32>
    %1062 = tpu.matmul %1060, %1061, %cst_351 {dimension_numbers = #tpu.dot_dimension_numbers<[1], [1], [0], [0], [0, 0, 1, 0], [], []>} : vector<7x8xf32>, vector<7x8xf32>, vector<7x7xf32> -> vector<7x7xf32>
    %cst_352 = arith.constant -1.000000e+09 : f32
    %1063 = vector.broadcast %cst_352 : f32 to vector<7x7xf32>
    %1064 = arith.select %81, %1062, %1063 : vector<7x7xi1>, vector<7x7xf32>
    %cst_353 = arith.constant dense<0xFF800000> : vector<7xf32>
    %1065 = vector.multi_reduction <maximumf>, %1064, %cst_353 [1] : vector<7x7xf32> to vector<7xf32>
    %1066 = vector.shape_cast %1065 : vector<7xf32> to vector<7x1xf32>
    %1067 = vector.broadcast %1066 : vector<7x1xf32> to vector<7x7xf32>
    %1068 = arith.subf %1064, %1067 : vector<7x7xf32>
    %1069 = math.exp %1068 : vector<7x7xf32>
    %cst_354 = arith.constant dense<0.000000e+00> : vector<7xf32>
    %1070 = vector.multi_reduction <add>, %1069, %cst_354 [1] : vector<7x7xf32> to vector<7xf32>
    %1071 = vector.shape_cast %1070 : vector<7xf32> to vector<7x1xf32>
    %1072 = vector.broadcast %1071 : vector<7x1xf32> to vector<7x7xf32>
    %1073 = arith.divf %1069, %1072 : vector<7x7xf32>
    %1074 = vector.extract_strided_slice %1011 {offsets = [0, 24], sizes = [7, 8], strides = [1, 1]} : vector<7x32xf32> to vector<7x8xf32>
    %cst_355 = arith.constant dense<0.000000e+00> : vector<7x8xf32>
    %1075 = tpu.matmul %1073, %1074, %cst_355 {dimension_numbers = #tpu.dot_dimension_numbers<[1], [0], [0], [1], [0, 0, 1, 1], [], []>} : vector<7x7xf32>, vector<7x8xf32>, vector<7x8xf32> -> vector<7x8xf32>
    %1076 = tpu.concatenate %1027, %1043, %1059, %1075 in 1 : vector<7x8xf32>, vector<7x8xf32>, vector<7x8xf32>, vector<7x8xf32> -> vector<7x32xf32>
    %1077 = tpu.concatenate %1008, %1076 in 0 : vector<7x32xf32>, vector<7x32xf32> -> vector<14x32xf32>
    %cst_356 = arith.constant dense<0.000000e+00> : vector<14x32xf32>
    %1078 = tpu.matmul %1077, %936, %cst_356 {dimension_numbers = #tpu.dot_dimension_numbers<[1], [0], [0], [1], [0, 0, 1, 1], [], []>} : vector<14x32xf32>, vector<32x32xf32>, vector<14x32xf32> -> vector<14x32xf32>
    %1079 = arith.addf %1078, %932 : vector<14x32xf32>
    %cst_357 = arith.constant dense<0.000000e+00> : vector<14xf32>
    %1080 = vector.multi_reduction <add>, %1079, %cst_357 [1] : vector<14x32xf32> to vector<14xf32>
    %1081 = vector.shape_cast %1080 : vector<14xf32> to vector<14x1xf32>
    %cst_358 = arith.constant 3.200000e+01 : f32
    %1082 = vector.broadcast %cst_358 : f32 to vector<14x1xf32>
    %1083 = arith.divf %1081, %1082 : vector<14x1xf32>
    %1084 = vector.broadcast %1083 : vector<14x1xf32> to vector<14x32xf32>
    %1085 = arith.subf %1079, %1084 : vector<14x32xf32>
    %1086 = arith.mulf %1085, %1085 : vector<14x32xf32>
    %cst_359 = arith.constant dense<0.000000e+00> : vector<14xf32>
    %1087 = vector.multi_reduction <add>, %1086, %cst_359 [1] : vector<14x32xf32> to vector<14xf32>
    %1088 = vector.shape_cast %1087 : vector<14xf32> to vector<14x1xf32>
    %cst_360 = arith.constant 3.200000e+01 : f32
    %1089 = vector.broadcast %cst_360 : f32 to vector<14x1xf32>
    %1090 = arith.divf %1088, %1089 : vector<14x1xf32>
    %1091 = vector.broadcast %1083 : vector<14x1xf32> to vector<14x32xf32>
    %1092 = arith.subf %1079, %1091 : vector<14x32xf32>
    %cst_361 = arith.constant 9.99999997E-7 : f32
    %1093 = vector.broadcast %cst_361 : f32 to vector<14x1xf32>
    %1094 = arith.addf %1090, %1093 : vector<14x1xf32>
    %1095 = math.rsqrt %1094 : vector<14x1xf32>
    %1096 = vector.broadcast %1095 : vector<14x1xf32> to vector<14x32xf32>
    %1097 = arith.mulf %1092, %1096 : vector<14x32xf32>
    %c21 = arith.constant 21 : index
    %c0_362 = arith.constant 0 : index
    %1098 = vector.load %arg3[%c21, %c0_362] : memref<28x32xf32, #tpu.memory_space<vmem>>, vector<1x32xf32>
    %1099 = vector.broadcast %1098 : vector<1x32xf32> to vector<14x32xf32>
    %1100 = arith.mulf %1097, %1099 : vector<14x32xf32>
    %c22 = arith.constant 22 : index
    %c0_363 = arith.constant 0 : index
    %1101 = vector.load %arg3[%c22, %c0_363] : memref<28x32xf32, #tpu.memory_space<vmem>>, vector<1x32xf32>
    %1102 = vector.broadcast %1101 : vector<1x32xf32> to vector<14x32xf32>
    %1103 = arith.addf %1100, %1102 : vector<14x32xf32>
    %c5_364 = arith.constant 5 : index
    %c0_365 = arith.constant 0 : index
    %c0_366 = arith.constant 0 : index
    %1104 = vector.load %arg5[%c5_364, %c0_365, %c0_366] : memref<6x32x96xf32, #tpu.memory_space<vmem>>, vector<1x32x96xf32>
    %1105 = vector.shape_cast %1104 : vector<1x32x96xf32> to vector<32x96xf32>
    %c5_367 = arith.constant 5 : index
    %c0_368 = arith.constant 0 : index
    %c0_369 = arith.constant 0 : index
    %1106 = vector.load %arg6[%c5_367, %c0_368, %c0_369] : memref<6x32x32xf32, #tpu.memory_space<vmem>>, vector<1x32x32xf32>
    %1107 = vector.shape_cast %1106 : vector<1x32x32xf32> to vector<32x32xf32>
    %1108 = vector.extract_strided_slice %1105 {offsets = [0, 0], sizes = [32, 32], strides = [1, 1]} : vector<32x96xf32> to vector<32x32xf32>
    %cst_370 = arith.constant dense<0.000000e+00> : vector<14x32xf32>
    %1109 = tpu.matmul %1103, %1108, %cst_370 {dimension_numbers = #tpu.dot_dimension_numbers<[1], [0], [0], [1], [0, 0, 1, 1], [], []>} : vector<14x32xf32>, vector<32x32xf32>, vector<14x32xf32> -> vector<14x32xf32>
    %1110 = vector.extract_strided_slice %1105 {offsets = [0, 32], sizes = [32, 64], strides = [1, 1]} : vector<32x96xf32> to vector<32x64xf32>
    %cst_371 = arith.constant dense<0.000000e+00> : vector<16x64xf32>
    %1111 = tpu.matmul %533, %1110, %cst_371 {dimension_numbers = #tpu.dot_dimension_numbers<[1], [0], [0], [1], [0, 0, 1, 1], [], []>} : vector<16x32xf32>, vector<32x64xf32>, vector<16x64xf32> -> vector<16x64xf32>
    %1112 = vector.extract_strided_slice %1111 {offsets = [0, 0], sizes = [16, 32], strides = [1, 1]} : vector<16x64xf32> to vector<16x32xf32>
    %1113 = vector.extract_strided_slice %1111 {offsets = [0, 32], sizes = [16, 32], strides = [1, 1]} : vector<16x64xf32> to vector<16x32xf32>
    %1114 = vector.extract_strided_slice %1109 {offsets = [0, 0], sizes = [7, 32], strides = [1, 1]} : vector<14x32xf32> to vector<7x32xf32>
    %1115 = vector.extract_strided_slice %1112 {offsets = [0, 0], sizes = [8, 32], strides = [1, 1]} : vector<16x32xf32> to vector<8x32xf32>
    %1116 = vector.extract_strided_slice %1113 {offsets = [0, 0], sizes = [8, 32], strides = [1, 1]} : vector<16x32xf32> to vector<8x32xf32>
    %1117 = vector.extract_strided_slice %1114 {offsets = [0, 0], sizes = [7, 8], strides = [1, 1]} : vector<7x32xf32> to vector<7x8xf32>
    %1118 = vector.extract_strided_slice %1115 {offsets = [0, 0], sizes = [8, 8], strides = [1, 1]} : vector<8x32xf32> to vector<8x8xf32>
    %cst_372 = arith.constant dense<0.000000e+00> : vector<7x8xf32>
    %1119 = tpu.matmul %1117, %1118, %cst_372 {dimension_numbers = #tpu.dot_dimension_numbers<[1], [1], [0], [0], [0, 0, 1, 0], [], []>} : vector<7x8xf32>, vector<8x8xf32>, vector<7x8xf32> -> vector<7x8xf32>
    %cst_373 = arith.constant -1.000000e+09 : f32
    %1120 = vector.shape_cast %68 : vector<1x8xi1> to vector<1x8xi1>
    %1121 = vector.broadcast %1120 : vector<1x8xi1> to vector<7x8xi1>
    %1122 = vector.broadcast %cst_373 : f32 to vector<7x8xf32>
    %1123 = arith.select %1121, %1119, %1122 : vector<7x8xi1>, vector<7x8xf32>
    %cst_374 = arith.constant dense<0xFF800000> : vector<7xf32>
    %1124 = vector.multi_reduction <maximumf>, %1123, %cst_374 [1] : vector<7x8xf32> to vector<7xf32>
    %1125 = vector.shape_cast %1124 : vector<7xf32> to vector<7x1xf32>
    %1126 = vector.broadcast %1125 : vector<7x1xf32> to vector<7x8xf32>
    %1127 = arith.subf %1123, %1126 : vector<7x8xf32>
    %1128 = math.exp %1127 : vector<7x8xf32>
    %cst_375 = arith.constant dense<0.000000e+00> : vector<7xf32>
    %1129 = vector.multi_reduction <add>, %1128, %cst_375 [1] : vector<7x8xf32> to vector<7xf32>
    %1130 = vector.shape_cast %1129 : vector<7xf32> to vector<7x1xf32>
    %1131 = vector.broadcast %1130 : vector<7x1xf32> to vector<7x8xf32>
    %1132 = arith.divf %1128, %1131 : vector<7x8xf32>
    %1133 = vector.extract_strided_slice %1116 {offsets = [0, 0], sizes = [8, 8], strides = [1, 1]} : vector<8x32xf32> to vector<8x8xf32>
    %cst_376 = arith.constant dense<0.000000e+00> : vector<7x8xf32>
    %1134 = tpu.matmul %1132, %1133, %cst_376 {dimension_numbers = #tpu.dot_dimension_numbers<[1], [0], [0], [1], [0, 0, 1, 1], [], []>} : vector<7x8xf32>, vector<8x8xf32>, vector<7x8xf32> -> vector<7x8xf32>
    %1135 = vector.extract_strided_slice %1114 {offsets = [0, 8], sizes = [7, 8], strides = [1, 1]} : vector<7x32xf32> to vector<7x8xf32>
    %1136 = vector.extract_strided_slice %1115 {offsets = [0, 8], sizes = [8, 8], strides = [1, 1]} : vector<8x32xf32> to vector<8x8xf32>
    %cst_377 = arith.constant dense<0.000000e+00> : vector<7x8xf32>
    %1137 = tpu.matmul %1135, %1136, %cst_377 {dimension_numbers = #tpu.dot_dimension_numbers<[1], [1], [0], [0], [0, 0, 1, 0], [], []>} : vector<7x8xf32>, vector<8x8xf32>, vector<7x8xf32> -> vector<7x8xf32>
    %cst_378 = arith.constant -1.000000e+09 : f32
    %1138 = vector.shape_cast %68 : vector<1x8xi1> to vector<1x8xi1>
    %1139 = vector.broadcast %1138 : vector<1x8xi1> to vector<7x8xi1>
    %1140 = vector.broadcast %cst_378 : f32 to vector<7x8xf32>
    %1141 = arith.select %1139, %1137, %1140 : vector<7x8xi1>, vector<7x8xf32>
    %cst_379 = arith.constant dense<0xFF800000> : vector<7xf32>
    %1142 = vector.multi_reduction <maximumf>, %1141, %cst_379 [1] : vector<7x8xf32> to vector<7xf32>
    %1143 = vector.shape_cast %1142 : vector<7xf32> to vector<7x1xf32>
    %1144 = vector.broadcast %1143 : vector<7x1xf32> to vector<7x8xf32>
    %1145 = arith.subf %1141, %1144 : vector<7x8xf32>
    %1146 = math.exp %1145 : vector<7x8xf32>
    %cst_380 = arith.constant dense<0.000000e+00> : vector<7xf32>
    %1147 = vector.multi_reduction <add>, %1146, %cst_380 [1] : vector<7x8xf32> to vector<7xf32>
    %1148 = vector.shape_cast %1147 : vector<7xf32> to vector<7x1xf32>
    %1149 = vector.broadcast %1148 : vector<7x1xf32> to vector<7x8xf32>
    %1150 = arith.divf %1146, %1149 : vector<7x8xf32>
    %1151 = vector.extract_strided_slice %1116 {offsets = [0, 8], sizes = [8, 8], strides = [1, 1]} : vector<8x32xf32> to vector<8x8xf32>
    %cst_381 = arith.constant dense<0.000000e+00> : vector<7x8xf32>
    %1152 = tpu.matmul %1150, %1151, %cst_381 {dimension_numbers = #tpu.dot_dimension_numbers<[1], [0], [0], [1], [0, 0, 1, 1], [], []>} : vector<7x8xf32>, vector<8x8xf32>, vector<7x8xf32> -> vector<7x8xf32>
    %1153 = vector.extract_strided_slice %1114 {offsets = [0, 16], sizes = [7, 8], strides = [1, 1]} : vector<7x32xf32> to vector<7x8xf32>
    %1154 = vector.extract_strided_slice %1115 {offsets = [0, 16], sizes = [8, 8], strides = [1, 1]} : vector<8x32xf32> to vector<8x8xf32>
    %cst_382 = arith.constant dense<0.000000e+00> : vector<7x8xf32>
    %1155 = tpu.matmul %1153, %1154, %cst_382 {dimension_numbers = #tpu.dot_dimension_numbers<[1], [1], [0], [0], [0, 0, 1, 0], [], []>} : vector<7x8xf32>, vector<8x8xf32>, vector<7x8xf32> -> vector<7x8xf32>
    %cst_383 = arith.constant -1.000000e+09 : f32
    %1156 = vector.shape_cast %68 : vector<1x8xi1> to vector<1x8xi1>
    %1157 = vector.broadcast %1156 : vector<1x8xi1> to vector<7x8xi1>
    %1158 = vector.broadcast %cst_383 : f32 to vector<7x8xf32>
    %1159 = arith.select %1157, %1155, %1158 : vector<7x8xi1>, vector<7x8xf32>
    %cst_384 = arith.constant dense<0xFF800000> : vector<7xf32>
    %1160 = vector.multi_reduction <maximumf>, %1159, %cst_384 [1] : vector<7x8xf32> to vector<7xf32>
    %1161 = vector.shape_cast %1160 : vector<7xf32> to vector<7x1xf32>
    %1162 = vector.broadcast %1161 : vector<7x1xf32> to vector<7x8xf32>
    %1163 = arith.subf %1159, %1162 : vector<7x8xf32>
    %1164 = math.exp %1163 : vector<7x8xf32>
    %cst_385 = arith.constant dense<0.000000e+00> : vector<7xf32>
    %1165 = vector.multi_reduction <add>, %1164, %cst_385 [1] : vector<7x8xf32> to vector<7xf32>
    %1166 = vector.shape_cast %1165 : vector<7xf32> to vector<7x1xf32>
    %1167 = vector.broadcast %1166 : vector<7x1xf32> to vector<7x8xf32>
    %1168 = arith.divf %1164, %1167 : vector<7x8xf32>
    %1169 = vector.extract_strided_slice %1116 {offsets = [0, 16], sizes = [8, 8], strides = [1, 1]} : vector<8x32xf32> to vector<8x8xf32>
    %cst_386 = arith.constant dense<0.000000e+00> : vector<7x8xf32>
    %1170 = tpu.matmul %1168, %1169, %cst_386 {dimension_numbers = #tpu.dot_dimension_numbers<[1], [0], [0], [1], [0, 0, 1, 1], [], []>} : vector<7x8xf32>, vector<8x8xf32>, vector<7x8xf32> -> vector<7x8xf32>
    %1171 = vector.extract_strided_slice %1114 {offsets = [0, 24], sizes = [7, 8], strides = [1, 1]} : vector<7x32xf32> to vector<7x8xf32>
    %1172 = vector.extract_strided_slice %1115 {offsets = [0, 24], sizes = [8, 8], strides = [1, 1]} : vector<8x32xf32> to vector<8x8xf32>
    %cst_387 = arith.constant dense<0.000000e+00> : vector<7x8xf32>
    %1173 = tpu.matmul %1171, %1172, %cst_387 {dimension_numbers = #tpu.dot_dimension_numbers<[1], [1], [0], [0], [0, 0, 1, 0], [], []>} : vector<7x8xf32>, vector<8x8xf32>, vector<7x8xf32> -> vector<7x8xf32>
    %cst_388 = arith.constant -1.000000e+09 : f32
    %1174 = vector.shape_cast %68 : vector<1x8xi1> to vector<1x8xi1>
    %1175 = vector.broadcast %1174 : vector<1x8xi1> to vector<7x8xi1>
    %1176 = vector.broadcast %cst_388 : f32 to vector<7x8xf32>
    %1177 = arith.select %1175, %1173, %1176 : vector<7x8xi1>, vector<7x8xf32>
    %cst_389 = arith.constant dense<0xFF800000> : vector<7xf32>
    %1178 = vector.multi_reduction <maximumf>, %1177, %cst_389 [1] : vector<7x8xf32> to vector<7xf32>
    %1179 = vector.shape_cast %1178 : vector<7xf32> to vector<7x1xf32>
    %1180 = vector.broadcast %1179 : vector<7x1xf32> to vector<7x8xf32>
    %1181 = arith.subf %1177, %1180 : vector<7x8xf32>
    %1182 = math.exp %1181 : vector<7x8xf32>
    %cst_390 = arith.constant dense<0.000000e+00> : vector<7xf32>
    %1183 = vector.multi_reduction <add>, %1182, %cst_390 [1] : vector<7x8xf32> to vector<7xf32>
    %1184 = vector.shape_cast %1183 : vector<7xf32> to vector<7x1xf32>
    %1185 = vector.broadcast %1184 : vector<7x1xf32> to vector<7x8xf32>
    %1186 = arith.divf %1182, %1185 : vector<7x8xf32>
    %1187 = vector.extract_strided_slice %1116 {offsets = [0, 24], sizes = [8, 8], strides = [1, 1]} : vector<8x32xf32> to vector<8x8xf32>
    %cst_391 = arith.constant dense<0.000000e+00> : vector<7x8xf32>
    %1188 = tpu.matmul %1186, %1187, %cst_391 {dimension_numbers = #tpu.dot_dimension_numbers<[1], [0], [0], [1], [0, 0, 1, 1], [], []>} : vector<7x8xf32>, vector<8x8xf32>, vector<7x8xf32> -> vector<7x8xf32>
    %1189 = tpu.concatenate %1134, %1152, %1170, %1188 in 1 : vector<7x8xf32>, vector<7x8xf32>, vector<7x8xf32>, vector<7x8xf32> -> vector<7x32xf32>
    %1190 = vector.extract_strided_slice %1109 {offsets = [7, 0], sizes = [7, 32], strides = [1, 1]} : vector<14x32xf32> to vector<7x32xf32>
    %1191 = vector.extract_strided_slice %1112 {offsets = [8, 0], sizes = [8, 32], strides = [1, 1]} : vector<16x32xf32> to vector<8x32xf32>
    %1192 = vector.extract_strided_slice %1113 {offsets = [8, 0], sizes = [8, 32], strides = [1, 1]} : vector<16x32xf32> to vector<8x32xf32>
    %1193 = vector.extract_strided_slice %1190 {offsets = [0, 0], sizes = [7, 8], strides = [1, 1]} : vector<7x32xf32> to vector<7x8xf32>
    %1194 = vector.extract_strided_slice %1191 {offsets = [0, 0], sizes = [8, 8], strides = [1, 1]} : vector<8x32xf32> to vector<8x8xf32>
    %cst_392 = arith.constant dense<0.000000e+00> : vector<7x8xf32>
    %1195 = tpu.matmul %1193, %1194, %cst_392 {dimension_numbers = #tpu.dot_dimension_numbers<[1], [1], [0], [0], [0, 0, 1, 0], [], []>} : vector<7x8xf32>, vector<8x8xf32>, vector<7x8xf32> -> vector<7x8xf32>
    %cst_393 = arith.constant -1.000000e+09 : f32
    %1196 = vector.shape_cast %76 : vector<1x8xi1> to vector<1x8xi1>
    %1197 = vector.broadcast %1196 : vector<1x8xi1> to vector<7x8xi1>
    %1198 = vector.broadcast %cst_393 : f32 to vector<7x8xf32>
    %1199 = arith.select %1197, %1195, %1198 : vector<7x8xi1>, vector<7x8xf32>
    %cst_394 = arith.constant dense<0xFF800000> : vector<7xf32>
    %1200 = vector.multi_reduction <maximumf>, %1199, %cst_394 [1] : vector<7x8xf32> to vector<7xf32>
    %1201 = vector.shape_cast %1200 : vector<7xf32> to vector<7x1xf32>
    %1202 = vector.broadcast %1201 : vector<7x1xf32> to vector<7x8xf32>
    %1203 = arith.subf %1199, %1202 : vector<7x8xf32>
    %1204 = math.exp %1203 : vector<7x8xf32>
    %cst_395 = arith.constant dense<0.000000e+00> : vector<7xf32>
    %1205 = vector.multi_reduction <add>, %1204, %cst_395 [1] : vector<7x8xf32> to vector<7xf32>
    %1206 = vector.shape_cast %1205 : vector<7xf32> to vector<7x1xf32>
    %1207 = vector.broadcast %1206 : vector<7x1xf32> to vector<7x8xf32>
    %1208 = arith.divf %1204, %1207 : vector<7x8xf32>
    %1209 = vector.extract_strided_slice %1192 {offsets = [0, 0], sizes = [8, 8], strides = [1, 1]} : vector<8x32xf32> to vector<8x8xf32>
    %cst_396 = arith.constant dense<0.000000e+00> : vector<7x8xf32>
    %1210 = tpu.matmul %1208, %1209, %cst_396 {dimension_numbers = #tpu.dot_dimension_numbers<[1], [0], [0], [1], [0, 0, 1, 1], [], []>} : vector<7x8xf32>, vector<8x8xf32>, vector<7x8xf32> -> vector<7x8xf32>
    %1211 = vector.extract_strided_slice %1190 {offsets = [0, 8], sizes = [7, 8], strides = [1, 1]} : vector<7x32xf32> to vector<7x8xf32>
    %1212 = vector.extract_strided_slice %1191 {offsets = [0, 8], sizes = [8, 8], strides = [1, 1]} : vector<8x32xf32> to vector<8x8xf32>
    %cst_397 = arith.constant dense<0.000000e+00> : vector<7x8xf32>
    %1213 = tpu.matmul %1211, %1212, %cst_397 {dimension_numbers = #tpu.dot_dimension_numbers<[1], [1], [0], [0], [0, 0, 1, 0], [], []>} : vector<7x8xf32>, vector<8x8xf32>, vector<7x8xf32> -> vector<7x8xf32>
    %cst_398 = arith.constant -1.000000e+09 : f32
    %1214 = vector.shape_cast %76 : vector<1x8xi1> to vector<1x8xi1>
    %1215 = vector.broadcast %1214 : vector<1x8xi1> to vector<7x8xi1>
    %1216 = vector.broadcast %cst_398 : f32 to vector<7x8xf32>
    %1217 = arith.select %1215, %1213, %1216 : vector<7x8xi1>, vector<7x8xf32>
    %cst_399 = arith.constant dense<0xFF800000> : vector<7xf32>
    %1218 = vector.multi_reduction <maximumf>, %1217, %cst_399 [1] : vector<7x8xf32> to vector<7xf32>
    %1219 = vector.shape_cast %1218 : vector<7xf32> to vector<7x1xf32>
    %1220 = vector.broadcast %1219 : vector<7x1xf32> to vector<7x8xf32>
    %1221 = arith.subf %1217, %1220 : vector<7x8xf32>
    %1222 = math.exp %1221 : vector<7x8xf32>
    %cst_400 = arith.constant dense<0.000000e+00> : vector<7xf32>
    %1223 = vector.multi_reduction <add>, %1222, %cst_400 [1] : vector<7x8xf32> to vector<7xf32>
    %1224 = vector.shape_cast %1223 : vector<7xf32> to vector<7x1xf32>
    %1225 = vector.broadcast %1224 : vector<7x1xf32> to vector<7x8xf32>
    %1226 = arith.divf %1222, %1225 : vector<7x8xf32>
    %1227 = vector.extract_strided_slice %1192 {offsets = [0, 8], sizes = [8, 8], strides = [1, 1]} : vector<8x32xf32> to vector<8x8xf32>
    %cst_401 = arith.constant dense<0.000000e+00> : vector<7x8xf32>
    %1228 = tpu.matmul %1226, %1227, %cst_401 {dimension_numbers = #tpu.dot_dimension_numbers<[1], [0], [0], [1], [0, 0, 1, 1], [], []>} : vector<7x8xf32>, vector<8x8xf32>, vector<7x8xf32> -> vector<7x8xf32>
    %1229 = vector.extract_strided_slice %1190 {offsets = [0, 16], sizes = [7, 8], strides = [1, 1]} : vector<7x32xf32> to vector<7x8xf32>
    %1230 = vector.extract_strided_slice %1191 {offsets = [0, 16], sizes = [8, 8], strides = [1, 1]} : vector<8x32xf32> to vector<8x8xf32>
    %cst_402 = arith.constant dense<0.000000e+00> : vector<7x8xf32>
    %1231 = tpu.matmul %1229, %1230, %cst_402 {dimension_numbers = #tpu.dot_dimension_numbers<[1], [1], [0], [0], [0, 0, 1, 0], [], []>} : vector<7x8xf32>, vector<8x8xf32>, vector<7x8xf32> -> vector<7x8xf32>
    %cst_403 = arith.constant -1.000000e+09 : f32
    %1232 = vector.shape_cast %76 : vector<1x8xi1> to vector<1x8xi1>
    %1233 = vector.broadcast %1232 : vector<1x8xi1> to vector<7x8xi1>
    %1234 = vector.broadcast %cst_403 : f32 to vector<7x8xf32>
    %1235 = arith.select %1233, %1231, %1234 : vector<7x8xi1>, vector<7x8xf32>
    %cst_404 = arith.constant dense<0xFF800000> : vector<7xf32>
    %1236 = vector.multi_reduction <maximumf>, %1235, %cst_404 [1] : vector<7x8xf32> to vector<7xf32>
    %1237 = vector.shape_cast %1236 : vector<7xf32> to vector<7x1xf32>
    %1238 = vector.broadcast %1237 : vector<7x1xf32> to vector<7x8xf32>
    %1239 = arith.subf %1235, %1238 : vector<7x8xf32>
    %1240 = math.exp %1239 : vector<7x8xf32>
    %cst_405 = arith.constant dense<0.000000e+00> : vector<7xf32>
    %1241 = vector.multi_reduction <add>, %1240, %cst_405 [1] : vector<7x8xf32> to vector<7xf32>
    %1242 = vector.shape_cast %1241 : vector<7xf32> to vector<7x1xf32>
    %1243 = vector.broadcast %1242 : vector<7x1xf32> to vector<7x8xf32>
    %1244 = arith.divf %1240, %1243 : vector<7x8xf32>
    %1245 = vector.extract_strided_slice %1192 {offsets = [0, 16], sizes = [8, 8], strides = [1, 1]} : vector<8x32xf32> to vector<8x8xf32>
    %cst_406 = arith.constant dense<0.000000e+00> : vector<7x8xf32>
    %1246 = tpu.matmul %1244, %1245, %cst_406 {dimension_numbers = #tpu.dot_dimension_numbers<[1], [0], [0], [1], [0, 0, 1, 1], [], []>} : vector<7x8xf32>, vector<8x8xf32>, vector<7x8xf32> -> vector<7x8xf32>
    %1247 = vector.extract_strided_slice %1190 {offsets = [0, 24], sizes = [7, 8], strides = [1, 1]} : vector<7x32xf32> to vector<7x8xf32>
    %1248 = vector.extract_strided_slice %1191 {offsets = [0, 24], sizes = [8, 8], strides = [1, 1]} : vector<8x32xf32> to vector<8x8xf32>
    %cst_407 = arith.constant dense<0.000000e+00> : vector<7x8xf32>
    %1249 = tpu.matmul %1247, %1248, %cst_407 {dimension_numbers = #tpu.dot_dimension_numbers<[1], [1], [0], [0], [0, 0, 1, 0], [], []>} : vector<7x8xf32>, vector<8x8xf32>, vector<7x8xf32> -> vector<7x8xf32>
    %cst_408 = arith.constant -1.000000e+09 : f32
    %1250 = vector.shape_cast %76 : vector<1x8xi1> to vector<1x8xi1>
    %1251 = vector.broadcast %1250 : vector<1x8xi1> to vector<7x8xi1>
    %1252 = vector.broadcast %cst_408 : f32 to vector<7x8xf32>
    %1253 = arith.select %1251, %1249, %1252 : vector<7x8xi1>, vector<7x8xf32>
    %cst_409 = arith.constant dense<0xFF800000> : vector<7xf32>
    %1254 = vector.multi_reduction <maximumf>, %1253, %cst_409 [1] : vector<7x8xf32> to vector<7xf32>
    %1255 = vector.shape_cast %1254 : vector<7xf32> to vector<7x1xf32>
    %1256 = vector.broadcast %1255 : vector<7x1xf32> to vector<7x8xf32>
    %1257 = arith.subf %1253, %1256 : vector<7x8xf32>
    %1258 = math.exp %1257 : vector<7x8xf32>
    %cst_410 = arith.constant dense<0.000000e+00> : vector<7xf32>
    %1259 = vector.multi_reduction <add>, %1258, %cst_410 [1] : vector<7x8xf32> to vector<7xf32>
    %1260 = vector.shape_cast %1259 : vector<7xf32> to vector<7x1xf32>
    %1261 = vector.broadcast %1260 : vector<7x1xf32> to vector<7x8xf32>
    %1262 = arith.divf %1258, %1261 : vector<7x8xf32>
    %1263 = vector.extract_strided_slice %1192 {offsets = [0, 24], sizes = [8, 8], strides = [1, 1]} : vector<8x32xf32> to vector<8x8xf32>
    %cst_411 = arith.constant dense<0.000000e+00> : vector<7x8xf32>
    %1264 = tpu.matmul %1262, %1263, %cst_411 {dimension_numbers = #tpu.dot_dimension_numbers<[1], [0], [0], [1], [0, 0, 1, 1], [], []>} : vector<7x8xf32>, vector<8x8xf32>, vector<7x8xf32> -> vector<7x8xf32>
    %1265 = tpu.concatenate %1210, %1228, %1246, %1264 in 1 : vector<7x8xf32>, vector<7x8xf32>, vector<7x8xf32>, vector<7x8xf32> -> vector<7x32xf32>
    %1266 = tpu.concatenate %1189, %1265 in 0 : vector<7x32xf32>, vector<7x32xf32> -> vector<14x32xf32>
    %cst_412 = arith.constant dense<0.000000e+00> : vector<14x32xf32>
    %1267 = tpu.matmul %1266, %1107, %cst_412 {dimension_numbers = #tpu.dot_dimension_numbers<[1], [0], [0], [1], [0, 0, 1, 1], [], []>} : vector<14x32xf32>, vector<32x32xf32>, vector<14x32xf32> -> vector<14x32xf32>
    %1268 = arith.addf %1267, %1103 : vector<14x32xf32>
    %cst_413 = arith.constant dense<0.000000e+00> : vector<14xf32>
    %1269 = vector.multi_reduction <add>, %1268, %cst_413 [1] : vector<14x32xf32> to vector<14xf32>
    %1270 = vector.shape_cast %1269 : vector<14xf32> to vector<14x1xf32>
    %cst_414 = arith.constant 3.200000e+01 : f32
    %1271 = vector.broadcast %cst_414 : f32 to vector<14x1xf32>
    %1272 = arith.divf %1270, %1271 : vector<14x1xf32>
    %1273 = vector.broadcast %1272 : vector<14x1xf32> to vector<14x32xf32>
    %1274 = arith.subf %1268, %1273 : vector<14x32xf32>
    %1275 = arith.mulf %1274, %1274 : vector<14x32xf32>
    %cst_415 = arith.constant dense<0.000000e+00> : vector<14xf32>
    %1276 = vector.multi_reduction <add>, %1275, %cst_415 [1] : vector<14x32xf32> to vector<14xf32>
    %1277 = vector.shape_cast %1276 : vector<14xf32> to vector<14x1xf32>
    %cst_416 = arith.constant 3.200000e+01 : f32
    %1278 = vector.broadcast %cst_416 : f32 to vector<14x1xf32>
    %1279 = arith.divf %1277, %1278 : vector<14x1xf32>
    %1280 = vector.broadcast %1272 : vector<14x1xf32> to vector<14x32xf32>
    %1281 = arith.subf %1268, %1280 : vector<14x32xf32>
    %cst_417 = arith.constant 9.99999997E-7 : f32
    %1282 = vector.broadcast %cst_417 : f32 to vector<14x1xf32>
    %1283 = arith.addf %1279, %1282 : vector<14x1xf32>
    %1284 = math.rsqrt %1283 : vector<14x1xf32>
    %1285 = vector.broadcast %1284 : vector<14x1xf32> to vector<14x32xf32>
    %1286 = arith.mulf %1281, %1285 : vector<14x32xf32>
    %c23 = arith.constant 23 : index
    %c0_418 = arith.constant 0 : index
    %1287 = vector.load %arg3[%c23, %c0_418] : memref<28x32xf32, #tpu.memory_space<vmem>>, vector<1x32xf32>
    %1288 = vector.broadcast %1287 : vector<1x32xf32> to vector<14x32xf32>
    %1289 = arith.mulf %1286, %1288 : vector<14x32xf32>
    %c24_419 = arith.constant 24 : index
    %c0_420 = arith.constant 0 : index
    %1290 = vector.load %arg3[%c24_419, %c0_420] : memref<28x32xf32, #tpu.memory_space<vmem>>, vector<1x32xf32>
    %1291 = vector.broadcast %1290 : vector<1x32xf32> to vector<14x32xf32>
    %1292 = arith.addf %1289, %1291 : vector<14x32xf32>
    %c3_421 = arith.constant 3 : index
    %c0_422 = arith.constant 0 : index
    %c0_423 = arith.constant 0 : index
    %1293 = vector.load %arg7[%c3_421, %c0_422, %c0_423] : memref<4x32x64xf32, #tpu.memory_space<vmem>>, vector<1x32x64xf32>
    %1294 = vector.shape_cast %1293 : vector<1x32x64xf32> to vector<32x64xf32>
    %c3_424 = arith.constant 3 : index
    %c0_425 = arith.constant 0 : index
    %c0_426 = arith.constant 0 : index
    %1295 = vector.load %arg8[%c3_424, %c0_425, %c0_426] : memref<4x64x32xf32, #tpu.memory_space<vmem>>, vector<1x64x32xf32>
    %1296 = vector.shape_cast %1295 : vector<1x64x32xf32> to vector<64x32xf32>
    %cst_427 = arith.constant dense<0.000000e+00> : vector<14x64xf32>
    %1297 = tpu.matmul %1292, %1294, %cst_427 {dimension_numbers = #tpu.dot_dimension_numbers<[1], [0], [0], [1], [0, 0, 1, 1], [], []>} : vector<14x32xf32>, vector<32x64xf32>, vector<14x64xf32> -> vector<14x64xf32>
    %c3_428 = arith.constant 3 : index
    %c0_429 = arith.constant 0 : index
    %1298 = vector.load %arg4[%c3_428, %c0_429] : memref<4x64xf32, #tpu.memory_space<vmem>>, vector<1x64xf32>
    %1299 = vector.broadcast %1298 : vector<1x64xf32> to vector<14x64xf32>
    %1300 = arith.addf %1297, %1299 : vector<14x64xf32>
    %cst_430 = arith.constant 0.000000e+00 : f32
    %1301 = vector.broadcast %cst_430 : f32 to vector<14x64xf32>
    %1302 = arith.maximumf %1300, %1301 : vector<14x64xf32>
    %cst_431 = arith.constant dense<0.000000e+00> : vector<14x32xf32>
    %1303 = tpu.matmul %1302, %1296, %cst_431 {dimension_numbers = #tpu.dot_dimension_numbers<[1], [0], [0], [1], [0, 0, 1, 1], [], []>} : vector<14x64xf32>, vector<64x32xf32>, vector<14x32xf32> -> vector<14x32xf32>
    %c25 = arith.constant 25 : index
    %c0_432 = arith.constant 0 : index
    %1304 = vector.load %arg3[%c25, %c0_432] : memref<28x32xf32, #tpu.memory_space<vmem>>, vector<1x32xf32>
    %1305 = vector.broadcast %1304 : vector<1x32xf32> to vector<14x32xf32>
    %1306 = arith.addf %1303, %1305 : vector<14x32xf32>
    %1307 = arith.addf %1306, %1292 : vector<14x32xf32>
    %cst_433 = arith.constant dense<0.000000e+00> : vector<14xf32>
    %1308 = vector.multi_reduction <add>, %1307, %cst_433 [1] : vector<14x32xf32> to vector<14xf32>
    %1309 = vector.shape_cast %1308 : vector<14xf32> to vector<14x1xf32>
    %cst_434 = arith.constant 3.200000e+01 : f32
    %1310 = vector.broadcast %cst_434 : f32 to vector<14x1xf32>
    %1311 = arith.divf %1309, %1310 : vector<14x1xf32>
    %1312 = vector.broadcast %1311 : vector<14x1xf32> to vector<14x32xf32>
    %1313 = arith.subf %1307, %1312 : vector<14x32xf32>
    %1314 = arith.mulf %1313, %1313 : vector<14x32xf32>
    %cst_435 = arith.constant dense<0.000000e+00> : vector<14xf32>
    %1315 = vector.multi_reduction <add>, %1314, %cst_435 [1] : vector<14x32xf32> to vector<14xf32>
    %1316 = vector.shape_cast %1315 : vector<14xf32> to vector<14x1xf32>
    %cst_436 = arith.constant 3.200000e+01 : f32
    %1317 = vector.broadcast %cst_436 : f32 to vector<14x1xf32>
    %1318 = arith.divf %1316, %1317 : vector<14x1xf32>
    %1319 = vector.broadcast %1311 : vector<14x1xf32> to vector<14x32xf32>
    %1320 = arith.subf %1307, %1319 : vector<14x32xf32>
    %cst_437 = arith.constant 9.99999997E-7 : f32
    %1321 = vector.broadcast %cst_437 : f32 to vector<14x1xf32>
    %1322 = arith.addf %1318, %1321 : vector<14x1xf32>
    %1323 = math.rsqrt %1322 : vector<14x1xf32>
    %1324 = vector.broadcast %1323 : vector<14x1xf32> to vector<14x32xf32>
    %1325 = arith.mulf %1320, %1324 : vector<14x32xf32>
    %c26 = arith.constant 26 : index
    %c0_438 = arith.constant 0 : index
    %1326 = vector.load %arg3[%c26, %c0_438] : memref<28x32xf32, #tpu.memory_space<vmem>>, vector<1x32xf32>
    %1327 = vector.broadcast %1326 : vector<1x32xf32> to vector<14x32xf32>
    %1328 = arith.mulf %1325, %1327 : vector<14x32xf32>
    %c27 = arith.constant 27 : index
    %c0_439 = arith.constant 0 : index
    %1329 = vector.load %arg3[%c27, %c0_439] : memref<28x32xf32, #tpu.memory_space<vmem>>, vector<1x32xf32>
    %1330 = vector.broadcast %1329 : vector<1x32xf32> to vector<14x32xf32>
    %1331 = arith.addf %1328, %1330 : vector<14x32xf32>
    %cst_440 = arith.constant dense<0.000000e+00> : vector<14x16xf32>
    %1332 = tpu.matmul %1331, %1, %cst_440 {dimension_numbers = #tpu.dot_dimension_numbers<[1], [1], [0], [0], [0, 0, 1, 0], [], []>} : vector<14x32xf32>, vector<16x32xf32>, vector<14x16xf32> -> vector<14x16xf32>
    %cst_441 = arith.constant dense<0xFF800000> : vector<14xf32>
    %1333 = vector.multi_reduction <maximumf>, %1332, %cst_441 [1] : vector<14x16xf32> to vector<14xf32>
    %1334 = vector.shape_cast %1333 : vector<14xf32> to vector<14x1xf32>
    %1335 = vector.broadcast %1334 : vector<14x1xf32> to vector<14x16xf32>
    %1336 = arith.subf %1332, %1335 : vector<14x16xf32>
    %1337 = math.exp %1336 : vector<14x16xf32>
    %cst_442 = arith.constant dense<0.000000e+00> : vector<14xf32>
    %1338 = vector.multi_reduction <add>, %1337, %cst_442 [1] : vector<14x16xf32> to vector<14xf32>
    %1339 = vector.shape_cast %1338 : vector<14xf32> to vector<14x1xf32>
    %1340 = math.log %1339 : vector<14x1xf32>
    %1341 = vector.broadcast %1340 : vector<14x1xf32> to vector<14x16xf32>
    %1342 = arith.subf %1336, %1341 : vector<14x16xf32>
    %c64 = arith.constant 64 : index
    %c0_443 = arith.constant 0 : index
    %1343 = vector.load %arg0[%c64, %c0_443] : memref<78x1xi32, #tpu.memory_space<vmem>>, vector<14x1xi32>
    %1344 = tpu.iota {dimensions = array<i32: 1>} : vector<14x16xi32>
    %1345 = vector.broadcast %1343 : vector<14x1xi32> to vector<14x16xi32>
    %1346 = arith.cmpi eq, %1344, %1345 : vector<14x16xi32>
    %cst_444 = arith.constant 0.000000e+00 : f32
    %1347 = vector.broadcast %cst_444 : f32 to vector<14x16xf32>
    %1348 = arith.select %1346, %1342, %1347 : vector<14x16xi1>, vector<14x16xf32>
    %cst_445 = arith.constant dense<0.000000e+00> : vector<14xf32>
    %1349 = vector.multi_reduction <add>, %1348, %cst_445 [1] : vector<14x16xf32> to vector<14xf32>
    %1350 = vector.shape_cast %1349 : vector<14xf32> to vector<14x1xf32>
    %1351 = vector.extract_strided_slice %1350 {offsets = [0, 0], sizes = [7, 1], strides = [1, 1]} : vector<14x1xf32> to vector<7x1xf32>
    %1352 = tpu.transpose %1351, [1, 0] : vector<7x1xf32> -> vector<1x7xf32>
    %1353 = vector.extract_strided_slice %1350 {offsets = [7, 0], sizes = [7, 1], strides = [1, 1]} : vector<14x1xf32> to vector<7x1xf32>
    %1354 = tpu.transpose %1353, [1, 0] : vector<7x1xf32> -> vector<1x7xf32>
    %1355 = tpu.concatenate %1352, %1354 in 0 : vector<1x7xf32>, vector<1x7xf32> -> vector<2x7xf32>
    %c0_446 = arith.constant 0 : index
    %c0_447 = arith.constant 0 : index
    %1356 = vector.load %arg9[%c0_446, %c0_447] : memref<2x7xf32, #tpu.memory_space<vmem>>, vector<2x7xf32>
    tpu.vector_store %arg9[%c0_446, %c0_447], %1355 {strides = array<i32>} : memref<2x7xf32, #tpu.memory_space<vmem>>, vector<2x7xf32>,
    return
  }
}

</mosaic_0001>

<llo_original>
// kernel: transformer_forward.1
$region0: #{transformer_forward.1}
  #allocation0 [shape = 'u32[]', space=smem, size = 0x4, offset = 0x4, fixed_abs, tag = 'smem constant byte address 0x4 - core index']
  #allocation1 [shape = 'u32[72,128]{1,0:T(1,128)}', space=vmem, size = 0x9000, scoped, tag = 'internal scratch']
  %s0 = inlined_call_operand.vmem [shape: s32[78,1], index: 0, kind: input, shape index: {}]
  %s1 = inlined_call_operand.vmem [shape: s32[4,8], index: 1, kind: input, shape index: {}]
  %s2 = inlined_call_operand.vmem [shape: f32[40,32], index: 2, kind: input, shape index: {}]
  %s3 = inlined_call_operand.vmem [shape: f32[28,32], index: 3, kind: input, shape index: {}]
  %s4 = inlined_call_operand.vmem [shape: f32[4,64], index: 4, kind: input, shape index: {}]
  %s5 = inlined_call_operand.vmem [shape: f32[6,32,96], index: 5, kind: input, shape index: {}]
  %s6 = inlined_call_operand.vmem [shape: f32[6,32,32], index: 6, kind: input, shape index: {}]
  %s7 = inlined_call_operand.vmem [shape: f32[4,32,64], index: 7, kind: input, shape index: {}]
  %s8 = inlined_call_operand.vmem [shape: f32[4,64,32], index: 8, kind: input, shape index: {}]
  %s9 = inlined_call_operand.hbm [shape: f32[2,7], index: 9, kind: output, shape index: {}]
  %s10 = sld [smem:[#allocation0]]
  $region46: #{transformer_forward.1} parent=0
    _
  %s12 = ssub.s32 1, %s10
  %s13 = scalar_select 0, %s12, %s10
  $region1: #{transformer_forward.1} parent=0
    #allocation2 [shape = 'u8[1024]{0}', space=vmem, size = 0x400, scoped, tag = 'output window, operand 0, single buffered']
    #allocation3 [shape = 's32[1]{0}', space=sflag, size = 0x4, scoped, tag = 'scoped memory for transformer_forward.1']
    %14 = vsyncpa [#allocation3], 0
    // Predicated region
    $region2: #{transformer_forward.1} parent=1 // pred_check
      _
    $region3: #{transformer_forward.1} parent=1 // pred_check_branch
      %16 = sbr.rel (0) target = $region5
    $region4: #{transformer_forward.1} parent=1 // pred_region
      _
    $region5: #{transformer_forward.1} parent=1 // pred_fallthru
      _
    // Predicated region
    $region6: #{transformer_forward.1} parent=1 // pred_check
      _
    $region7: #{transformer_forward.1} parent=1 // pred_check_branch
      %18 = sbr.rel (0) target = $region9
    $region8: #{transformer_forward.1} parent=1 // pred_region
      _
    $region9: #{transformer_forward.1} parent=1 // pred_fallthru
      _
    // Predicated region
    $region10: #{transformer_forward.1} parent=1 // pred_check
      _
    $region11: #{transformer_forward.1} parent=1 // pred_check_branch
      %20 = sbr.rel (0) target = $region13
    $region12: #{transformer_forward.1} parent=1 // pred_region
      _
    $region13: #{transformer_forward.1} parent=1 // pred_fallthru
      _
    // Predicated region
    $region14: #{transformer_forward.1} parent=1 // pred_check
      _
    $region15: #{transformer_forward.1} parent=1 // pred_check_branch
      %22 = sbr.rel (0) target = $region17
    $region16: #{transformer_forward.1} parent=1 // pred_region
      _
    $region17: #{transformer_forward.1} parent=1 // pred_fallthru
      _
    // Predicated region
    $region18: #{transformer_forward.1} parent=1 // pred_check
      _
    $region19: #{transformer_forward.1} parent=1 // pred_check_branch
      %24 = sbr.rel (0) target = $region21
    $region20: #{transformer_forward.1} parent=1 // pred_region
      _
    $region21: #{transformer_forward.1} parent=1 // pred_fallthru
      _
    // Predicated region
    $region22: #{transformer_forward.1} parent=1 // pred_check
      _
    $region23: #{transformer_forward.1} parent=1 // pred_check_branch
      %26 = sbr.rel (0) target = $region25
    $region24: #{transformer_forward.1} parent=1 // pred_region
      _
    $region25: #{transformer_forward.1} parent=1 // pred_fallthru
      _
    // Predicated region
    $region26: #{transformer_forward.1} parent=1 // pred_check
      _
    $region27: #{transformer_forward.1} parent=1 // pred_check_branch
      %28 = sbr.rel (0) target = $region29
    $region28: #{transformer_forward.1} parent=1 // pred_region
      _
    $region29: #{transformer_forward.1} parent=1 // pred_fallthru
      _
    // Predicated region
    $region30: #{transformer_forward.1} parent=1 // pred_check
      _
    $region31: #{transformer_forward.1} parent=1 // pred_check_branch
      %30 = sbr.rel (0) target = $region33
    $region32: #{transformer_forward.1} parent=1 // pred_region
      _
    $region33: #{transformer_forward.1} parent=1 // pred_fallthru
      _
    // Predicated region
    $region34: #{transformer_forward.1} parent=1 // pred_check
      _
    $region35: #{transformer_forward.1} parent=1 // pred_check_branch
      %32 = sbr.rel (0) target = $region37
    $region36: #{transformer_forward.1} parent=1 // pred_region
      _
    $region37: #{transformer_forward.1} parent=1 // pred_fallthru
      _
    %v33 = vld [vmem:[%s2] sm:$0xff]
    %v34 = vld [vmem:[%s2 + $0x8] sm:$0xff]
    %v35 = vld [vmem:[%s2 + $0x10] sm:$0xff]
    %v36 = vld [vmem:[%s2 + $0x18] sm:$0xff]
    %v37 = vld [vmem:[%s2 + $0x20] sm:$0xff]
    %v38 = vld [vmem:[%s0] sm:$0xff]
    %v39 = vld [vmem:[%s0 + $0x8] sm:$0xff]
    %v40 = vld [vmem:[%s0 + $0x10] sm:$0xff]
    %v41 = vld [vmem:[%s0 + $0x18] sm:$0x3f]
    %v42 = vld [vmem:[%s0 + $0x20] sm:$0xff]
    %v43 = vld [vmem:[%s0 + $0x28] sm:$0xff]
    %v44 = vld [vmem:[%s0 + $0x30] sm:$0xff]
    %v45 = vld [vmem:[%s0 + $0x38] sm:$0x3f]
    %v46 = vlaneseq
    %v47 = vand.u32 %v46, 127
    %48 = vset.pattern.permute.xlu0 0
    %49 = vperm.xlu0 %48, %v38
    %v50 = vpop.permute.xlu0 %49
    %51 = vset.pattern.permute.xlu0 0
    %52 = vperm.xlu0 %51, %v39
    %v53 = vpop.permute.xlu0 %52
    %54 = vset.pattern.permute.xlu0 0
    %55 = vperm.xlu0 %54, %v40
    %v56 = vpop.permute.xlu0 %55
    %57 = vset.pattern.permute.xlu0 0
    %58 = vperm.xlu0 %57, %v41
    %v59 = vpop.permute.xlu0 %58
    %vm60 = vcmp.eq.s32.totalorder %v47, %v50
    %vm61 = vcmp.eq.s32.totalorder %v47, %v53
    %vm62 = vcmp.eq.s32.totalorder %v47, %v56
    %vm63 = vcmp.eq.s32.totalorder %v47, %v59
    %64 = vset.pattern.permute.xlu0 0
    %65 = vperm.xlu0 %64, %v42
    %v66 = vpop.permute.xlu0 %65
    %67 = vset.pattern.permute.xlu0 0
    %68 = vperm.xlu0 %67, %v43
    %v69 = vpop.permute.xlu0 %68
    %70 = vset.pattern.permute.xlu0 0
    %71 = vperm.xlu0 %70, %v44
    %v72 = vpop.permute.xlu0 %71
    %73 = vset.pattern.permute.xlu0 0
    %74 = vperm.xlu0 %73, %v45
    %v75 = vpop.permute.xlu0 %74
    %vm76 = vcmp.eq.s32.totalorder %v47, %v66
    %vm77 = vcmp.eq.s32.totalorder %v47, %v69
    %vm78 = vcmp.eq.s32.totalorder %v47, %v72
    %vm79 = vcmp.eq.s32.totalorder %v47, %v75
    %vm80 = vmor %vm60, %vm76
    %vm81 = vmor %vm61, %vm77
    %vm82 = vmor %vm62, %vm78
    %vm83 = vmor %vm63, %vm79
    %v84 = vsel %vm80, 1, 0
    %v85 = vsel %vm81, 1, 0
    %v86 = vsel %vm82, 1, 0
    %v87 = vsel %vm83, 1, 0
    %v88 = vcvt.s32.f32 %v84
    %v89 = vcvt.s32.f32 %v85
    %v90 = vcvt.s32.f32 %v86
    %v91 = vcvt.s32.f32 %v87
    %vm92 = vcmask 195584
    %v94 = vsel %vm92, %v88, 0
    %v97 = vsel %vm92, %v89, 0
    %v100 = vsel %vm92, %v90, 0
    %v103 = vsel %vm92, %v91, 0
    %105 = vmatpush.msra.mxu0 0.0
    %106 = vmatpush.msra.mxu0 0.0
    %107 = vmatpush.msra.mxu0 0.0
    %108 = vmatpush.msra.mxu0 0.0
    %109 = vmatpush.msra.mxu0 0.0
    %110 = vmatpush.msra.mxu0 0.0
    %111 = vmatpush.msra.mxu0 0.0
    %112 = vmatpush.msra.mxu0 0.0
    %113 = vmatpush.msra.mxu0 0.0
    %114 = vmatpush.msra.mxu0 0.0
    %115 = vmatpush.msra.mxu0 0.0
    %116 = vmatpush.msra.mxu0 0.0
    %117 = vmatpush.msra.mxu0 0.0
    %118 = vmatpush.msra.mxu0 %v35
    %119 = vmatpush.msra.mxu0 %v34
    %120 = vmatpush.msra.mxu0 %v33
    %121 = vmatmul.f32.gmra.mxu0 %v94
    %v122 = vpop.f32.mrf.mxu0
    %v123 = vadd.f32 0.0, %v122
    %124 = vmatmul.f32.gmra.mxu0 %v97
    %v125 = vpop.f32.mrf.mxu0
    %v126 = vadd.f32 0.0, %v125
    %127 = vmatmul.f32.gmra.mxu0 %v100
    %v128 = vpop.f32.mrf.mxu0
    %v129 = vadd.f32 0.0, %v128
    %130 = vmatmul.f32.gmra.mxu0 %v103
    %v131 = vpop.f32.mrf.mxu0
    %v132 = vadd.f32 0.0, %v131
    %133 = vdwg.mxu0
    %vm134 = vcmask 261120
    %v135 = vsel %vm134, %v123, 0.0
    %136 = vadd.xlane.f32.xlu0 %v135
    %v137 = vpop.xlane.xlu0 %136
    %v138 = vsel %vm134, %v126, 0.0
    %139 = vadd.xlane.f32.xlu0 %v138
    %v140 = vpop.xlane.xlu0 %139
    %v141 = vrcp.pop 32.0
    %v142 = vmul.f32 32.0, %v141
    %v143 = vsub.f32 1.0, %v142
    %v144 = vmul.f32 %v141, %v143
    %v145 = vadd.f32 %v141, %v144
    %vm146 = vweird.f32 %v141
    %v147 = vsel %vm146, %v141, %v145
    %v148 = vmul.f32 %v137, %v147
    %v149 = vmul.f32 %v140, %v147
    %v150 = vsub.f32 %v123, %v148
    %v151 = vsub.f32 %v126, %v149
    %v152 = vmul.f32 %v150, %v150
    %v153 = vmul.f32 %v151, %v151
    %v154 = vsel %vm134, %v152, 0.0
    %155 = vadd.xlane.f32.xlu0 %v154
    %v156 = vpop.xlane.xlu0 %155
    %v157 = vsel %vm134, %v153, 0.0
    %158 = vadd.xlane.f32.xlu0 %v157
    %v159 = vpop.xlane.xlu0 %158
    %v160 = vmul.f32 %v156, %v147
    %v161 = vmul.f32 %v159, %v147
    %v162 = vadd.f32 %v160, 1e-06
    %v163 = vadd.f32 %v161, 1e-06
    %v164 = vrsqrt.pop %v162
    %v165 = vmul.f32 %v164, %v162
    %v166 = vmul.f32 %v165, %v164
    %v167 = vmul.f32 0.5, %v166
    %v168 = vsub.f32 1.5, %v167
    %v169 = vmul.f32 %v164, %v168
    %vm170 = vweird.f32 %v162
    %vm171 = vweird.f32 %v164
    %vm172 = vmor %vm170, %vm171
    %v173 = vsel %vm172, %v164, %v169
    %v174 = vrsqrt.pop %v163
    %v175 = vmul.f32 %v174, %v163
    %v176 = vmul.f32 %v175, %v174
    %v177 = vmul.f32 0.5, %v176
    %v178 = vsub.f32 1.5, %v177
    %v179 = vmul.f32 %v174, %v178
    %vm180 = vweird.f32 %v163
    %vm181 = vweird.f32 %v174
    %vm182 = vmor %vm180, %vm181
    %v183 = vsel %vm182, %v174, %v179
    %v184 = vmul.f32 %v150, %v173
    %v185 = vmul.f32 %v151, %v183
    %v186 = vld [vmem:[%s3] sm:$0x1]
    %v187 = vperm.slane %v186, 0
    %v188 = vmul.f32 %v184, %v187
    %v189 = vmul.f32 %v185, %v187
    %v190 = vld [vmem:[%s3 + $0x1] sm:$0x1]
    %v191 = vperm.slane %v190, 0
    %v192 = vadd.f32 %v188, %v191
    %v193 = vadd.f32 %v189, %v191
    %v194 = vsel %vm134, %v129, 0.0
    %195 = vadd.xlane.f32.xlu0 %v194
    %v196 = vpop.xlane.xlu0 %195
    %vm197 = vcmask 259072
    %v198 = vsel %vm197, %v132, 0.0
    %199 = vadd.xlane.f32.xlu0 %v198
    %v200 = vpop.xlane.xlu0 %199
    %v201 = vmul.f32 %v196, %v147
    %v202 = vmul.f32 %v200, %v147
    %v203 = vsub.f32 %v129, %v201
    %v204 = vsub.f32 %v132, %v202
    %v205 = vmul.f32 %v203, %v203
    %v206 = vmul.f32 %v204, %v204
    %v207 = vsel %vm134, %v205, 0.0
    %208 = vadd.xlane.f32.xlu0 %v207
    %v209 = vpop.xlane.xlu0 %208
    %v210 = vsel %vm197, %v206, 0.0
    %211 = vadd.xlane.f32.xlu0 %v210
    %v212 = vpop.xlane.xlu0 %211
    %v213 = vmul.f32 %v209, %v147
    %v214 = vmul.f32 %v212, %v147
    %v215 = vadd.f32 %v213, 1e-06
    %v216 = vadd.f32 %v214, 1e-06
    %v217 = vrsqrt.pop %v215
    %v218 = vmul.f32 %v217, %v215
    %v219 = vmul.f32 %v218, %v217
    %v220 = vmul.f32 0.5, %v219
    %v221 = vsub.f32 1.5, %v220
    %v222 = vmul.f32 %v217, %v221
    %vm223 = vweird.f32 %v215
    %vm224 = vweird.f32 %v217
    %vm225 = vmor %vm223, %vm224
    %v226 = vsel %vm225, %v217, %v222
    %v227 = vrsqrt.pop %v216
    %v228 = vmul.f32 %v227, %v216
    %v229 = vmul.f32 %v228, %v227
    %v230 = vmul.f32 0.5, %v229
    %v231 = vsub.f32 1.5, %v230
    %v232 = vmul.f32 %v227, %v231
    %vm233 = vweird.f32 %v216
    %vm234 = vweird.f32 %v227
    %vm235 = vmor %vm233, %vm234
    %v236 = vsel %vm235, %v227, %v232
    %v237 = vmul.f32 %v203, %v226
    %v238 = vmul.f32 %v204, %v236
    %v239 = vld [vmem:[%s3 + $0x2] sm:$0x1]
    %v240 = vperm.slane %v239, 0
    %v241 = vmul.f32 %v237, %v240
    %v242 = vmul.f32 %v238, %v240
    %v243 = vld [vmem:[%s3 + $0x3] sm:$0x1]
    %v244 = vperm.slane %v243, 0
    %v245 = vadd.f32 %v241, %v244
    %v246 = vadd.f32 %v242, %v244
    %v247 = vlaneseq
    %v248 = vshrl.u32 %v247, 7
    %vm249 = vcmp.le.s32.totalorder %v47, %v248
    %v250 = vld [vmem:[%s1] sm:$0x1]
    %vm251 = vcmp.ne.s32.totalorder %v250, 0
    %v252 = vld [vmem:[%s1 + $0x2] sm:$0x1]
    %vm253 = vcmp.ne.s32.totalorder %v252, 0
    %v254 = vsel %vm253, 1, 0
    %v255 = vperm.slane %v254, 0
    %vm256 = vcmp.eq.s32.totalorder %v255, 1
    %vm257 = vmand %vm249, %vm256
    %v258 = vld [vmem:[%s1 + $0x1] sm:$0x1]
    %vm259 = vcmp.ne.s32.totalorder %v258, 0
    %v260 = vld [vmem:[%s1 + $0x3] sm:$0x1]
    %vm261 = vcmp.ne.s32.totalorder %v260, 0
    %v262 = vsel %vm261, 1, 0
    %v263 = vperm.slane %v262, 0
    %vm264 = vcmp.eq.s32.totalorder %v263, 1
    %vm265 = vmand %vm249, %vm264
    %v266 = vld [vmem:[%s5] sm:$0xff]
    %v267 = vld [vmem:[%s5 + $0x8] sm:$0xff]
    %v268 = vld [vmem:[%s5 + $0x10] sm:$0xff]
    %v269 = vld [vmem:[%s5 + $0x18] sm:$0xff]
    %v270 = vld [vmem:[%s6] sm:$0xff]
    %v271 = vld [vmem:[%s6 + $0x8] sm:$0xff]
    %v272 = vld [vmem:[%s6 + $0x10] sm:$0xff]
    %v273 = vld [vmem:[%s6 + $0x18] sm:$0xff]
    %v275 = vsel %vm134, %v192, 0
    %v278 = vsel %vm134, %v193, 0
    %280 = vmatpush.msra.mxu0 0.0
    %281 = vmatpush.msra.mxu0 0.0
    %282 = vmatpush.msra.mxu0 0.0
    %283 = vmatpush.msra.mxu0 0.0
    %284 = vmatpush.msra.mxu0 0.0
    %285 = vmatpush.msra.mxu0 0.0
    %286 = vmatpush.msra.mxu0 0.0
    %287 = vmatpush.msra.mxu0 0.0
    %288 = vmatpush.msra.mxu0 0.0
    %289 = vmatpush.msra.mxu0 0.0
    %290 = vmatpush.msra.mxu0 0.0
    %291 = vmatpush.msra.mxu0 0.0
    %292 = vmatpush.msra.mxu0 %v269
    %293 = vmatpush.msra.mxu0 %v268
    %294 = vmatpush.msra.mxu0 %v267
    %295 = vmatpush.msra.mxu0 %v266
    %296 = vmatmul.f32.gmra.mxu0 %v275
    %v297 = vpop.f32.mrf.mxu0
    %v298 = vadd.f32 0.0, %v297
    %299 = vmatmul.f32.gmra.mxu0 %v278
    %v300 = vpop.f32.mrf.mxu0
    %v301 = vadd.f32 0.0, %v300
    %302 = vdwg.mxu0
    %304 = vrot.lane.b32.xlu0 %v298, 96
    %v305 = vpop.permute.xlu0 %304
    %vm306 = vcmask 64512
    %v307 = vsel %vm306, %v298, 0
    %v309 = vsel %vm306, %v305, 0
    %311 = vmatpush.xpose.msra.mxu0 0.0
    %312 = vmatpush.xpose.msra.mxu0 0.0
    %313 = vmatpush.xpose.msra.mxu0 0.0
    %314 = vmatpush.xpose.msra.mxu0 0.0
    %315 = vmatpush.xpose.msra.mxu0 0.0
    %316 = vmatpush.xpose.msra.mxu0 0.0
    %317 = vmatpush.xpose.msra.mxu0 0.0
    %318 = vmatpush.xpose.msra.mxu0 0.0
    %319 = vmatpush.xpose.msra.mxu0 0.0
    %320 = vmatpush.xpose.msra.mxu0 0.0
    %321 = vmatpush.xpose.msra.mxu0 0.0
    %322 = vmatpush.xpose.msra.mxu0 0.0
    %323 = vmatpush.xpose.msra.mxu0 0.0
    %324 = vmatpush.xpose.msra.mxu0 0.0
    %325 = vmatpush.xpose.msra.mxu0 0.0
    %326 = vmatpush.xpose.msra.mxu0 %v309
    %327 = vmatmul.f32.gmra.mxu0 %v307
    %v328 = vpop.f32.mrf.mxu0
    %v329 = vadd.f32 0.0, %v328
    %330 = vdwg.mxu0
    %v331 = vsel %vm251, 1, 0
    %v332 = vperm.slane %v331, 0
    %vm333 = vcmp.eq.s32.totalorder %v332, 1
    %v334 = vsel %vm333, %v329, -1e+09
    %v335 = vsel %vm306, %v334, -inf
    %336 = vmax.xlane.f32.xlu0 %v335
    %v337 = vpop.xlane.xlu0 %336
    %v338 = vsub.f32 %v334, %v337
    %v339 = vmul.f32 %v338, 1.442695
    %v340 = vpow.pop %v339
    %v341 = vsel %vm306, %v340, 0.0
    %342 = vadd.xlane.f32.xlu0 %v341
    %v343 = vpop.xlane.xlu0 %342
    %v344 = vrcp.pop %v343
    %v345 = vmul.f32 %v343, %v344
    %v346 = vsub.f32 1.0, %v345
    %v347 = vmul.f32 %v344, %v346
    %v348 = vadd.f32 %v344, %v347
    %vm349 = vweird.f32 %v343
    %vm350 = vweird.f32 %v344
    %vm351 = vmor %vm349, %vm350
    %v352 = vsel %vm351, %v344, %v348
    %v353 = vand.u32 2147483647, %v343
    %vm354 = vcmp.eq.f32.partialorder %v353, 8.507059e+37
    %v355 = vand.u32 %v343, 2147483648
    %v356 = vor.u32 1.1754944e-38, %v355
    %v357 = vsel %vm354, %v356, %v352
    %v358 = vmul.f32 %v340, %v357
    %359 = vrot.lane.b32.xlu0 %v298, 64
    %v360 = vpop.permute.xlu0 %359
    %v363 = vsel %vm306, %v358, 0
    %365 = vmatpush.msra.mxu0 0.0
    %366 = vmatpush.msra.mxu0 0.0
    %367 = vmatpush.msra.mxu0 0.0
    %368 = vmatpush.msra.mxu0 0.0
    %369 = vmatpush.msra.mxu0 0.0
    %370 = vmatpush.msra.mxu0 0.0
    %371 = vmatpush.msra.mxu0 0.0
    %372 = vmatpush.msra.mxu0 0.0
    %373 = vmatpush.msra.mxu0 0.0
    %374 = vmatpush.msra.mxu0 0.0
    %375 = vmatpush.msra.mxu0 0.0
    %376 = vmatpush.msra.mxu0 0.0
    %377 = vmatpush.msra.mxu0 0.0
    %378 = vmatpush.msra.mxu0 0.0
    %379 = vmatpush.msra.mxu0 0.0
    %380 = vmatpush.msra.mxu0 %v360
    %381 = vmatmul.f32.gmra.mxu0 %v363
    %v382 = vpop.f32.mrf.mxu0
    %v383 = vadd.f32 0.0, %v382
    %384 = vdwg.mxu0
    %385 = vrot.lane.b32.xlu0 %v298, 120
    %v386 = vpop.permute.xlu0 %385
    %387 = vrot.lane.b32.xlu0 %v298, 88
    %v388 = vpop.permute.xlu0 %387
    %v389 = vsel %vm306, %v386, 0
    %v391 = vsel %vm306, %v388, 0
    %393 = vmatpush.xpose.msra.mxu0 0.0
    %394 = vmatpush.xpose.msra.mxu0 0.0
    %395 = vmatpush.xpose.msra.mxu0 0.0
    %396 = vmatpush.xpose.msra.mxu0 0.0
    %397 = vmatpush.xpose.msra.mxu0 0.0
    %398 = vmatpush.xpose.msra.mxu0 0.0
    %399 = vmatpush.xpose.msra.mxu0 0.0
    %400 = vmatpush.xpose.msra.mxu0 0.0
    %401 = vmatpush.xpose.msra.mxu0 0.0
    %402 = vmatpush.xpose.msra.mxu0 0.0
    %403 = vmatpush.xpose.msra.mxu0 0.0
    %404 = vmatpush.xpose.msra.mxu0 0.0
    %405 = vmatpush.xpose.msra.mxu0 0.0
    %406 = vmatpush.xpose.msra.mxu0 0.0
    %407 = vmatpush.xpose.msra.mxu0 0.0
    %408 = vmatpush.xpose.msra.mxu0 %v391
    %409 = vmatmul.f32.gmra.mxu0 %v389
    %v410 = vpop.f32.mrf.mxu0
    %v411 = vadd.f32 0.0, %v410
    %412 = vdwg.mxu0
    %v413 = vsel %vm333, %v411, -1e+09
    %v414 = vsel %vm306, %v413, -inf
    %415 = vmax.xlane.f32.xlu0 %v414
    %v416 = vpop.xlane.xlu0 %415
    %v417 = vsub.f32 %v413, %v416
    %v418 = vmul.f32 %v417, 1.442695
    %v419 = vpow.pop %v418
    %v420 = vsel %vm306, %v419, 0.0
    %421 = vadd.xlane.f32.xlu0 %v420
    %v422 = vpop.xlane.xlu0 %421
    %v423 = vrcp.pop %v422
    %v424 = vmul.f32 %v422, %v423
    %v425 = vsub.f32 1.0, %v424
    %v426 = vmul.f32 %v423, %v425
    %v427 = vadd.f32 %v423, %v426
    %vm428 = vweird.f32 %v422
    %vm429 = vweird.f32 %v423
    %vm430 = vmor %vm428, %vm429
    %v431 = vsel %vm430, %v423, %v427
    %v432 = vand.u32 2147483647, %v422
    %vm433 = vcmp.eq.f32.partialorder %v432, 8.507059e+37
    %v434 = vand.u32 %v422, 2147483648
    %v435 = vor.u32 1.1754944e-38, %v434
    %v436 = vsel %vm433, %v435, %v431
    %v437 = vmul.f32 %v419, %v436
    %438 = vrot.lane.b32.xlu0 %v298, 56
    %v439 = vpop.permute.xlu0 %438
    %v442 = vsel %vm306, %v437, 0
    %444 = vmatpush.msra.mxu0 0.0
    %445 = vmatpush.msra.mxu0 0.0
    %446 = vmatpush.msra.mxu0 0.0
    %447 = vmatpush.msra.mxu0 0.0
    %448 = vmatpush.msra.mxu0 0.0
    %449 = vmatpush.msra.mxu0 0.0
    %450 = vmatpush.msra.mxu0 0.0
    %451 = vmatpush.msra.mxu0 0.0
    %452 = vmatpush.msra.mxu0 0.0
    %453 = vmatpush.msra.mxu0 0.0
    %454 = vmatpush.msra.mxu0 0.0
    %455 = vmatpush.msra.mxu0 0.0
    %456 = vmatpush.msra.mxu0 0.0
    %457 = vmatpush.msra.mxu0 0.0
    %458 = vmatpush.msra.mxu0 0.0
    %459 = vmatpush.msra.mxu0 %v439
    %460 = vmatmul.f32.gmra.mxu0 %v442
    %v461 = vpop.f32.mrf.mxu0
    %v462 = vadd.f32 0.0, %v461
    %463 = vdwg.mxu0
    %464 = vrot.lane.b32.xlu0 %v298, 112
    %v465 = vpop.permute.xlu0 %464
    %466 = vrot.lane.b32.xlu0 %v298, 80
    %v467 = vpop.permute.xlu0 %466
    %v468 = vsel %vm306, %v465, 0
    %v470 = vsel %vm306, %v467, 0
    %472 = vmatpush.xpose.msra.mxu0 0.0
    %473 = vmatpush.xpose.msra.mxu0 0.0
    %474 = vmatpush.xpose.msra.mxu0 0.0
    %475 = vmatpush.xpose.msra.mxu0 0.0
    %476 = vmatpush.xpose.msra.mxu0 0.0
    %477 = vmatpush.xpose.msra.mxu0 0.0
    %478 = vmatpush.xpose.msra.mxu0 0.0
    %479 = vmatpush.xpose.msra.mxu0 0.0
    %480 = vmatpush.xpose.msra.mxu0 0.0
    %481 = vmatpush.xpose.msra.mxu0 0.0
    %482 = vmatpush.xpose.msra.mxu0 0.0
    %483 = vmatpush.xpose.msra.mxu0 0.0
    %484 = vmatpush.xpose.msra.mxu0 0.0
    %485 = vmatpush.xpose.msra.mxu0 0.0
    %486 = vmatpush.xpose.msra.mxu0 0.0
    %487 = vmatpush.xpose.msra.mxu0 %v470
    %488 = vmatmul.f32.gmra.mxu0 %v468
    %v489 = vpop.f32.mrf.mxu0
    %v490 = vadd.f32 0.0, %v489
    %491 = vdwg.mxu0
    %v492 = vsel %vm333, %v490, -1e+09
    %v493 = vsel %vm306, %v492, -inf
    %494 = vmax.xlane.f32.xlu0 %v493
    %v495 = vpop.xlane.xlu0 %494
    %v496 = vsub.f32 %v492, %v495
    %v497 = vmul.f32 %v496, 1.442695
    %v498 = vpow.pop %v497
    %v499 = vsel %vm306, %v498, 0.0
    %500 = vadd.xlane.f32.xlu0 %v499
    %v501 = vpop.xlane.xlu0 %500
    %v502 = vrcp.pop %v501
    %v503 = vmul.f32 %v501, %v502
    %v504 = vsub.f32 1.0, %v503
    %v505 = vmul.f32 %v502, %v504
    %v506 = vadd.f32 %v502, %v505
    %vm507 = vweird.f32 %v501
    %vm508 = vweird.f32 %v502
    %vm509 = vmor %vm507, %vm508
    %v510 = vsel %vm509, %v502, %v506
    %v511 = vand.u32 2147483647, %v501
    %vm512 = vcmp.eq.f32.partialorder %v511, 8.507059e+37
    %v513 = vand.u32 %v501, 2147483648
    %v514 = vor.u32 1.1754944e-38, %v513
    %v515 = vsel %vm512, %v514, %v510
    %v516 = vmul.f32 %v498, %v515
    %517 = vrot.lane.b32.xlu0 %v298, 48
    %v518 = vpop.permute.xlu0 %517
    %v521 = vsel %vm306, %v516, 0
    %523 = vmatpush.msra.mxu0 0.0
    %524 = vmatpush.msra.mxu0 0.0
    %525 = vmatpush.msra.mxu0 0.0
    %526 = vmatpush.msra.mxu0 0.0
    %527 = vmatpush.msra.mxu0 0.0
    %528 = vmatpush.msra.mxu0 0.0
    %529 = vmatpush.msra.mxu0 0.0
    %530 = vmatpush.msra.mxu0 0.0
    %531 = vmatpush.msra.mxu0 0.0
    %532 = vmatpush.msra.mxu0 0.0
    %533 = vmatpush.msra.mxu0 0.0
    %534 = vmatpush.msra.mxu0 0.0
    %535 = vmatpush.msra.mxu0 0.0
    %536 = vmatpush.msra.mxu0 0.0
    %537 = vmatpush.msra.mxu0 0.0
    %538 = vmatpush.msra.mxu0 %v518
    %539 = vmatmul.f32.gmra.mxu0 %v521
    %v540 = vpop.f32.mrf.mxu0
    %v541 = vadd.f32 0.0, %v540
    %542 = vdwg.mxu0
    %543 = vrot.lane.b32.xlu0 %v298, 104
    %v544 = vpop.permute.xlu0 %543
    %545 = vrot.lane.b32.xlu0 %v298, 72
    %v546 = vpop.permute.xlu0 %545
    %v547 = vsel %vm306, %v544, 0
    %v549 = vsel %vm306, %v546, 0
    %551 = vmatpush.xpose.msra.mxu0 0.0
    %552 = vmatpush.xpose.msra.mxu0 0.0
    %553 = vmatpush.xpose.msra.mxu0 0.0
    %554 = vmatpush.xpose.msra.mxu0 0.0
    %555 = vmatpush.xpose.msra.mxu0 0.0
    %556 = vmatpush.xpose.msra.mxu0 0.0
    %557 = vmatpush.xpose.msra.mxu0 0.0
    %558 = vmatpush.xpose.msra.mxu0 0.0
    %559 = vmatpush.xpose.msra.mxu0 0.0
    %560 = vmatpush.xpose.msra.mxu0 0.0
    %561 = vmatpush.xpose.msra.mxu0 0.0
    %562 = vmatpush.xpose.msra.mxu0 0.0
    %563 = vmatpush.xpose.msra.mxu0 0.0
    %564 = vmatpush.xpose.msra.mxu0 0.0
    %565 = vmatpush.xpose.msra.mxu0 0.0
    %566 = vmatpush.xpose.msra.mxu0 %v549
    %567 = vmatmul.f32.gmra.mxu0 %v547
    %v568 = vpop.f32.mrf.mxu0
    %v569 = vadd.f32 0.0, %v568
    %570 = vdwg.mxu0
    %v571 = vsel %vm333, %v569, -1e+09
    %v572 = vsel %vm306, %v571, -inf
    %573 = vmax.xlane.f32.xlu0 %v572
    %v574 = vpop.xlane.xlu0 %573
    %v575 = vsub.f32 %v571, %v574
    %v576 = vmul.f32 %v575, 1.442695
    %v577 = vpow.pop %v576
    %v578 = vsel %vm306, %v577, 0.0
    %579 = vadd.xlane.f32.xlu0 %v578
    %v580 = vpop.xlane.xlu0 %579
    %v581 = vrcp.pop %v580
    %v582 = vmul.f32 %v580, %v581
    %v583 = vsub.f32 1.0, %v582
    %v584 = vmul.f32 %v581, %v583
    %v585 = vadd.f32 %v581, %v584
    %vm586 = vweird.f32 %v580
    %vm587 = vweird.f32 %v581
    %vm588 = vmor %vm586, %vm587
    %v589 = vsel %vm588, %v581, %v585
    %v590 = vand.u32 2147483647, %v580
    %vm591 = vcmp.eq.f32.partialorder %v590, 8.507059e+37
    %v592 = vand.u32 %v580, 2147483648
    %v593 = vor.u32 1.1754944e-38, %v592
    %v594 = vsel %vm591, %v593, %v589
    %v595 = vmul.f32 %v577, %v594
    %596 = vrot.lane.b32.xlu0 %v298, 40
    %v597 = vpop.permute.xlu0 %596
    %v600 = vsel %vm306, %v595, 0
    %602 = vmatpush.msra.mxu0 0.0
    %603 = vmatpush.msra.mxu0 0.0
    %604 = vmatpush.msra.mxu0 0.0
    %605 = vmatpush.msra.mxu0 0.0
    %606 = vmatpush.msra.mxu0 0.0
    %607 = vmatpush.msra.mxu0 0.0
    %608 = vmatpush.msra.mxu0 0.0
    %609 = vmatpush.msra.mxu0 0.0
    %610 = vmatpush.msra.mxu0 0.0
    %611 = vmatpush.msra.mxu0 0.0
    %612 = vmatpush.msra.mxu0 0.0
    %613 = vmatpush.msra.mxu0 0.0
    %614 = vmatpush.msra.mxu0 0.0
    %615 = vmatpush.msra.mxu0 0.0
    %616 = vmatpush.msra.mxu0 0.0
    %617 = vmatpush.msra.mxu0 %v597
    %618 = vmatmul.f32.gmra.mxu0 %v600
    %v619 = vpop.f32.mrf.mxu0
    %v620 = vadd.f32 0.0, %v619
    %621 = vdwg.mxu0
    %623 = vrot.lane.b32.xlu0 %v462, 8
    %v624 = vpop.permute.xlu0 %623
    %627 = vrot.lane.b32.xlu0 %v541, 16
    %v628 = vpop.permute.xlu0 %627
    %631 = vrot.lane.b32.xlu0 %v620, 24
    %v632 = vpop.permute.xlu0 %631
    %v634 = vsel %vm306, %v383, %v624
    %vm635 = vcmask 130048
    %v636 = vsel %vm635, %v634, %v628
    %v637 = vsel %vm92, %v636, %v632
    %639 = vrot.lane.b32.xlu0 %v301, 96
    %v640 = vpop.permute.xlu0 %639
    %v641 = vsel %vm306, %v301, 0
    %v643 = vsel %vm306, %v640, 0
    %645 = vmatpush.xpose.msra.mxu0 0.0
    %646 = vmatpush.xpose.msra.mxu0 0.0
    %647 = vmatpush.xpose.msra.mxu0 0.0
    %648 = vmatpush.xpose.msra.mxu0 0.0
    %649 = vmatpush.xpose.msra.mxu0 0.0
    %650 = vmatpush.xpose.msra.mxu0 0.0
    %651 = vmatpush.xpose.msra.mxu0 0.0
    %652 = vmatpush.xpose.msra.mxu0 0.0
    %653 = vmatpush.xpose.msra.mxu0 0.0
    %654 = vmatpush.xpose.msra.mxu0 0.0
    %655 = vmatpush.xpose.msra.mxu0 0.0
    %656 = vmatpush.xpose.msra.mxu0 0.0
    %657 = vmatpush.xpose.msra.mxu0 0.0
    %658 = vmatpush.xpose.msra.mxu0 0.0
    %659 = vmatpush.xpose.msra.mxu0 0.0
    %660 = vmatpush.xpose.msra.mxu0 %v643
    %661 = vmatmul.f32.gmra.mxu0 %v641
    %v662 = vpop.f32.mrf.mxu0
    %v663 = vadd.f32 0.0, %v662
    %664 = vdwg.mxu0
    %v665 = vsel %vm259, 1, 0
    %v666 = vperm.slane %v665, 0
    %vm667 = vcmp.eq.s32.totalorder %v666, 1
    %v668 = vsel %vm667, %v663, -1e+09
    %v669 = vsel %vm306, %v668, -inf
    %670 = vmax.xlane.f32.xlu0 %v669
    %v671 = vpop.xlane.xlu0 %670
    %v672 = vsub.f32 %v668, %v671
    %v673 = vmul.f32 %v672, 1.442695
    %v674 = vpow.pop %v673
    %v675 = vsel %vm306, %v674, 0.0
    %676 = vadd.xlane.f32.xlu0 %v675
    %v677 = vpop.xlane.xlu0 %676
    %v678 = vrcp.pop %v677
    %v679 = vmul.f32 %v677, %v678
    %v680 = vsub.f32 1.0, %v679
    %v681 = vmul.f32 %v678, %v680
    %v682 = vadd.f32 %v678, %v681
    %vm683 = vweird.f32 %v677
    %vm684 = vweird.f32 %v678
    %vm685 = vmor %vm683, %vm684
    %v686 = vsel %vm685, %v678, %v682
    %v687 = vand.u32 2147483647, %v677
    %vm688 = vcmp.eq.f32.partialorder %v687, 8.507059e+37
    %v689 = vand.u32 %v677, 2147483648
    %v690 = vor.u32 1.1754944e-38, %v689
    %v691 = vsel %vm688, %v690, %v686
    %v692 = vmul.f32 %v674, %v691
    %693 = vrot.lane.b32.xlu0 %v301, 64
    %v694 = vpop.permute.xlu0 %693
    %v697 = vsel %vm306, %v692, 0
    %699 = vmatpush.msra.mxu0 0.0
    %700 = vmatpush.msra.mxu0 0.0
    %701 = vmatpush.msra.mxu0 0.0
    %702 = vmatpush.msra.mxu0 0.0
    %703 = vmatpush.msra.mxu0 0.0
    %704 = vmatpush.msra.mxu0 0.0
    %705 = vmatpush.msra.mxu0 0.0
    %706 = vmatpush.msra.mxu0 0.0
    %707 = vmatpush.msra.mxu0 0.0
    %708 = vmatpush.msra.mxu0 0.0
    %709 = vmatpush.msra.mxu0 0.0
    %710 = vmatpush.msra.mxu0 0.0
    %711 = vmatpush.msra.mxu0 0.0
    %712 = vmatpush.msra.mxu0 0.0
    %713 = vmatpush.msra.mxu0 0.0
    %714 = vmatpush.msra.mxu0 %v694
    %715 = vmatmul.f32.gmra.mxu0 %v697
    %v716 = vpop.f32.mrf.mxu0
    %v717 = vadd.f32 0.0, %v716
    %718 = vdwg.mxu0
    %719 = vrot.lane.b32.xlu0 %v301, 120
    %v720 = vpop.permute.xlu0 %719
    %721 = vrot.lane.b32.xlu0 %v301, 88
    %v722 = vpop.permute.xlu0 %721
    %v723 = vsel %vm306, %v720, 0
    %v725 = vsel %vm306, %v722, 0
    %727 = vmatpush.xpose.msra.mxu0 0.0
    %728 = vmatpush.xpose.msra.mxu0 0.0
    %729 = vmatpush.xpose.msra.mxu0 0.0
    %730 = vmatpush.xpose.msra.mxu0 0.0
    %731 = vmatpush.xpose.msra.mxu0 0.0
    %732 = vmatpush.xpose.msra.mxu0 0.0
    %733 = vmatpush.xpose.msra.mxu0 0.0
    %734 = vmatpush.xpose.msra.mxu0 0.0
    %735 = vmatpush.xpose.msra.mxu0 0.0
    %736 = vmatpush.xpose.msra.mxu0 0.0
    %737 = vmatpush.xpose.msra.mxu0 0.0
    %738 = vmatpush.xpose.msra.mxu0 0.0
    %739 = vmatpush.xpose.msra.mxu0 0.0
    %740 = vmatpush.xpose.msra.mxu0 0.0
    %741 = vmatpush.xpose.msra.mxu0 0.0
    %742 = vmatpush.xpose.msra.mxu0 %v725
    %743 = vmatmul.f32.gmra.mxu0 %v723
    %v744 = vpop.f32.mrf.mxu0
    %v745 = vadd.f32 0.0, %v744
    %746 = vdwg.mxu0
    %v747 = vsel %vm667, %v745, -1e+09
    %v748 = vsel %vm306, %v747, -inf
    %749 = vmax.xlane.f32.xlu0 %v748
    %v750 = vpop.xlane.xlu0 %749
    %v751 = vsub.f32 %v747, %v750
    %v752 = vmul.f32 %v751, 1.442695
    %v753 = vpow.pop %v752
    %v754 = vsel %vm306, %v753, 0.0
    %755 = vadd.xlane.f32.xlu0 %v754
    %v756 = vpop.xlane.xlu0 %755
    %v757 = vrcp.pop %v756
    %v758 = vmul.f32 %v756, %v757
    %v759 = vsub.f32 1.0, %v758
    %v760 = vmul.f32 %v757, %v759
    %v761 = vadd.f32 %v757, %v760
    %vm762 = vweird.f32 %v756
    %vm763 = vweird.f32 %v757
    %vm764 = vmor %vm762, %vm763
    %v765 = vsel %vm764, %v757, %v761
    %v766 = vand.u32 2147483647, %v756
    %vm767 = vcmp.eq.f32.partialorder %v766, 8.507059e+37
    %v768 = vand.u32 %v756, 2147483648
    %v769 = vor.u32 1.1754944e-38, %v768
    %v770 = vsel %vm767, %v769, %v765
    %v771 = vmul.f32 %v753, %v770
    %772 = vrot.lane.b32.xlu0 %v301, 56
    %v773 = vpop.permute.xlu0 %772
    %v776 = vsel %vm306, %v771, 0
    %778 = vmatpush.msra.mxu0 0.0
    %779 = vmatpush.msra.mxu0 0.0
    %780 = vmatpush.msra.mxu0 0.0
    %781 = vmatpush.msra.mxu0 0.0
    %782 = vmatpush.msra.mxu0 0.0
    %783 = vmatpush.msra.mxu0 0.0
    %784 = vmatpush.msra.mxu0 0.0
    %785 = vmatpush.msra.mxu0 0.0
    %786 = vmatpush.msra.mxu0 0.0
    %787 = vmatpush.msra.mxu0 0.0
    %788 = vmatpush.msra.mxu0 0.0
    %789 = vmatpush.msra.mxu0 0.0
    %790 = vmatpush.msra.mxu0 0.0
    %791 = vmatpush.msra.mxu0 0.0
    %792 = vmatpush.msra.mxu0 0.0
    %793 = vmatpush.msra.mxu0 %v773
    %794 = vmatmul.f32.gmra.mxu0 %v776
    %v795 = vpop.f32.mrf.mxu0
    %v796 = vadd.f32 0.0, %v795
    %797 = vdwg.mxu0
    %798 = vrot.lane.b32.xlu0 %v301, 112
    %v799 = vpop.permute.xlu0 %798
    %800 = vrot.lane.b32.xlu0 %v301, 80
    %v801 = vpop.permute.xlu0 %800
    %v802 = vsel %vm306, %v799, 0
    %v804 = vsel %vm306, %v801, 0
    %806 = vmatpush.xpose.msra.mxu0 0.0
    %807 = vmatpush.xpose.msra.mxu0 0.0
    %808 = vmatpush.xpose.msra.mxu0 0.0
    %809 = vmatpush.xpose.msra.mxu0 0.0
    %810 = vmatpush.xpose.msra.mxu0 0.0
    %811 = vmatpush.xpose.msra.mxu0 0.0
    %812 = vmatpush.xpose.msra.mxu0 0.0
    %813 = vmatpush.xpose.msra.mxu0 0.0
    %814 = vmatpush.xpose.msra.mxu0 0.0
    %815 = vmatpush.xpose.msra.mxu0 0.0
    %816 = vmatpush.xpose.msra.mxu0 0.0
    %817 = vmatpush.xpose.msra.mxu0 0.0
    %818 = vmatpush.xpose.msra.mxu0 0.0
    %819 = vmatpush.xpose.msra.mxu0 0.0
    %820 = vmatpush.xpose.msra.mxu0 0.0
    %821 = vmatpush.xpose.msra.mxu0 %v804
    %822 = vmatmul.f32.gmra.mxu0 %v802
    %v823 = vpop.f32.mrf.mxu0
    %v824 = vadd.f32 0.0, %v823
    %825 = vdwg.mxu0
    %v826 = vsel %vm667, %v824, -1e+09
    %v827 = vsel %vm306, %v826, -inf
    %828 = vmax.xlane.f32.xlu0 %v827
    %v829 = vpop.xlane.xlu0 %828
    %v830 = vsub.f32 %v826, %v829
    %v831 = vmul.f32 %v830, 1.442695
    %v832 = vpow.pop %v831
    %v833 = vsel %vm306, %v832, 0.0
    %834 = vadd.xlane.f32.xlu0 %v833
    %v835 = vpop.xlane.xlu0 %834
    %v836 = vrcp.pop %v835
    %v837 = vmul.f32 %v835, %v836
    %v838 = vsub.f32 1.0, %v837
    %v839 = vmul.f32 %v836, %v838
    %v840 = vadd.f32 %v836, %v839
    %vm841 = vweird.f32 %v835
    %vm842 = vweird.f32 %v836
    %vm843 = vmor %vm841, %vm842
    %v844 = vsel %vm843, %v836, %v840
    %v845 = vand.u32 2147483647, %v835
    %vm846 = vcmp.eq.f32.partialorder %v845, 8.507059e+37
    %v847 = vand.u32 %v835, 2147483648
    %v848 = vor.u32 1.1754944e-38, %v847
    %v849 = vsel %vm846, %v848, %v844
    %v850 = vmul.f32 %v832, %v849
    %851 = vrot.lane.b32.xlu0 %v301, 48
    %v852 = vpop.permute.xlu0 %851
    %v855 = vsel %vm306, %v850, 0
    %857 = vmatpush.msra.mxu0 0.0
    %858 = vmatpush.msra.mxu0 0.0
    %859 = vmatpush.msra.mxu0 0.0
    %860 = vmatpush.msra.mxu0 0.0
    %861 = vmatpush.msra.mxu0 0.0
    %862 = vmatpush.msra.mxu0 0.0
    %863 = vmatpush.msra.mxu0 0.0
    %864 = vmatpush.msra.mxu0 0.0
    %865 = vmatpush.msra.mxu0 0.0
    %866 = vmatpush.msra.mxu0 0.0
    %867 = vmatpush.msra.mxu0 0.0
    %868 = vmatpush.msra.mxu0 0.0
    %869 = vmatpush.msra.mxu0 0.0
    %870 = vmatpush.msra.mxu0 0.0
    %871 = vmatpush.msra.mxu0 0.0
    %872 = vmatpush.msra.mxu0 %v852
    %873 = vmatmul.f32.gmra.mxu0 %v855
    %v874 = vpop.f32.mrf.mxu0
    %v875 = vadd.f32 0.0, %v874
    %876 = vdwg.mxu0
    %877 = vrot.lane.b32.xlu0 %v301, 104
    %v878 = vpop.permute.xlu0 %877
    %879 = vrot.lane.b32.xlu0 %v301, 72
    %v880 = vpop.permute.xlu0 %879
    %v881 = vsel %vm306, %v878, 0
    %v883 = vsel %vm306, %v880, 0
    %885 = vmatpush.xpose.msra.mxu0 0.0
    %886 = vmatpush.xpose.msra.mxu0 0.0
    %887 = vmatpush.xpose.msra.mxu0 0.0
    %888 = vmatpush.xpose.msra.mxu0 0.0
    %889 = vmatpush.xpose.msra.mxu0 0.0
    %890 = vmatpush.xpose.msra.mxu0 0.0
    %891 = vmatpush.xpose.msra.mxu0 0.0
    %892 = vmatpush.xpose.msra.mxu0 0.0
    %893 = vmatpush.xpose.msra.mxu0 0.0
    %894 = vmatpush.xpose.msra.mxu0 0.0
    %895 = vmatpush.xpose.msra.mxu0 0.0
    %896 = vmatpush.xpose.msra.mxu0 0.0
    %897 = vmatpush.xpose.msra.mxu0 0.0
    %898 = vmatpush.xpose.msra.mxu0 0.0
    %899 = vmatpush.xpose.msra.mxu0 0.0
    %900 = vmatpush.xpose.msra.mxu0 %v883
    %901 = vmatmul.f32.gmra.mxu0 %v881
    %v902 = vpop.f32.mrf.mxu0
    %v903 = vadd.f32 0.0, %v902
    %904 = vdwg.mxu0
    %v905 = vsel %vm667, %v903, -1e+09
    %v906 = vsel %vm306, %v905, -inf
    %907 = vmax.xlane.f32.xlu0 %v906
    %v908 = vpop.xlane.xlu0 %907
    %v909 = vsub.f32 %v905, %v908
    %v910 = vmul.f32 %v909, 1.442695
    %v911 = vpow.pop %v910
    %v912 = vsel %vm306, %v911, 0.0
    %913 = vadd.xlane.f32.xlu0 %v912
    %v914 = vpop.xlane.xlu0 %913
    %v915 = vrcp.pop %v914
    %v916 = vmul.f32 %v914, %v915
    %v917 = vsub.f32 1.0, %v916
    %v918 = vmul.f32 %v915, %v917
    %v919 = vadd.f32 %v915, %v918
    %vm920 = vweird.f32 %v914
    %vm921 = vweird.f32 %v915
    %vm922 = vmor %vm920, %vm921
    %v923 = vsel %vm922, %v915, %v919
    %v924 = vand.u32 2147483647, %v914
    %vm925 = vcmp.eq.f32.partialorder %v924, 8.507059e+37
    %v926 = vand.u32 %v914, 2147483648
    %v927 = vor.u32 1.1754944e-38, %v926
    %v928 = vsel %vm925, %v927, %v923
    %v929 = vmul.f32 %v911, %v928
    %930 = vrot.lane.b32.xlu0 %v301, 40
    %v931 = vpop.permute.xlu0 %930
    %v934 = vsel %vm306, %v929, 0
    %936 = vmatpush.msra.mxu0 0.0
    %937 = vmatpush.msra.mxu0 0.0
    %938 = vmatpush.msra.mxu0 0.0
    %939 = vmatpush.msra.mxu0 0.0
    %940 = vmatpush.msra.mxu0 0.0
    %941 = vmatpush.msra.mxu0 0.0
    %942 = vmatpush.msra.mxu0 0.0
    %943 = vmatpush.msra.mxu0 0.0
    %944 = vmatpush.msra.mxu0 0.0
    %945 = vmatpush.msra.mxu0 0.0
    %946 = vmatpush.msra.mxu0 0.0
    %947 = vmatpush.msra.mxu0 0.0
    %948 = vmatpush.msra.mxu0 0.0
    %949 = vmatpush.msra.mxu0 0.0
    %950 = vmatpush.msra.mxu0 0.0
    %951 = vmatpush.msra.mxu0 %v931
    %952 = vmatmul.f32.gmra.mxu0 %v934
    %v953 = vpop.f32.mrf.mxu0
    %v954 = vadd.f32 0.0, %v953
    %955 = vdwg.mxu0
    %957 = vrot.lane.b32.xlu0 %v796, 8
    %v958 = vpop.permute.xlu0 %957
    %961 = vrot.lane.b32.xlu0 %v875, 16
    %v962 = vpop.permute.xlu0 %961
    %965 = vrot.lane.b32.xlu0 %v954, 24
    %v966 = vpop.permute.xlu0 %965
    %v968 = vsel %vm306, %v717, %v958
    %v969 = vsel %vm635, %v968, %v962
    %v970 = vsel %vm92, %v969, %v966
    %v972 = vsel %vm134, %v637, 0
    %v975 = vsel %vm134, %v970, 0
    %977 = vmatpush.msra.mxu0 0.0
    %978 = vmatpush.msra.mxu0 0.0
    %979 = vmatpush.msra.mxu0 0.0
    %980 = vmatpush.msra.mxu0 0.0
    %981 = vmatpush.msra.mxu0 0.0
    %982 = vmatpush.msra.mxu0 0.0
    %983 = vmatpush.msra.mxu0 0.0
    %984 = vmatpush.msra.mxu0 0.0
    %985 = vmatpush.msra.mxu0 0.0
    %986 = vmatpush.msra.mxu0 0.0
    %987 = vmatpush.msra.mxu0 0.0
    %988 = vmatpush.msra.mxu0 0.0
    %989 = vmatpush.msra.mxu0 %v273
    %990 = vmatpush.msra.mxu0 %v272
    %991 = vmatpush.msra.mxu0 %v271
    %992 = vmatpush.msra.mxu0 %v270
    %993 = vmatmul.f32.gmra.mxu0 %v972
    %v994 = vpop.f32.mrf.mxu0
    %v995 = vadd.f32 %v192, %v994
    %996 = vmatmul.f32.gmra.mxu0 %v975
    %v997 = vpop.f32.mrf.mxu0
    %v998 = vadd.f32 %v193, %v997
    %999 = vdwg.mxu0
    %v1000 = vsel %vm134, %v995, 0.0
    %1001 = vadd.xlane.f32.xlu0 %v1000
    %v1002 = vpop.xlane.xlu0 %1001
    %v1003 = vsel %vm134, %v998, 0.0
    %1004 = vadd.xlane.f32.xlu0 %v1003
    %v1005 = vpop.xlane.xlu0 %1004
    %v1006 = vmul.f32 %v1002, %v147
    %v1007 = vmul.f32 %v1005, %v147
    %v1008 = vsub.f32 %v995, %v1006
    %v1009 = vsub.f32 %v998, %v1007
    %v1010 = vmul.f32 %v1008, %v1008
    %v1011 = vmul.f32 %v1009, %v1009
    %v1012 = vsel %vm134, %v1010, 0.0
    %1013 = vadd.xlane.f32.xlu0 %v1012
    %v1014 = vpop.xlane.xlu0 %1013
    %v1015 = vsel %vm134, %v1011, 0.0
    %1016 = vadd.xlane.f32.xlu0 %v1015
    %v1017 = vpop.xlane.xlu0 %1016
    %v1018 = vmul.f32 %v1014, %v147
    %v1019 = vmul.f32 %v1017, %v147
    %v1020 = vadd.f32 %v1018, 1e-06
    %v1021 = vadd.f32 %v1019, 1e-06
    %v1022 = vrsqrt.pop %v1020
    %v1023 = vmul.f32 %v1022, %v1020
    %v1024 = vmul.f32 %v1023, %v1022
    %v1025 = vmul.f32 0.5, %v1024
    %v1026 = vsub.f32 1.5, %v1025
    %v1027 = vmul.f32 %v1022, %v1026
    %vm1028 = vweird.f32 %v1020
    %vm1029 = vweird.f32 %v1022
    %vm1030 = vmor %vm1028, %vm1029
    %v1031 = vsel %vm1030, %v1022, %v1027
    %v1032 = vrsqrt.pop %v1021
    %v1033 = vmul.f32 %v1032, %v1021
    %v1034 = vmul.f32 %v1033, %v1032
    %v1035 = vmul.f32 0.5, %v1034
    %v1036 = vsub.f32 1.5, %v1035
    %v1037 = vmul.f32 %v1032, %v1036
    %vm1038 = vweird.f32 %v1021
    %vm1039 = vweird.f32 %v1032
    %vm1040 = vmor %vm1038, %vm1039
    %v1041 = vsel %vm1040, %v1032, %v1037
    %v1042 = vmul.f32 %v1008, %v1031
    %v1043 = vmul.f32 %v1009, %v1041
    %v1044 = vld [vmem:[%s3 + $0x4] sm:$0x1]
    %v1045 = vperm.slane %v1044, 0
    %v1046 = vmul.f32 %v1042, %v1045
    %v1047 = vmul.f32 %v1043, %v1045
    %v1048 = vld [vmem:[%s3 + $0x5] sm:$0x1]
    %v1049 = vperm.slane %v1048, 0
    %v1050 = vadd.f32 %v1046, %v1049
    %v1051 = vadd.f32 %v1047, %v1049
    %v1052 = vld [vmem:[%s7] sm:$0xff]
    %v1053 = vld [vmem:[%s7 + $0x8] sm:$0xff]
    %v1054 = vld [vmem:[%s7 + $0x10] sm:$0xff]
    %v1055 = vld [vmem:[%s7 + $0x18] sm:$0xff]
    %v1056 = vld [vmem:[%s8] sm:$0xff]
    %v1057 = vld [vmem:[%s8 + $0x8] sm:$0xff]
    %v1058 = vld [vmem:[%s8 + $0x10] sm:$0xff]
    %v1059 = vld [vmem:[%s8 + $0x18] sm:$0xff]
    %v1060 = vld [vmem:[%s8 + $0x20] sm:$0xff]
    %v1061 = vld [vmem:[%s8 + $0x28] sm:$0xff]
    %v1062 = vld [vmem:[%s8 + $0x30] sm:$0xff]
    %v1063 = vld [vmem:[%s8 + $0x38] sm:$0xff]
    %v1064 = vld [vmem:[%s4] sm:$0x1]
    %v1065 = vperm.slane %v1064, 0
    %v1067 = vsel %vm134, %v1050, 0
    %v1070 = vsel %vm134, %v1051, 0
    %1072 = vmatpush.msra.mxu0 0.0
    %1073 = vmatpush.msra.mxu0 0.0
    %1074 = vmatpush.msra.mxu0 0.0
    %1075 = vmatpush.msra.mxu0 0.0
    %1076 = vmatpush.msra.mxu0 0.0
    %1077 = vmatpush.msra.mxu0 0.0
    %1078 = vmatpush.msra.mxu0 0.0
    %1079 = vmatpush.msra.mxu0 0.0
    %1080 = vmatpush.msra.mxu0 0.0
    %1081 = vmatpush.msra.mxu0 0.0
    %1082 = vmatpush.msra.mxu0 0.0
    %1083 = vmatpush.msra.mxu0 0.0
    %1084 = vmatpush.msra.mxu0 %v1055
    %1085 = vmatpush.msra.mxu0 %v1054
    %1086 = vmatpush.msra.mxu0 %v1053
    %1087 = vmatpush.msra.mxu0 %v1052
    %1088 = vmatmul.f32.gmra.mxu0 %v1067
    %v1089 = vpop.f32.mrf.mxu0
    %v1090 = vadd.f32 %v1065, %v1089
    %1091 = vmatmul.f32.gmra.mxu0 %v1070
    %v1092 = vpop.f32.mrf.mxu0
    %v1093 = vadd.f32 %v1065, %v1092
    %1094 = vdwg.mxu0
    %v1095 = vmax.f32 %v1090, 0.0
    %v1096 = vmax.f32 %v1093, 0.0
    %v1097 = vld [vmem:[%s3 + $0x6] sm:$0x1]
    %v1098 = vperm.slane %v1097, 0
    %vm1099 = vcmask 523264
    %v1101 = vsel %vm1099, %v1095, 0
    %v1104 = vsel %vm1099, %v1096, 0
    %1106 = vmatpush.msra.mxu0 0.0
    %1107 = vmatpush.msra.mxu0 0.0
    %1108 = vmatpush.msra.mxu0 0.0
    %1109 = vmatpush.msra.mxu0 0.0
    %1110 = vmatpush.msra.mxu0 0.0
    %1111 = vmatpush.msra.mxu0 0.0
    %1112 = vmatpush.msra.mxu0 0.0
    %1113 = vmatpush.msra.mxu0 0.0
    %1114 = vmatpush.msra.mxu0 %v1063
    %1115 = vmatpush.msra.mxu0 %v1062
    %1116 = vmatpush.msra.mxu0 %v1061
    %1117 = vmatpush.msra.mxu0 %v1060
    %1118 = vmatpush.msra.mxu0 %v1059
    %1119 = vmatpush.msra.mxu0 %v1058
    %1120 = vmatpush.msra.mxu0 %v1057
    %1121 = vmatpush.msra.mxu0 %v1056
    %1122 = vmatmul.f32.gmra.mxu0 %v1101
    %v1123 = vpop.f32.mrf.mxu0
    %v1124 = vadd.f32 %v1098, %v1123
    %1125 = vmatmul.f32.gmra.mxu0 %v1104
    %v1126 = vpop.f32.mrf.mxu0
    %v1127 = vadd.f32 %v1098, %v1126
    %1128 = vdwg.mxu0
    %v1129 = vadd.f32 %v1124, %v1050
    %v1130 = vadd.f32 %v1127, %v1051
    %v1131 = vsel %vm134, %v1129, 0.0
    %1132 = vadd.xlane.f32.xlu0 %v1131
    %v1133 = vpop.xlane.xlu0 %1132
    %v1134 = vsel %vm134, %v1130, 0.0
    %1135 = vadd.xlane.f32.xlu0 %v1134
    %v1136 = vpop.xlane.xlu0 %1135
    %v1137 = vmul.f32 %v1133, %v147
    %v1138 = vmul.f32 %v1136, %v147
    %v1139 = vsub.f32 %v1129, %v1137
    %v1140 = vsub.f32 %v1130, %v1138
    %v1141 = vmul.f32 %v1139, %v1139
    %v1142 = vmul.f32 %v1140, %v1140
    %v1143 = vsel %vm134, %v1141, 0.0
    %1144 = vadd.xlane.f32.xlu0 %v1143
    %v1145 = vpop.xlane.xlu0 %1144
    %v1146 = vsel %vm134, %v1142, 0.0
    %1147 = vadd.xlane.f32.xlu0 %v1146
    %v1148 = vpop.xlane.xlu0 %1147
    %v1149 = vmul.f32 %v1145, %v147
    %v1150 = vmul.f32 %v1148, %v147
    %v1151 = vadd.f32 %v1149, 1e-06
    %v1152 = vadd.f32 %v1150, 1e-06
    %v1153 = vrsqrt.pop %v1151
    %v1154 = vmul.f32 %v1153, %v1151
    %v1155 = vmul.f32 %v1154, %v1153
    %v1156 = vmul.f32 0.5, %v1155
    %v1157 = vsub.f32 1.5, %v1156
    %v1158 = vmul.f32 %v1153, %v1157
    %vm1159 = vweird.f32 %v1151
    %vm1160 = vweird.f32 %v1153
    %vm1161 = vmor %vm1159, %vm1160
    %v1162 = vsel %vm1161, %v1153, %v1158
    %v1163 = vrsqrt.pop %v1152
    %v1164 = vmul.f32 %v1163, %v1152
    %v1165 = vmul.f32 %v1164, %v1163
    %v1166 = vmul.f32 0.5, %v1165
    %v1167 = vsub.f32 1.5, %v1166
    %v1168 = vmul.f32 %v1163, %v1167
    %vm1169 = vweird.f32 %v1152
    %vm1170 = vweird.f32 %v1163
    %vm1171 = vmor %vm1169, %vm1170
    %v1172 = vsel %vm1171, %v1163, %v1168
    %v1173 = vmul.f32 %v1139, %v1162
    %v1174 = vmul.f32 %v1140, %v1172
    %v1175 = vld [vmem:[%s3 + $0x7] sm:$0x1]
    %v1176 = vperm.slane %v1175, 0
    %v1177 = vmul.f32 %v1173, %v1176
    %v1178 = vmul.f32 %v1174, %v1176
    %v1179 = vld [vmem:[%s3 + $0x8] sm:$0x1]
    %v1180 = vperm.slane %v1179, 0
    %v1181 = vadd.f32 %v1177, %v1180
    %v1182 = vadd.f32 %v1178, %v1180
    %s1183 = scalar_lea.vmem %s5, 32
    %v1184 = vld [vmem:[%s1183] sm:$0xff]
    %v1185 = vld [vmem:[%s1183 + $0x8] sm:$0xff]
    %v1186 = vld [vmem:[%s1183 + $0x10] sm:$0xff]
    %v1187 = vld [vmem:[%s1183 + $0x18] sm:$0xff]
    %s1188 = scalar_lea.vmem %s6, 32
    %v1189 = vld [vmem:[%s1188] sm:$0xff]
    %v1190 = vld [vmem:[%s1188 + $0x8] sm:$0xff]
    %v1191 = vld [vmem:[%s1188 + $0x10] sm:$0xff]
    %v1192 = vld [vmem:[%s1188 + $0x18] sm:$0xff]
    %v1194 = vsel %vm134, %v1181, 0
    %v1197 = vsel %vm134, %v1182, 0
    %1199 = vmatpush.msra.mxu0 0.0
    %1200 = vmatpush.msra.mxu0 0.0
    %1201 = vmatpush.msra.mxu0 0.0
    %1202 = vmatpush.msra.mxu0 0.0
    %1203 = vmatpush.msra.mxu0 0.0
    %1204 = vmatpush.msra.mxu0 0.0
    %1205 = vmatpush.msra.mxu0 0.0
    %1206 = vmatpush.msra.mxu0 0.0
    %1207 = vmatpush.msra.mxu0 0.0
    %1208 = vmatpush.msra.mxu0 0.0
    %1209 = vmatpush.msra.mxu0 0.0
    %1210 = vmatpush.msra.mxu0 0.0
    %1211 = vmatpush.msra.mxu0 %v1187
    %1212 = vmatpush.msra.mxu0 %v1186
    %1213 = vmatpush.msra.mxu0 %v1185
    %1214 = vmatpush.msra.mxu0 %v1184
    %1215 = vmatmul.f32.gmra.mxu0 %v1194
    %v1216 = vpop.f32.mrf.mxu0
    %v1217 = vadd.f32 0.0, %v1216
    %1218 = vmatmul.f32.gmra.mxu0 %v1197
    %v1219 = vpop.f32.mrf.mxu0
    %v1220 = vadd.f32 0.0, %v1219
    %1221 = vdwg.mxu0
    %1223 = vrot.lane.b32.xlu0 %v1217, 96
    %v1224 = vpop.permute.xlu0 %1223
    %v1225 = vsel %vm306, %v1217, 0
    %v1227 = vsel %vm306, %v1224, 0
    %1229 = vmatpush.xpose.msra.mxu0 0.0
    %1230 = vmatpush.xpose.msra.mxu0 0.0
    %1231 = vmatpush.xpose.msra.mxu0 0.0
    %1232 = vmatpush.xpose.msra.mxu0 0.0
    %1233 = vmatpush.xpose.msra.mxu0 0.0
    %1234 = vmatpush.xpose.msra.mxu0 0.0
    %1235 = vmatpush.xpose.msra.mxu0 0.0
    %1236 = vmatpush.xpose.msra.mxu0 0.0
    %1237 = vmatpush.xpose.msra.mxu0 0.0
    %1238 = vmatpush.xpose.msra.mxu0 0.0
    %1239 = vmatpush.xpose.msra.mxu0 0.0
    %1240 = vmatpush.xpose.msra.mxu0 0.0
    %1241 = vmatpush.xpose.msra.mxu0 0.0
    %1242 = vmatpush.xpose.msra.mxu0 0.0
    %1243 = vmatpush.xpose.msra.mxu0 0.0
    %1244 = vmatpush.xpose.msra.mxu0 %v1227
    %1245 = vmatmul.f32.gmra.mxu0 %v1225
    %v1246 = vpop.f32.mrf.mxu0
    %v1247 = vadd.f32 0.0, %v1246
    %1248 = vdwg.mxu0
    %v1249 = vsel %vm333, %v1247, -1e+09
    %v1250 = vsel %vm306, %v1249, -inf
    %1251 = vmax.xlane.f32.xlu0 %v1250
    %v1252 = vpop.xlane.xlu0 %1251
    %v1253 = vsub.f32 %v1249, %v1252
    %v1254 = vmul.f32 %v1253, 1.442695
    %v1255 = vpow.pop %v1254
    %v1256 = vsel %vm306, %v1255, 0.0
    %1257 = vadd.xlane.f32.xlu0 %v1256
    %v1258 = vpop.xlane.xlu0 %1257
    %v1259 = vrcp.pop %v1258
    %v1260 = vmul.f32 %v1258, %v1259
    %v1261 = vsub.f32 1.0, %v1260
    %v1262 = vmul.f32 %v1259, %v1261
    %v1263 = vadd.f32 %v1259, %v1262
    %vm1264 = vweird.f32 %v1258
    %vm1265 = vweird.f32 %v1259
    %vm1266 = vmor %vm1264, %vm1265
    %v1267 = vsel %vm1266, %v1259, %v1263
    %v1268 = vand.u32 2147483647, %v1258
    %vm1269 = vcmp.eq.f32.partialorder %v1268, 8.507059e+37
    %v1270 = vand.u32 %v1258, 2147483648
    %v1271 = vor.u32 1.1754944e-38, %v1270
    %v1272 = vsel %vm1269, %v1271, %v1267
    %v1273 = vmul.f32 %v1255, %v1272
    %1274 = vrot.lane.b32.xlu0 %v1217, 64
    %v1275 = vpop.permute.xlu0 %1274
    %v1278 = vsel %vm306, %v1273, 0
    %1280 = vmatpush.msra.mxu0 0.0
    %1281 = vmatpush.msra.mxu0 0.0
    %1282 = vmatpush.msra.mxu0 0.0
    %1283 = vmatpush.msra.mxu0 0.0
    %1284 = vmatpush.msra.mxu0 0.0
    %1285 = vmatpush.msra.mxu0 0.0
    %1286 = vmatpush.msra.mxu0 0.0
    %1287 = vmatpush.msra.mxu0 0.0
    %1288 = vmatpush.msra.mxu0 0.0
    %1289 = vmatpush.msra.mxu0 0.0
    %1290 = vmatpush.msra.mxu0 0.0
    %1291 = vmatpush.msra.mxu0 0.0
    %1292 = vmatpush.msra.mxu0 0.0
    %1293 = vmatpush.msra.mxu0 0.0
    %1294 = vmatpush.msra.mxu0 0.0
    %1295 = vmatpush.msra.mxu0 %v1275
    %1296 = vmatmul.f32.gmra.mxu0 %v1278
    %v1297 = vpop.f32.mrf.mxu0
    %v1298 = vadd.f32 0.0, %v1297
    %1299 = vdwg.mxu0
    %1300 = vrot.lane.b32.xlu0 %v1217, 120
    %v1301 = vpop.permute.xlu0 %1300
    %1302 = vrot.lane.b32.xlu0 %v1217, 88
    %v1303 = vpop.permute.xlu0 %1302
    %v1304 = vsel %vm306, %v1301, 0
    %v1306 = vsel %vm306, %v1303, 0
    %1308 = vmatpush.xpose.msra.mxu0 0.0
    %1309 = vmatpush.xpose.msra.mxu0 0.0
    %1310 = vmatpush.xpose.msra.mxu0 0.0
    %1311 = vmatpush.xpose.msra.mxu0 0.0
    %1312 = vmatpush.xpose.msra.mxu0 0.0
    %1313 = vmatpush.xpose.msra.mxu0 0.0
    %1314 = vmatpush.xpose.msra.mxu0 0.0
    %1315 = vmatpush.xpose.msra.mxu0 0.0
    %1316 = vmatpush.xpose.msra.mxu0 0.0
    %1317 = vmatpush.xpose.msra.mxu0 0.0
    %1318 = vmatpush.xpose.msra.mxu0 0.0
    %1319 = vmatpush.xpose.msra.mxu0 0.0
    %1320 = vmatpush.xpose.msra.mxu0 0.0
    %1321 = vmatpush.xpose.msra.mxu0 0.0
    %1322 = vmatpush.xpose.msra.mxu0 0.0
    %1323 = vmatpush.xpose.msra.mxu0 %v1306
    %1324 = vmatmul.f32.gmra.mxu0 %v1304
    %v1325 = vpop.f32.mrf.mxu0
    %v1326 = vadd.f32 0.0, %v1325
    %1327 = vdwg.mxu0
    %v1328 = vsel %vm333, %v1326, -1e+09
    %v1329 = vsel %vm306, %v1328, -inf
    %1330 = vmax.xlane.f32.xlu0 %v1329
    %v1331 = vpop.xlane.xlu0 %1330
    %v1332 = vsub.f32 %v1328, %v1331
    %v1333 = vmul.f32 %v1332, 1.442695
    %v1334 = vpow.pop %v1333
    %v1335 = vsel %vm306, %v1334, 0.0
    %1336 = vadd.xlane.f32.xlu0 %v1335
    %v1337 = vpop.xlane.xlu0 %1336
    %v1338 = vrcp.pop %v1337
    %v1339 = vmul.f32 %v1337, %v1338
    %v1340 = vsub.f32 1.0, %v1339
    %v1341 = vmul.f32 %v1338, %v1340
    %v1342 = vadd.f32 %v1338, %v1341
    %vm1343 = vweird.f32 %v1337
    %vm1344 = vweird.f32 %v1338
    %vm1345 = vmor %vm1343, %vm1344
    %v1346 = vsel %vm1345, %v1338, %v1342
    %v1347 = vand.u32 2147483647, %v1337
    %vm1348 = vcmp.eq.f32.partialorder %v1347, 8.507059e+37
    %v1349 = vand.u32 %v1337, 2147483648
    %v1350 = vor.u32 1.1754944e-38, %v1349
    %v1351 = vsel %vm1348, %v1350, %v1346
    %v1352 = vmul.f32 %v1334, %v1351
    %1353 = vrot.lane.b32.xlu0 %v1217, 56
    %v1354 = vpop.permute.xlu0 %1353
    %v1357 = vsel %vm306, %v1352, 0
    %1359 = vmatpush.msra.mxu0 0.0
    %1360 = vmatpush.msra.mxu0 0.0
    %1361 = vmatpush.msra.mxu0 0.0
    %1362 = vmatpush.msra.mxu0 0.0
    %1363 = vmatpush.msra.mxu0 0.0
    %1364 = vmatpush.msra.mxu0 0.0
    %1365 = vmatpush.msra.mxu0 0.0
    %1366 = vmatpush.msra.mxu0 0.0
    %1367 = vmatpush.msra.mxu0 0.0
    %1368 = vmatpush.msra.mxu0 0.0
    %1369 = vmatpush.msra.mxu0 0.0
    %1370 = vmatpush.msra.mxu0 0.0
    %1371 = vmatpush.msra.mxu0 0.0
    %1372 = vmatpush.msra.mxu0 0.0
    %1373 = vmatpush.msra.mxu0 0.0
    %1374 = vmatpush.msra.mxu0 %v1354
    %1375 = vmatmul.f32.gmra.mxu0 %v1357
    %v1376 = vpop.f32.mrf.mxu0
    %v1377 = vadd.f32 0.0, %v1376
    %1378 = vdwg.mxu0
    %1379 = vrot.lane.b32.xlu0 %v1217, 112
    %v1380 = vpop.permute.xlu0 %1379
    %1381 = vrot.lane.b32.xlu0 %v1217, 80
    %v1382 = vpop.permute.xlu0 %1381
    %v1383 = vsel %vm306, %v1380, 0
    %v1385 = vsel %vm306, %v1382, 0
    %1387 = vmatpush.xpose.msra.mxu0 0.0
    %1388 = vmatpush.xpose.msra.mxu0 0.0
    %1389 = vmatpush.xpose.msra.mxu0 0.0
    %1390 = vmatpush.xpose.msra.mxu0 0.0
    %1391 = vmatpush.xpose.msra.mxu0 0.0
    %1392 = vmatpush.xpose.msra.mxu0 0.0
    %1393 = vmatpush.xpose.msra.mxu0 0.0
    %1394 = vmatpush.xpose.msra.mxu0 0.0
    %1395 = vmatpush.xpose.msra.mxu0 0.0
    %1396 = vmatpush.xpose.msra.mxu0 0.0
    %1397 = vmatpush.xpose.msra.mxu0 0.0
    %1398 = vmatpush.xpose.msra.mxu0 0.0
    %1399 = vmatpush.xpose.msra.mxu0 0.0
    %1400 = vmatpush.xpose.msra.mxu0 0.0
    %1401 = vmatpush.xpose.msra.mxu0 0.0
    %1402 = vmatpush.xpose.msra.mxu0 %v1385
    %1403 = vmatmul.f32.gmra.mxu0 %v1383
    %v1404 = vpop.f32.mrf.mxu0
    %v1405 = vadd.f32 0.0, %v1404
    %1406 = vdwg.mxu0
    %v1407 = vsel %vm333, %v1405, -1e+09
    %v1408 = vsel %vm306, %v1407, -inf
    %1409 = vmax.xlane.f32.xlu0 %v1408
    %v1410 = vpop.xlane.xlu0 %1409
    %v1411 = vsub.f32 %v1407, %v1410
    %v1412 = vmul.f32 %v1411, 1.442695
    %v1413 = vpow.pop %v1412
    %v1414 = vsel %vm306, %v1413, 0.0
    %1415 = vadd.xlane.f32.xlu0 %v1414
    %v1416 = vpop.xlane.xlu0 %1415
    %v1417 = vrcp.pop %v1416
    %v1418 = vmul.f32 %v1416, %v1417
    %v1419 = vsub.f32 1.0, %v1418
    %v1420 = vmul.f32 %v1417, %v1419
    %v1421 = vadd.f32 %v1417, %v1420
    %vm1422 = vweird.f32 %v1416
    %vm1423 = vweird.f32 %v1417
    %vm1424 = vmor %vm1422, %vm1423
    %v1425 = vsel %vm1424, %v1417, %v1421
    %v1426 = vand.u32 2147483647, %v1416
    %vm1427 = vcmp.eq.f32.partialorder %v1426, 8.507059e+37
    %v1428 = vand.u32 %v1416, 2147483648
    %v1429 = vor.u32 1.1754944e-38, %v1428
    %v1430 = vsel %vm1427, %v1429, %v1425
    %v1431 = vmul.f32 %v1413, %v1430
    %1432 = vrot.lane.b32.xlu0 %v1217, 48
    %v1433 = vpop.permute.xlu0 %1432
    %v1436 = vsel %vm306, %v1431, 0
    %1438 = vmatpush.msra.mxu0 0.0
    %1439 = vmatpush.msra.mxu0 0.0
    %1440 = vmatpush.msra.mxu0 0.0
    %1441 = vmatpush.msra.mxu0 0.0
    %1442 = vmatpush.msra.mxu0 0.0
    %1443 = vmatpush.msra.mxu0 0.0
    %1444 = vmatpush.msra.mxu0 0.0
    %1445 = vmatpush.msra.mxu0 0.0
    %1446 = vmatpush.msra.mxu0 0.0
    %1447 = vmatpush.msra.mxu0 0.0
    %1448 = vmatpush.msra.mxu0 0.0
    %1449 = vmatpush.msra.mxu0 0.0
    %1450 = vmatpush.msra.mxu0 0.0
    %1451 = vmatpush.msra.mxu0 0.0
    %1452 = vmatpush.msra.mxu0 0.0
    %1453 = vmatpush.msra.mxu0 %v1433
    %1454 = vmatmul.f32.gmra.mxu0 %v1436
    %v1455 = vpop.f32.mrf.mxu0
    %v1456 = vadd.f32 0.0, %v1455
    %1457 = vdwg.mxu0
    %1458 = vrot.lane.b32.xlu0 %v1217, 104
    %v1459 = vpop.permute.xlu0 %1458
    %1460 = vrot.lane.b32.xlu0 %v1217, 72
    %v1461 = vpop.permute.xlu0 %1460
    %v1462 = vsel %vm306, %v1459, 0
    %v1464 = vsel %vm306, %v1461, 0
    %1466 = vmatpush.xpose.msra.mxu0 0.0
    %1467 = vmatpush.xpose.msra.mxu0 0.0
    %1468 = vmatpush.xpose.msra.mxu0 0.0
    %1469 = vmatpush.xpose.msra.mxu0 0.0
    %1470 = vmatpush.xpose.msra.mxu0 0.0
    %1471 = vmatpush.xpose.msra.mxu0 0.0
    %1472 = vmatpush.xpose.msra.mxu0 0.0
    %1473 = vmatpush.xpose.msra.mxu0 0.0
    %1474 = vmatpush.xpose.msra.mxu0 0.0
    %1475 = vmatpush.xpose.msra.mxu0 0.0
    %1476 = vmatpush.xpose.msra.mxu0 0.0
    %1477 = vmatpush.xpose.msra.mxu0 0.0
    %1478 = vmatpush.xpose.msra.mxu0 0.0
    %1479 = vmatpush.xpose.msra.mxu0 0.0
    %1480 = vmatpush.xpose.msra.mxu0 0.0
    %1481 = vmatpush.xpose.msra.mxu0 %v1464
    %1482 = vmatmul.f32.gmra.mxu0 %v1462
    %v1483 = vpop.f32.mrf.mxu0
    %v1484 = vadd.f32 0.0, %v1483
    %1485 = vdwg.mxu0
    %v1486 = vsel %vm333, %v1484, -1e+09
    %v1487 = vsel %vm306, %v1486, -inf
    %1488 = vmax.xlane.f32.xlu0 %v1487
    %v1489 = vpop.xlane.xlu0 %1488
    %v1490 = vsub.f32 %v1486, %v1489
    %v1491 = vmul.f32 %v1490, 1.442695
    %v1492 = vpow.pop %v1491
    %v1493 = vsel %vm306, %v1492, 0.0
    %1494 = vadd.xlane.f32.xlu0 %v1493
    %v1495 = vpop.xlane.xlu0 %1494
    %v1496 = vrcp.pop %v1495
    %v1497 = vmul.f32 %v1495, %v1496
    %v1498 = vsub.f32 1.0, %v1497
    %v1499 = vmul.f32 %v1496, %v1498
    %v1500 = vadd.f32 %v1496, %v1499
    %vm1501 = vweird.f32 %v1495
    %vm1502 = vweird.f32 %v1496
    %vm1503 = vmor %vm1501, %vm1502
    %v1504 = vsel %vm1503, %v1496, %v1500
    %v1505 = vand.u32 2147483647, %v1495
    %vm1506 = vcmp.eq.f32.partialorder %v1505, 8.507059e+37
    %v1507 = vand.u32 %v1495, 2147483648
    %v1508 = vor.u32 1.1754944e-38, %v1507
    %v1509 = vsel %vm1506, %v1508, %v1504
    %v1510 = vmul.f32 %v1492, %v1509
    %1511 = vrot.lane.b32.xlu0 %v1217, 40
    %v1512 = vpop.permute.xlu0 %1511
    %v1515 = vsel %vm306, %v1510, 0
    %1517 = vmatpush.msra.mxu0 0.0
    %1518 = vmatpush.msra.mxu0 0.0
    %1519 = vmatpush.msra.mxu0 0.0
    %1520 = vmatpush.msra.mxu0 0.0
    %1521 = vmatpush.msra.mxu0 0.0
    %1522 = vmatpush.msra.mxu0 0.0
    %1523 = vmatpush.msra.mxu0 0.0
    %1524 = vmatpush.msra.mxu0 0.0
    %1525 = vmatpush.msra.mxu0 0.0
    %1526 = vmatpush.msra.mxu0 0.0
    %1527 = vmatpush.msra.mxu0 0.0
    %1528 = vmatpush.msra.mxu0 0.0
    %1529 = vmatpush.msra.mxu0 0.0
    %1530 = vmatpush.msra.mxu0 0.0
    %1531 = vmatpush.msra.mxu0 0.0
    %1532 = vmatpush.msra.mxu0 %v1512
    %1533 = vmatmul.f32.gmra.mxu0 %v1515
    %v1534 = vpop.f32.mrf.mxu0
    %v1535 = vadd.f32 0.0, %v1534
    %1536 = vdwg.mxu0
    %1538 = vrot.lane.b32.xlu0 %v1377, 8
    %v1539 = vpop.permute.xlu0 %1538
    %1542 = vrot.lane.b32.xlu0 %v1456, 16
    %v1543 = vpop.permute.xlu0 %1542
    %1546 = vrot.lane.b32.xlu0 %v1535, 24
    %v1547 = vpop.permute.xlu0 %1546
    %v1549 = vsel %vm306, %v1298, %v1539
    %v1550 = vsel %vm635, %v1549, %v1543
    %v1551 = vsel %vm92, %v1550, %v1547
    %1553 = vrot.lane.b32.xlu0 %v1220, 96
    %v1554 = vpop.permute.xlu0 %1553
    %v1555 = vsel %vm306, %v1220, 0
    %v1557 = vsel %vm306, %v1554, 0
    %1559 = vmatpush.xpose.msra.mxu0 0.0
    %1560 = vmatpush.xpose.msra.mxu0 0.0
    %1561 = vmatpush.xpose.msra.mxu0 0.0
    %1562 = vmatpush.xpose.msra.mxu0 0.0
    %1563 = vmatpush.xpose.msra.mxu0 0.0
    %1564 = vmatpush.xpose.msra.mxu0 0.0
    %1565 = vmatpush.xpose.msra.mxu0 0.0
    %1566 = vmatpush.xpose.msra.mxu0 0.0
    %1567 = vmatpush.xpose.msra.mxu0 0.0
    %1568 = vmatpush.xpose.msra.mxu0 0.0
    %1569 = vmatpush.xpose.msra.mxu0 0.0
    %1570 = vmatpush.xpose.msra.mxu0 0.0
    %1571 = vmatpush.xpose.msra.mxu0 0.0
    %1572 = vmatpush.xpose.msra.mxu0 0.0
    %1573 = vmatpush.xpose.msra.mxu0 0.0
    %1574 = vmatpush.xpose.msra.mxu0 %v1557
    %1575 = vmatmul.f32.gmra.mxu0 %v1555
    %v1576 = vpop.f32.mrf.mxu0
    %v1577 = vadd.f32 0.0, %v1576
    %1578 = vdwg.mxu0
    %v1579 = vsel %vm667, %v1577, -1e+09
    %v1580 = vsel %vm306, %v1579, -inf
    %1581 = vmax.xlane.f32.xlu0 %v1580
    %v1582 = vpop.xlane.xlu0 %1581
    %v1583 = vsub.f32 %v1579, %v1582
    %v1584 = vmul.f32 %v1583, 1.442695
    %v1585 = vpow.pop %v1584
    %v1586 = vsel %vm306, %v1585, 0.0
    %1587 = vadd.xlane.f32.xlu0 %v1586
    %v1588 = vpop.xlane.xlu0 %1587
    %v1589 = vrcp.pop %v1588
    %v1590 = vmul.f32 %v1588, %v1589
    %v1591 = vsub.f32 1.0, %v1590
    %v1592 = vmul.f32 %v1589, %v1591
    %v1593 = vadd.f32 %v1589, %v1592
    %vm1594 = vweird.f32 %v1588
    %vm1595 = vweird.f32 %v1589
    %vm1596 = vmor %vm1594, %vm1595
    %v1597 = vsel %vm1596, %v1589, %v1593
    %v1598 = vand.u32 2147483647, %v1588
    %vm1599 = vcmp.eq.f32.partialorder %v1598, 8.507059e+37
    %v1600 = vand.u32 %v1588, 2147483648
    %v1601 = vor.u32 1.1754944e-38, %v1600
    %v1602 = vsel %vm1599, %v1601, %v1597
    %v1603 = vmul.f32 %v1585, %v1602
    %1604 = vrot.lane.b32.xlu0 %v1220, 64
    %v1605 = vpop.permute.xlu0 %1604
    %v1608 = vsel %vm306, %v1603, 0
    %1610 = vmatpush.msra.mxu0 0.0
    %1611 = vmatpush.msra.mxu0 0.0
    %1612 = vmatpush.msra.mxu0 0.0
    %1613 = vmatpush.msra.mxu0 0.0
    %1614 = vmatpush.msra.mxu0 0.0
    %1615 = vmatpush.msra.mxu0 0.0
    %1616 = vmatpush.msra.mxu0 0.0
    %1617 = vmatpush.msra.mxu0 0.0
    %1618 = vmatpush.msra.mxu0 0.0
    %1619 = vmatpush.msra.mxu0 0.0
    %1620 = vmatpush.msra.mxu0 0.0
    %1621 = vmatpush.msra.mxu0 0.0
    %1622 = vmatpush.msra.mxu0 0.0
    %1623 = vmatpush.msra.mxu0 0.0
    %1624 = vmatpush.msra.mxu0 0.0
    %1625 = vmatpush.msra.mxu0 %v1605
    %1626 = vmatmul.f32.gmra.mxu0 %v1608
    %v1627 = vpop.f32.mrf.mxu0
    %v1628 = vadd.f32 0.0, %v1627
    %1629 = vdwg.mxu0
    %1630 = vrot.lane.b32.xlu0 %v1220, 120
    %v1631 = vpop.permute.xlu0 %1630
    %1632 = vrot.lane.b32.xlu0 %v1220, 88
    %v1633 = vpop.permute.xlu0 %1632
    %v1634 = vsel %vm306, %v1631, 0
    %v1636 = vsel %vm306, %v1633, 0
    %1638 = vmatpush.xpose.msra.mxu0 0.0
    %1639 = vmatpush.xpose.msra.mxu0 0.0
    %1640 = vmatpush.xpose.msra.mxu0 0.0
    %1641 = vmatpush.xpose.msra.mxu0 0.0
    %1642 = vmatpush.xpose.msra.mxu0 0.0
    %1643 = vmatpush.xpose.msra.mxu0 0.0
    %1644 = vmatpush.xpose.msra.mxu0 0.0
    %1645 = vmatpush.xpose.msra.mxu0 0.0
    %1646 = vmatpush.xpose.msra.mxu0 0.0
    %1647 = vmatpush.xpose.msra.mxu0 0.0
    %1648 = vmatpush.xpose.msra.mxu0 0.0
    %1649 = vmatpush.xpose.msra.mxu0 0.0
    %1650 = vmatpush.xpose.msra.mxu0 0.0
    %1651 = vmatpush.xpose.msra.mxu0 0.0
    %1652 = vmatpush.xpose.msra.mxu0 0.0
    %1653 = vmatpush.xpose.msra.mxu0 %v1636
    %1654 = vmatmul.f32.gmra.mxu0 %v1634
    %v1655 = vpop.f32.mrf.mxu0
    %v1656 = vadd.f32 0.0, %v1655
    %1657 = vdwg.mxu0
    %v1658 = vsel %vm667, %v1656, -1e+09
    %v1659 = vsel %vm306, %v1658, -inf
    %1660 = vmax.xlane.f32.xlu0 %v1659
    %v1661 = vpop.xlane.xlu0 %1660
    %v1662 = vsub.f32 %v1658, %v1661
    %v1663 = vmul.f32 %v1662, 1.442695
    %v1664 = vpow.pop %v1663
    %v1665 = vsel %vm306, %v1664, 0.0
    %1666 = vadd.xlane.f32.xlu0 %v1665
    %v1667 = vpop.xlane.xlu0 %1666
    %v1668 = vrcp.pop %v1667
    %v1669 = vmul.f32 %v1667, %v1668
    %v1670 = vsub.f32 1.0, %v1669
    %v1671 = vmul.f32 %v1668, %v1670
    %v1672 = vadd.f32 %v1668, %v1671
    %vm1673 = vweird.f32 %v1667
    %vm1674 = vweird.f32 %v1668
    %vm1675 = vmor %vm1673, %vm1674
    %v1676 = vsel %vm1675, %v1668, %v1672
    %v1677 = vand.u32 2147483647, %v1667
    %vm1678 = vcmp.eq.f32.partialorder %v1677, 8.507059e+37
    %v1679 = vand.u32 %v1667, 2147483648
    %v1680 = vor.u32 1.1754944e-38, %v1679
    %v1681 = vsel %vm1678, %v1680, %v1676
    %v1682 = vmul.f32 %v1664, %v1681
    %1683 = vrot.lane.b32.xlu0 %v1220, 56
    %v1684 = vpop.permute.xlu0 %1683
    %v1687 = vsel %vm306, %v1682, 0
    %1689 = vmatpush.msra.mxu0 0.0
    %1690 = vmatpush.msra.mxu0 0.0
    %1691 = vmatpush.msra.mxu0 0.0
    %1692 = vmatpush.msra.mxu0 0.0
    %1693 = vmatpush.msra.mxu0 0.0
    %1694 = vmatpush.msra.mxu0 0.0
    %1695 = vmatpush.msra.mxu0 0.0
    %1696 = vmatpush.msra.mxu0 0.0
    %1697 = vmatpush.msra.mxu0 0.0
    %1698 = vmatpush.msra.mxu0 0.0
    %1699 = vmatpush.msra.mxu0 0.0
    %1700 = vmatpush.msra.mxu0 0.0
    %1701 = vmatpush.msra.mxu0 0.0
    %1702 = vmatpush.msra.mxu0 0.0
    %1703 = vmatpush.msra.mxu0 0.0
    %1704 = vmatpush.msra.mxu0 %v1684
    %1705 = vmatmul.f32.gmra.mxu0 %v1687
    %v1706 = vpop.f32.mrf.mxu0
    %v1707 = vadd.f32 0.0, %v1706
    %1708 = vdwg.mxu0
    %1709 = vrot.lane.b32.xlu0 %v1220, 112
    %v1710 = vpop.permute.xlu0 %1709
    %1711 = vrot.lane.b32.xlu0 %v1220, 80
    %v1712 = vpop.permute.xlu0 %1711
    %v1713 = vsel %vm306, %v1710, 0
    %v1715 = vsel %vm306, %v1712, 0
    %1717 = vmatpush.xpose.msra.mxu0 0.0
    %1718 = vmatpush.xpose.msra.mxu0 0.0
    %1719 = vmatpush.xpose.msra.mxu0 0.0
    %1720 = vmatpush.xpose.msra.mxu0 0.0
    %1721 = vmatpush.xpose.msra.mxu0 0.0
    %1722 = vmatpush.xpose.msra.mxu0 0.0
    %1723 = vmatpush.xpose.msra.mxu0 0.0
    %1724 = vmatpush.xpose.msra.mxu0 0.0
    %1725 = vmatpush.xpose.msra.mxu0 0.0
    %1726 = vmatpush.xpose.msra.mxu0 0.0
    %1727 = vmatpush.xpose.msra.mxu0 0.0
    %1728 = vmatpush.xpose.msra.mxu0 0.0
    %1729 = vmatpush.xpose.msra.mxu0 0.0
    %1730 = vmatpush.xpose.msra.mxu0 0.0
    %1731 = vmatpush.xpose.msra.mxu0 0.0
    %1732 = vmatpush.xpose.msra.mxu0 %v1715
    %1733 = vmatmul.f32.gmra.mxu0 %v1713
    %v1734 = vpop.f32.mrf.mxu0
    %v1735 = vadd.f32 0.0, %v1734
    %1736 = vdwg.mxu0
    %v1737 = vsel %vm667, %v1735, -1e+09
    %v1738 = vsel %vm306, %v1737, -inf
    %1739 = vmax.xlane.f32.xlu0 %v1738
    %v1740 = vpop.xlane.xlu0 %1739
    %v1741 = vsub.f32 %v1737, %v1740
    %v1742 = vmul.f32 %v1741, 1.442695
    %v1743 = vpow.pop %v1742
    %v1744 = vsel %vm306, %v1743, 0.0
    %1745 = vadd.xlane.f32.xlu0 %v1744
    %v1746 = vpop.xlane.xlu0 %1745
    %v1747 = vrcp.pop %v1746
    %v1748 = vmul.f32 %v1746, %v1747
    %v1749 = vsub.f32 1.0, %v1748
    %v1750 = vmul.f32 %v1747, %v1749
    %v1751 = vadd.f32 %v1747, %v1750
    %vm1752 = vweird.f32 %v1746
    %vm1753 = vweird.f32 %v1747
    %vm1754 = vmor %vm1752, %vm1753
    %v1755 = vsel %vm1754, %v1747, %v1751
    %v1756 = vand.u32 2147483647, %v1746
    %vm1757 = vcmp.eq.f32.partialorder %v1756, 8.507059e+37
    %v1758 = vand.u32 %v1746, 2147483648
    %v1759 = vor.u32 1.1754944e-38, %v1758
    %v1760 = vsel %vm1757, %v1759, %v1755
    %v1761 = vmul.f32 %v1743, %v1760
    %1762 = vrot.lane.b32.xlu0 %v1220, 48
    %v1763 = vpop.permute.xlu0 %1762
    %v1766 = vsel %vm306, %v1761, 0
    %1768 = vmatpush.msra.mxu0 0.0
    %1769 = vmatpush.msra.mxu0 0.0
    %1770 = vmatpush.msra.mxu0 0.0
    %1771 = vmatpush.msra.mxu0 0.0
    %1772 = vmatpush.msra.mxu0 0.0
    %1773 = vmatpush.msra.mxu0 0.0
    %1774 = vmatpush.msra.mxu0 0.0
    %1775 = vmatpush.msra.mxu0 0.0
    %1776 = vmatpush.msra.mxu0 0.0
    %1777 = vmatpush.msra.mxu0 0.0
    %1778 = vmatpush.msra.mxu0 0.0
    %1779 = vmatpush.msra.mxu0 0.0
    %1780 = vmatpush.msra.mxu0 0.0
    %1781 = vmatpush.msra.mxu0 0.0
    %1782 = vmatpush.msra.mxu0 0.0
    %1783 = vmatpush.msra.mxu0 %v1763
    %1784 = vmatmul.f32.gmra.mxu0 %v1766
    %v1785 = vpop.f32.mrf.mxu0
    %v1786 = vadd.f32 0.0, %v1785
    %1787 = vdwg.mxu0
    %1788 = vrot.lane.b32.xlu0 %v1220, 104
    %v1789 = vpop.permute.xlu0 %1788
    %1790 = vrot.lane.b32.xlu0 %v1220, 72
    %v1791 = vpop.permute.xlu0 %1790
    %v1792 = vsel %vm306, %v1789, 0
    %v1794 = vsel %vm306, %v1791, 0
    %1796 = vmatpush.xpose.msra.mxu0 0.0
    %1797 = vmatpush.xpose.msra.mxu0 0.0
    %1798 = vmatpush.xpose.msra.mxu0 0.0
    %1799 = vmatpush.xpose.msra.mxu0 0.0
    %1800 = vmatpush.xpose.msra.mxu0 0.0
    %1801 = vmatpush.xpose.msra.mxu0 0.0
    %1802 = vmatpush.xpose.msra.mxu0 0.0
    %1803 = vmatpush.xpose.msra.mxu0 0.0
    %1804 = vmatpush.xpose.msra.mxu0 0.0
    %1805 = vmatpush.xpose.msra.mxu0 0.0
    %1806 = vmatpush.xpose.msra.mxu0 0.0
    %1807 = vmatpush.xpose.msra.mxu0 0.0
    %1808 = vmatpush.xpose.msra.mxu0 0.0
    %1809 = vmatpush.xpose.msra.mxu0 0.0
    %1810 = vmatpush.xpose.msra.mxu0 0.0
    %1811 = vmatpush.xpose.msra.mxu0 %v1794
    %1812 = vmatmul.f32.gmra.mxu0 %v1792
    %v1813 = vpop.f32.mrf.mxu0
    %v1814 = vadd.f32 0.0, %v1813
    %1815 = vdwg.mxu0
    %v1816 = vsel %vm667, %v1814, -1e+09
    %v1817 = vsel %vm306, %v1816, -inf
    %1818 = vmax.xlane.f32.xlu0 %v1817
    %v1819 = vpop.xlane.xlu0 %1818
    %v1820 = vsub.f32 %v1816, %v1819
    %v1821 = vmul.f32 %v1820, 1.442695
    %v1822 = vpow.pop %v1821
    %v1823 = vsel %vm306, %v1822, 0.0
    %1824 = vadd.xlane.f32.xlu0 %v1823
    %v1825 = vpop.xlane.xlu0 %1824
    %v1826 = vrcp.pop %v1825
    %v1827 = vmul.f32 %v1825, %v1826
    %v1828 = vsub.f32 1.0, %v1827
    %v1829 = vmul.f32 %v1826, %v1828
    %v1830 = vadd.f32 %v1826, %v1829
    %vm1831 = vweird.f32 %v1825
    %vm1832 = vweird.f32 %v1826
    %vm1833 = vmor %vm1831, %vm1832
    %v1834 = vsel %vm1833, %v1826, %v1830
    %v1835 = vand.u32 2147483647, %v1825
    %vm1836 = vcmp.eq.f32.partialorder %v1835, 8.507059e+37
    %v1837 = vand.u32 %v1825, 2147483648
    %v1838 = vor.u32 1.1754944e-38, %v1837
    %v1839 = vsel %vm1836, %v1838, %v1834
    %v1840 = vmul.f32 %v1822, %v1839
    %1841 = vrot.lane.b32.xlu0 %v1220, 40
    %v1842 = vpop.permute.xlu0 %1841
    %v1845 = vsel %vm306, %v1840, 0
    %1847 = vmatpush.msra.mxu0 0.0
    %1848 = vmatpush.msra.mxu0 0.0
    %1849 = vmatpush.msra.mxu0 0.0
    %1850 = vmatpush.msra.mxu0 0.0
    %1851 = vmatpush.msra.mxu0 0.0
    %1852 = vmatpush.msra.mxu0 0.0
    %1853 = vmatpush.msra.mxu0 0.0
    %1854 = vmatpush.msra.mxu0 0.0
    %1855 = vmatpush.msra.mxu0 0.0
    %1856 = vmatpush.msra.mxu0 0.0
    %1857 = vmatpush.msra.mxu0 0.0
    %1858 = vmatpush.msra.mxu0 0.0
    %1859 = vmatpush.msra.mxu0 0.0
    %1860 = vmatpush.msra.mxu0 0.0
    %1861 = vmatpush.msra.mxu0 0.0
    %1862 = vmatpush.msra.mxu0 %v1842
    %1863 = vmatmul.f32.gmra.mxu0 %v1845
    %v1864 = vpop.f32.mrf.mxu0
    %v1865 = vadd.f32 0.0, %v1864
    %1866 = vdwg.mxu0
    %1868 = vrot.lane.b32.xlu0 %v1707, 8
    %v1869 = vpop.permute.xlu0 %1868
    %1872 = vrot.lane.b32.xlu0 %v1786, 16
    %v1873 = vpop.permute.xlu0 %1872
    %1876 = vrot.lane.b32.xlu0 %v1865, 24
    %v1877 = vpop.permute.xlu0 %1876
    %v1879 = vsel %vm306, %v1628, %v1869
    %v1880 = vsel %vm635, %v1879, %v1873
    %v1881 = vsel %vm92, %v1880, %v1877
    %v1883 = vsel %vm134, %v1551, 0
    %v1886 = vsel %vm134, %v1881, 0
    %1888 = vmatpush.msra.mxu0 0.0
    %1889 = vmatpush.msra.mxu0 0.0
    %1890 = vmatpush.msra.mxu0 0.0
    %1891 = vmatpush.msra.mxu0 0.0
    %1892 = vmatpush.msra.mxu0 0.0
    %1893 = vmatpush.msra.mxu0 0.0
    %1894 = vmatpush.msra.mxu0 0.0
    %1895 = vmatpush.msra.mxu0 0.0
    %1896 = vmatpush.msra.mxu0 0.0
    %1897 = vmatpush.msra.mxu0 0.0
    %1898 = vmatpush.msra.mxu0 0.0
    %1899 = vmatpush.msra.mxu0 0.0
    %1900 = vmatpush.msra.mxu0 %v1192
    %1901 = vmatpush.msra.mxu0 %v1191
    %1902 = vmatpush.msra.mxu0 %v1190
    %1903 = vmatpush.msra.mxu0 %v1189
    %1904 = vmatmul.f32.gmra.mxu0 %v1883
    %v1905 = vpop.f32.mrf.mxu0
    %v1906 = vadd.f32 %v1181, %v1905
    %1907 = vmatmul.f32.gmra.mxu0 %v1886
    %v1908 = vpop.f32.mrf.mxu0
    %v1909 = vadd.f32 %v1182, %v1908
    %1910 = vdwg.mxu0
    %v1911 = vsel %vm134, %v1906, 0.0
    %1912 = vadd.xlane.f32.xlu0 %v1911
    %v1913 = vpop.xlane.xlu0 %1912
    %v1914 = vsel %vm134, %v1909, 0.0
    %1915 = vadd.xlane.f32.xlu0 %v1914
    %v1916 = vpop.xlane.xlu0 %1915
    %v1917 = vmul.f32 %v1913, %v147
    %v1918 = vmul.f32 %v1916, %v147
    %v1919 = vsub.f32 %v1906, %v1917
    %v1920 = vsub.f32 %v1909, %v1918
    %v1921 = vmul.f32 %v1919, %v1919
    %v1922 = vmul.f32 %v1920, %v1920
    %v1923 = vsel %vm134, %v1921, 0.0
    %1924 = vadd.xlane.f32.xlu0 %v1923
    %v1925 = vpop.xlane.xlu0 %1924
    %v1926 = vsel %vm134, %v1922, 0.0
    %1927 = vadd.xlane.f32.xlu0 %v1926
    %v1928 = vpop.xlane.xlu0 %1927
    %v1929 = vmul.f32 %v1925, %v147
    %v1930 = vmul.f32 %v1928, %v147
    %v1931 = vadd.f32 %v1929, 1e-06
    %v1932 = vadd.f32 %v1930, 1e-06
    %v1933 = vrsqrt.pop %v1931
    %v1934 = vmul.f32 %v1933, %v1931
    %v1935 = vmul.f32 %v1934, %v1933
    %v1936 = vmul.f32 0.5, %v1935
    %v1937 = vsub.f32 1.5, %v1936
    %v1938 = vmul.f32 %v1933, %v1937
    %vm1939 = vweird.f32 %v1931
    %vm1940 = vweird.f32 %v1933
    %vm1941 = vmor %vm1939, %vm1940
    %v1942 = vsel %vm1941, %v1933, %v1938
    %v1943 = vrsqrt.pop %v1932
    %v1944 = vmul.f32 %v1943, %v1932
    %v1945 = vmul.f32 %v1944, %v1943
    %v1946 = vmul.f32 0.5, %v1945
    %v1947 = vsub.f32 1.5, %v1946
    %v1948 = vmul.f32 %v1943, %v1947
    %vm1949 = vweird.f32 %v1932
    %vm1950 = vweird.f32 %v1943
    %vm1951 = vmor %vm1949, %vm1950
    %v1952 = vsel %vm1951, %v1943, %v1948
    %v1953 = vmul.f32 %v1919, %v1942
    %v1954 = vmul.f32 %v1920, %v1952
    %v1955 = vld [vmem:[%s3 + $0x9] sm:$0x1]
    %v1956 = vperm.slane %v1955, 0
    %v1957 = vmul.f32 %v1953, %v1956
    %v1958 = vmul.f32 %v1954, %v1956
    %v1959 = vld [vmem:[%s3 + $0xa] sm:$0x1]
    %v1960 = vperm.slane %v1959, 0
    %v1961 = vadd.f32 %v1957, %v1960
    %v1962 = vadd.f32 %v1958, %v1960
    %s1963 = scalar_lea.vmem %s7, 32
    %v1964 = vld [vmem:[%s1963] sm:$0xff]
    %v1965 = vld [vmem:[%s1963 + $0x8] sm:$0xff]
    %v1966 = vld [vmem:[%s1963 + $0x10] sm:$0xff]
    %v1967 = vld [vmem:[%s1963 + $0x18] sm:$0xff]
    %s1968 = scalar_lea.vmem %s8, 64
    %v1969 = vld [vmem:[%s1968] sm:$0xff]
    %v1970 = vld [vmem:[%s1968 + $0x8] sm:$0xff]
    %v1971 = vld [vmem:[%s1968 + $0x10] sm:$0xff]
    %v1972 = vld [vmem:[%s1968 + $0x18] sm:$0xff]
    %v1973 = vld [vmem:[%s1968 + $0x20] sm:$0xff]
    %v1974 = vld [vmem:[%s1968 + $0x28] sm:$0xff]
    %v1975 = vld [vmem:[%s1968 + $0x30] sm:$0xff]
    %v1976 = vld [vmem:[%s1968 + $0x38] sm:$0xff]
    %v1977 = vld [vmem:[%s4 + $0x1] sm:$0x1]
    %v1978 = vperm.slane %v1977, 0
    %v1980 = vsel %vm134, %v1961, 0
    %v1983 = vsel %vm134, %v1962, 0
    %1985 = vmatpush.msra.mxu0 0.0
    %1986 = vmatpush.msra.mxu0 0.0
    %1987 = vmatpush.msra.mxu0 0.0
    %1988 = vmatpush.msra.mxu0 0.0
    %1989 = vmatpush.msra.mxu0 0.0
    %1990 = vmatpush.msra.mxu0 0.0
    %1991 = vmatpush.msra.mxu0 0.0
    %1992 = vmatpush.msra.mxu0 0.0
    %1993 = vmatpush.msra.mxu0 0.0
    %1994 = vmatpush.msra.mxu0 0.0
    %1995 = vmatpush.msra.mxu0 0.0
    %1996 = vmatpush.msra.mxu0 0.0
    %1997 = vmatpush.msra.mxu0 %v1967
    %1998 = vmatpush.msra.mxu0 %v1966
    %1999 = vmatpush.msra.mxu0 %v1965
    %2000 = vmatpush.msra.mxu0 %v1964
    %2001 = vmatmul.f32.gmra.mxu0 %v1980
    %v2002 = vpop.f32.mrf.mxu0
    %v2003 = vadd.f32 %v1978, %v2002
    %2004 = vmatmul.f32.gmra.mxu0 %v1983
    %v2005 = vpop.f32.mrf.mxu0
    %v2006 = vadd.f32 %v1978, %v2005
    %2007 = vdwg.mxu0
    %v2008 = vmax.f32 %v2003, 0.0
    %v2009 = vmax.f32 %v2006, 0.0
    %v2010 = vld [vmem:[%s3 + $0xb] sm:$0x1]
    %v2011 = vperm.slane %v2010, 0
    %v2013 = vsel %vm1099, %v2008, 0
    %v2016 = vsel %vm1099, %v2009, 0
    %2018 = vmatpush.msra.mxu0 0.0
    %2019 = vmatpush.msra.mxu0 0.0
    %2020 = vmatpush.msra.mxu0 0.0
    %2021 = vmatpush.msra.mxu0 0.0
    %2022 = vmatpush.msra.mxu0 0.0
    %2023 = vmatpush.msra.mxu0 0.0
    %2024 = vmatpush.msra.mxu0 0.0
    %2025 = vmatpush.msra.mxu0 0.0
    %2026 = vmatpush.msra.mxu0 %v1976
    %2027 = vmatpush.msra.mxu0 %v1975
    %2028 = vmatpush.msra.mxu0 %v1974
    %2029 = vmatpush.msra.mxu0 %v1973
    %2030 = vmatpush.msra.mxu0 %v1972
    %2031 = vmatpush.msra.mxu0 %v1971
    %2032 = vmatpush.msra.mxu0 %v1970
    %2033 = vmatpush.msra.mxu0 %v1969
    %2034 = vmatmul.f32.gmra.mxu0 %v2013
    %v2035 = vpop.f32.mrf.mxu0
    %v2036 = vadd.f32 %v2011, %v2035
    %2037 = vmatmul.f32.gmra.mxu0 %v2016
    %v2038 = vpop.f32.mrf.mxu0
    %v2039 = vadd.f32 %v2011, %v2038
    %2040 = vdwg.mxu0
    %v2041 = vadd.f32 %v2036, %v1961
    %v2042 = vadd.f32 %v2039, %v1962
    %v2043 = vsel %vm134, %v2041, 0.0
    %2044 = vadd.xlane.f32.xlu0 %v2043
    %v2045 = vpop.xlane.xlu0 %2044
    %v2046 = vsel %vm134, %v2042, 0.0
    %2047 = vadd.xlane.f32.xlu0 %v2046
    %v2048 = vpop.xlane.xlu0 %2047
    %v2049 = vmul.f32 %v2045, %v147
    %v2050 = vmul.f32 %v2048, %v147
    %v2051 = vsub.f32 %v2041, %v2049
    %v2052 = vsub.f32 %v2042, %v2050
    %v2053 = vmul.f32 %v2051, %v2051
    %v2054 = vmul.f32 %v2052, %v2052
    %v2055 = vsel %vm134, %v2053, 0.0
    %2056 = vadd.xlane.f32.xlu0 %v2055
    %v2057 = vpop.xlane.xlu0 %2056
    %v2058 = vsel %vm134, %v2054, 0.0
    %2059 = vadd.xlane.f32.xlu0 %v2058
    %v2060 = vpop.xlane.xlu0 %2059
    %v2061 = vmul.f32 %v2057, %v147
    %v2062 = vmul.f32 %v2060, %v147
    %v2063 = vadd.f32 %v2061, 1e-06
    %v2064 = vadd.f32 %v2062, 1e-06
    %v2065 = vrsqrt.pop %v2063
    %v2066 = vmul.f32 %v2065, %v2063
    %v2067 = vmul.f32 %v2066, %v2065
    %v2068 = vmul.f32 0.5, %v2067
    %v2069 = vsub.f32 1.5, %v2068
    %v2070 = vmul.f32 %v2065, %v2069
    %vm2071 = vweird.f32 %v2063
    %vm2072 = vweird.f32 %v2065
    %vm2073 = vmor %vm2071, %vm2072
    %v2074 = vsel %vm2073, %v2065, %v2070
    %v2075 = vrsqrt.pop %v2064
    %v2076 = vmul.f32 %v2075, %v2064
    %v2077 = vmul.f32 %v2076, %v2075
    %v2078 = vmul.f32 0.5, %v2077
    %v2079 = vsub.f32 1.5, %v2078
    %v2080 = vmul.f32 %v2075, %v2079
    %vm2081 = vweird.f32 %v2064
    %vm2082 = vweird.f32 %v2075
    %vm2083 = vmor %vm2081, %vm2082
    %v2084 = vsel %vm2083, %v2075, %v2080
    %v2085 = vmul.f32 %v2051, %v2074
    %v2086 = vmul.f32 %v2052, %v2084
    %v2087 = vld [vmem:[%s3 + $0xc] sm:$0x1]
    %v2088 = vperm.slane %v2087, 0
    %v2089 = vmul.f32 %v2085, %v2088
    %v2090 = vmul.f32 %v2086, %v2088
    %v2091 = vld [vmem:[%s3 + $0xd] sm:$0x1]
    %v2092 = vperm.slane %v2091, 0
    %v2093 = vadd.f32 %v2089, %v2092
    %v2094 = vadd.f32 %v2090, %v2092
    %s2095 = scalar_lea.vmem %s5, 64
    %v2096 = vld [vmem:[%s2095] sm:$0xff]
    %v2097 = vld [vmem:[%s2095 + $0x8] sm:$0xff]
    %v2098 = vld [vmem:[%s2095 + $0x10] sm:$0xff]
    %v2099 = vld [vmem:[%s2095 + $0x18] sm:$0xff]
    %s2100 = scalar_lea.vmem %s6, 64
    %v2101 = vld [vmem:[%s2100] sm:$0xff]
    %v2102 = vld [vmem:[%s2100 + $0x8] sm:$0xff]
    %v2103 = vld [vmem:[%s2100 + $0x10] sm:$0xff]
    %v2104 = vld [vmem:[%s2100 + $0x18] sm:$0xff]
    %v2106 = vsel %vm134, %v245, 0
    %v2109 = vsel %vm134, %v246, 0
    %2111 = vmatpush.msra.mxu0 0.0
    %2112 = vmatpush.msra.mxu0 0.0
    %2113 = vmatpush.msra.mxu0 0.0
    %2114 = vmatpush.msra.mxu0 0.0
    %2115 = vmatpush.msra.mxu0 0.0
    %2116 = vmatpush.msra.mxu0 0.0
    %2117 = vmatpush.msra.mxu0 0.0
    %2118 = vmatpush.msra.mxu0 0.0
    %2119 = vmatpush.msra.mxu0 0.0
    %2120 = vmatpush.msra.mxu0 0.0
    %2121 = vmatpush.msra.mxu0 0.0
    %2122 = vmatpush.msra.mxu0 0.0
    %2123 = vmatpush.msra.mxu0 %v2099
    %2124 = vmatpush.msra.mxu0 %v2098
    %2125 = vmatpush.msra.mxu0 %v2097
    %2126 = vmatpush.msra.mxu0 %v2096
    %2127 = vmatmul.f32.gmra.mxu0 %v2106
    %v2128 = vpop.f32.mrf.mxu0
    %v2129 = vadd.f32 0.0, %v2128
    %2130 = vmatmul.f32.gmra.mxu0 %v2109
    %v2131 = vpop.f32.mrf.mxu0
    %v2132 = vadd.f32 0.0, %v2131
    %2133 = vdwg.mxu0
    %2135 = vrot.lane.b32.xlu0 %v2129, 96
    %v2136 = vpop.permute.xlu0 %2135
    %v2137 = vsel %vm306, %v2129, 0
    %v2139 = vsel %vm306, %v2136, 0
    %2141 = vmatpush.xpose.msra.mxu0 0.0
    %2142 = vmatpush.xpose.msra.mxu0 0.0
    %2143 = vmatpush.xpose.msra.mxu0 0.0
    %2144 = vmatpush.xpose.msra.mxu0 0.0
    %2145 = vmatpush.xpose.msra.mxu0 0.0
    %2146 = vmatpush.xpose.msra.mxu0 0.0
    %2147 = vmatpush.xpose.msra.mxu0 0.0
    %2148 = vmatpush.xpose.msra.mxu0 0.0
    %2149 = vmatpush.xpose.msra.mxu0 0.0
    %2150 = vmatpush.xpose.msra.mxu0 0.0
    %2151 = vmatpush.xpose.msra.mxu0 0.0
    %2152 = vmatpush.xpose.msra.mxu0 0.0
    %2153 = vmatpush.xpose.msra.mxu0 0.0
    %2154 = vmatpush.xpose.msra.mxu0 0.0
    %2155 = vmatpush.xpose.msra.mxu0 0.0
    %2156 = vmatpush.xpose.msra.mxu0 %v2139
    %2157 = vmatmul.f32.gmra.mxu0 %v2137
    %v2158 = vpop.f32.mrf.mxu0
    %v2159 = vadd.f32 0.0, %v2158
    %2160 = vdwg.mxu0
    %v2161 = vsel %vm257, %v2159, -1e+09
    %vm2162 = vcmask 55296
    %v2163 = vsel %vm2162, %v2161, -inf
    %2164 = vmax.xlane.f32.xlu0 %v2163
    %v2165 = vpop.xlane.xlu0 %2164
    %v2166 = vsub.f32 %v2161, %v2165
    %v2167 = vmul.f32 %v2166, 1.442695
    %v2168 = vpow.pop %v2167
    %v2169 = vsel %vm2162, %v2168, 0.0
    %2170 = vadd.xlane.f32.xlu0 %v2169
    %v2171 = vpop.xlane.xlu0 %2170
    %v2172 = vrcp.pop %v2171
    %v2173 = vmul.f32 %v2171, %v2172
    %v2174 = vsub.f32 1.0, %v2173
    %v2175 = vmul.f32 %v2172, %v2174
    %v2176 = vadd.f32 %v2172, %v2175
    %vm2177 = vweird.f32 %v2171
    %vm2178 = vweird.f32 %v2172
    %vm2179 = vmor %vm2177, %vm2178
    %v2180 = vsel %vm2179, %v2172, %v2176
    %v2181 = vand.u32 2147483647, %v2171
    %vm2182 = vcmp.eq.f32.partialorder %v2181, 8.507059e+37
    %v2183 = vand.u32 %v2171, 2147483648
    %v2184 = vor.u32 1.1754944e-38, %v2183
    %v2185 = vsel %vm2182, %v2184, %v2180
    %v2186 = vmul.f32 %v2168, %v2185
    %2187 = vrot.lane.b32.xlu0 %v2129, 64
    %v2188 = vpop.permute.xlu0 %2187
    %vm2189 = vcmask 56320
    %v2191 = vsel %vm2189, %v2186, 0
    %vm2193 = vcmask 1046528
    %v2194 = vsel %vm2193, %v2188, 0
    %2196 = vmatpush.msra.mxu0 0.0
    %2197 = vmatpush.msra.mxu0 0.0
    %2198 = vmatpush.msra.mxu0 0.0
    %2199 = vmatpush.msra.mxu0 0.0
    %2200 = vmatpush.msra.mxu0 0.0
    %2201 = vmatpush.msra.mxu0 0.0
    %2202 = vmatpush.msra.mxu0 0.0
    %2203 = vmatpush.msra.mxu0 0.0
    %2204 = vmatpush.msra.mxu0 0.0
    %2205 = vmatpush.msra.mxu0 0.0
    %2206 = vmatpush.msra.mxu0 0.0
    %2207 = vmatpush.msra.mxu0 0.0
    %2208 = vmatpush.msra.mxu0 0.0
    %2209 = vmatpush.msra.mxu0 0.0
    %2210 = vmatpush.msra.mxu0 0.0
    %2211 = vmatpush.msra.mxu0 %v2194
    %2212 = vmatmul.f32.gmra.mxu0 %v2191
    %v2213 = vpop.f32.mrf.mxu0
    %v2214 = vadd.f32 0.0, %v2213
    %2215 = vdwg.mxu0
    %2216 = vrot.lane.b32.xlu0 %v2129, 120
    %v2217 = vpop.permute.xlu0 %2216
    %2218 = vrot.lane.b32.xlu0 %v2129, 88
    %v2219 = vpop.permute.xlu0 %2218
    %v2220 = vsel %vm306, %v2217, 0
    %v2222 = vsel %vm306, %v2219, 0
    %2224 = vmatpush.xpose.msra.mxu0 0.0
    %2225 = vmatpush.xpose.msra.mxu0 0.0
    %2226 = vmatpush.xpose.msra.mxu0 0.0
    %2227 = vmatpush.xpose.msra.mxu0 0.0
    %2228 = vmatpush.xpose.msra.mxu0 0.0
    %2229 = vmatpush.xpose.msra.mxu0 0.0
    %2230 = vmatpush.xpose.msra.mxu0 0.0
    %2231 = vmatpush.xpose.msra.mxu0 0.0
    %2232 = vmatpush.xpose.msra.mxu0 0.0
    %2233 = vmatpush.xpose.msra.mxu0 0.0
    %2234 = vmatpush.xpose.msra.mxu0 0.0
    %2235 = vmatpush.xpose.msra.mxu0 0.0
    %2236 = vmatpush.xpose.msra.mxu0 0.0
    %2237 = vmatpush.xpose.msra.mxu0 0.0
    %2238 = vmatpush.xpose.msra.mxu0 0.0
    %2239 = vmatpush.xpose.msra.mxu0 %v2222
    %2240 = vmatmul.f32.gmra.mxu0 %v2220
    %v2241 = vpop.f32.mrf.mxu0
    %v2242 = vadd.f32 0.0, %v2241
    %2243 = vdwg.mxu0
    %v2244 = vsel %vm257, %v2242, -1e+09
    %v2245 = vsel %vm2162, %v2244, -inf
    %2246 = vmax.xlane.f32.xlu0 %v2245
    %v2247 = vpop.xlane.xlu0 %2246
    %v2248 = vsub.f32 %v2244, %v2247
    %v2249 = vmul.f32 %v2248, 1.442695
    %v2250 = vpow.pop %v2249
    %v2251 = vsel %vm2162, %v2250, 0.0
    %2252 = vadd.xlane.f32.xlu0 %v2251
    %v2253 = vpop.xlane.xlu0 %2252
    %v2254 = vrcp.pop %v2253
    %v2255 = vmul.f32 %v2253, %v2254
    %v2256 = vsub.f32 1.0, %v2255
    %v2257 = vmul.f32 %v2254, %v2256
    %v2258 = vadd.f32 %v2254, %v2257
    %vm2259 = vweird.f32 %v2253
    %vm2260 = vweird.f32 %v2254
    %vm2261 = vmor %vm2259, %vm2260
    %v2262 = vsel %vm2261, %v2254, %v2258
    %v2263 = vand.u32 2147483647, %v2253
    %vm2264 = vcmp.eq.f32.partialorder %v2263, 8.507059e+37
    %v2265 = vand.u32 %v2253, 2147483648
    %v2266 = vor.u32 1.1754944e-38, %v2265
    %v2267 = vsel %vm2264, %v2266, %v2262
    %v2268 = vmul.f32 %v2250, %v2267
    %2269 = vrot.lane.b32.xlu0 %v2129, 56
    %v2270 = vpop.permute.xlu0 %2269
    %v2272 = vsel %vm2189, %v2268, 0
    %v2274 = vsel %vm2193, %v2270, 0
    %2276 = vmatpush.msra.mxu0 0.0
    %2277 = vmatpush.msra.mxu0 0.0
    %2278 = vmatpush.msra.mxu0 0.0
    %2279 = vmatpush.msra.mxu0 0.0
    %2280 = vmatpush.msra.mxu0 0.0
    %2281 = vmatpush.msra.mxu0 0.0
    %2282 = vmatpush.msra.mxu0 0.0
    %2283 = vmatpush.msra.mxu0 0.0
    %2284 = vmatpush.msra.mxu0 0.0
    %2285 = vmatpush.msra.mxu0 0.0
    %2286 = vmatpush.msra.mxu0 0.0
    %2287 = vmatpush.msra.mxu0 0.0
    %2288 = vmatpush.msra.mxu0 0.0
    %2289 = vmatpush.msra.mxu0 0.0
    %2290 = vmatpush.msra.mxu0 0.0
    %2291 = vmatpush.msra.mxu0 %v2274
    %2292 = vmatmul.f32.gmra.mxu0 %v2272
    %v2293 = vpop.f32.mrf.mxu0
    %v2294 = vadd.f32 0.0, %v2293
    %2295 = vdwg.mxu0
    %2296 = vrot.lane.b32.xlu0 %v2129, 112
    %v2297 = vpop.permute.xlu0 %2296
    %2298 = vrot.lane.b32.xlu0 %v2129, 80
    %v2299 = vpop.permute.xlu0 %2298
    %v2300 = vsel %vm306, %v2297, 0
    %v2302 = vsel %vm306, %v2299, 0
    %2304 = vmatpush.xpose.msra.mxu0 0.0
    %2305 = vmatpush.xpose.msra.mxu0 0.0
    %2306 = vmatpush.xpose.msra.mxu0 0.0
    %2307 = vmatpush.xpose.msra.mxu0 0.0
    %2308 = vmatpush.xpose.msra.mxu0 0.0
    %2309 = vmatpush.xpose.msra.mxu0 0.0
    %2310 = vmatpush.xpose.msra.mxu0 0.0
    %2311 = vmatpush.xpose.msra.mxu0 0.0
    %2312 = vmatpush.xpose.msra.mxu0 0.0
    %2313 = vmatpush.xpose.msra.mxu0 0.0
    %2314 = vmatpush.xpose.msra.mxu0 0.0
    %2315 = vmatpush.xpose.msra.mxu0 0.0
    %2316 = vmatpush.xpose.msra.mxu0 0.0
    %2317 = vmatpush.xpose.msra.mxu0 0.0
    %2318 = vmatpush.xpose.msra.mxu0 0.0
    %2319 = vmatpush.xpose.msra.mxu0 %v2302
    %2320 = vmatmul.f32.gmra.mxu0 %v2300
    %v2321 = vpop.f32.mrf.mxu0
    %v2322 = vadd.f32 0.0, %v2321
    %2323 = vdwg.mxu0
    %v2324 = vsel %vm257, %v2322, -1e+09
    %v2325 = vsel %vm2162, %v2324, -inf
    %2326 = vmax.xlane.f32.xlu0 %v2325
    %v2327 = vpop.xlane.xlu0 %2326
    %v2328 = vsub.f32 %v2324, %v2327
    %v2329 = vmul.f32 %v2328, 1.442695
    %v2330 = vpow.pop %v2329
    %v2331 = vsel %vm2162, %v2330, 0.0
    %2332 = vadd.xlane.f32.xlu0 %v2331
    %v2333 = vpop.xlane.xlu0 %2332
    %v2334 = vrcp.pop %v2333
    %v2335 = vmul.f32 %v2333, %v2334
    %v2336 = vsub.f32 1.0, %v2335
    %v2337 = vmul.f32 %v2334, %v2336
    %v2338 = vadd.f32 %v2334, %v2337
    %vm2339 = vweird.f32 %v2333
    %vm2340 = vweird.f32 %v2334
    %vm2341 = vmor %vm2339, %vm2340
    %v2342 = vsel %vm2341, %v2334, %v2338
    %v2343 = vand.u32 2147483647, %v2333
    %vm2344 = vcmp.eq.f32.partialorder %v2343, 8.507059e+37
    %v2345 = vand.u32 %v2333, 2147483648
    %v2346 = vor.u32 1.1754944e-38, %v2345
    %v2347 = vsel %vm2344, %v2346, %v2342
    %v2348 = vmul.f32 %v2330, %v2347
    %2349 = vrot.lane.b32.xlu0 %v2129, 48
    %v2350 = vpop.permute.xlu0 %2349
    %v2352 = vsel %vm2189, %v2348, 0
    %v2354 = vsel %vm2193, %v2350, 0
    %2356 = vmatpush.msra.mxu0 0.0
    %2357 = vmatpush.msra.mxu0 0.0
    %2358 = vmatpush.msra.mxu0 0.0
    %2359 = vmatpush.msra.mxu0 0.0
    %2360 = vmatpush.msra.mxu0 0.0
    %2361 = vmatpush.msra.mxu0 0.0
    %2362 = vmatpush.msra.mxu0 0.0
    %2363 = vmatpush.msra.mxu0 0.0
    %2364 = vmatpush.msra.mxu0 0.0
    %2365 = vmatpush.msra.mxu0 0.0
    %2366 = vmatpush.msra.mxu0 0.0
    %2367 = vmatpush.msra.mxu0 0.0
    %2368 = vmatpush.msra.mxu0 0.0
    %2369 = vmatpush.msra.mxu0 0.0
    %2370 = vmatpush.msra.mxu0 0.0
    %2371 = vmatpush.msra.mxu0 %v2354
    %2372 = vmatmul.f32.gmra.mxu0 %v2352
    %v2373 = vpop.f32.mrf.mxu0
    %v2374 = vadd.f32 0.0, %v2373
    %2375 = vdwg.mxu0
    %2376 = vrot.lane.b32.xlu0 %v2129, 104
    %v2377 = vpop.permute.xlu0 %2376
    %2378 = vrot.lane.b32.xlu0 %v2129, 72
    %v2379 = vpop.permute.xlu0 %2378
    %v2380 = vsel %vm306, %v2377, 0
    %v2382 = vsel %vm306, %v2379, 0
    %2384 = vmatpush.xpose.msra.mxu0 0.0
    %2385 = vmatpush.xpose.msra.mxu0 0.0
    %2386 = vmatpush.xpose.msra.mxu0 0.0
    %2387 = vmatpush.xpose.msra.mxu0 0.0
    %2388 = vmatpush.xpose.msra.mxu0 0.0
    %2389 = vmatpush.xpose.msra.mxu0 0.0
    %2390 = vmatpush.xpose.msra.mxu0 0.0
    %2391 = vmatpush.xpose.msra.mxu0 0.0
    %2392 = vmatpush.xpose.msra.mxu0 0.0
    %2393 = vmatpush.xpose.msra.mxu0 0.0
    %2394 = vmatpush.xpose.msra.mxu0 0.0
    %2395 = vmatpush.xpose.msra.mxu0 0.0
    %2396 = vmatpush.xpose.msra.mxu0 0.0
    %2397 = vmatpush.xpose.msra.mxu0 0.0
    %2398 = vmatpush.xpose.msra.mxu0 0.0
    %2399 = vmatpush.xpose.msra.mxu0 %v2382
    %2400 = vmatmul.f32.gmra.mxu0 %v2380
    %v2401 = vpop.f32.mrf.mxu0
    %v2402 = vadd.f32 0.0, %v2401
    %2403 = vdwg.mxu0
    %v2404 = vsel %vm257, %v2402, -1e+09
    %v2405 = vsel %vm2162, %v2404, -inf
    %2406 = vmax.xlane.f32.xlu0 %v2405
    %v2407 = vpop.xlane.xlu0 %2406
    %v2408 = vsub.f32 %v2404, %v2407
    %v2409 = vmul.f32 %v2408, 1.442695
    %v2410 = vpow.pop %v2409
    %v2411 = vsel %vm2162, %v2410, 0.0
    %2412 = vadd.xlane.f32.xlu0 %v2411
    %v2413 = vpop.xlane.xlu0 %2412
    %v2414 = vrcp.pop %v2413
    %v2415 = vmul.f32 %v2413, %v2414
    %v2416 = vsub.f32 1.0, %v2415
    %v2417 = vmul.f32 %v2414, %v2416
    %v2418 = vadd.f32 %v2414, %v2417
    %vm2419 = vweird.f32 %v2413
    %vm2420 = vweird.f32 %v2414
    %vm2421 = vmor %vm2419, %vm2420
    %v2422 = vsel %vm2421, %v2414, %v2418
    %v2423 = vand.u32 2147483647, %v2413
    %vm2424 = vcmp.eq.f32.partialorder %v2423, 8.507059e+37
    %v2425 = vand.u32 %v2413, 2147483648
    %v2426 = vor.u32 1.1754944e-38, %v2425
    %v2427 = vsel %vm2424, %v2426, %v2422
    %v2428 = vmul.f32 %v2410, %v2427
    %2429 = vrot.lane.b32.xlu0 %v2129, 40
    %v2430 = vpop.permute.xlu0 %2429
    %v2432 = vsel %vm2189, %v2428, 0
    %v2434 = vsel %vm2193, %v2430, 0
    %2436 = vmatpush.msra.mxu0 0.0
    %2437 = vmatpush.msra.mxu0 0.0
    %2438 = vmatpush.msra.mxu0 0.0
    %2439 = vmatpush.msra.mxu0 0.0
    %2440 = vmatpush.msra.mxu0 0.0
    %2441 = vmatpush.msra.mxu0 0.0
    %2442 = vmatpush.msra.mxu0 0.0
    %2443 = vmatpush.msra.mxu0 0.0
    %2444 = vmatpush.msra.mxu0 0.0
    %2445 = vmatpush.msra.mxu0 0.0
    %2446 = vmatpush.msra.mxu0 0.0
    %2447 = vmatpush.msra.mxu0 0.0
    %2448 = vmatpush.msra.mxu0 0.0
    %2449 = vmatpush.msra.mxu0 0.0
    %2450 = vmatpush.msra.mxu0 0.0
    %2451 = vmatpush.msra.mxu0 %v2434
    %2452 = vmatmul.f32.gmra.mxu0 %v2432
    %v2453 = vpop.f32.mrf.mxu0
    %v2454 = vadd.f32 0.0, %v2453
    %2455 = vdwg.mxu0
    %2457 = vrot.lane.b32.xlu0 %v2294, 8
    %v2458 = vpop.permute.xlu0 %2457
    %2461 = vrot.lane.b32.xlu0 %v2374, 16
    %v2462 = vpop.permute.xlu0 %2461
    %2465 = vrot.lane.b32.xlu0 %v2454, 24
    %v2466 = vpop.permute.xlu0 %2465
    %v2468 = vsel %vm306, %v2214, %v2458
    %v2469 = vsel %vm635, %v2468, %v2462
    %v2470 = vsel %vm92, %v2469, %v2466
    %vm2472 = vcmask 1040384
    %v2473 = vrot.slane %v2129, 7
    %v2474 = vrot.slane %v2132, 7
    %v2475 = vsel %vm2472, %v2473, %v2474
    %2476 = vrot.lane.b32.xlu0 %v2475, 96
    %v2477 = vpop.permute.xlu0 %2476
    %v2478 = vsel %vm306, %v2475, 0
    %v2480 = vsel %vm306, %v2477, 0
    %2482 = vmatpush.xpose.msra.mxu0 0.0
    %2483 = vmatpush.xpose.msra.mxu0 0.0
    %2484 = vmatpush.xpose.msra.mxu0 0.0
    %2485 = vmatpush.xpose.msra.mxu0 0.0
    %2486 = vmatpush.xpose.msra.mxu0 0.0
    %2487 = vmatpush.xpose.msra.mxu0 0.0
    %2488 = vmatpush.xpose.msra.mxu0 0.0
    %2489 = vmatpush.xpose.msra.mxu0 0.0
    %2490 = vmatpush.xpose.msra.mxu0 0.0
    %2491 = vmatpush.xpose.msra.mxu0 0.0
    %2492 = vmatpush.xpose.msra.mxu0 0.0
    %2493 = vmatpush.xpose.msra.mxu0 0.0
    %2494 = vmatpush.xpose.msra.mxu0 0.0
    %2495 = vmatpush.xpose.msra.mxu0 0.0
    %2496 = vmatpush.xpose.msra.mxu0 0.0
    %2497 = vmatpush.xpose.msra.mxu0 %v2480
    %2498 = vmatmul.f32.gmra.mxu0 %v2478
    %v2499 = vpop.f32.mrf.mxu0
    %v2500 = vadd.f32 0.0, %v2499
    %2501 = vdwg.mxu0
    %v2502 = vsel %vm265, %v2500, -1e+09
    %v2503 = vsel %vm2162, %v2502, -inf
    %2504 = vmax.xlane.f32.xlu0 %v2503
    %v2505 = vpop.xlane.xlu0 %2504
    %v2506 = vsub.f32 %v2502, %v2505
    %v2507 = vmul.f32 %v2506, 1.442695
    %v2508 = vpow.pop %v2507
    %v2509 = vsel %vm2162, %v2508, 0.0
    %2510 = vadd.xlane.f32.xlu0 %v2509
    %v2511 = vpop.xlane.xlu0 %2510
    %v2512 = vrcp.pop %v2511
    %v2513 = vmul.f32 %v2511, %v2512
    %v2514 = vsub.f32 1.0, %v2513
    %v2515 = vmul.f32 %v2512, %v2514
    %v2516 = vadd.f32 %v2512, %v2515
    %vm2517 = vweird.f32 %v2511
    %vm2518 = vweird.f32 %v2512
    %vm2519 = vmor %vm2517, %vm2518
    %v2520 = vsel %vm2519, %v2512, %v2516
    %v2521 = vand.u32 2147483647, %v2511
    %vm2522 = vcmp.eq.f32.partialorder %v2521, 8.507059e+37
    %v2523 = vand.u32 %v2511, 2147483648
    %v2524 = vor.u32 1.1754944e-38, %v2523
    %v2525 = vsel %vm2522, %v2524, %v2520
    %v2526 = vmul.f32 %v2508, %v2525
    %2527 = vrot.lane.b32.xlu0 %v2475, 64
    %v2528 = vpop.permute.xlu0 %2527
    %v2530 = vsel %vm2189, %v2526, 0
    %v2532 = vsel %vm2193, %v2528, 0
    %2534 = vmatpush.msra.mxu0 0.0
    %2535 = vmatpush.msra.mxu0 0.0
    %2536 = vmatpush.msra.mxu0 0.0
    %2537 = vmatpush.msra.mxu0 0.0
    %2538 = vmatpush.msra.mxu0 0.0
    %2539 = vmatpush.msra.mxu0 0.0
    %2540 = vmatpush.msra.mxu0 0.0
    %2541 = vmatpush.msra.mxu0 0.0
    %2542 = vmatpush.msra.mxu0 0.0
    %2543 = vmatpush.msra.mxu0 0.0
    %2544 = vmatpush.msra.mxu0 0.0
    %2545 = vmatpush.msra.mxu0 0.0
    %2546 = vmatpush.msra.mxu0 0.0
    %2547 = vmatpush.msra.mxu0 0.0
    %2548 = vmatpush.msra.mxu0 0.0
    %2549 = vmatpush.msra.mxu0 %v2532
    %2550 = vmatmul.f32.gmra.mxu0 %v2530
    %v2551 = vpop.f32.mrf.mxu0
    %v2552 = vadd.f32 0.0, %v2551
    %2553 = vdwg.mxu0
    %2554 = vrot.lane.b32.xlu0 %v2475, 120
    %v2555 = vpop.permute.xlu0 %2554
    %2556 = vrot.lane.b32.xlu0 %v2475, 88
    %v2557 = vpop.permute.xlu0 %2556
    %v2558 = vsel %vm306, %v2555, 0
    %v2560 = vsel %vm306, %v2557, 0
    %2562 = vmatpush.xpose.msra.mxu0 0.0
    %2563 = vmatpush.xpose.msra.mxu0 0.0
    %2564 = vmatpush.xpose.msra.mxu0 0.0
    %2565 = vmatpush.xpose.msra.mxu0 0.0
    %2566 = vmatpush.xpose.msra.mxu0 0.0
    %2567 = vmatpush.xpose.msra.mxu0 0.0
    %2568 = vmatpush.xpose.msra.mxu0 0.0
    %2569 = vmatpush.xpose.msra.mxu0 0.0
    %2570 = vmatpush.xpose.msra.mxu0 0.0
    %2571 = vmatpush.xpose.msra.mxu0 0.0
    %2572 = vmatpush.xpose.msra.mxu0 0.0
    %2573 = vmatpush.xpose.msra.mxu0 0.0
    %2574 = vmatpush.xpose.msra.mxu0 0.0
    %2575 = vmatpush.xpose.msra.mxu0 0.0
    %2576 = vmatpush.xpose.msra.mxu0 0.0
    %2577 = vmatpush.xpose.msra.mxu0 %v2560
    %2578 = vmatmul.f32.gmra.mxu0 %v2558
    %v2579 = vpop.f32.mrf.mxu0
    %v2580 = vadd.f32 0.0, %v2579
    %2581 = vdwg.mxu0
    %v2582 = vsel %vm265, %v2580, -1e+09
    %v2583 = vsel %vm2162, %v2582, -inf
    %2584 = vmax.xlane.f32.xlu0 %v2583
    %v2585 = vpop.xlane.xlu0 %2584
    %v2586 = vsub.f32 %v2582, %v2585
    %v2587 = vmul.f32 %v2586, 1.442695
    %v2588 = vpow.pop %v2587
    %v2589 = vsel %vm2162, %v2588, 0.0
    %2590 = vadd.xlane.f32.xlu0 %v2589
    %v2591 = vpop.xlane.xlu0 %2590
    %v2592 = vrcp.pop %v2591
    %v2593 = vmul.f32 %v2591, %v2592
    %v2594 = vsub.f32 1.0, %v2593
    %v2595 = vmul.f32 %v2592, %v2594
    %v2596 = vadd.f32 %v2592, %v2595
    %vm2597 = vweird.f32 %v2591
    %vm2598 = vweird.f32 %v2592
    %vm2599 = vmor %vm2597, %vm2598
    %v2600 = vsel %vm2599, %v2592, %v2596
    %v2601 = vand.u32 2147483647, %v2591
    %vm2602 = vcmp.eq.f32.partialorder %v2601, 8.507059e+37
    %v2603 = vand.u32 %v2591, 2147483648
    %v2604 = vor.u32 1.1754944e-38, %v2603
    %v2605 = vsel %vm2602, %v2604, %v2600
    %v2606 = vmul.f32 %v2588, %v2605
    %2607 = vrot.lane.b32.xlu0 %v2475, 56
    %v2608 = vpop.permute.xlu0 %2607
    %v2610 = vsel %vm2189, %v2606, 0
    %v2612 = vsel %vm2193, %v2608, 0
    %2614 = vmatpush.msra.mxu0 0.0
    %2615 = vmatpush.msra.mxu0 0.0
    %2616 = vmatpush.msra.mxu0 0.0
    %2617 = vmatpush.msra.mxu0 0.0
    %2618 = vmatpush.msra.mxu0 0.0
    %2619 = vmatpush.msra.mxu0 0.0
    %2620 = vmatpush.msra.mxu0 0.0
    %2621 = vmatpush.msra.mxu0 0.0
    %2622 = vmatpush.msra.mxu0 0.0
    %2623 = vmatpush.msra.mxu0 0.0
    %2624 = vmatpush.msra.mxu0 0.0
    %2625 = vmatpush.msra.mxu0 0.0
    %2626 = vmatpush.msra.mxu0 0.0
    %2627 = vmatpush.msra.mxu0 0.0
    %2628 = vmatpush.msra.mxu0 0.0
    %2629 = vmatpush.msra.mxu0 %v2612
    %2630 = vmatmul.f32.gmra.mxu0 %v2610
    %v2631 = vpop.f32.mrf.mxu0
    %v2632 = vadd.f32 0.0, %v2631
    %2633 = vdwg.mxu0
    %2634 = vrot.lane.b32.xlu0 %v2475, 112
    %v2635 = vpop.permute.xlu0 %2634
    %2636 = vrot.lane.b32.xlu0 %v2475, 80
    %v2637 = vpop.permute.xlu0 %2636
    %v2638 = vsel %vm306, %v2635, 0
    %v2640 = vsel %vm306, %v2637, 0
    %2642 = vmatpush.xpose.msra.mxu0 0.0
    %2643 = vmatpush.xpose.msra.mxu0 0.0
    %2644 = vmatpush.xpose.msra.mxu0 0.0
    %2645 = vmatpush.xpose.msra.mxu0 0.0
    %2646 = vmatpush.xpose.msra.mxu0 0.0
    %2647 = vmatpush.xpose.msra.mxu0 0.0
    %2648 = vmatpush.xpose.msra.mxu0 0.0
    %2649 = vmatpush.xpose.msra.mxu0 0.0
    %2650 = vmatpush.xpose.msra.mxu0 0.0
    %2651 = vmatpush.xpose.msra.mxu0 0.0
    %2652 = vmatpush.xpose.msra.mxu0 0.0
    %2653 = vmatpush.xpose.msra.mxu0 0.0
    %2654 = vmatpush.xpose.msra.mxu0 0.0
    %2655 = vmatpush.xpose.msra.mxu0 0.0
    %2656 = vmatpush.xpose.msra.mxu0 0.0
    %2657 = vmatpush.xpose.msra.mxu0 %v2640
    %2658 = vmatmul.f32.gmra.mxu0 %v2638
    %v2659 = vpop.f32.mrf.mxu0
    %v2660 = vadd.f32 0.0, %v2659
    %2661 = vdwg.mxu0
    %v2662 = vsel %vm265, %v2660, -1e+09
    %v2663 = vsel %vm2162, %v2662, -inf
    %2664 = vmax.xlane.f32.xlu0 %v2663
    %v2665 = vpop.xlane.xlu0 %2664
    %v2666 = vsub.f32 %v2662, %v2665
    %v2667 = vmul.f32 %v2666, 1.442695
    %v2668 = vpow.pop %v2667
    %v2669 = vsel %vm2162, %v2668, 0.0
    %2670 = vadd.xlane.f32.xlu0 %v2669
    %v2671 = vpop.xlane.xlu0 %2670
    %v2672 = vrcp.pop %v2671
    %v2673 = vmul.f32 %v2671, %v2672
    %v2674 = vsub.f32 1.0, %v2673
    %v2675 = vmul.f32 %v2672, %v2674
    %v2676 = vadd.f32 %v2672, %v2675
    %vm2677 = vweird.f32 %v2671
    %vm2678 = vweird.f32 %v2672
    %vm2679 = vmor %vm2677, %vm2678
    %v2680 = vsel %vm2679, %v2672, %v2676
    %v2681 = vand.u32 2147483647, %v2671
    %vm2682 = vcmp.eq.f32.partialorder %v2681, 8.507059e+37
    %v2683 = vand.u32 %v2671, 2147483648
    %v2684 = vor.u32 1.1754944e-38, %v2683
    %v2685 = vsel %vm2682, %v2684, %v2680
    %v2686 = vmul.f32 %v2668, %v2685
    %2687 = vrot.lane.b32.xlu0 %v2475, 48
    %v2688 = vpop.permute.xlu0 %2687
    %v2690 = vsel %vm2189, %v2686, 0
    %v2692 = vsel %vm2193, %v2688, 0
    %2694 = vmatpush.msra.mxu0 0.0
    %2695 = vmatpush.msra.mxu0 0.0
    %2696 = vmatpush.msra.mxu0 0.0
    %2697 = vmatpush.msra.mxu0 0.0
    %2698 = vmatpush.msra.mxu0 0.0
    %2699 = vmatpush.msra.mxu0 0.0
    %2700 = vmatpush.msra.mxu0 0.0
    %2701 = vmatpush.msra.mxu0 0.0
    %2702 = vmatpush.msra.mxu0 0.0
    %2703 = vmatpush.msra.mxu0 0.0
    %2704 = vmatpush.msra.mxu0 0.0
    %2705 = vmatpush.msra.mxu0 0.0
    %2706 = vmatpush.msra.mxu0 0.0
    %2707 = vmatpush.msra.mxu0 0.0
    %2708 = vmatpush.msra.mxu0 0.0
    %2709 = vmatpush.msra.mxu0 %v2692
    %2710 = vmatmul.f32.gmra.mxu0 %v2690
    %v2711 = vpop.f32.mrf.mxu0
    %v2712 = vadd.f32 0.0, %v2711
    %2713 = vdwg.mxu0
    %2714 = vrot.lane.b32.xlu0 %v2475, 104
    %v2715 = vpop.permute.xlu0 %2714
    %2716 = vrot.lane.b32.xlu0 %v2475, 72
    %v2717 = vpop.permute.xlu0 %2716
    %v2718 = vsel %vm306, %v2715, 0
    %v2720 = vsel %vm306, %v2717, 0
    %2722 = vmatpush.xpose.msra.mxu0 0.0
    %2723 = vmatpush.xpose.msra.mxu0 0.0
    %2724 = vmatpush.xpose.msra.mxu0 0.0
    %2725 = vmatpush.xpose.msra.mxu0 0.0
    %2726 = vmatpush.xpose.msra.mxu0 0.0
    %2727 = vmatpush.xpose.msra.mxu0 0.0
    %2728 = vmatpush.xpose.msra.mxu0 0.0
    %2729 = vmatpush.xpose.msra.mxu0 0.0
    %2730 = vmatpush.xpose.msra.mxu0 0.0
    %2731 = vmatpush.xpose.msra.mxu0 0.0
    %2732 = vmatpush.xpose.msra.mxu0 0.0
    %2733 = vmatpush.xpose.msra.mxu0 0.0
    %2734 = vmatpush.xpose.msra.mxu0 0.0
    %2735 = vmatpush.xpose.msra.mxu0 0.0
    %2736 = vmatpush.xpose.msra.mxu0 0.0
    %2737 = vmatpush.xpose.msra.mxu0 %v2720
    %2738 = vmatmul.f32.gmra.mxu0 %v2718
    %v2739 = vpop.f32.mrf.mxu0
    %v2740 = vadd.f32 0.0, %v2739
    %2741 = vdwg.mxu0
    %v2742 = vsel %vm265, %v2740, -1e+09
    %v2743 = vsel %vm2162, %v2742, -inf
    %2744 = vmax.xlane.f32.xlu0 %v2743
    %v2745 = vpop.xlane.xlu0 %2744
    %v2746 = vsub.f32 %v2742, %v2745
    %v2747 = vmul.f32 %v2746, 1.442695
    %v2748 = vpow.pop %v2747
    %v2749 = vsel %vm2162, %v2748, 0.0
    %2750 = vadd.xlane.f32.xlu0 %v2749
    %v2751 = vpop.xlane.xlu0 %2750
    %v2752 = vrcp.pop %v2751
    %v2753 = vmul.f32 %v2751, %v2752
    %v2754 = vsub.f32 1.0, %v2753
    %v2755 = vmul.f32 %v2752, %v2754
    %v2756 = vadd.f32 %v2752, %v2755
    %vm2757 = vweird.f32 %v2751
    %vm2758 = vweird.f32 %v2752
    %vm2759 = vmor %vm2757, %vm2758
    %v2760 = vsel %vm2759, %v2752, %v2756
    %v2761 = vand.u32 2147483647, %v2751
    %vm2762 = vcmp.eq.f32.partialorder %v2761, 8.507059e+37
    %v2763 = vand.u32 %v2751, 2147483648
    %v2764 = vor.u32 1.1754944e-38, %v2763
    %v2765 = vsel %vm2762, %v2764, %v2760
    %v2766 = vmul.f32 %v2748, %v2765
    %2767 = vrot.lane.b32.xlu0 %v2475, 40
    %v2768 = vpop.permute.xlu0 %2767
    %v2770 = vsel %vm2189, %v2766, 0
    %v2772 = vsel %vm2193, %v2768, 0
    %2774 = vmatpush.msra.mxu0 0.0
    %2775 = vmatpush.msra.mxu0 0.0
    %2776 = vmatpush.msra.mxu0 0.0
    %2777 = vmatpush.msra.mxu0 0.0
    %2778 = vmatpush.msra.mxu0 0.0
    %2779 = vmatpush.msra.mxu0 0.0
    %2780 = vmatpush.msra.mxu0 0.0
    %2781 = vmatpush.msra.mxu0 0.0
    %2782 = vmatpush.msra.mxu0 0.0
    %2783 = vmatpush.msra.mxu0 0.0
    %2784 = vmatpush.msra.mxu0 0.0
    %2785 = vmatpush.msra.mxu0 0.0
    %2786 = vmatpush.msra.mxu0 0.0
    %2787 = vmatpush.msra.mxu0 0.0
    %2788 = vmatpush.msra.mxu0 0.0
    %2789 = vmatpush.msra.mxu0 %v2772
    %2790 = vmatmul.f32.gmra.mxu0 %v2770
    %v2791 = vpop.f32.mrf.mxu0
    %v2792 = vadd.f32 0.0, %v2791
    %2793 = vdwg.mxu0
    %2795 = vrot.lane.b32.xlu0 %v2632, 8
    %v2796 = vpop.permute.xlu0 %2795
    %2799 = vrot.lane.b32.xlu0 %v2712, 16
    %v2800 = vpop.permute.xlu0 %2799
    %2803 = vrot.lane.b32.xlu0 %v2792, 24
    %v2804 = vpop.permute.xlu0 %2803
    %v2806 = vsel %vm306, %v2552, %v2796
    %v2807 = vsel %vm635, %v2806, %v2800
    %v2808 = vsel %vm92, %v2807, %v2804
    %v2810 = vrot.slane %v2808, 1
    %v2812 = vsel %vm2193, %v2470, %v2810
    %v2814 = vsel %vm134, %v2812, 0
    %v2816 = vsel %vm134, %v2810, 0
    %2818 = vmatpush.msra.mxu0 0.0
    %2819 = vmatpush.msra.mxu0 0.0
    %2820 = vmatpush.msra.mxu0 0.0
    %2821 = vmatpush.msra.mxu0 0.0
    %2822 = vmatpush.msra.mxu0 0.0
    %2823 = vmatpush.msra.mxu0 0.0
    %2824 = vmatpush.msra.mxu0 0.0
    %2825 = vmatpush.msra.mxu0 0.0
    %2826 = vmatpush.msra.mxu0 0.0
    %2827 = vmatpush.msra.mxu0 0.0
    %2828 = vmatpush.msra.mxu0 0.0
    %2829 = vmatpush.msra.mxu0 0.0
    %2830 = vmatpush.msra.mxu0 %v2104
    %2831 = vmatpush.msra.mxu0 %v2103
    %2832 = vmatpush.msra.mxu0 %v2102
    %2833 = vmatpush.msra.mxu0 %v2101
    %2834 = vmatmul.f32.gmra.mxu0 %v2814
    %v2835 = vpop.f32.mrf.mxu0
    %v2836 = vadd.f32 %v245, %v2835
    %2837 = vmatmul.f32.gmra.mxu0 %v2816
    %v2838 = vpop.f32.mrf.mxu0
    %v2839 = vadd.f32 %v246, %v2838
    %2840 = vdwg.mxu0
    %v2841 = vsel %vm134, %v2836, 0.0
    %2842 = vadd.xlane.f32.xlu0 %v2841
    %v2843 = vpop.xlane.xlu0 %2842
    %v2844 = vsel %vm197, %v2839, 0.0
    %2845 = vadd.xlane.f32.xlu0 %v2844
    %v2846 = vpop.xlane.xlu0 %2845
    %v2847 = vmul.f32 %v2843, %v147
    %v2848 = vmul.f32 %v2846, %v147
    %v2849 = vsub.f32 %v2836, %v2847
    %v2850 = vsub.f32 %v2839, %v2848
    %v2851 = vmul.f32 %v2849, %v2849
    %v2852 = vmul.f32 %v2850, %v2850
    %v2853 = vsel %vm134, %v2851, 0.0
    %2854 = vadd.xlane.f32.xlu0 %v2853
    %v2855 = vpop.xlane.xlu0 %2854
    %v2856 = vsel %vm197, %v2852, 0.0
    %2857 = vadd.xlane.f32.xlu0 %v2856
    %v2858 = vpop.xlane.xlu0 %2857
    %v2859 = vmul.f32 %v2855, %v147
    %v2860 = vmul.f32 %v2858, %v147
    %v2861 = vadd.f32 %v2859, 1e-06
    %v2862 = vadd.f32 %v2860, 1e-06
    %v2863 = vrsqrt.pop %v2861
    %v2864 = vmul.f32 %v2863, %v2861
    %v2865 = vmul.f32 %v2864, %v2863
    %v2866 = vmul.f32 0.5, %v2865
    %v2867 = vsub.f32 1.5, %v2866
    %v2868 = vmul.f32 %v2863, %v2867
    %vm2869 = vweird.f32 %v2861
    %vm2870 = vweird.f32 %v2863
    %vm2871 = vmor %vm2869, %vm2870
    %v2872 = vsel %vm2871, %v2863, %v2868
    %v2873 = vrsqrt.pop %v2862
    %v2874 = vmul.f32 %v2873, %v2862
    %v2875 = vmul.f32 %v2874, %v2873
    %v2876 = vmul.f32 0.5, %v2875
    %v2877 = vsub.f32 1.5, %v2876
    %v2878 = vmul.f32 %v2873, %v2877
    %vm2879 = vweird.f32 %v2862
    %vm2880 = vweird.f32 %v2873
    %vm2881 = vmor %vm2879, %vm2880
    %v2882 = vsel %vm2881, %v2873, %v2878
    %v2883 = vmul.f32 %v2849, %v2872
    %v2884 = vmul.f32 %v2850, %v2882
    %v2885 = vld [vmem:[%s3 + $0xe] sm:$0x1]
    %v2886 = vperm.slane %v2885, 0
    %v2887 = vmul.f32 %v2883, %v2886
    %v2888 = vmul.f32 %v2884, %v2886
    %v2889 = vld [vmem:[%s3 + $0xf] sm:$0x1]
    %v2890 = vperm.slane %v2889, 0
    %v2891 = vadd.f32 %v2887, %v2890
    %v2892 = vadd.f32 %v2888, %v2890
    %s2893 = scalar_lea.vmem %s5, 128
    %v2894 = vld [vmem:[%s2893] sm:$0xff]
    %v2895 = vld [vmem:[%s2893 + $0x8] sm:$0xff]
    %v2896 = vld [vmem:[%s2893 + $0x10] sm:$0xff]
    %v2897 = vld [vmem:[%s2893 + $0x18] sm:$0xff]
    %s2898 = scalar_lea.vmem %s6, 128
    %v2899 = vld [vmem:[%s2898] sm:$0xff]
    %v2900 = vld [vmem:[%s2898 + $0x8] sm:$0xff]
    %v2901 = vld [vmem:[%s2898 + $0x10] sm:$0xff]
    %v2902 = vld [vmem:[%s2898 + $0x18] sm:$0xff]
    %v2904 = vsel %vm134, %v2891, 0
    %v2907 = vsel %vm134, %v2892, 0
    %2909 = vmatpush.msra.mxu0 0.0
    %2910 = vmatpush.msra.mxu0 0.0
    %2911 = vmatpush.msra.mxu0 0.0
    %2912 = vmatpush.msra.mxu0 0.0
    %2913 = vmatpush.msra.mxu0 0.0
    %2914 = vmatpush.msra.mxu0 0.0
    %2915 = vmatpush.msra.mxu0 0.0
    %2916 = vmatpush.msra.mxu0 0.0
    %2917 = vmatpush.msra.mxu0 0.0
    %2918 = vmatpush.msra.mxu0 0.0
    %2919 = vmatpush.msra.mxu0 0.0
    %2920 = vmatpush.msra.mxu0 0.0
    %2921 = vmatpush.msra.mxu0 %v2897
    %2922 = vmatpush.msra.mxu0 %v2896
    %2923 = vmatpush.msra.mxu0 %v2895
    %2924 = vmatpush.msra.mxu0 %v2894
    %2925 = vmatmul.f32.gmra.mxu0 %v2904
    %v2926 = vpop.f32.mrf.mxu0
    %v2927 = vadd.f32 0.0, %v2926
    %2928 = vmatmul.f32.gmra.mxu0 %v2907
    %v2929 = vpop.f32.mrf.mxu0
    %v2930 = vadd.f32 0.0, %v2929
    %2931 = vdwg.mxu0
    %2936 = vrot.lane.b32.xlu0 %v2894, 96
    %v2937 = vpop.permute.xlu0 %2936
    %2938 = vrot.lane.b32.xlu0 %v2895, 96
    %v2939 = vpop.permute.xlu0 %2938
    %2940 = vrot.lane.b32.xlu0 %v2896, 96
    %v2941 = vpop.permute.xlu0 %2940
    %2942 = vrot.lane.b32.xlu0 %v2897, 96
    %v2943 = vpop.permute.xlu0 %2942
    %v2949 = vsel %vm134, %v2093, 0
    %v2952 = vsel %vm134, %v2094, 0
    %2954 = vmatpush.msra.mxu0 0.0
    %2955 = vmatpush.msra.mxu0 0.0
    %2956 = vmatpush.msra.mxu0 0.0
    %2957 = vmatpush.msra.mxu0 0.0
    %2958 = vmatpush.msra.mxu0 0.0
    %2959 = vmatpush.msra.mxu0 0.0
    %2960 = vmatpush.msra.mxu0 0.0
    %2961 = vmatpush.msra.mxu0 0.0
    %2962 = vmatpush.msra.mxu0 0.0
    %2963 = vmatpush.msra.mxu0 0.0
    %2964 = vmatpush.msra.mxu0 0.0
    %2965 = vmatpush.msra.mxu0 0.0
    %2966 = vmatpush.msra.mxu0 %v2943
    %2967 = vmatpush.msra.mxu0 %v2941
    %2968 = vmatpush.msra.mxu0 %v2939
    %2969 = vmatpush.msra.mxu0 %v2937
    %2970 = vmatmul.f32.gmra.mxu0 %v2949
    %v2971 = vpop.f32.mrf.mxu0
    %v2972 = vadd.f32 0.0, %v2971
    %2973 = vmatmul.f32.gmra.mxu0 %v2952
    %v2974 = vpop.f32.mrf.mxu0
    %v2975 = vadd.f32 0.0, %v2974
    %2976 = vdwg.mxu0
    %v2978 = vsel %vm306, %v2927, 0
    %v2981 = vsel %vm306, %v2972, 0
    %2983 = vmatpush.xpose.msra.mxu0 0.0
    %2984 = vmatpush.xpose.msra.mxu0 0.0
    %2985 = vmatpush.xpose.msra.mxu0 0.0
    %2986 = vmatpush.xpose.msra.mxu0 0.0
    %2987 = vmatpush.xpose.msra.mxu0 0.0
    %2988 = vmatpush.xpose.msra.mxu0 0.0
    %2989 = vmatpush.xpose.msra.mxu0 0.0
    %2990 = vmatpush.xpose.msra.mxu0 0.0
    %2991 = vmatpush.xpose.msra.mxu0 0.0
    %2992 = vmatpush.xpose.msra.mxu0 0.0
    %2993 = vmatpush.xpose.msra.mxu0 0.0
    %2994 = vmatpush.xpose.msra.mxu0 0.0
    %2995 = vmatpush.xpose.msra.mxu0 0.0
    %2996 = vmatpush.xpose.msra.mxu0 0.0
    %2997 = vmatpush.xpose.msra.mxu0 0.0
    %2998 = vmatpush.xpose.msra.mxu0 %v2981
    %2999 = vmatmul.f32.gmra.mxu0 %v2978
    %v3000 = vpop.f32.mrf.mxu0
    %v3001 = vadd.f32 0.0, %v3000
    %3002 = vdwg.mxu0
    %v3003 = vsel %vm333, %v3001, -1e+09
    %vm3004 = vcmask 63488
    %v3005 = vsel %vm3004, %v3003, -inf
    %3006 = vmax.xlane.f32.xlu0 %v3005
    %v3007 = vpop.xlane.xlu0 %3006
    %v3008 = vsub.f32 %v3003, %v3007
    %v3009 = vmul.f32 %v3008, 1.442695
    %v3010 = vpow.pop %v3009
    %v3011 = vsel %vm3004, %v3010, 0.0
    %3012 = vadd.xlane.f32.xlu0 %v3011
    %v3013 = vpop.xlane.xlu0 %3012
    %v3014 = vrcp.pop %v3013
    %v3015 = vmul.f32 %v3013, %v3014
    %v3016 = vsub.f32 1.0, %v3015
    %v3017 = vmul.f32 %v3014, %v3016
    %v3018 = vadd.f32 %v3014, %v3017
    %vm3019 = vweird.f32 %v3013
    %vm3020 = vweird.f32 %v3014
    %vm3021 = vmor %vm3019, %vm3020
    %v3022 = vsel %vm3021, %v3014, %v3018
    %v3023 = vand.u32 2147483647, %v3013
    %vm3024 = vcmp.eq.f32.partialorder %v3023, 8.507059e+37
    %v3025 = vand.u32 %v3013, 2147483648
    %v3026 = vor.u32 1.1754944e-38, %v3025
    %v3027 = vsel %vm3024, %v3026, %v3022
    %v3028 = vmul.f32 %v3010, %v3027
    %3029 = vrot.lane.b32.xlu0 %v2972, 96
    %v3030 = vpop.permute.xlu0 %3029
    %v3033 = vsel %vm306, %v3028, 0
    %3035 = vmatpush.msra.mxu0 0.0
    %3036 = vmatpush.msra.mxu0 0.0
    %3037 = vmatpush.msra.mxu0 0.0
    %3038 = vmatpush.msra.mxu0 0.0
    %3039 = vmatpush.msra.mxu0 0.0
    %3040 = vmatpush.msra.mxu0 0.0
    %3041 = vmatpush.msra.mxu0 0.0
    %3042 = vmatpush.msra.mxu0 0.0
    %3043 = vmatpush.msra.mxu0 0.0
    %3044 = vmatpush.msra.mxu0 0.0
    %3045 = vmatpush.msra.mxu0 0.0
    %3046 = vmatpush.msra.mxu0 0.0
    %3047 = vmatpush.msra.mxu0 0.0
    %3048 = vmatpush.msra.mxu0 0.0
    %3049 = vmatpush.msra.mxu0 0.0
    %3050 = vmatpush.msra.mxu0 %v3030
    %3051 = vmatmul.f32.gmra.mxu0 %v3033
    %v3052 = vpop.f32.mrf.mxu0
    %v3053 = vadd.f32 0.0, %v3052
    %3054 = vdwg.mxu0
    %3055 = vrot.lane.b32.xlu0 %v2927, 120
    %v3056 = vpop.permute.xlu0 %3055
    %3057 = vrot.lane.b32.xlu0 %v2972, 120
    %v3058 = vpop.permute.xlu0 %3057
    %v3059 = vsel %vm306, %v3056, 0
    %v3061 = vsel %vm306, %v3058, 0
    %3063 = vmatpush.xpose.msra.mxu0 0.0
    %3064 = vmatpush.xpose.msra.mxu0 0.0
    %3065 = vmatpush.xpose.msra.mxu0 0.0
    %3066 = vmatpush.xpose.msra.mxu0 0.0
    %3067 = vmatpush.xpose.msra.mxu0 0.0
    %3068 = vmatpush.xpose.msra.mxu0 0.0
    %3069 = vmatpush.xpose.msra.mxu0 0.0
    %3070 = vmatpush.xpose.msra.mxu0 0.0
    %3071 = vmatpush.xpose.msra.mxu0 0.0
    %3072 = vmatpush.xpose.msra.mxu0 0.0
    %3073 = vmatpush.xpose.msra.mxu0 0.0
    %3074 = vmatpush.xpose.msra.mxu0 0.0
    %3075 = vmatpush.xpose.msra.mxu0 0.0
    %3076 = vmatpush.xpose.msra.mxu0 0.0
    %3077 = vmatpush.xpose.msra.mxu0 0.0
    %3078 = vmatpush.xpose.msra.mxu0 %v3061
    %3079 = vmatmul.f32.gmra.mxu0 %v3059
    %v3080 = vpop.f32.mrf.mxu0
    %v3081 = vadd.f32 0.0, %v3080
    %3082 = vdwg.mxu0
    %v3083 = vsel %vm333, %v3081, -1e+09
    %v3084 = vsel %vm3004, %v3083, -inf
    %3085 = vmax.xlane.f32.xlu0 %v3084
    %v3086 = vpop.xlane.xlu0 %3085
    %v3087 = vsub.f32 %v3083, %v3086
    %v3088 = vmul.f32 %v3087, 1.442695
    %v3089 = vpow.pop %v3088
    %v3090 = vsel %vm3004, %v3089, 0.0
    %3091 = vadd.xlane.f32.xlu0 %v3090
    %v3092 = vpop.xlane.xlu0 %3091
    %v3093 = vrcp.pop %v3092
    %v3094 = vmul.f32 %v3092, %v3093
    %v3095 = vsub.f32 1.0, %v3094
    %v3096 = vmul.f32 %v3093, %v3095
    %v3097 = vadd.f32 %v3093, %v3096
    %vm3098 = vweird.f32 %v3092
    %vm3099 = vweird.f32 %v3093
    %vm3100 = vmor %vm3098, %vm3099
    %v3101 = vsel %vm3100, %v3093, %v3097
    %v3102 = vand.u32 2147483647, %v3092
    %vm3103 = vcmp.eq.f32.partialorder %v3102, 8.507059e+37
    %v3104 = vand.u32 %v3092, 2147483648
    %v3105 = vor.u32 1.1754944e-38, %v3104
    %v3106 = vsel %vm3103, %v3105, %v3101
    %v3107 = vmul.f32 %v3089, %v3106
    %3108 = vrot.lane.b32.xlu0 %v2972, 88
    %v3109 = vpop.permute.xlu0 %3108
    %v3112 = vsel %vm306, %v3107, 0
    %3114 = vmatpush.msra.mxu0 0.0
    %3115 = vmatpush.msra.mxu0 0.0
    %3116 = vmatpush.msra.mxu0 0.0
    %3117 = vmatpush.msra.mxu0 0.0
    %3118 = vmatpush.msra.mxu0 0.0
    %3119 = vmatpush.msra.mxu0 0.0
    %3120 = vmatpush.msra.mxu0 0.0
    %3121 = vmatpush.msra.mxu0 0.0
    %3122 = vmatpush.msra.mxu0 0.0
    %3123 = vmatpush.msra.mxu0 0.0
    %3124 = vmatpush.msra.mxu0 0.0
    %3125 = vmatpush.msra.mxu0 0.0
    %3126 = vmatpush.msra.mxu0 0.0
    %3127 = vmatpush.msra.mxu0 0.0
    %3128 = vmatpush.msra.mxu0 0.0
    %3129 = vmatpush.msra.mxu0 %v3109
    %3130 = vmatmul.f32.gmra.mxu0 %v3112
    %v3131 = vpop.f32.mrf.mxu0
    %v3132 = vadd.f32 0.0, %v3131
    %3133 = vdwg.mxu0
    %3134 = vrot.lane.b32.xlu0 %v2927, 112
    %v3135 = vpop.permute.xlu0 %3134
    %3136 = vrot.lane.b32.xlu0 %v2972, 112
    %v3137 = vpop.permute.xlu0 %3136
    %v3138 = vsel %vm306, %v3135, 0
    %v3140 = vsel %vm306, %v3137, 0
    %3142 = vmatpush.xpose.msra.mxu0 0.0
    %3143 = vmatpush.xpose.msra.mxu0 0.0
    %3144 = vmatpush.xpose.msra.mxu0 0.0
    %3145 = vmatpush.xpose.msra.mxu0 0.0
    %3146 = vmatpush.xpose.msra.mxu0 0.0
    %3147 = vmatpush.xpose.msra.mxu0 0.0
    %3148 = vmatpush.xpose.msra.mxu0 0.0
    %3149 = vmatpush.xpose.msra.mxu0 0.0
    %3150 = vmatpush.xpose.msra.mxu0 0.0
    %3151 = vmatpush.xpose.msra.mxu0 0.0
    %3152 = vmatpush.xpose.msra.mxu0 0.0
    %3153 = vmatpush.xpose.msra.mxu0 0.0
    %3154 = vmatpush.xpose.msra.mxu0 0.0
    %3155 = vmatpush.xpose.msra.mxu0 0.0
    %3156 = vmatpush.xpose.msra.mxu0 0.0
    %3157 = vmatpush.xpose.msra.mxu0 %v3140
    %3158 = vmatmul.f32.gmra.mxu0 %v3138
    %v3159 = vpop.f32.mrf.mxu0
    %v3160 = vadd.f32 0.0, %v3159
    %3161 = vdwg.mxu0
    %v3162 = vsel %vm333, %v3160, -1e+09
    %v3163 = vsel %vm3004, %v3162, -inf
    %3164 = vmax.xlane.f32.xlu0 %v3163
    %v3165 = vpop.xlane.xlu0 %3164
    %v3166 = vsub.f32 %v3162, %v3165
    %v3167 = vmul.f32 %v3166, 1.442695
    %v3168 = vpow.pop %v3167
    %v3169 = vsel %vm3004, %v3168, 0.0
    %3170 = vadd.xlane.f32.xlu0 %v3169
    %v3171 = vpop.xlane.xlu0 %3170
    %v3172 = vrcp.pop %v3171
    %v3173 = vmul.f32 %v3171, %v3172
    %v3174 = vsub.f32 1.0, %v3173
    %v3175 = vmul.f32 %v3172, %v3174
    %v3176 = vadd.f32 %v3172, %v3175
    %vm3177 = vweird.f32 %v3171
    %vm3178 = vweird.f32 %v3172
    %vm3179 = vmor %vm3177, %vm3178
    %v3180 = vsel %vm3179, %v3172, %v3176
    %v3181 = vand.u32 2147483647, %v3171
    %vm3182 = vcmp.eq.f32.partialorder %v3181, 8.507059e+37
    %v3183 = vand.u32 %v3171, 2147483648
    %v3184 = vor.u32 1.1754944e-38, %v3183
    %v3185 = vsel %vm3182, %v3184, %v3180
    %v3186 = vmul.f32 %v3168, %v3185
    %3187 = vrot.lane.b32.xlu0 %v2972, 80
    %v3188 = vpop.permute.xlu0 %3187
    %v3191 = vsel %vm306, %v3186, 0
    %3193 = vmatpush.msra.mxu0 0.0
    %3194 = vmatpush.msra.mxu0 0.0
    %3195 = vmatpush.msra.mxu0 0.0
    %3196 = vmatpush.msra.mxu0 0.0
    %3197 = vmatpush.msra.mxu0 0.0
    %3198 = vmatpush.msra.mxu0 0.0
    %3199 = vmatpush.msra.mxu0 0.0
    %3200 = vmatpush.msra.mxu0 0.0
    %3201 = vmatpush.msra.mxu0 0.0
    %3202 = vmatpush.msra.mxu0 0.0
    %3203 = vmatpush.msra.mxu0 0.0
    %3204 = vmatpush.msra.mxu0 0.0
    %3205 = vmatpush.msra.mxu0 0.0
    %3206 = vmatpush.msra.mxu0 0.0
    %3207 = vmatpush.msra.mxu0 0.0
    %3208 = vmatpush.msra.mxu0 %v3188
    %3209 = vmatmul.f32.gmra.mxu0 %v3191
    %v3210 = vpop.f32.mrf.mxu0
    %v3211 = vadd.f32 0.0, %v3210
    %3212 = vdwg.mxu0
    %3213 = vrot.lane.b32.xlu0 %v2927, 104
    %v3214 = vpop.permute.xlu0 %3213
    %3215 = vrot.lane.b32.xlu0 %v2972, 104
    %v3216 = vpop.permute.xlu0 %3215
    %v3217 = vsel %vm306, %v3214, 0
    %v3219 = vsel %vm306, %v3216, 0
    %3221 = vmatpush.xpose.msra.mxu0 0.0
    %3222 = vmatpush.xpose.msra.mxu0 0.0
    %3223 = vmatpush.xpose.msra.mxu0 0.0
    %3224 = vmatpush.xpose.msra.mxu0 0.0
    %3225 = vmatpush.xpose.msra.mxu0 0.0
    %3226 = vmatpush.xpose.msra.mxu0 0.0
    %3227 = vmatpush.xpose.msra.mxu0 0.0
    %3228 = vmatpush.xpose.msra.mxu0 0.0
    %3229 = vmatpush.xpose.msra.mxu0 0.0
    %3230 = vmatpush.xpose.msra.mxu0 0.0
    %3231 = vmatpush.xpose.msra.mxu0 0.0
    %3232 = vmatpush.xpose.msra.mxu0 0.0
    %3233 = vmatpush.xpose.msra.mxu0 0.0
    %3234 = vmatpush.xpose.msra.mxu0 0.0
    %3235 = vmatpush.xpose.msra.mxu0 0.0
    %3236 = vmatpush.xpose.msra.mxu0 %v3219
    %3237 = vmatmul.f32.gmra.mxu0 %v3217
    %v3238 = vpop.f32.mrf.mxu0
    %v3239 = vadd.f32 0.0, %v3238
    %3240 = vdwg.mxu0
    %v3241 = vsel %vm333, %v3239, -1e+09
    %v3242 = vsel %vm3004, %v3241, -inf
    %3243 = vmax.xlane.f32.xlu0 %v3242
    %v3244 = vpop.xlane.xlu0 %3243
    %v3245 = vsub.f32 %v3241, %v3244
    %v3246 = vmul.f32 %v3245, 1.442695
    %v3247 = vpow.pop %v3246
    %v3248 = vsel %vm3004, %v3247, 0.0
    %3249 = vadd.xlane.f32.xlu0 %v3248
    %v3250 = vpop.xlane.xlu0 %3249
    %v3251 = vrcp.pop %v3250
    %v3252 = vmul.f32 %v3250, %v3251
    %v3253 = vsub.f32 1.0, %v3252
    %v3254 = vmul.f32 %v3251, %v3253
    %v3255 = vadd.f32 %v3251, %v3254
    %vm3256 = vweird.f32 %v3250
    %vm3257 = vweird.f32 %v3251
    %vm3258 = vmor %vm3256, %vm3257
    %v3259 = vsel %vm3258, %v3251, %v3255
    %v3260 = vand.u32 2147483647, %v3250
    %vm3261 = vcmp.eq.f32.partialorder %v3260, 8.507059e+37
    %v3262 = vand.u32 %v3250, 2147483648
    %v3263 = vor.u32 1.1754944e-38, %v3262
    %v3264 = vsel %vm3261, %v3263, %v3259
    %v3265 = vmul.f32 %v3247, %v3264
    %3266 = vrot.lane.b32.xlu0 %v2972, 72
    %v3267 = vpop.permute.xlu0 %3266
    %v3270 = vsel %vm306, %v3265, 0
    %3272 = vmatpush.msra.mxu0 0.0
    %3273 = vmatpush.msra.mxu0 0.0
    %3274 = vmatpush.msra.mxu0 0.0
    %3275 = vmatpush.msra.mxu0 0.0
    %3276 = vmatpush.msra.mxu0 0.0
    %3277 = vmatpush.msra.mxu0 0.0
    %3278 = vmatpush.msra.mxu0 0.0
    %3279 = vmatpush.msra.mxu0 0.0
    %3280 = vmatpush.msra.mxu0 0.0
    %3281 = vmatpush.msra.mxu0 0.0
    %3282 = vmatpush.msra.mxu0 0.0
    %3283 = vmatpush.msra.mxu0 0.0
    %3284 = vmatpush.msra.mxu0 0.0
    %3285 = vmatpush.msra.mxu0 0.0
    %3286 = vmatpush.msra.mxu0 0.0
    %3287 = vmatpush.msra.mxu0 %v3267
    %3288 = vmatmul.f32.gmra.mxu0 %v3270
    %v3289 = vpop.f32.mrf.mxu0
    %v3290 = vadd.f32 0.0, %v3289
    %3291 = vdwg.mxu0
    %3293 = vrot.lane.b32.xlu0 %v3132, 8
    %v3294 = vpop.permute.xlu0 %3293
    %3297 = vrot.lane.b32.xlu0 %v3211, 16
    %v3298 = vpop.permute.xlu0 %3297
    %3301 = vrot.lane.b32.xlu0 %v3290, 24
    %v3302 = vpop.permute.xlu0 %3301
    %v3304 = vsel %vm306, %v3053, %v3294
    %v3305 = vsel %vm635, %v3304, %v3298
    %v3306 = vsel %vm92, %v3305, %v3302
    %v3308 = vrot.slane %v2927, 7
    %v3309 = vrot.slane %v2930, 7
    %v3310 = vsel %vm2472, %v3308, %v3309
    %v3311 = vsel %vm306, %v3310, 0
    %v3314 = vsel %vm306, %v2975, 0
    %3316 = vmatpush.xpose.msra.mxu0 0.0
    %3317 = vmatpush.xpose.msra.mxu0 0.0
    %3318 = vmatpush.xpose.msra.mxu0 0.0
    %3319 = vmatpush.xpose.msra.mxu0 0.0
    %3320 = vmatpush.xpose.msra.mxu0 0.0
    %3321 = vmatpush.xpose.msra.mxu0 0.0
    %3322 = vmatpush.xpose.msra.mxu0 0.0
    %3323 = vmatpush.xpose.msra.mxu0 0.0
    %3324 = vmatpush.xpose.msra.mxu0 0.0
    %3325 = vmatpush.xpose.msra.mxu0 0.0
    %3326 = vmatpush.xpose.msra.mxu0 0.0
    %3327 = vmatpush.xpose.msra.mxu0 0.0
    %3328 = vmatpush.xpose.msra.mxu0 0.0
    %3329 = vmatpush.xpose.msra.mxu0 0.0
    %3330 = vmatpush.xpose.msra.mxu0 0.0
    %3331 = vmatpush.xpose.msra.mxu0 %v3314
    %3332 = vmatmul.f32.gmra.mxu0 %v3311
    %v3333 = vpop.f32.mrf.mxu0
    %v3334 = vadd.f32 0.0, %v3333
    %3335 = vdwg.mxu0
    %v3336 = vsel %vm667, %v3334, -1e+09
    %v3337 = vsel %vm3004, %v3336, -inf
    %3338 = vmax.xlane.f32.xlu0 %v3337
    %v3339 = vpop.xlane.xlu0 %3338
    %v3340 = vsub.f32 %v3336, %v3339
    %v3341 = vmul.f32 %v3340, 1.442695
    %v3342 = vpow.pop %v3341
    %v3343 = vsel %vm3004, %v3342, 0.0
    %3344 = vadd.xlane.f32.xlu0 %v3343
    %v3345 = vpop.xlane.xlu0 %3344
    %v3346 = vrcp.pop %v3345
    %v3347 = vmul.f32 %v3345, %v3346
    %v3348 = vsub.f32 1.0, %v3347
    %v3349 = vmul.f32 %v3346, %v3348
    %v3350 = vadd.f32 %v3346, %v3349
    %vm3351 = vweird.f32 %v3345
    %vm3352 = vweird.f32 %v3346
    %vm3353 = vmor %vm3351, %vm3352
    %v3354 = vsel %vm3353, %v3346, %v3350
    %v3355 = vand.u32 2147483647, %v3345
    %vm3356 = vcmp.eq.f32.partialorder %v3355, 8.507059e+37
    %v3357 = vand.u32 %v3345, 2147483648
    %v3358 = vor.u32 1.1754944e-38, %v3357
    %v3359 = vsel %vm3356, %v3358, %v3354
    %v3360 = vmul.f32 %v3342, %v3359
    %3361 = vrot.lane.b32.xlu0 %v2975, 96
    %v3362 = vpop.permute.xlu0 %3361
    %v3365 = vsel %vm306, %v3360, 0
    %3367 = vmatpush.msra.mxu0 0.0
    %3368 = vmatpush.msra.mxu0 0.0
    %3369 = vmatpush.msra.mxu0 0.0
    %3370 = vmatpush.msra.mxu0 0.0
    %3371 = vmatpush.msra.mxu0 0.0
    %3372 = vmatpush.msra.mxu0 0.0
    %3373 = vmatpush.msra.mxu0 0.0
    %3374 = vmatpush.msra.mxu0 0.0
    %3375 = vmatpush.msra.mxu0 0.0
    %3376 = vmatpush.msra.mxu0 0.0
    %3377 = vmatpush.msra.mxu0 0.0
    %3378 = vmatpush.msra.mxu0 0.0
    %3379 = vmatpush.msra.mxu0 0.0
    %3380 = vmatpush.msra.mxu0 0.0
    %3381 = vmatpush.msra.mxu0 0.0
    %3382 = vmatpush.msra.mxu0 %v3362
    %3383 = vmatmul.f32.gmra.mxu0 %v3365
    %v3384 = vpop.f32.mrf.mxu0
    %v3385 = vadd.f32 0.0, %v3384
    %3386 = vdwg.mxu0
    %3387 = vrot.lane.b32.xlu0 %v3310, 120
    %v3388 = vpop.permute.xlu0 %3387
    %3389 = vrot.lane.b32.xlu0 %v2975, 120
    %v3390 = vpop.permute.xlu0 %3389
    %v3391 = vsel %vm306, %v3388, 0
    %v3393 = vsel %vm306, %v3390, 0
    %3395 = vmatpush.xpose.msra.mxu0 0.0
    %3396 = vmatpush.xpose.msra.mxu0 0.0
    %3397 = vmatpush.xpose.msra.mxu0 0.0
    %3398 = vmatpush.xpose.msra.mxu0 0.0
    %3399 = vmatpush.xpose.msra.mxu0 0.0
    %3400 = vmatpush.xpose.msra.mxu0 0.0
    %3401 = vmatpush.xpose.msra.mxu0 0.0
    %3402 = vmatpush.xpose.msra.mxu0 0.0
    %3403 = vmatpush.xpose.msra.mxu0 0.0
    %3404 = vmatpush.xpose.msra.mxu0 0.0
    %3405 = vmatpush.xpose.msra.mxu0 0.0
    %3406 = vmatpush.xpose.msra.mxu0 0.0
    %3407 = vmatpush.xpose.msra.mxu0 0.0
    %3408 = vmatpush.xpose.msra.mxu0 0.0
    %3409 = vmatpush.xpose.msra.mxu0 0.0
    %3410 = vmatpush.xpose.msra.mxu0 %v3393
    %3411 = vmatmul.f32.gmra.mxu0 %v3391
    %v3412 = vpop.f32.mrf.mxu0
    %v3413 = vadd.f32 0.0, %v3412
    %3414 = vdwg.mxu0
    %v3415 = vsel %vm667, %v3413, -1e+09
    %v3416 = vsel %vm3004, %v3415, -inf
    %3417 = vmax.xlane.f32.xlu0 %v3416
    %v3418 = vpop.xlane.xlu0 %3417
    %v3419 = vsub.f32 %v3415, %v3418
    %v3420 = vmul.f32 %v3419, 1.442695
    %v3421 = vpow.pop %v3420
    %v3422 = vsel %vm3004, %v3421, 0.0
    %3423 = vadd.xlane.f32.xlu0 %v3422
    %v3424 = vpop.xlane.xlu0 %3423
    %v3425 = vrcp.pop %v3424
    %v3426 = vmul.f32 %v3424, %v3425
    %v3427 = vsub.f32 1.0, %v3426
    %v3428 = vmul.f32 %v3425, %v3427
    %v3429 = vadd.f32 %v3425, %v3428
    %vm3430 = vweird.f32 %v3424
    %vm3431 = vweird.f32 %v3425
    %vm3432 = vmor %vm3430, %vm3431
    %v3433 = vsel %vm3432, %v3425, %v3429
    %v3434 = vand.u32 2147483647, %v3424
    %vm3435 = vcmp.eq.f32.partialorder %v3434, 8.507059e+37
    %v3436 = vand.u32 %v3424, 2147483648
    %v3437 = vor.u32 1.1754944e-38, %v3436
    %v3438 = vsel %vm3435, %v3437, %v3433
    %v3439 = vmul.f32 %v3421, %v3438
    %3440 = vrot.lane.b32.xlu0 %v2975, 88
    %v3441 = vpop.permute.xlu0 %3440
    %v3444 = vsel %vm306, %v3439, 0
    %3446 = vmatpush.msra.mxu0 0.0
    %3447 = vmatpush.msra.mxu0 0.0
    %3448 = vmatpush.msra.mxu0 0.0
    %3449 = vmatpush.msra.mxu0 0.0
    %3450 = vmatpush.msra.mxu0 0.0
    %3451 = vmatpush.msra.mxu0 0.0
    %3452 = vmatpush.msra.mxu0 0.0
    %3453 = vmatpush.msra.mxu0 0.0
    %3454 = vmatpush.msra.mxu0 0.0
    %3455 = vmatpush.msra.mxu0 0.0
    %3456 = vmatpush.msra.mxu0 0.0
    %3457 = vmatpush.msra.mxu0 0.0
    %3458 = vmatpush.msra.mxu0 0.0
    %3459 = vmatpush.msra.mxu0 0.0
    %3460 = vmatpush.msra.mxu0 0.0
    %3461 = vmatpush.msra.mxu0 %v3441
    %3462 = vmatmul.f32.gmra.mxu0 %v3444
    %v3463 = vpop.f32.mrf.mxu0
    %v3464 = vadd.f32 0.0, %v3463
    %3465 = vdwg.mxu0
    %3466 = vrot.lane.b32.xlu0 %v3310, 112
    %v3467 = vpop.permute.xlu0 %3466
    %3468 = vrot.lane.b32.xlu0 %v2975, 112
    %v3469 = vpop.permute.xlu0 %3468
    %v3470 = vsel %vm306, %v3467, 0
    %v3472 = vsel %vm306, %v3469, 0
    %3474 = vmatpush.xpose.msra.mxu0 0.0
    %3475 = vmatpush.xpose.msra.mxu0 0.0
    %3476 = vmatpush.xpose.msra.mxu0 0.0
    %3477 = vmatpush.xpose.msra.mxu0 0.0
    %3478 = vmatpush.xpose.msra.mxu0 0.0
    %3479 = vmatpush.xpose.msra.mxu0 0.0
    %3480 = vmatpush.xpose.msra.mxu0 0.0
    %3481 = vmatpush.xpose.msra.mxu0 0.0
    %3482 = vmatpush.xpose.msra.mxu0 0.0
    %3483 = vmatpush.xpose.msra.mxu0 0.0
    %3484 = vmatpush.xpose.msra.mxu0 0.0
    %3485 = vmatpush.xpose.msra.mxu0 0.0
    %3486 = vmatpush.xpose.msra.mxu0 0.0
    %3487 = vmatpush.xpose.msra.mxu0 0.0
    %3488 = vmatpush.xpose.msra.mxu0 0.0
    %3489 = vmatpush.xpose.msra.mxu0 %v3472
    %3490 = vmatmul.f32.gmra.mxu0 %v3470
    %v3491 = vpop.f32.mrf.mxu0
    %v3492 = vadd.f32 0.0, %v3491
    %3493 = vdwg.mxu0
    %v3494 = vsel %vm667, %v3492, -1e+09
    %v3495 = vsel %vm3004, %v3494, -inf
    %3496 = vmax.xlane.f32.xlu0 %v3495
    %v3497 = vpop.xlane.xlu0 %3496
    %v3498 = vsub.f32 %v3494, %v3497
    %v3499 = vmul.f32 %v3498, 1.442695
    %v3500 = vpow.pop %v3499
    %v3501 = vsel %vm3004, %v3500, 0.0
    %3502 = vadd.xlane.f32.xlu0 %v3501
    %v3503 = vpop.xlane.xlu0 %3502
    %v3504 = vrcp.pop %v3503
    %v3505 = vmul.f32 %v3503, %v3504
    %v3506 = vsub.f32 1.0, %v3505
    %v3507 = vmul.f32 %v3504, %v3506
    %v3508 = vadd.f32 %v3504, %v3507
    %vm3509 = vweird.f32 %v3503
    %vm3510 = vweird.f32 %v3504
    %vm3511 = vmor %vm3509, %vm3510
    %v3512 = vsel %vm3511, %v3504, %v3508
    %v3513 = vand.u32 2147483647, %v3503
    %vm3514 = vcmp.eq.f32.partialorder %v3513, 8.507059e+37
    %v3515 = vand.u32 %v3503, 2147483648
    %v3516 = vor.u32 1.1754944e-38, %v3515
    %v3517 = vsel %vm3514, %v3516, %v3512
    %v3518 = vmul.f32 %v3500, %v3517
    %3519 = vrot.lane.b32.xlu0 %v2975, 80
    %v3520 = vpop.permute.xlu0 %3519
    %v3523 = vsel %vm306, %v3518, 0
    %3525 = vmatpush.msra.mxu0 0.0
    %3526 = vmatpush.msra.mxu0 0.0
    %3527 = vmatpush.msra.mxu0 0.0
    %3528 = vmatpush.msra.mxu0 0.0
    %3529 = vmatpush.msra.mxu0 0.0
    %3530 = vmatpush.msra.mxu0 0.0
    %3531 = vmatpush.msra.mxu0 0.0
    %3532 = vmatpush.msra.mxu0 0.0
    %3533 = vmatpush.msra.mxu0 0.0
    %3534 = vmatpush.msra.mxu0 0.0
    %3535 = vmatpush.msra.mxu0 0.0
    %3536 = vmatpush.msra.mxu0 0.0
    %3537 = vmatpush.msra.mxu0 0.0
    %3538 = vmatpush.msra.mxu0 0.0
    %3539 = vmatpush.msra.mxu0 0.0
    %3540 = vmatpush.msra.mxu0 %v3520
    %3541 = vmatmul.f32.gmra.mxu0 %v3523
    %v3542 = vpop.f32.mrf.mxu0
    %v3543 = vadd.f32 0.0, %v3542
    %3544 = vdwg.mxu0
    %3545 = vrot.lane.b32.xlu0 %v3310, 104
    %v3546 = vpop.permute.xlu0 %3545
    %3547 = vrot.lane.b32.xlu0 %v2975, 104
    %v3548 = vpop.permute.xlu0 %3547
    %v3549 = vsel %vm306, %v3546, 0
    %v3551 = vsel %vm306, %v3548, 0
    %3553 = vmatpush.xpose.msra.mxu0 0.0
    %3554 = vmatpush.xpose.msra.mxu0 0.0
    %3555 = vmatpush.xpose.msra.mxu0 0.0
    %3556 = vmatpush.xpose.msra.mxu0 0.0
    %3557 = vmatpush.xpose.msra.mxu0 0.0
    %3558 = vmatpush.xpose.msra.mxu0 0.0
    %3559 = vmatpush.xpose.msra.mxu0 0.0
    %3560 = vmatpush.xpose.msra.mxu0 0.0
    %3561 = vmatpush.xpose.msra.mxu0 0.0
    %3562 = vmatpush.xpose.msra.mxu0 0.0
    %3563 = vmatpush.xpose.msra.mxu0 0.0
    %3564 = vmatpush.xpose.msra.mxu0 0.0
    %3565 = vmatpush.xpose.msra.mxu0 0.0
    %3566 = vmatpush.xpose.msra.mxu0 0.0
    %3567 = vmatpush.xpose.msra.mxu0 0.0
    %3568 = vmatpush.xpose.msra.mxu0 %v3551
    %3569 = vmatmul.f32.gmra.mxu0 %v3549
    %v3570 = vpop.f32.mrf.mxu0
    %v3571 = vadd.f32 0.0, %v3570
    %3572 = vdwg.mxu0
    %v3573 = vsel %vm667, %v3571, -1e+09
    %v3574 = vsel %vm3004, %v3573, -inf
    %3575 = vmax.xlane.f32.xlu0 %v3574
    %v3576 = vpop.xlane.xlu0 %3575
    %v3577 = vsub.f32 %v3573, %v3576
    %v3578 = vmul.f32 %v3577, 1.442695
    %v3579 = vpow.pop %v3578
    %v3580 = vsel %vm3004, %v3579, 0.0
    %3581 = vadd.xlane.f32.xlu0 %v3580
    %v3582 = vpop.xlane.xlu0 %3581
    %v3583 = vrcp.pop %v3582
    %v3584 = vmul.f32 %v3582, %v3583
    %v3585 = vsub.f32 1.0, %v3584
    %v3586 = vmul.f32 %v3583, %v3585
    %v3587 = vadd.f32 %v3583, %v3586
    %vm3588 = vweird.f32 %v3582
    %vm3589 = vweird.f32 %v3583
    %vm3590 = vmor %vm3588, %vm3589
    %v3591 = vsel %vm3590, %v3583, %v3587
    %v3592 = vand.u32 2147483647, %v3582
    %vm3593 = vcmp.eq.f32.partialorder %v3592, 8.507059e+37
    %v3594 = vand.u32 %v3582, 2147483648
    %v3595 = vor.u32 1.1754944e-38, %v3594
    %v3596 = vsel %vm3593, %v3595, %v3591
    %v3597 = vmul.f32 %v3579, %v3596
    %3598 = vrot.lane.b32.xlu0 %v2975, 72
    %v3599 = vpop.permute.xlu0 %3598
    %v3602 = vsel %vm306, %v3597, 0
    %3604 = vmatpush.msra.mxu0 0.0
    %3605 = vmatpush.msra.mxu0 0.0
    %3606 = vmatpush.msra.mxu0 0.0
    %3607 = vmatpush.msra.mxu0 0.0
    %3608 = vmatpush.msra.mxu0 0.0
    %3609 = vmatpush.msra.mxu0 0.0
    %3610 = vmatpush.msra.mxu0 0.0
    %3611 = vmatpush.msra.mxu0 0.0
    %3612 = vmatpush.msra.mxu0 0.0
    %3613 = vmatpush.msra.mxu0 0.0
    %3614 = vmatpush.msra.mxu0 0.0
    %3615 = vmatpush.msra.mxu0 0.0
    %3616 = vmatpush.msra.mxu0 0.0
    %3617 = vmatpush.msra.mxu0 0.0
    %3618 = vmatpush.msra.mxu0 0.0
    %3619 = vmatpush.msra.mxu0 %v3599
    %3620 = vmatmul.f32.gmra.mxu0 %v3602
    %v3621 = vpop.f32.mrf.mxu0
    %v3622 = vadd.f32 0.0, %v3621
    %3623 = vdwg.mxu0
    %3625 = vrot.lane.b32.xlu0 %v3464, 8
    %v3626 = vpop.permute.xlu0 %3625
    %3629 = vrot.lane.b32.xlu0 %v3543, 16
    %v3630 = vpop.permute.xlu0 %3629
    %3633 = vrot.lane.b32.xlu0 %v3622, 24
    %v3634 = vpop.permute.xlu0 %3633
    %v3636 = vsel %vm306, %v3385, %v3626
    %v3637 = vsel %vm635, %v3636, %v3630
    %v3638 = vsel %vm92, %v3637, %v3634
    %v3640 = vrot.slane %v3638, 1
    %v3642 = vsel %vm2193, %v3306, %v3640
    %v3644 = vsel %vm134, %v3642, 0
    %v3646 = vsel %vm134, %v3640, 0
    %3648 = vmatpush.msra.mxu0 0.0
    %3649 = vmatpush.msra.mxu0 0.0
    %3650 = vmatpush.msra.mxu0 0.0
    %3651 = vmatpush.msra.mxu0 0.0
    %3652 = vmatpush.msra.mxu0 0.0
    %3653 = vmatpush.msra.mxu0 0.0
    %3654 = vmatpush.msra.mxu0 0.0
    %3655 = vmatpush.msra.mxu0 0.0
    %3656 = vmatpush.msra.mxu0 0.0
    %3657 = vmatpush.msra.mxu0 0.0
    %3658 = vmatpush.msra.mxu0 0.0
    %3659 = vmatpush.msra.mxu0 0.0
    %3660 = vmatpush.msra.mxu0 %v2902
    %3661 = vmatpush.msra.mxu0 %v2901
    %3662 = vmatpush.msra.mxu0 %v2900
    %3663 = vmatpush.msra.mxu0 %v2899
    %3664 = vmatmul.f32.gmra.mxu0 %v3644
    %v3665 = vpop.f32.mrf.mxu0
    %v3666 = vadd.f32 %v2891, %v3665
    %3667 = vmatmul.f32.gmra.mxu0 %v3646
    %v3668 = vpop.f32.mrf.mxu0
    %v3669 = vadd.f32 %v2892, %v3668
    %3670 = vdwg.mxu0
    %v3671 = vsel %vm134, %v3666, 0.0
    %3672 = vadd.xlane.f32.xlu0 %v3671
    %v3673 = vpop.xlane.xlu0 %3672
    %v3674 = vsel %vm197, %v3669, 0.0
    %3675 = vadd.xlane.f32.xlu0 %v3674
    %v3676 = vpop.xlane.xlu0 %3675
    %v3677 = vmul.f32 %v3673, %v147
    %v3678 = vmul.f32 %v3676, %v147
    %v3679 = vsub.f32 %v3666, %v3677
    %v3680 = vsub.f32 %v3669, %v3678
    %v3681 = vmul.f32 %v3679, %v3679
    %v3682 = vmul.f32 %v3680, %v3680
    %v3683 = vsel %vm134, %v3681, 0.0
    %3684 = vadd.xlane.f32.xlu0 %v3683
    %v3685 = vpop.xlane.xlu0 %3684
    %v3686 = vsel %vm197, %v3682, 0.0
    %3687 = vadd.xlane.f32.xlu0 %v3686
    %v3688 = vpop.xlane.xlu0 %3687
    %v3689 = vmul.f32 %v3685, %v147
    %v3690 = vmul.f32 %v3688, %v147
    %v3691 = vadd.f32 %v3689, 1e-06
    %v3692 = vadd.f32 %v3690, 1e-06
    %v3693 = vrsqrt.pop %v3691
    %v3694 = vmul.f32 %v3693, %v3691
    %v3695 = vmul.f32 %v3694, %v3693
    %v3696 = vmul.f32 0.5, %v3695
    %v3697 = vsub.f32 1.5, %v3696
    %v3698 = vmul.f32 %v3693, %v3697
    %vm3699 = vweird.f32 %v3691
    %vm3700 = vweird.f32 %v3693
    %vm3701 = vmor %vm3699, %vm3700
    %v3702 = vsel %vm3701, %v3693, %v3698
    %v3703 = vrsqrt.pop %v3692
    %v3704 = vmul.f32 %v3703, %v3692
    %v3705 = vmul.f32 %v3704, %v3703
    %v3706 = vmul.f32 0.5, %v3705
    %v3707 = vsub.f32 1.5, %v3706
    %v3708 = vmul.f32 %v3703, %v3707
    %vm3709 = vweird.f32 %v3692
    %vm3710 = vweird.f32 %v3703
    %vm3711 = vmor %vm3709, %vm3710
    %v3712 = vsel %vm3711, %v3703, %v3708
    %v3713 = vmul.f32 %v3679, %v3702
    %v3714 = vmul.f32 %v3680, %v3712
    %v3715 = vld [vmem:[%s3 + $0x10] sm:$0x1]
    %v3716 = vperm.slane %v3715, 0
    %v3717 = vmul.f32 %v3713, %v3716
    %v3718 = vmul.f32 %v3714, %v3716
    %v3719 = vld [vmem:[%s3 + $0x11] sm:$0x1]
    %v3720 = vperm.slane %v3719, 0
    %v3721 = vadd.f32 %v3717, %v3720
    %v3722 = vadd.f32 %v3718, %v3720
    %s3723 = scalar_lea.vmem %s7, 64
    %v3724 = vld [vmem:[%s3723] sm:$0xff]
    %v3725 = vld [vmem:[%s3723 + $0x8] sm:$0xff]
    %v3726 = vld [vmem:[%s3723 + $0x10] sm:$0xff]
    %v3727 = vld [vmem:[%s3723 + $0x18] sm:$0xff]
    %s3728 = scalar_lea.vmem %s8, 128
    %v3729 = vld [vmem:[%s3728] sm:$0xff]
    %v3730 = vld [vmem:[%s3728 + $0x8] sm:$0xff]
    %v3731 = vld [vmem:[%s3728 + $0x10] sm:$0xff]
    %v3732 = vld [vmem:[%s3728 + $0x18] sm:$0xff]
    %v3733 = vld [vmem:[%s3728 + $0x20] sm:$0xff]
    %v3734 = vld [vmem:[%s3728 + $0x28] sm:$0xff]
    %v3735 = vld [vmem:[%s3728 + $0x30] sm:$0xff]
    %v3736 = vld [vmem:[%s3728 + $0x38] sm:$0xff]
    %v3737 = vld [vmem:[%s4 + $0x2] sm:$0x1]
    %v3738 = vperm.slane %v3737, 0
    %v3740 = vsel %vm134, %v3721, 0
    %v3743 = vsel %vm134, %v3722, 0
    %3745 = vmatpush.msra.mxu0 0.0
    %3746 = vmatpush.msra.mxu0 0.0
    %3747 = vmatpush.msra.mxu0 0.0
    %3748 = vmatpush.msra.mxu0 0.0
    %3749 = vmatpush.msra.mxu0 0.0
    %3750 = vmatpush.msra.mxu0 0.0
    %3751 = vmatpush.msra.mxu0 0.0
    %3752 = vmatpush.msra.mxu0 0.0
    %3753 = vmatpush.msra.mxu0 0.0
    %3754 = vmatpush.msra.mxu0 0.0
    %3755 = vmatpush.msra.mxu0 0.0
    %3756 = vmatpush.msra.mxu0 0.0
    %3757 = vmatpush.msra.mxu0 %v3727
    %3758 = vmatpush.msra.mxu0 %v3726
    %3759 = vmatpush.msra.mxu0 %v3725
    %3760 = vmatpush.msra.mxu0 %v3724
    %3761 = vmatmul.f32.gmra.mxu0 %v3740
    %v3762 = vpop.f32.mrf.mxu0
    %v3763 = vadd.f32 %v3738, %v3762
    %3764 = vmatmul.f32.gmra.mxu0 %v3743
    %v3765 = vpop.f32.mrf.mxu0
    %v3766 = vadd.f32 %v3738, %v3765
    %3767 = vdwg.mxu0
    %v3768 = vmax.f32 %v3763, 0.0
    %v3769 = vmax.f32 %v3766, 0.0
    %v3770 = vld [vmem:[%s3 + $0x12] sm:$0x1]
    %v3771 = vperm.slane %v3770, 0
    %v3773 = vsel %vm1099, %v3768, 0
    %v3776 = vsel %vm1099, %v3769, 0
    %3778 = vmatpush.msra.mxu0 0.0
    %3779 = vmatpush.msra.mxu0 0.0
    %3780 = vmatpush.msra.mxu0 0.0
    %3781 = vmatpush.msra.mxu0 0.0
    %3782 = vmatpush.msra.mxu0 0.0
    %3783 = vmatpush.msra.mxu0 0.0
    %3784 = vmatpush.msra.mxu0 0.0
    %3785 = vmatpush.msra.mxu0 0.0
    %3786 = vmatpush.msra.mxu0 %v3736
    %3787 = vmatpush.msra.mxu0 %v3735
    %3788 = vmatpush.msra.mxu0 %v3734
    %3789 = vmatpush.msra.mxu0 %v3733
    %3790 = vmatpush.msra.mxu0 %v3732
    %3791 = vmatpush.msra.mxu0 %v3731
    %3792 = vmatpush.msra.mxu0 %v3730
    %3793 = vmatpush.msra.mxu0 %v3729
    %3794 = vmatmul.f32.gmra.mxu0 %v3773
    %v3795 = vpop.f32.mrf.mxu0
    %v3796 = vadd.f32 %v3771, %v3795
    %3797 = vmatmul.f32.gmra.mxu0 %v3776
    %v3798 = vpop.f32.mrf.mxu0
    %v3799 = vadd.f32 %v3771, %v3798
    %3800 = vdwg.mxu0
    %v3801 = vadd.f32 %v3796, %v3721
    %v3802 = vadd.f32 %v3799, %v3722
    %v3803 = vsel %vm134, %v3801, 0.0
    %3804 = vadd.xlane.f32.xlu0 %v3803
    %v3805 = vpop.xlane.xlu0 %3804
    %v3806 = vsel %vm197, %v3802, 0.0
    %3807 = vadd.xlane.f32.xlu0 %v3806
    %v3808 = vpop.xlane.xlu0 %3807
    %v3809 = vmul.f32 %v3805, %v147
    %v3810 = vmul.f32 %v3808, %v147
    %v3811 = vsub.f32 %v3801, %v3809
    %v3812 = vsub.f32 %v3802, %v3810
    %v3813 = vmul.f32 %v3811, %v3811
    %v3814 = vmul.f32 %v3812, %v3812
    %v3815 = vsel %vm134, %v3813, 0.0
    %3816 = vadd.xlane.f32.xlu0 %v3815
    %v3817 = vpop.xlane.xlu0 %3816
    %v3818 = vsel %vm197, %v3814, 0.0
    %3819 = vadd.xlane.f32.xlu0 %v3818
    %v3820 = vpop.xlane.xlu0 %3819
    %v3821 = vmul.f32 %v3817, %v147
    %v3822 = vmul.f32 %v3820, %v147
    %v3823 = vadd.f32 %v3821, 1e-06
    %v3824 = vadd.f32 %v3822, 1e-06
    %v3825 = vrsqrt.pop %v3823
    %v3826 = vmul.f32 %v3825, %v3823
    %v3827 = vmul.f32 %v3826, %v3825
    %v3828 = vmul.f32 0.5, %v3827
    %v3829 = vsub.f32 1.5, %v3828
    %v3830 = vmul.f32 %v3825, %v3829
    %vm3831 = vweird.f32 %v3823
    %vm3832 = vweird.f32 %v3825
    %vm3833 = vmor %vm3831, %vm3832
    %v3834 = vsel %vm3833, %v3825, %v3830
    %v3835 = vrsqrt.pop %v3824
    %v3836 = vmul.f32 %v3835, %v3824
    %v3837 = vmul.f32 %v3836, %v3835
    %v3838 = vmul.f32 0.5, %v3837
    %v3839 = vsub.f32 1.5, %v3838
    %v3840 = vmul.f32 %v3835, %v3839
    %vm3841 = vweird.f32 %v3824
    %vm3842 = vweird.f32 %v3835
    %vm3843 = vmor %vm3841, %vm3842
    %v3844 = vsel %vm3843, %v3835, %v3840
    %v3845 = vmul.f32 %v3811, %v3834
    %v3846 = vmul.f32 %v3812, %v3844
    %v3847 = vld [vmem:[%s3 + $0x13] sm:$0x1]
    %v3848 = vperm.slane %v3847, 0
    %v3849 = vmul.f32 %v3845, %v3848
    %v3850 = vmul.f32 %v3846, %v3848
    %v3851 = vld [vmem:[%s3 + $0x14] sm:$0x1]
    %v3852 = vperm.slane %v3851, 0
    %v3853 = vadd.f32 %v3849, %v3852
    %v3854 = vadd.f32 %v3850, %v3852
    %s3855 = scalar_lea.vmem %s5, 96
    %v3856 = vld [vmem:[%s3855] sm:$0xff]
    %v3857 = vld [vmem:[%s3855 + $0x8] sm:$0xff]
    %v3858 = vld [vmem:[%s3855 + $0x10] sm:$0xff]
    %v3859 = vld [vmem:[%s3855 + $0x18] sm:$0xff]
    %s3860 = scalar_lea.vmem %s6, 96
    %v3861 = vld [vmem:[%s3860] sm:$0xff]
    %v3862 = vld [vmem:[%s3860 + $0x8] sm:$0xff]
    %v3863 = vld [vmem:[%s3860 + $0x10] sm:$0xff]
    %v3864 = vld [vmem:[%s3860 + $0x18] sm:$0xff]
    %v3866 = vsel %vm134, %v3853, 0
    %v3869 = vsel %vm134, %v3854, 0
    %3871 = vmatpush.msra.mxu0 0.0
    %3872 = vmatpush.msra.mxu0 0.0
    %3873 = vmatpush.msra.mxu0 0.0
    %3874 = vmatpush.msra.mxu0 0.0
    %3875 = vmatpush.msra.mxu0 0.0
    %3876 = vmatpush.msra.mxu0 0.0
    %3877 = vmatpush.msra.mxu0 0.0
    %3878 = vmatpush.msra.mxu0 0.0
    %3879 = vmatpush.msra.mxu0 0.0
    %3880 = vmatpush.msra.mxu0 0.0
    %3881 = vmatpush.msra.mxu0 0.0
    %3882 = vmatpush.msra.mxu0 0.0
    %3883 = vmatpush.msra.mxu0 %v3859
    %3884 = vmatpush.msra.mxu0 %v3858
    %3885 = vmatpush.msra.mxu0 %v3857
    %3886 = vmatpush.msra.mxu0 %v3856
    %3887 = vmatmul.f32.gmra.mxu0 %v3866
    %v3888 = vpop.f32.mrf.mxu0
    %v3889 = vadd.f32 0.0, %v3888
    %3890 = vmatmul.f32.gmra.mxu0 %v3869
    %v3891 = vpop.f32.mrf.mxu0
    %v3892 = vadd.f32 0.0, %v3891
    %3893 = vdwg.mxu0
    %3895 = vrot.lane.b32.xlu0 %v3889, 96
    %v3896 = vpop.permute.xlu0 %3895
    %v3897 = vsel %vm306, %v3889, 0
    %v3899 = vsel %vm306, %v3896, 0
    %3901 = vmatpush.xpose.msra.mxu0 0.0
    %3902 = vmatpush.xpose.msra.mxu0 0.0
    %3903 = vmatpush.xpose.msra.mxu0 0.0
    %3904 = vmatpush.xpose.msra.mxu0 0.0
    %3905 = vmatpush.xpose.msra.mxu0 0.0
    %3906 = vmatpush.xpose.msra.mxu0 0.0
    %3907 = vmatpush.xpose.msra.mxu0 0.0
    %3908 = vmatpush.xpose.msra.mxu0 0.0
    %3909 = vmatpush.xpose.msra.mxu0 0.0
    %3910 = vmatpush.xpose.msra.mxu0 0.0
    %3911 = vmatpush.xpose.msra.mxu0 0.0
    %3912 = vmatpush.xpose.msra.mxu0 0.0
    %3913 = vmatpush.xpose.msra.mxu0 0.0
    %3914 = vmatpush.xpose.msra.mxu0 0.0
    %3915 = vmatpush.xpose.msra.mxu0 0.0
    %3916 = vmatpush.xpose.msra.mxu0 %v3899
    %3917 = vmatmul.f32.gmra.mxu0 %v3897
    %v3918 = vpop.f32.mrf.mxu0
    %v3919 = vadd.f32 0.0, %v3918
    %3920 = vdwg.mxu0
    %v3921 = vsel %vm257, %v3919, -1e+09
    %v3922 = vsel %vm2162, %v3921, -inf
    %3923 = vmax.xlane.f32.xlu0 %v3922
    %v3924 = vpop.xlane.xlu0 %3923
    %v3925 = vsub.f32 %v3921, %v3924
    %v3926 = vmul.f32 %v3925, 1.442695
    %v3927 = vpow.pop %v3926
    %v3928 = vsel %vm2162, %v3927, 0.0
    %3929 = vadd.xlane.f32.xlu0 %v3928
    %v3930 = vpop.xlane.xlu0 %3929
    %v3931 = vrcp.pop %v3930
    %v3932 = vmul.f32 %v3930, %v3931
    %v3933 = vsub.f32 1.0, %v3932
    %v3934 = vmul.f32 %v3931, %v3933
    %v3935 = vadd.f32 %v3931, %v3934
    %vm3936 = vweird.f32 %v3930
    %vm3937 = vweird.f32 %v3931
    %vm3938 = vmor %vm3936, %vm3937
    %v3939 = vsel %vm3938, %v3931, %v3935
    %v3940 = vand.u32 2147483647, %v3930
    %vm3941 = vcmp.eq.f32.partialorder %v3940, 8.507059e+37
    %v3942 = vand.u32 %v3930, 2147483648
    %v3943 = vor.u32 1.1754944e-38, %v3942
    %v3944 = vsel %vm3941, %v3943, %v3939
    %v3945 = vmul.f32 %v3927, %v3944
    %3946 = vrot.lane.b32.xlu0 %v3889, 64
    %v3947 = vpop.permute.xlu0 %3946
    %v3949 = vsel %vm2189, %v3945, 0
    %v3951 = vsel %vm2193, %v3947, 0
    %3953 = vmatpush.msra.mxu0 0.0
    %3954 = vmatpush.msra.mxu0 0.0
    %3955 = vmatpush.msra.mxu0 0.0
    %3956 = vmatpush.msra.mxu0 0.0
    %3957 = vmatpush.msra.mxu0 0.0
    %3958 = vmatpush.msra.mxu0 0.0
    %3959 = vmatpush.msra.mxu0 0.0
    %3960 = vmatpush.msra.mxu0 0.0
    %3961 = vmatpush.msra.mxu0 0.0
    %3962 = vmatpush.msra.mxu0 0.0
    %3963 = vmatpush.msra.mxu0 0.0
    %3964 = vmatpush.msra.mxu0 0.0
    %3965 = vmatpush.msra.mxu0 0.0
    %3966 = vmatpush.msra.mxu0 0.0
    %3967 = vmatpush.msra.mxu0 0.0
    %3968 = vmatpush.msra.mxu0 %v3951
    %3969 = vmatmul.f32.gmra.mxu0 %v3949
    %v3970 = vpop.f32.mrf.mxu0
    %v3971 = vadd.f32 0.0, %v3970
    %3972 = vdwg.mxu0
    %3973 = vrot.lane.b32.xlu0 %v3889, 120
    %v3974 = vpop.permute.xlu0 %3973
    %3975 = vrot.lane.b32.xlu0 %v3889, 88
    %v3976 = vpop.permute.xlu0 %3975
    %v3977 = vsel %vm306, %v3974, 0
    %v3979 = vsel %vm306, %v3976, 0
    %3981 = vmatpush.xpose.msra.mxu0 0.0
    %3982 = vmatpush.xpose.msra.mxu0 0.0
    %3983 = vmatpush.xpose.msra.mxu0 0.0
    %3984 = vmatpush.xpose.msra.mxu0 0.0
    %3985 = vmatpush.xpose.msra.mxu0 0.0
    %3986 = vmatpush.xpose.msra.mxu0 0.0
    %3987 = vmatpush.xpose.msra.mxu0 0.0
    %3988 = vmatpush.xpose.msra.mxu0 0.0
    %3989 = vmatpush.xpose.msra.mxu0 0.0
    %3990 = vmatpush.xpose.msra.mxu0 0.0
    %3991 = vmatpush.xpose.msra.mxu0 0.0
    %3992 = vmatpush.xpose.msra.mxu0 0.0
    %3993 = vmatpush.xpose.msra.mxu0 0.0
    %3994 = vmatpush.xpose.msra.mxu0 0.0
    %3995 = vmatpush.xpose.msra.mxu0 0.0
    %3996 = vmatpush.xpose.msra.mxu0 %v3979
    %3997 = vmatmul.f32.gmra.mxu0 %v3977
    %v3998 = vpop.f32.mrf.mxu0
    %v3999 = vadd.f32 0.0, %v3998
    %4000 = vdwg.mxu0
    %v4001 = vsel %vm257, %v3999, -1e+09
    %v4002 = vsel %vm2162, %v4001, -inf
    %4003 = vmax.xlane.f32.xlu0 %v4002
    %v4004 = vpop.xlane.xlu0 %4003
    %v4005 = vsub.f32 %v4001, %v4004
    %v4006 = vmul.f32 %v4005, 1.442695
    %v4007 = vpow.pop %v4006
    %v4008 = vsel %vm2162, %v4007, 0.0
    %4009 = vadd.xlane.f32.xlu0 %v4008
    %v4010 = vpop.xlane.xlu0 %4009
    %v4011 = vrcp.pop %v4010
    %v4012 = vmul.f32 %v4010, %v4011
    %v4013 = vsub.f32 1.0, %v4012
    %v4014 = vmul.f32 %v4011, %v4013
    %v4015 = vadd.f32 %v4011, %v4014
    %vm4016 = vweird.f32 %v4010
    %vm4017 = vweird.f32 %v4011
    %vm4018 = vmor %vm4016, %vm4017
    %v4019 = vsel %vm4018, %v4011, %v4015
    %v4020 = vand.u32 2147483647, %v4010
    %vm4021 = vcmp.eq.f32.partialorder %v4020, 8.507059e+37
    %v4022 = vand.u32 %v4010, 2147483648
    %v4023 = vor.u32 1.1754944e-38, %v4022
    %v4024 = vsel %vm4021, %v4023, %v4019
    %v4025 = vmul.f32 %v4007, %v4024
    %4026 = vrot.lane.b32.xlu0 %v3889, 56
    %v4027 = vpop.permute.xlu0 %4026
    %v4029 = vsel %vm2189, %v4025, 0
    %v4031 = vsel %vm2193, %v4027, 0
    %4033 = vmatpush.msra.mxu0 0.0
    %4034 = vmatpush.msra.mxu0 0.0
    %4035 = vmatpush.msra.mxu0 0.0
    %4036 = vmatpush.msra.mxu0 0.0
    %4037 = vmatpush.msra.mxu0 0.0
    %4038 = vmatpush.msra.mxu0 0.0
    %4039 = vmatpush.msra.mxu0 0.0
    %4040 = vmatpush.msra.mxu0 0.0
    %4041 = vmatpush.msra.mxu0 0.0
    %4042 = vmatpush.msra.mxu0 0.0
    %4043 = vmatpush.msra.mxu0 0.0
    %4044 = vmatpush.msra.mxu0 0.0
    %4045 = vmatpush.msra.mxu0 0.0
    %4046 = vmatpush.msra.mxu0 0.0
    %4047 = vmatpush.msra.mxu0 0.0
    %4048 = vmatpush.msra.mxu0 %v4031
    %4049 = vmatmul.f32.gmra.mxu0 %v4029
    %v4050 = vpop.f32.mrf.mxu0
    %v4051 = vadd.f32 0.0, %v4050
    %4052 = vdwg.mxu0
    %4053 = vrot.lane.b32.xlu0 %v3889, 112
    %v4054 = vpop.permute.xlu0 %4053
    %4055 = vrot.lane.b32.xlu0 %v3889, 80
    %v4056 = vpop.permute.xlu0 %4055
    %v4057 = vsel %vm306, %v4054, 0
    %v4059 = vsel %vm306, %v4056, 0
    %4061 = vmatpush.xpose.msra.mxu0 0.0
    %4062 = vmatpush.xpose.msra.mxu0 0.0
    %4063 = vmatpush.xpose.msra.mxu0 0.0
    %4064 = vmatpush.xpose.msra.mxu0 0.0
    %4065 = vmatpush.xpose.msra.mxu0 0.0
    %4066 = vmatpush.xpose.msra.mxu0 0.0
    %4067 = vmatpush.xpose.msra.mxu0 0.0
    %4068 = vmatpush.xpose.msra.mxu0 0.0
    %4069 = vmatpush.xpose.msra.mxu0 0.0
    %4070 = vmatpush.xpose.msra.mxu0 0.0
    %4071 = vmatpush.xpose.msra.mxu0 0.0
    %4072 = vmatpush.xpose.msra.mxu0 0.0
    %4073 = vmatpush.xpose.msra.mxu0 0.0
    %4074 = vmatpush.xpose.msra.mxu0 0.0
    %4075 = vmatpush.xpose.msra.mxu0 0.0
    %4076 = vmatpush.xpose.msra.mxu0 %v4059
    %4077 = vmatmul.f32.gmra.mxu0 %v4057
    %v4078 = vpop.f32.mrf.mxu0
    %v4079 = vadd.f32 0.0, %v4078
    %4080 = vdwg.mxu0
    %v4081 = vsel %vm257, %v4079, -1e+09
    %v4082 = vsel %vm2162, %v4081, -inf
    %4083 = vmax.xlane.f32.xlu0 %v4082
    %v4084 = vpop.xlane.xlu0 %4083
    %v4085 = vsub.f32 %v4081, %v4084
    %v4086 = vmul.f32 %v4085, 1.442695
    %v4087 = vpow.pop %v4086
    %v4088 = vsel %vm2162, %v4087, 0.0
    %4089 = vadd.xlane.f32.xlu0 %v4088
    %v4090 = vpop.xlane.xlu0 %4089
    %v4091 = vrcp.pop %v4090
    %v4092 = vmul.f32 %v4090, %v4091
    %v4093 = vsub.f32 1.0, %v4092
    %v4094 = vmul.f32 %v4091, %v4093
    %v4095 = vadd.f32 %v4091, %v4094
    %vm4096 = vweird.f32 %v4090
    %vm4097 = vweird.f32 %v4091
    %vm4098 = vmor %vm4096, %vm4097
    %v4099 = vsel %vm4098, %v4091, %v4095
    %v4100 = vand.u32 2147483647, %v4090
    %vm4101 = vcmp.eq.f32.partialorder %v4100, 8.507059e+37
    %v4102 = vand.u32 %v4090, 2147483648
    %v4103 = vor.u32 1.1754944e-38, %v4102
    %v4104 = vsel %vm4101, %v4103, %v4099
    %v4105 = vmul.f32 %v4087, %v4104
    %4106 = vrot.lane.b32.xlu0 %v3889, 48
    %v4107 = vpop.permute.xlu0 %4106
    %v4109 = vsel %vm2189, %v4105, 0
    %v4111 = vsel %vm2193, %v4107, 0
    %4113 = vmatpush.msra.mxu0 0.0
    %4114 = vmatpush.msra.mxu0 0.0
    %4115 = vmatpush.msra.mxu0 0.0
    %4116 = vmatpush.msra.mxu0 0.0
    %4117 = vmatpush.msra.mxu0 0.0
    %4118 = vmatpush.msra.mxu0 0.0
    %4119 = vmatpush.msra.mxu0 0.0
    %4120 = vmatpush.msra.mxu0 0.0
    %4121 = vmatpush.msra.mxu0 0.0
    %4122 = vmatpush.msra.mxu0 0.0
    %4123 = vmatpush.msra.mxu0 0.0
    %4124 = vmatpush.msra.mxu0 0.0
    %4125 = vmatpush.msra.mxu0 0.0
    %4126 = vmatpush.msra.mxu0 0.0
    %4127 = vmatpush.msra.mxu0 0.0
    %4128 = vmatpush.msra.mxu0 %v4111
    %4129 = vmatmul.f32.gmra.mxu0 %v4109
    %v4130 = vpop.f32.mrf.mxu0
    %v4131 = vadd.f32 0.0, %v4130
    %4132 = vdwg.mxu0
    %4133 = vrot.lane.b32.xlu0 %v3889, 104
    %v4134 = vpop.permute.xlu0 %4133
    %4135 = vrot.lane.b32.xlu0 %v3889, 72
    %v4136 = vpop.permute.xlu0 %4135
    %v4137 = vsel %vm306, %v4134, 0
    %v4139 = vsel %vm306, %v4136, 0
    %4141 = vmatpush.xpose.msra.mxu0 0.0
    %4142 = vmatpush.xpose.msra.mxu0 0.0
    %4143 = vmatpush.xpose.msra.mxu0 0.0
    %4144 = vmatpush.xpose.msra.mxu0 0.0
    %4145 = vmatpush.xpose.msra.mxu0 0.0
    %4146 = vmatpush.xpose.msra.mxu0 0.0
    %4147 = vmatpush.xpose.msra.mxu0 0.0
    %4148 = vmatpush.xpose.msra.mxu0 0.0
    %4149 = vmatpush.xpose.msra.mxu0 0.0
    %4150 = vmatpush.xpose.msra.mxu0 0.0
    %4151 = vmatpush.xpose.msra.mxu0 0.0
    %4152 = vmatpush.xpose.msra.mxu0 0.0
    %4153 = vmatpush.xpose.msra.mxu0 0.0
    %4154 = vmatpush.xpose.msra.mxu0 0.0
    %4155 = vmatpush.xpose.msra.mxu0 0.0
    %4156 = vmatpush.xpose.msra.mxu0 %v4139
    %4157 = vmatmul.f32.gmra.mxu0 %v4137
    %v4158 = vpop.f32.mrf.mxu0
    %v4159 = vadd.f32 0.0, %v4158
    %4160 = vdwg.mxu0
    %v4161 = vsel %vm257, %v4159, -1e+09
    %v4162 = vsel %vm2162, %v4161, -inf
    %4163 = vmax.xlane.f32.xlu0 %v4162
    %v4164 = vpop.xlane.xlu0 %4163
    %v4165 = vsub.f32 %v4161, %v4164
    %v4166 = vmul.f32 %v4165, 1.442695
    %v4167 = vpow.pop %v4166
    %v4168 = vsel %vm2162, %v4167, 0.0
    %4169 = vadd.xlane.f32.xlu0 %v4168
    %v4170 = vpop.xlane.xlu0 %4169
    %v4171 = vrcp.pop %v4170
    %v4172 = vmul.f32 %v4170, %v4171
    %v4173 = vsub.f32 1.0, %v4172
    %v4174 = vmul.f32 %v4171, %v4173
    %v4175 = vadd.f32 %v4171, %v4174
    %vm4176 = vweird.f32 %v4170
    %vm4177 = vweird.f32 %v4171
    %vm4178 = vmor %vm4176, %vm4177
    %v4179 = vsel %vm4178, %v4171, %v4175
    %v4180 = vand.u32 2147483647, %v4170
    %vm4181 = vcmp.eq.f32.partialorder %v4180, 8.507059e+37
    %v4182 = vand.u32 %v4170, 2147483648
    %v4183 = vor.u32 1.1754944e-38, %v4182
    %v4184 = vsel %vm4181, %v4183, %v4179
    %v4185 = vmul.f32 %v4167, %v4184
    %4186 = vrot.lane.b32.xlu0 %v3889, 40
    %v4187 = vpop.permute.xlu0 %4186
    %v4189 = vsel %vm2189, %v4185, 0
    %v4191 = vsel %vm2193, %v4187, 0
    %4193 = vmatpush.msra.mxu0 0.0
    %4194 = vmatpush.msra.mxu0 0.0
    %4195 = vmatpush.msra.mxu0 0.0
    %4196 = vmatpush.msra.mxu0 0.0
    %4197 = vmatpush.msra.mxu0 0.0
    %4198 = vmatpush.msra.mxu0 0.0
    %4199 = vmatpush.msra.mxu0 0.0
    %4200 = vmatpush.msra.mxu0 0.0
    %4201 = vmatpush.msra.mxu0 0.0
    %4202 = vmatpush.msra.mxu0 0.0
    %4203 = vmatpush.msra.mxu0 0.0
    %4204 = vmatpush.msra.mxu0 0.0
    %4205 = vmatpush.msra.mxu0 0.0
    %4206 = vmatpush.msra.mxu0 0.0
    %4207 = vmatpush.msra.mxu0 0.0
    %4208 = vmatpush.msra.mxu0 %v4191
    %4209 = vmatmul.f32.gmra.mxu0 %v4189
    %v4210 = vpop.f32.mrf.mxu0
    %v4211 = vadd.f32 0.0, %v4210
    %4212 = vdwg.mxu0
    %4214 = vrot.lane.b32.xlu0 %v4051, 8
    %v4215 = vpop.permute.xlu0 %4214
    %4218 = vrot.lane.b32.xlu0 %v4131, 16
    %v4219 = vpop.permute.xlu0 %4218
    %4222 = vrot.lane.b32.xlu0 %v4211, 24
    %v4223 = vpop.permute.xlu0 %4222
    %v4225 = vsel %vm306, %v3971, %v4215
    %v4226 = vsel %vm635, %v4225, %v4219
    %v4227 = vsel %vm92, %v4226, %v4223
    %v4229 = vrot.slane %v3889, 7
    %v4230 = vrot.slane %v3892, 7
    %v4231 = vsel %vm2472, %v4229, %v4230
    %4232 = vrot.lane.b32.xlu0 %v4231, 96
    %v4233 = vpop.permute.xlu0 %4232
    %v4234 = vsel %vm306, %v4231, 0
    %v4236 = vsel %vm306, %v4233, 0
    %4238 = vmatpush.xpose.msra.mxu0 0.0
    %4239 = vmatpush.xpose.msra.mxu0 0.0
    %4240 = vmatpush.xpose.msra.mxu0 0.0
    %4241 = vmatpush.xpose.msra.mxu0 0.0
    %4242 = vmatpush.xpose.msra.mxu0 0.0
    %4243 = vmatpush.xpose.msra.mxu0 0.0
    %4244 = vmatpush.xpose.msra.mxu0 0.0
    %4245 = vmatpush.xpose.msra.mxu0 0.0
    %4246 = vmatpush.xpose.msra.mxu0 0.0
    %4247 = vmatpush.xpose.msra.mxu0 0.0
    %4248 = vmatpush.xpose.msra.mxu0 0.0
    %4249 = vmatpush.xpose.msra.mxu0 0.0
    %4250 = vmatpush.xpose.msra.mxu0 0.0
    %4251 = vmatpush.xpose.msra.mxu0 0.0
    %4252 = vmatpush.xpose.msra.mxu0 0.0
    %4253 = vmatpush.xpose.msra.mxu0 %v4236
    %4254 = vmatmul.f32.gmra.mxu0 %v4234
    %v4255 = vpop.f32.mrf.mxu0
    %v4256 = vadd.f32 0.0, %v4255
    %4257 = vdwg.mxu0
    %v4258 = vsel %vm265, %v4256, -1e+09
    %v4259 = vsel %vm2162, %v4258, -inf
    %4260 = vmax.xlane.f32.xlu0 %v4259
    %v4261 = vpop.xlane.xlu0 %4260
    %v4262 = vsub.f32 %v4258, %v4261
    %v4263 = vmul.f32 %v4262, 1.442695
    %v4264 = vpow.pop %v4263
    %v4265 = vsel %vm2162, %v4264, 0.0
    %4266 = vadd.xlane.f32.xlu0 %v4265
    %v4267 = vpop.xlane.xlu0 %4266
    %v4268 = vrcp.pop %v4267
    %v4269 = vmul.f32 %v4267, %v4268
    %v4270 = vsub.f32 1.0, %v4269
    %v4271 = vmul.f32 %v4268, %v4270
    %v4272 = vadd.f32 %v4268, %v4271
    %vm4273 = vweird.f32 %v4267
    %vm4274 = vweird.f32 %v4268
    %vm4275 = vmor %vm4273, %vm4274
    %v4276 = vsel %vm4275, %v4268, %v4272
    %v4277 = vand.u32 2147483647, %v4267
    %vm4278 = vcmp.eq.f32.partialorder %v4277, 8.507059e+37
    %v4279 = vand.u32 %v4267, 2147483648
    %v4280 = vor.u32 1.1754944e-38, %v4279
    %v4281 = vsel %vm4278, %v4280, %v4276
    %v4282 = vmul.f32 %v4264, %v4281
    %4283 = vrot.lane.b32.xlu0 %v4231, 64
    %v4284 = vpop.permute.xlu0 %4283
    %v4286 = vsel %vm2189, %v4282, 0
    %v4288 = vsel %vm2193, %v4284, 0
    %4290 = vmatpush.msra.mxu0 0.0
    %4291 = vmatpush.msra.mxu0 0.0
    %4292 = vmatpush.msra.mxu0 0.0
    %4293 = vmatpush.msra.mxu0 0.0
    %4294 = vmatpush.msra.mxu0 0.0
    %4295 = vmatpush.msra.mxu0 0.0
    %4296 = vmatpush.msra.mxu0 0.0
    %4297 = vmatpush.msra.mxu0 0.0
    %4298 = vmatpush.msra.mxu0 0.0
    %4299 = vmatpush.msra.mxu0 0.0
    %4300 = vmatpush.msra.mxu0 0.0
    %4301 = vmatpush.msra.mxu0 0.0
    %4302 = vmatpush.msra.mxu0 0.0
    %4303 = vmatpush.msra.mxu0 0.0
    %4304 = vmatpush.msra.mxu0 0.0
    %4305 = vmatpush.msra.mxu0 %v4288
    %4306 = vmatmul.f32.gmra.mxu0 %v4286
    %v4307 = vpop.f32.mrf.mxu0
    %v4308 = vadd.f32 0.0, %v4307
    %4309 = vdwg.mxu0
    %4310 = vrot.lane.b32.xlu0 %v4231, 120
    %v4311 = vpop.permute.xlu0 %4310
    %4312 = vrot.lane.b32.xlu0 %v4231, 88
    %v4313 = vpop.permute.xlu0 %4312
    %v4314 = vsel %vm306, %v4311, 0
    %v4316 = vsel %vm306, %v4313, 0
    %4318 = vmatpush.xpose.msra.mxu0 0.0
    %4319 = vmatpush.xpose.msra.mxu0 0.0
    %4320 = vmatpush.xpose.msra.mxu0 0.0
    %4321 = vmatpush.xpose.msra.mxu0 0.0
    %4322 = vmatpush.xpose.msra.mxu0 0.0
    %4323 = vmatpush.xpose.msra.mxu0 0.0
    %4324 = vmatpush.xpose.msra.mxu0 0.0
    %4325 = vmatpush.xpose.msra.mxu0 0.0
    %4326 = vmatpush.xpose.msra.mxu0 0.0
    %4327 = vmatpush.xpose.msra.mxu0 0.0
    %4328 = vmatpush.xpose.msra.mxu0 0.0
    %4329 = vmatpush.xpose.msra.mxu0 0.0
    %4330 = vmatpush.xpose.msra.mxu0 0.0
    %4331 = vmatpush.xpose.msra.mxu0 0.0
    %4332 = vmatpush.xpose.msra.mxu0 0.0
    %4333 = vmatpush.xpose.msra.mxu0 %v4316
    %4334 = vmatmul.f32.gmra.mxu0 %v4314
    %v4335 = vpop.f32.mrf.mxu0
    %v4336 = vadd.f32 0.0, %v4335
    %4337 = vdwg.mxu0
    %v4338 = vsel %vm265, %v4336, -1e+09
    %v4339 = vsel %vm2162, %v4338, -inf
    %4340 = vmax.xlane.f32.xlu0 %v4339
    %v4341 = vpop.xlane.xlu0 %4340
    %v4342 = vsub.f32 %v4338, %v4341
    %v4343 = vmul.f32 %v4342, 1.442695
    %v4344 = vpow.pop %v4343
    %v4345 = vsel %vm2162, %v4344, 0.0
    %4346 = vadd.xlane.f32.xlu0 %v4345
    %v4347 = vpop.xlane.xlu0 %4346
    %v4348 = vrcp.pop %v4347
    %v4349 = vmul.f32 %v4347, %v4348
    %v4350 = vsub.f32 1.0, %v4349
    %v4351 = vmul.f32 %v4348, %v4350
    %v4352 = vadd.f32 %v4348, %v4351
    %vm4353 = vweird.f32 %v4347
    %vm4354 = vweird.f32 %v4348
    %vm4355 = vmor %vm4353, %vm4354
    %v4356 = vsel %vm4355, %v4348, %v4352
    %v4357 = vand.u32 2147483647, %v4347
    %vm4358 = vcmp.eq.f32.partialorder %v4357, 8.507059e+37
    %v4359 = vand.u32 %v4347, 2147483648
    %v4360 = vor.u32 1.1754944e-38, %v4359
    %v4361 = vsel %vm4358, %v4360, %v4356
    %v4362 = vmul.f32 %v4344, %v4361
    %4363 = vrot.lane.b32.xlu0 %v4231, 56
    %v4364 = vpop.permute.xlu0 %4363
    %v4366 = vsel %vm2189, %v4362, 0
    %v4368 = vsel %vm2193, %v4364, 0
    %4370 = vmatpush.msra.mxu0 0.0
    %4371 = vmatpush.msra.mxu0 0.0
    %4372 = vmatpush.msra.mxu0 0.0
    %4373 = vmatpush.msra.mxu0 0.0
    %4374 = vmatpush.msra.mxu0 0.0
    %4375 = vmatpush.msra.mxu0 0.0
    %4376 = vmatpush.msra.mxu0 0.0
    %4377 = vmatpush.msra.mxu0 0.0
    %4378 = vmatpush.msra.mxu0 0.0
    %4379 = vmatpush.msra.mxu0 0.0
    %4380 = vmatpush.msra.mxu0 0.0
    %4381 = vmatpush.msra.mxu0 0.0
    %4382 = vmatpush.msra.mxu0 0.0
    %4383 = vmatpush.msra.mxu0 0.0
    %4384 = vmatpush.msra.mxu0 0.0
    %4385 = vmatpush.msra.mxu0 %v4368
    %4386 = vmatmul.f32.gmra.mxu0 %v4366
    %v4387 = vpop.f32.mrf.mxu0
    %v4388 = vadd.f32 0.0, %v4387
    %4389 = vdwg.mxu0
    %4390 = vrot.lane.b32.xlu0 %v4231, 112
    %v4391 = vpop.permute.xlu0 %4390
    %4392 = vrot.lane.b32.xlu0 %v4231, 80
    %v4393 = vpop.permute.xlu0 %4392
    %v4394 = vsel %vm306, %v4391, 0
    %v4396 = vsel %vm306, %v4393, 0
    %4398 = vmatpush.xpose.msra.mxu0 0.0
    %4399 = vmatpush.xpose.msra.mxu0 0.0
    %4400 = vmatpush.xpose.msra.mxu0 0.0
    %4401 = vmatpush.xpose.msra.mxu0 0.0
    %4402 = vmatpush.xpose.msra.mxu0 0.0
    %4403 = vmatpush.xpose.msra.mxu0 0.0
    %4404 = vmatpush.xpose.msra.mxu0 0.0
    %4405 = vmatpush.xpose.msra.mxu0 0.0
    %4406 = vmatpush.xpose.msra.mxu0 0.0
    %4407 = vmatpush.xpose.msra.mxu0 0.0
    %4408 = vmatpush.xpose.msra.mxu0 0.0
    %4409 = vmatpush.xpose.msra.mxu0 0.0
    %4410 = vmatpush.xpose.msra.mxu0 0.0
    %4411 = vmatpush.xpose.msra.mxu0 0.0
    %4412 = vmatpush.xpose.msra.mxu0 0.0
    %4413 = vmatpush.xpose.msra.mxu0 %v4396
    %4414 = vmatmul.f32.gmra.mxu0 %v4394
    %v4415 = vpop.f32.mrf.mxu0
    %v4416 = vadd.f32 0.0, %v4415
    %4417 = vdwg.mxu0
    %v4418 = vsel %vm265, %v4416, -1e+09
    %v4419 = vsel %vm2162, %v4418, -inf
    %4420 = vmax.xlane.f32.xlu0 %v4419
    %v4421 = vpop.xlane.xlu0 %4420
    %v4422 = vsub.f32 %v4418, %v4421
    %v4423 = vmul.f32 %v4422, 1.442695
    %v4424 = vpow.pop %v4423
    %v4425 = vsel %vm2162, %v4424, 0.0
    %4426 = vadd.xlane.f32.xlu0 %v4425
    %v4427 = vpop.xlane.xlu0 %4426
    %v4428 = vrcp.pop %v4427
    %v4429 = vmul.f32 %v4427, %v4428
    %v4430 = vsub.f32 1.0, %v4429
    %v4431 = vmul.f32 %v4428, %v4430
    %v4432 = vadd.f32 %v4428, %v4431
    %vm4433 = vweird.f32 %v4427
    %vm4434 = vweird.f32 %v4428
    %vm4435 = vmor %vm4433, %vm4434
    %v4436 = vsel %vm4435, %v4428, %v4432
    %v4437 = vand.u32 2147483647, %v4427
    %vm4438 = vcmp.eq.f32.partialorder %v4437, 8.507059e+37
    %v4439 = vand.u32 %v4427, 2147483648
    %v4440 = vor.u32 1.1754944e-38, %v4439
    %v4441 = vsel %vm4438, %v4440, %v4436
    %v4442 = vmul.f32 %v4424, %v4441
    %4443 = vrot.lane.b32.xlu0 %v4231, 48
    %v4444 = vpop.permute.xlu0 %4443
    %v4446 = vsel %vm2189, %v4442, 0
    %v4448 = vsel %vm2193, %v4444, 0
    %4450 = vmatpush.msra.mxu0 0.0
    %4451 = vmatpush.msra.mxu0 0.0
    %4452 = vmatpush.msra.mxu0 0.0
    %4453 = vmatpush.msra.mxu0 0.0
    %4454 = vmatpush.msra.mxu0 0.0
    %4455 = vmatpush.msra.mxu0 0.0
    %4456 = vmatpush.msra.mxu0 0.0
    %4457 = vmatpush.msra.mxu0 0.0
    %4458 = vmatpush.msra.mxu0 0.0
    %4459 = vmatpush.msra.mxu0 0.0
    %4460 = vmatpush.msra.mxu0 0.0
    %4461 = vmatpush.msra.mxu0 0.0
    %4462 = vmatpush.msra.mxu0 0.0
    %4463 = vmatpush.msra.mxu0 0.0
    %4464 = vmatpush.msra.mxu0 0.0
    %4465 = vmatpush.msra.mxu0 %v4448
    %4466 = vmatmul.f32.gmra.mxu0 %v4446
    %v4467 = vpop.f32.mrf.mxu0
    %v4468 = vadd.f32 0.0, %v4467
    %4469 = vdwg.mxu0
    %4470 = vrot.lane.b32.xlu0 %v4231, 104
    %v4471 = vpop.permute.xlu0 %4470
    %4472 = vrot.lane.b32.xlu0 %v4231, 72
    %v4473 = vpop.permute.xlu0 %4472
    %v4474 = vsel %vm306, %v4471, 0
    %v4476 = vsel %vm306, %v4473, 0
    %4478 = vmatpush.xpose.msra.mxu0 0.0
    %4479 = vmatpush.xpose.msra.mxu0 0.0
    %4480 = vmatpush.xpose.msra.mxu0 0.0
    %4481 = vmatpush.xpose.msra.mxu0 0.0
    %4482 = vmatpush.xpose.msra.mxu0 0.0
    %4483 = vmatpush.xpose.msra.mxu0 0.0
    %4484 = vmatpush.xpose.msra.mxu0 0.0
    %4485 = vmatpush.xpose.msra.mxu0 0.0
    %4486 = vmatpush.xpose.msra.mxu0 0.0
    %4487 = vmatpush.xpose.msra.mxu0 0.0
    %4488 = vmatpush.xpose.msra.mxu0 0.0
    %4489 = vmatpush.xpose.msra.mxu0 0.0
    %4490 = vmatpush.xpose.msra.mxu0 0.0
    %4491 = vmatpush.xpose.msra.mxu0 0.0
    %4492 = vmatpush.xpose.msra.mxu0 0.0
    %4493 = vmatpush.xpose.msra.mxu0 %v4476
    %4494 = vmatmul.f32.gmra.mxu0 %v4474
    %v4495 = vpop.f32.mrf.mxu0
    %v4496 = vadd.f32 0.0, %v4495
    %4497 = vdwg.mxu0
    %v4498 = vsel %vm265, %v4496, -1e+09
    %v4499 = vsel %vm2162, %v4498, -inf
    %4500 = vmax.xlane.f32.xlu0 %v4499
    %v4501 = vpop.xlane.xlu0 %4500
    %v4502 = vsub.f32 %v4498, %v4501
    %v4503 = vmul.f32 %v4502, 1.442695
    %v4504 = vpow.pop %v4503
    %v4505 = vsel %vm2162, %v4504, 0.0
    %4506 = vadd.xlane.f32.xlu0 %v4505
    %v4507 = vpop.xlane.xlu0 %4506
    %v4508 = vrcp.pop %v4507
    %v4509 = vmul.f32 %v4507, %v4508
    %v4510 = vsub.f32 1.0, %v4509
    %v4511 = vmul.f32 %v4508, %v4510
    %v4512 = vadd.f32 %v4508, %v4511
    %vm4513 = vweird.f32 %v4507
    %vm4514 = vweird.f32 %v4508
    %vm4515 = vmor %vm4513, %vm4514
    %v4516 = vsel %vm4515, %v4508, %v4512
    %v4517 = vand.u32 2147483647, %v4507
    %vm4518 = vcmp.eq.f32.partialorder %v4517, 8.507059e+37
    %v4519 = vand.u32 %v4507, 2147483648
    %v4520 = vor.u32 1.1754944e-38, %v4519
    %v4521 = vsel %vm4518, %v4520, %v4516
    %v4522 = vmul.f32 %v4504, %v4521
    %4523 = vrot.lane.b32.xlu0 %v4231, 40
    %v4524 = vpop.permute.xlu0 %4523
    %v4526 = vsel %vm2189, %v4522, 0
    %v4528 = vsel %vm2193, %v4524, 0
    %4530 = vmatpush.msra.mxu0 0.0
    %4531 = vmatpush.msra.mxu0 0.0
    %4532 = vmatpush.msra.mxu0 0.0
    %4533 = vmatpush.msra.mxu0 0.0
    %4534 = vmatpush.msra.mxu0 0.0
    %4535 = vmatpush.msra.mxu0 0.0
    %4536 = vmatpush.msra.mxu0 0.0
    %4537 = vmatpush.msra.mxu0 0.0
    %4538 = vmatpush.msra.mxu0 0.0
    %4539 = vmatpush.msra.mxu0 0.0
    %4540 = vmatpush.msra.mxu0 0.0
    %4541 = vmatpush.msra.mxu0 0.0
    %4542 = vmatpush.msra.mxu0 0.0
    %4543 = vmatpush.msra.mxu0 0.0
    %4544 = vmatpush.msra.mxu0 0.0
    %4545 = vmatpush.msra.mxu0 %v4528
    %4546 = vmatmul.f32.gmra.mxu0 %v4526
    %v4547 = vpop.f32.mrf.mxu0
    %v4548 = vadd.f32 0.0, %v4547
    %4549 = vdwg.mxu0
    %4551 = vrot.lane.b32.xlu0 %v4388, 8
    %v4552 = vpop.permute.xlu0 %4551
    %4555 = vrot.lane.b32.xlu0 %v4468, 16
    %v4556 = vpop.permute.xlu0 %4555
    %4559 = vrot.lane.b32.xlu0 %v4548, 24
    %v4560 = vpop.permute.xlu0 %4559
    %v4562 = vsel %vm306, %v4308, %v4552
    %v4563 = vsel %vm635, %v4562, %v4556
    %v4564 = vsel %vm92, %v4563, %v4560
    %v4566 = vrot.slane %v4564, 1
    %v4568 = vsel %vm2193, %v4227, %v4566
    %v4570 = vsel %vm134, %v4568, 0
    %v4572 = vsel %vm134, %v4566, 0
    %4574 = vmatpush.msra.mxu0 0.0
    %4575 = vmatpush.msra.mxu0 0.0
    %4576 = vmatpush.msra.mxu0 0.0
    %4577 = vmatpush.msra.mxu0 0.0
    %4578 = vmatpush.msra.mxu0 0.0
    %4579 = vmatpush.msra.mxu0 0.0
    %4580 = vmatpush.msra.mxu0 0.0
    %4581 = vmatpush.msra.mxu0 0.0
    %4582 = vmatpush.msra.mxu0 0.0
    %4583 = vmatpush.msra.mxu0 0.0
    %4584 = vmatpush.msra.mxu0 0.0
    %4585 = vmatpush.msra.mxu0 0.0
    %4586 = vmatpush.msra.mxu0 %v3864
    %4587 = vmatpush.msra.mxu0 %v3863
    %4588 = vmatpush.msra.mxu0 %v3862
    %4589 = vmatpush.msra.mxu0 %v3861
    %4590 = vmatmul.f32.gmra.mxu0 %v4570
    %v4591 = vpop.f32.mrf.mxu0
    %v4592 = vadd.f32 %v3853, %v4591
    %4593 = vmatmul.f32.gmra.mxu0 %v4572
    %v4594 = vpop.f32.mrf.mxu0
    %v4595 = vadd.f32 %v3854, %v4594
    %4596 = vdwg.mxu0
    %v4597 = vsel %vm134, %v4592, 0.0
    %4598 = vadd.xlane.f32.xlu0 %v4597
    %v4599 = vpop.xlane.xlu0 %4598
    %v4600 = vsel %vm197, %v4595, 0.0
    %4601 = vadd.xlane.f32.xlu0 %v4600
    %v4602 = vpop.xlane.xlu0 %4601
    %v4603 = vmul.f32 %v4599, %v147
    %v4604 = vmul.f32 %v4602, %v147
    %v4605 = vsub.f32 %v4592, %v4603
    %v4606 = vsub.f32 %v4595, %v4604
    %v4607 = vmul.f32 %v4605, %v4605
    %v4608 = vmul.f32 %v4606, %v4606
    %v4609 = vsel %vm134, %v4607, 0.0
    %4610 = vadd.xlane.f32.xlu0 %v4609
    %v4611 = vpop.xlane.xlu0 %4610
    %v4612 = vsel %vm197, %v4608, 0.0
    %4613 = vadd.xlane.f32.xlu0 %v4612
    %v4614 = vpop.xlane.xlu0 %4613
    %v4615 = vmul.f32 %v4611, %v147
    %v4616 = vmul.f32 %v4614, %v147
    %v4617 = vadd.f32 %v4615, 1e-06
    %v4618 = vadd.f32 %v4616, 1e-06
    %v4619 = vrsqrt.pop %v4617
    %v4620 = vmul.f32 %v4619, %v4617
    %v4621 = vmul.f32 %v4620, %v4619
    %v4622 = vmul.f32 0.5, %v4621
    %v4623 = vsub.f32 1.5, %v4622
    %v4624 = vmul.f32 %v4619, %v4623
    %vm4625 = vweird.f32 %v4617
    %vm4626 = vweird.f32 %v4619
    %vm4627 = vmor %vm4625, %vm4626
    %v4628 = vsel %vm4627, %v4619, %v4624
    %v4629 = vrsqrt.pop %v4618
    %v4630 = vmul.f32 %v4629, %v4618
    %v4631 = vmul.f32 %v4630, %v4629
    %v4632 = vmul.f32 0.5, %v4631
    %v4633 = vsub.f32 1.5, %v4632
    %v4634 = vmul.f32 %v4629, %v4633
    %vm4635 = vweird.f32 %v4618
    %vm4636 = vweird.f32 %v4629
    %vm4637 = vmor %vm4635, %vm4636
    %v4638 = vsel %vm4637, %v4629, %v4634
    %v4639 = vmul.f32 %v4605, %v4628
    %v4640 = vmul.f32 %v4606, %v4638
    %v4641 = vld [vmem:[%s3 + $0x15] sm:$0x1]
    %v4642 = vperm.slane %v4641, 0
    %v4643 = vmul.f32 %v4639, %v4642
    %v4644 = vmul.f32 %v4640, %v4642
    %v4645 = vld [vmem:[%s3 + $0x16] sm:$0x1]
    %v4646 = vperm.slane %v4645, 0
    %v4647 = vadd.f32 %v4643, %v4646
    %v4648 = vadd.f32 %v4644, %v4646
    %s4649 = scalar_lea.vmem %s5, 160
    %v4650 = vld [vmem:[%s4649] sm:$0xff]
    %v4651 = vld [vmem:[%s4649 + $0x8] sm:$0xff]
    %v4652 = vld [vmem:[%s4649 + $0x10] sm:$0xff]
    %v4653 = vld [vmem:[%s4649 + $0x18] sm:$0xff]
    %s4654 = scalar_lea.vmem %s6, 160
    %v4655 = vld [vmem:[%s4654] sm:$0xff]
    %v4656 = vld [vmem:[%s4654 + $0x8] sm:$0xff]
    %v4657 = vld [vmem:[%s4654 + $0x10] sm:$0xff]
    %v4658 = vld [vmem:[%s4654 + $0x18] sm:$0xff]
    %v4660 = vsel %vm134, %v4647, 0
    %v4663 = vsel %vm134, %v4648, 0
    %4665 = vmatpush.msra.mxu0 0.0
    %4666 = vmatpush.msra.mxu0 0.0
    %4667 = vmatpush.msra.mxu0 0.0
    %4668 = vmatpush.msra.mxu0 0.0
    %4669 = vmatpush.msra.mxu0 0.0
    %4670 = vmatpush.msra.mxu0 0.0
    %4671 = vmatpush.msra.mxu0 0.0
    %4672 = vmatpush.msra.mxu0 0.0
    %4673 = vmatpush.msra.mxu0 0.0
    %4674 = vmatpush.msra.mxu0 0.0
    %4675 = vmatpush.msra.mxu0 0.0
    %4676 = vmatpush.msra.mxu0 0.0
    %4677 = vmatpush.msra.mxu0 %v4653
    %4678 = vmatpush.msra.mxu0 %v4652
    %4679 = vmatpush.msra.mxu0 %v4651
    %4680 = vmatpush.msra.mxu0 %v4650
    %4681 = vmatmul.f32.gmra.mxu0 %v4660
    %v4682 = vpop.f32.mrf.mxu0
    %v4683 = vadd.f32 0.0, %v4682
    %4684 = vmatmul.f32.gmra.mxu0 %v4663
    %v4685 = vpop.f32.mrf.mxu0
    %v4686 = vadd.f32 0.0, %v4685
    %4687 = vdwg.mxu0
    %4692 = vrot.lane.b32.xlu0 %v4650, 96
    %v4693 = vpop.permute.xlu0 %4692
    %4694 = vrot.lane.b32.xlu0 %v4651, 96
    %v4695 = vpop.permute.xlu0 %4694
    %4696 = vrot.lane.b32.xlu0 %v4652, 96
    %v4697 = vpop.permute.xlu0 %4696
    %4698 = vrot.lane.b32.xlu0 %v4653, 96
    %v4699 = vpop.permute.xlu0 %4698
    %4704 = vmatpush.msra.mxu0 0.0
    %4705 = vmatpush.msra.mxu0 0.0
    %4706 = vmatpush.msra.mxu0 0.0
    %4707 = vmatpush.msra.mxu0 0.0
    %4708 = vmatpush.msra.mxu0 0.0
    %4709 = vmatpush.msra.mxu0 0.0
    %4710 = vmatpush.msra.mxu0 0.0
    %4711 = vmatpush.msra.mxu0 0.0
    %4712 = vmatpush.msra.mxu0 0.0
    %4713 = vmatpush.msra.mxu0 0.0
    %4714 = vmatpush.msra.mxu0 0.0
    %4715 = vmatpush.msra.mxu0 0.0
    %4716 = vmatpush.msra.mxu0 %v4699
    %4717 = vmatpush.msra.mxu0 %v4697
    %4718 = vmatpush.msra.mxu0 %v4695
    %4719 = vmatpush.msra.mxu0 %v4693
    %4720 = vmatmul.f32.gmra.mxu0 %v2949
    %v4721 = vpop.f32.mrf.mxu0
    %v4722 = vadd.f32 0.0, %v4721
    %4723 = vmatmul.f32.gmra.mxu0 %v2952
    %v4724 = vpop.f32.mrf.mxu0
    %v4725 = vadd.f32 0.0, %v4724
    %4726 = vdwg.mxu0
    %v4728 = vsel %vm306, %v4683, 0
    %v4731 = vsel %vm306, %v4722, 0
    %4733 = vmatpush.xpose.msra.mxu0 0.0
    %4734 = vmatpush.xpose.msra.mxu0 0.0
    %4735 = vmatpush.xpose.msra.mxu0 0.0
    %4736 = vmatpush.xpose.msra.mxu0 0.0
    %4737 = vmatpush.xpose.msra.mxu0 0.0
    %4738 = vmatpush.xpose.msra.mxu0 0.0
    %4739 = vmatpush.xpose.msra.mxu0 0.0
    %4740 = vmatpush.xpose.msra.mxu0 0.0
    %4741 = vmatpush.xpose.msra.mxu0 0.0
    %4742 = vmatpush.xpose.msra.mxu0 0.0
    %4743 = vmatpush.xpose.msra.mxu0 0.0
    %4744 = vmatpush.xpose.msra.mxu0 0.0
    %4745 = vmatpush.xpose.msra.mxu0 0.0
    %4746 = vmatpush.xpose.msra.mxu0 0.0
    %4747 = vmatpush.xpose.msra.mxu0 0.0
    %4748 = vmatpush.xpose.msra.mxu0 %v4731
    %4749 = vmatmul.f32.gmra.mxu0 %v4728
    %v4750 = vpop.f32.mrf.mxu0
    %v4751 = vadd.f32 0.0, %v4750
    %4752 = vdwg.mxu0
    %v4753 = vsel %vm333, %v4751, -1e+09
    %v4754 = vsel %vm3004, %v4753, -inf
    %4755 = vmax.xlane.f32.xlu0 %v4754
    %v4756 = vpop.xlane.xlu0 %4755
    %v4757 = vsub.f32 %v4753, %v4756
    %v4758 = vmul.f32 %v4757, 1.442695
    %v4759 = vpow.pop %v4758
    %v4760 = vsel %vm3004, %v4759, 0.0
    %4761 = vadd.xlane.f32.xlu0 %v4760
    %v4762 = vpop.xlane.xlu0 %4761
    %v4763 = vrcp.pop %v4762
    %v4764 = vmul.f32 %v4762, %v4763
    %v4765 = vsub.f32 1.0, %v4764
    %v4766 = vmul.f32 %v4763, %v4765
    %v4767 = vadd.f32 %v4763, %v4766
    %vm4768 = vweird.f32 %v4762
    %vm4769 = vweird.f32 %v4763
    %vm4770 = vmor %vm4768, %vm4769
    %v4771 = vsel %vm4770, %v4763, %v4767
    %v4772 = vand.u32 2147483647, %v4762
    %vm4773 = vcmp.eq.f32.partialorder %v4772, 8.507059e+37
    %v4774 = vand.u32 %v4762, 2147483648
    %v4775 = vor.u32 1.1754944e-38, %v4774
    %v4776 = vsel %vm4773, %v4775, %v4771
    %v4777 = vmul.f32 %v4759, %v4776
    %4778 = vrot.lane.b32.xlu0 %v4722, 96
    %v4779 = vpop.permute.xlu0 %4778
    %v4782 = vsel %vm306, %v4777, 0
    %4784 = vmatpush.msra.mxu0 0.0
    %4785 = vmatpush.msra.mxu0 0.0
    %4786 = vmatpush.msra.mxu0 0.0
    %4787 = vmatpush.msra.mxu0 0.0
    %4788 = vmatpush.msra.mxu0 0.0
    %4789 = vmatpush.msra.mxu0 0.0
    %4790 = vmatpush.msra.mxu0 0.0
    %4791 = vmatpush.msra.mxu0 0.0
    %4792 = vmatpush.msra.mxu0 0.0
    %4793 = vmatpush.msra.mxu0 0.0
    %4794 = vmatpush.msra.mxu0 0.0
    %4795 = vmatpush.msra.mxu0 0.0
    %4796 = vmatpush.msra.mxu0 0.0
    %4797 = vmatpush.msra.mxu0 0.0
    %4798 = vmatpush.msra.mxu0 0.0
    %4799 = vmatpush.msra.mxu0 %v4779
    %4800 = vmatmul.f32.gmra.mxu0 %v4782
    %v4801 = vpop.f32.mrf.mxu0
    %v4802 = vadd.f32 0.0, %v4801
    %4803 = vdwg.mxu0
    %4804 = vrot.lane.b32.xlu0 %v4683, 120
    %v4805 = vpop.permute.xlu0 %4804
    %4806 = vrot.lane.b32.xlu0 %v4722, 120
    %v4807 = vpop.permute.xlu0 %4806
    %v4808 = vsel %vm306, %v4805, 0
    %v4810 = vsel %vm306, %v4807, 0
    %4812 = vmatpush.xpose.msra.mxu0 0.0
    %4813 = vmatpush.xpose.msra.mxu0 0.0
    %4814 = vmatpush.xpose.msra.mxu0 0.0
    %4815 = vmatpush.xpose.msra.mxu0 0.0
    %4816 = vmatpush.xpose.msra.mxu0 0.0
    %4817 = vmatpush.xpose.msra.mxu0 0.0
    %4818 = vmatpush.xpose.msra.mxu0 0.0
    %4819 = vmatpush.xpose.msra.mxu0 0.0
    %4820 = vmatpush.xpose.msra.mxu0 0.0
    %4821 = vmatpush.xpose.msra.mxu0 0.0
    %4822 = vmatpush.xpose.msra.mxu0 0.0
    %4823 = vmatpush.xpose.msra.mxu0 0.0
    %4824 = vmatpush.xpose.msra.mxu0 0.0
    %4825 = vmatpush.xpose.msra.mxu0 0.0
    %4826 = vmatpush.xpose.msra.mxu0 0.0
    %4827 = vmatpush.xpose.msra.mxu0 %v4810
    %4828 = vmatmul.f32.gmra.mxu0 %v4808
    %v4829 = vpop.f32.mrf.mxu0
    %v4830 = vadd.f32 0.0, %v4829
    %4831 = vdwg.mxu0
    %v4832 = vsel %vm333, %v4830, -1e+09
    %v4833 = vsel %vm3004, %v4832, -inf
    %4834 = vmax.xlane.f32.xlu0 %v4833
    %v4835 = vpop.xlane.xlu0 %4834
    %v4836 = vsub.f32 %v4832, %v4835
    %v4837 = vmul.f32 %v4836, 1.442695
    %v4838 = vpow.pop %v4837
    %v4839 = vsel %vm3004, %v4838, 0.0
    %4840 = vadd.xlane.f32.xlu0 %v4839
    %v4841 = vpop.xlane.xlu0 %4840
    %v4842 = vrcp.pop %v4841
    %v4843 = vmul.f32 %v4841, %v4842
    %v4844 = vsub.f32 1.0, %v4843
    %v4845 = vmul.f32 %v4842, %v4844
    %v4846 = vadd.f32 %v4842, %v4845
    %vm4847 = vweird.f32 %v4841
    %vm4848 = vweird.f32 %v4842
    %vm4849 = vmor %vm4847, %vm4848
    %v4850 = vsel %vm4849, %v4842, %v4846
    %v4851 = vand.u32 2147483647, %v4841
    %vm4852 = vcmp.eq.f32.partialorder %v4851, 8.507059e+37
    %v4853 = vand.u32 %v4841, 2147483648
    %v4854 = vor.u32 1.1754944e-38, %v4853
    %v4855 = vsel %vm4852, %v4854, %v4850
    %v4856 = vmul.f32 %v4838, %v4855
    %4857 = vrot.lane.b32.xlu0 %v4722, 88
    %v4858 = vpop.permute.xlu0 %4857
    %v4861 = vsel %vm306, %v4856, 0
    %4863 = vmatpush.msra.mxu0 0.0
    %4864 = vmatpush.msra.mxu0 0.0
    %4865 = vmatpush.msra.mxu0 0.0
    %4866 = vmatpush.msra.mxu0 0.0
    %4867 = vmatpush.msra.mxu0 0.0
    %4868 = vmatpush.msra.mxu0 0.0
    %4869 = vmatpush.msra.mxu0 0.0
    %4870 = vmatpush.msra.mxu0 0.0
    %4871 = vmatpush.msra.mxu0 0.0
    %4872 = vmatpush.msra.mxu0 0.0
    %4873 = vmatpush.msra.mxu0 0.0
    %4874 = vmatpush.msra.mxu0 0.0
    %4875 = vmatpush.msra.mxu0 0.0
    %4876 = vmatpush.msra.mxu0 0.0
    %4877 = vmatpush.msra.mxu0 0.0
    %4878 = vmatpush.msra.mxu0 %v4858
    %4879 = vmatmul.f32.gmra.mxu0 %v4861
    %v4880 = vpop.f32.mrf.mxu0
    %v4881 = vadd.f32 0.0, %v4880
    %4882 = vdwg.mxu0
    %4883 = vrot.lane.b32.xlu0 %v4683, 112
    %v4884 = vpop.permute.xlu0 %4883
    %4885 = vrot.lane.b32.xlu0 %v4722, 112
    %v4886 = vpop.permute.xlu0 %4885
    %v4887 = vsel %vm306, %v4884, 0
    %v4889 = vsel %vm306, %v4886, 0
    %4891 = vmatpush.xpose.msra.mxu0 0.0
    %4892 = vmatpush.xpose.msra.mxu0 0.0
    %4893 = vmatpush.xpose.msra.mxu0 0.0
    %4894 = vmatpush.xpose.msra.mxu0 0.0
    %4895 = vmatpush.xpose.msra.mxu0 0.0
    %4896 = vmatpush.xpose.msra.mxu0 0.0
    %4897 = vmatpush.xpose.msra.mxu0 0.0
    %4898 = vmatpush.xpose.msra.mxu0 0.0
    %4899 = vmatpush.xpose.msra.mxu0 0.0
    %4900 = vmatpush.xpose.msra.mxu0 0.0
    %4901 = vmatpush.xpose.msra.mxu0 0.0
    %4902 = vmatpush.xpose.msra.mxu0 0.0
    %4903 = vmatpush.xpose.msra.mxu0 0.0
    %4904 = vmatpush.xpose.msra.mxu0 0.0
    %4905 = vmatpush.xpose.msra.mxu0 0.0
    %4906 = vmatpush.xpose.msra.mxu0 %v4889
    %4907 = vmatmul.f32.gmra.mxu0 %v4887
    %v4908 = vpop.f32.mrf.mxu0
    %v4909 = vadd.f32 0.0, %v4908
    %4910 = vdwg.mxu0
    %v4911 = vsel %vm333, %v4909, -1e+09
    %v4912 = vsel %vm3004, %v4911, -inf
    %4913 = vmax.xlane.f32.xlu0 %v4912
    %v4914 = vpop.xlane.xlu0 %4913
    %v4915 = vsub.f32 %v4911, %v4914
    %v4916 = vmul.f32 %v4915, 1.442695
    %v4917 = vpow.pop %v4916
    %v4918 = vsel %vm3004, %v4917, 0.0
    %4919 = vadd.xlane.f32.xlu0 %v4918
    %v4920 = vpop.xlane.xlu0 %4919
    %v4921 = vrcp.pop %v4920
    %v4922 = vmul.f32 %v4920, %v4921
    %v4923 = vsub.f32 1.0, %v4922
    %v4924 = vmul.f32 %v4921, %v4923
    %v4925 = vadd.f32 %v4921, %v4924
    %vm4926 = vweird.f32 %v4920
    %vm4927 = vweird.f32 %v4921
    %vm4928 = vmor %vm4926, %vm4927
    %v4929 = vsel %vm4928, %v4921, %v4925
    %v4930 = vand.u32 2147483647, %v4920
    %vm4931 = vcmp.eq.f32.partialorder %v4930, 8.507059e+37
    %v4932 = vand.u32 %v4920, 2147483648
    %v4933 = vor.u32 1.1754944e-38, %v4932
    %v4934 = vsel %vm4931, %v4933, %v4929
    %v4935 = vmul.f32 %v4917, %v4934
    %4936 = vrot.lane.b32.xlu0 %v4722, 80
    %v4937 = vpop.permute.xlu0 %4936
    %v4940 = vsel %vm306, %v4935, 0
    %4942 = vmatpush.msra.mxu0 0.0
    %4943 = vmatpush.msra.mxu0 0.0
    %4944 = vmatpush.msra.mxu0 0.0
    %4945 = vmatpush.msra.mxu0 0.0
    %4946 = vmatpush.msra.mxu0 0.0
    %4947 = vmatpush.msra.mxu0 0.0
    %4948 = vmatpush.msra.mxu0 0.0
    %4949 = vmatpush.msra.mxu0 0.0
    %4950 = vmatpush.msra.mxu0 0.0
    %4951 = vmatpush.msra.mxu0 0.0
    %4952 = vmatpush.msra.mxu0 0.0
    %4953 = vmatpush.msra.mxu0 0.0
    %4954 = vmatpush.msra.mxu0 0.0
    %4955 = vmatpush.msra.mxu0 0.0
    %4956 = vmatpush.msra.mxu0 0.0
    %4957 = vmatpush.msra.mxu0 %v4937
    %4958 = vmatmul.f32.gmra.mxu0 %v4940
    %v4959 = vpop.f32.mrf.mxu0
    %v4960 = vadd.f32 0.0, %v4959
    %4961 = vdwg.mxu0
    %4962 = vrot.lane.b32.xlu0 %v4683, 104
    %v4963 = vpop.permute.xlu0 %4962
    %4964 = vrot.lane.b32.xlu0 %v4722, 104
    %v4965 = vpop.permute.xlu0 %4964
    %v4966 = vsel %vm306, %v4963, 0
    %v4968 = vsel %vm306, %v4965, 0
    %4970 = vmatpush.xpose.msra.mxu0 0.0
    %4971 = vmatpush.xpose.msra.mxu0 0.0
    %4972 = vmatpush.xpose.msra.mxu0 0.0
    %4973 = vmatpush.xpose.msra.mxu0 0.0
    %4974 = vmatpush.xpose.msra.mxu0 0.0
    %4975 = vmatpush.xpose.msra.mxu0 0.0
    %4976 = vmatpush.xpose.msra.mxu0 0.0
    %4977 = vmatpush.xpose.msra.mxu0 0.0
    %4978 = vmatpush.xpose.msra.mxu0 0.0
    %4979 = vmatpush.xpose.msra.mxu0 0.0
    %4980 = vmatpush.xpose.msra.mxu0 0.0
    %4981 = vmatpush.xpose.msra.mxu0 0.0
    %4982 = vmatpush.xpose.msra.mxu0 0.0
    %4983 = vmatpush.xpose.msra.mxu0 0.0
    %4984 = vmatpush.xpose.msra.mxu0 0.0
    %4985 = vmatpush.xpose.msra.mxu0 %v4968
    %4986 = vmatmul.f32.gmra.mxu0 %v4966
    %v4987 = vpop.f32.mrf.mxu0
    %v4988 = vadd.f32 0.0, %v4987
    %4989 = vdwg.mxu0
    %v4990 = vsel %vm333, %v4988, -1e+09
    %v4991 = vsel %vm3004, %v4990, -inf
    %4992 = vmax.xlane.f32.xlu0 %v4991
    %v4993 = vpop.xlane.xlu0 %4992
    %v4994 = vsub.f32 %v4990, %v4993
    %v4995 = vmul.f32 %v4994, 1.442695
    %v4996 = vpow.pop %v4995
    %v4997 = vsel %vm3004, %v4996, 0.0
    %4998 = vadd.xlane.f32.xlu0 %v4997
    %v4999 = vpop.xlane.xlu0 %4998
    %v5000 = vrcp.pop %v4999
    %v5001 = vmul.f32 %v4999, %v5000
    %v5002 = vsub.f32 1.0, %v5001
    %v5003 = vmul.f32 %v5000, %v5002
    %v5004 = vadd.f32 %v5000, %v5003
    %vm5005 = vweird.f32 %v4999
    %vm5006 = vweird.f32 %v5000
    %vm5007 = vmor %vm5005, %vm5006
    %v5008 = vsel %vm5007, %v5000, %v5004
    %v5009 = vand.u32 2147483647, %v4999
    %vm5010 = vcmp.eq.f32.partialorder %v5009, 8.507059e+37
    %v5011 = vand.u32 %v4999, 2147483648
    %v5012 = vor.u32 1.1754944e-38, %v5011
    %v5013 = vsel %vm5010, %v5012, %v5008
    %v5014 = vmul.f32 %v4996, %v5013
    %5015 = vrot.lane.b32.xlu0 %v4722, 72
    %v5016 = vpop.permute.xlu0 %5015
    %v5019 = vsel %vm306, %v5014, 0
    %5021 = vmatpush.msra.mxu0 0.0
    %5022 = vmatpush.msra.mxu0 0.0
    %5023 = vmatpush.msra.mxu0 0.0
    %5024 = vmatpush.msra.mxu0 0.0
    %5025 = vmatpush.msra.mxu0 0.0
    %5026 = vmatpush.msra.mxu0 0.0
    %5027 = vmatpush.msra.mxu0 0.0
    %5028 = vmatpush.msra.mxu0 0.0
    %5029 = vmatpush.msra.mxu0 0.0
    %5030 = vmatpush.msra.mxu0 0.0
    %5031 = vmatpush.msra.mxu0 0.0
    %5032 = vmatpush.msra.mxu0 0.0
    %5033 = vmatpush.msra.mxu0 0.0
    %5034 = vmatpush.msra.mxu0 0.0
    %5035 = vmatpush.msra.mxu0 0.0
    %5036 = vmatpush.msra.mxu0 %v5016
    %5037 = vmatmul.f32.gmra.mxu0 %v5019
    %v5038 = vpop.f32.mrf.mxu0
    %v5039 = vadd.f32 0.0, %v5038
    %5040 = vdwg.mxu0
    %5042 = vrot.lane.b32.xlu0 %v4881, 8
    %v5043 = vpop.permute.xlu0 %5042
    %5046 = vrot.lane.b32.xlu0 %v4960, 16
    %v5047 = vpop.permute.xlu0 %5046
    %5050 = vrot.lane.b32.xlu0 %v5039, 24
    %v5051 = vpop.permute.xlu0 %5050
    %v5053 = vsel %vm306, %v4802, %v5043
    %v5054 = vsel %vm635, %v5053, %v5047
    %v5055 = vsel %vm92, %v5054, %v5051
    %v5057 = vrot.slane %v4683, 7
    %v5058 = vrot.slane %v4686, 7
    %v5059 = vsel %vm2472, %v5057, %v5058
    %v5060 = vsel %vm306, %v5059, 0
    %v5063 = vsel %vm306, %v4725, 0
    %5065 = vmatpush.xpose.msra.mxu0 0.0
    %5066 = vmatpush.xpose.msra.mxu0 0.0
    %5067 = vmatpush.xpose.msra.mxu0 0.0
    %5068 = vmatpush.xpose.msra.mxu0 0.0
    %5069 = vmatpush.xpose.msra.mxu0 0.0
    %5070 = vmatpush.xpose.msra.mxu0 0.0
    %5071 = vmatpush.xpose.msra.mxu0 0.0
    %5072 = vmatpush.xpose.msra.mxu0 0.0
    %5073 = vmatpush.xpose.msra.mxu0 0.0
    %5074 = vmatpush.xpose.msra.mxu0 0.0
    %5075 = vmatpush.xpose.msra.mxu0 0.0
    %5076 = vmatpush.xpose.msra.mxu0 0.0
    %5077 = vmatpush.xpose.msra.mxu0 0.0
    %5078 = vmatpush.xpose.msra.mxu0 0.0
    %5079 = vmatpush.xpose.msra.mxu0 0.0
    %5080 = vmatpush.xpose.msra.mxu0 %v5063
    %5081 = vmatmul.f32.gmra.mxu0 %v5060
    %v5082 = vpop.f32.mrf.mxu0
    %v5083 = vadd.f32 0.0, %v5082
    %5084 = vdwg.mxu0
    %v5085 = vsel %vm667, %v5083, -1e+09
    %v5086 = vsel %vm3004, %v5085, -inf
    %5087 = vmax.xlane.f32.xlu0 %v5086
    %v5088 = vpop.xlane.xlu0 %5087
    %v5089 = vsub.f32 %v5085, %v5088
    %v5090 = vmul.f32 %v5089, 1.442695
    %v5091 = vpow.pop %v5090
    %v5092 = vsel %vm3004, %v5091, 0.0
    %5093 = vadd.xlane.f32.xlu0 %v5092
    %v5094 = vpop.xlane.xlu0 %5093
    %v5095 = vrcp.pop %v5094
    %v5096 = vmul.f32 %v5094, %v5095
    %v5097 = vsub.f32 1.0, %v5096
    %v5098 = vmul.f32 %v5095, %v5097
    %v5099 = vadd.f32 %v5095, %v5098
    %vm5100 = vweird.f32 %v5094
    %vm5101 = vweird.f32 %v5095
    %vm5102 = vmor %vm5100, %vm5101
    %v5103 = vsel %vm5102, %v5095, %v5099
    %v5104 = vand.u32 2147483647, %v5094
    %vm5105 = vcmp.eq.f32.partialorder %v5104, 8.507059e+37
    %v5106 = vand.u32 %v5094, 2147483648
    %v5107 = vor.u32 1.1754944e-38, %v5106
    %v5108 = vsel %vm5105, %v5107, %v5103
    %v5109 = vmul.f32 %v5091, %v5108
    %5110 = vrot.lane.b32.xlu0 %v4725, 96
    %v5111 = vpop.permute.xlu0 %5110
    %v5114 = vsel %vm306, %v5109, 0
    %5116 = vmatpush.msra.mxu0 0.0
    %5117 = vmatpush.msra.mxu0 0.0
    %5118 = vmatpush.msra.mxu0 0.0
    %5119 = vmatpush.msra.mxu0 0.0
    %5120 = vmatpush.msra.mxu0 0.0
    %5121 = vmatpush.msra.mxu0 0.0
    %5122 = vmatpush.msra.mxu0 0.0
    %5123 = vmatpush.msra.mxu0 0.0
    %5124 = vmatpush.msra.mxu0 0.0
    %5125 = vmatpush.msra.mxu0 0.0
    %5126 = vmatpush.msra.mxu0 0.0
    %5127 = vmatpush.msra.mxu0 0.0
    %5128 = vmatpush.msra.mxu0 0.0
    %5129 = vmatpush.msra.mxu0 0.0
    %5130 = vmatpush.msra.mxu0 0.0
    %5131 = vmatpush.msra.mxu0 %v5111
    %5132 = vmatmul.f32.gmra.mxu0 %v5114
    %v5133 = vpop.f32.mrf.mxu0
    %v5134 = vadd.f32 0.0, %v5133
    %5135 = vdwg.mxu0
    %5136 = vrot.lane.b32.xlu0 %v5059, 120
    %v5137 = vpop.permute.xlu0 %5136
    %5138 = vrot.lane.b32.xlu0 %v4725, 120
    %v5139 = vpop.permute.xlu0 %5138
    %v5140 = vsel %vm306, %v5137, 0
    %v5142 = vsel %vm306, %v5139, 0
    %5144 = vmatpush.xpose.msra.mxu0 0.0
    %5145 = vmatpush.xpose.msra.mxu0 0.0
    %5146 = vmatpush.xpose.msra.mxu0 0.0
    %5147 = vmatpush.xpose.msra.mxu0 0.0
    %5148 = vmatpush.xpose.msra.mxu0 0.0
    %5149 = vmatpush.xpose.msra.mxu0 0.0
    %5150 = vmatpush.xpose.msra.mxu0 0.0
    %5151 = vmatpush.xpose.msra.mxu0 0.0
    %5152 = vmatpush.xpose.msra.mxu0 0.0
    %5153 = vmatpush.xpose.msra.mxu0 0.0
    %5154 = vmatpush.xpose.msra.mxu0 0.0
    %5155 = vmatpush.xpose.msra.mxu0 0.0
    %5156 = vmatpush.xpose.msra.mxu0 0.0
    %5157 = vmatpush.xpose.msra.mxu0 0.0
    %5158 = vmatpush.xpose.msra.mxu0 0.0
    %5159 = vmatpush.xpose.msra.mxu0 %v5142
    %5160 = vmatmul.f32.gmra.mxu0 %v5140
    %v5161 = vpop.f32.mrf.mxu0
    %v5162 = vadd.f32 0.0, %v5161
    %5163 = vdwg.mxu0
    %v5164 = vsel %vm667, %v5162, -1e+09
    %v5165 = vsel %vm3004, %v5164, -inf
    %5166 = vmax.xlane.f32.xlu0 %v5165
    %v5167 = vpop.xlane.xlu0 %5166
    %v5168 = vsub.f32 %v5164, %v5167
    %v5169 = vmul.f32 %v5168, 1.442695
    %v5170 = vpow.pop %v5169
    %v5171 = vsel %vm3004, %v5170, 0.0
    %5172 = vadd.xlane.f32.xlu0 %v5171
    %v5173 = vpop.xlane.xlu0 %5172
    %v5174 = vrcp.pop %v5173
    %v5175 = vmul.f32 %v5173, %v5174
    %v5176 = vsub.f32 1.0, %v5175
    %v5177 = vmul.f32 %v5174, %v5176
    %v5178 = vadd.f32 %v5174, %v5177
    %vm5179 = vweird.f32 %v5173
    %vm5180 = vweird.f32 %v5174
    %vm5181 = vmor %vm5179, %vm5180
    %v5182 = vsel %vm5181, %v5174, %v5178
    %v5183 = vand.u32 2147483647, %v5173
    %vm5184 = vcmp.eq.f32.partialorder %v5183, 8.507059e+37
    %v5185 = vand.u32 %v5173, 2147483648
    %v5186 = vor.u32 1.1754944e-38, %v5185
    %v5187 = vsel %vm5184, %v5186, %v5182
    %v5188 = vmul.f32 %v5170, %v5187
    %5189 = vrot.lane.b32.xlu0 %v4725, 88
    %v5190 = vpop.permute.xlu0 %5189
    %v5193 = vsel %vm306, %v5188, 0
    %5195 = vmatpush.msra.mxu0 0.0
    %5196 = vmatpush.msra.mxu0 0.0
    %5197 = vmatpush.msra.mxu0 0.0
    %5198 = vmatpush.msra.mxu0 0.0
    %5199 = vmatpush.msra.mxu0 0.0
    %5200 = vmatpush.msra.mxu0 0.0
    %5201 = vmatpush.msra.mxu0 0.0
    %5202 = vmatpush.msra.mxu0 0.0
    %5203 = vmatpush.msra.mxu0 0.0
    %5204 = vmatpush.msra.mxu0 0.0
    %5205 = vmatpush.msra.mxu0 0.0
    %5206 = vmatpush.msra.mxu0 0.0
    %5207 = vmatpush.msra.mxu0 0.0
    %5208 = vmatpush.msra.mxu0 0.0
    %5209 = vmatpush.msra.mxu0 0.0
    %5210 = vmatpush.msra.mxu0 %v5190
    %5211 = vmatmul.f32.gmra.mxu0 %v5193
    %v5212 = vpop.f32.mrf.mxu0
    %v5213 = vadd.f32 0.0, %v5212
    %5214 = vdwg.mxu0
    %5215 = vrot.lane.b32.xlu0 %v5059, 112
    %v5216 = vpop.permute.xlu0 %5215
    %5217 = vrot.lane.b32.xlu0 %v4725, 112
    %v5218 = vpop.permute.xlu0 %5217
    %v5219 = vsel %vm306, %v5216, 0
    %v5221 = vsel %vm306, %v5218, 0
    %5223 = vmatpush.xpose.msra.mxu0 0.0
    %5224 = vmatpush.xpose.msra.mxu0 0.0
    %5225 = vmatpush.xpose.msra.mxu0 0.0
    %5226 = vmatpush.xpose.msra.mxu0 0.0
    %5227 = vmatpush.xpose.msra.mxu0 0.0
    %5228 = vmatpush.xpose.msra.mxu0 0.0
    %5229 = vmatpush.xpose.msra.mxu0 0.0
    %5230 = vmatpush.xpose.msra.mxu0 0.0
    %5231 = vmatpush.xpose.msra.mxu0 0.0
    %5232 = vmatpush.xpose.msra.mxu0 0.0
    %5233 = vmatpush.xpose.msra.mxu0 0.0
    %5234 = vmatpush.xpose.msra.mxu0 0.0
    %5235 = vmatpush.xpose.msra.mxu0 0.0
    %5236 = vmatpush.xpose.msra.mxu0 0.0
    %5237 = vmatpush.xpose.msra.mxu0 0.0
    %5238 = vmatpush.xpose.msra.mxu0 %v5221
    %5239 = vmatmul.f32.gmra.mxu0 %v5219
    %v5240 = vpop.f32.mrf.mxu0
    %v5241 = vadd.f32 0.0, %v5240
    %5242 = vdwg.mxu0
    %v5243 = vsel %vm667, %v5241, -1e+09
    %v5244 = vsel %vm3004, %v5243, -inf
    %5245 = vmax.xlane.f32.xlu0 %v5244
    %v5246 = vpop.xlane.xlu0 %5245
    %v5247 = vsub.f32 %v5243, %v5246
    %v5248 = vmul.f32 %v5247, 1.442695
    %v5249 = vpow.pop %v5248
    %v5250 = vsel %vm3004, %v5249, 0.0
    %5251 = vadd.xlane.f32.xlu0 %v5250
    %v5252 = vpop.xlane.xlu0 %5251
    %v5253 = vrcp.pop %v5252
    %v5254 = vmul.f32 %v5252, %v5253
    %v5255 = vsub.f32 1.0, %v5254
    %v5256 = vmul.f32 %v5253, %v5255
    %v5257 = vadd.f32 %v5253, %v5256
    %vm5258 = vweird.f32 %v5252
    %vm5259 = vweird.f32 %v5253
    %vm5260 = vmor %vm5258, %vm5259
    %v5261 = vsel %vm5260, %v5253, %v5257
    %v5262 = vand.u32 2147483647, %v5252
    %vm5263 = vcmp.eq.f32.partialorder %v5262, 8.507059e+37
    %v5264 = vand.u32 %v5252, 2147483648
    %v5265 = vor.u32 1.1754944e-38, %v5264
    %v5266 = vsel %vm5263, %v5265, %v5261
    %v5267 = vmul.f32 %v5249, %v5266
    %5268 = vrot.lane.b32.xlu0 %v4725, 80
    %v5269 = vpop.permute.xlu0 %5268
    %v5272 = vsel %vm306, %v5267, 0
    %5274 = vmatpush.msra.mxu0 0.0
    %5275 = vmatpush.msra.mxu0 0.0
    %5276 = vmatpush.msra.mxu0 0.0
    %5277 = vmatpush.msra.mxu0 0.0
    %5278 = vmatpush.msra.mxu0 0.0
    %5279 = vmatpush.msra.mxu0 0.0
    %5280 = vmatpush.msra.mxu0 0.0
    %5281 = vmatpush.msra.mxu0 0.0
    %5282 = vmatpush.msra.mxu0 0.0
    %5283 = vmatpush.msra.mxu0 0.0
    %5284 = vmatpush.msra.mxu0 0.0
    %5285 = vmatpush.msra.mxu0 0.0
    %5286 = vmatpush.msra.mxu0 0.0
    %5287 = vmatpush.msra.mxu0 0.0
    %5288 = vmatpush.msra.mxu0 0.0
    %5289 = vmatpush.msra.mxu0 %v5269
    %5290 = vmatmul.f32.gmra.mxu0 %v5272
    %v5291 = vpop.f32.mrf.mxu0
    %v5292 = vadd.f32 0.0, %v5291
    %5293 = vdwg.mxu0
    %5294 = vrot.lane.b32.xlu0 %v5059, 104
    %v5295 = vpop.permute.xlu0 %5294
    %5296 = vrot.lane.b32.xlu0 %v4725, 104
    %v5297 = vpop.permute.xlu0 %5296
    %v5298 = vsel %vm306, %v5295, 0
    %v5300 = vsel %vm306, %v5297, 0
    %5302 = vmatpush.xpose.msra.mxu0 0.0
    %5303 = vmatpush.xpose.msra.mxu0 0.0
    %5304 = vmatpush.xpose.msra.mxu0 0.0
    %5305 = vmatpush.xpose.msra.mxu0 0.0
    %5306 = vmatpush.xpose.msra.mxu0 0.0
    %5307 = vmatpush.xpose.msra.mxu0 0.0
    %5308 = vmatpush.xpose.msra.mxu0 0.0
    %5309 = vmatpush.xpose.msra.mxu0 0.0
    %5310 = vmatpush.xpose.msra.mxu0 0.0
    %5311 = vmatpush.xpose.msra.mxu0 0.0
    %5312 = vmatpush.xpose.msra.mxu0 0.0
    %5313 = vmatpush.xpose.msra.mxu0 0.0
    %5314 = vmatpush.xpose.msra.mxu0 0.0
    %5315 = vmatpush.xpose.msra.mxu0 0.0
    %5316 = vmatpush.xpose.msra.mxu0 0.0
    %5317 = vmatpush.xpose.msra.mxu0 %v5300
    %5318 = vmatmul.f32.gmra.mxu0 %v5298
    %v5319 = vpop.f32.mrf.mxu0
    %v5320 = vadd.f32 0.0, %v5319
    %5321 = vdwg.mxu0
    %v5322 = vsel %vm667, %v5320, -1e+09
    %v5323 = vsel %vm3004, %v5322, -inf
    %5324 = vmax.xlane.f32.xlu0 %v5323
    %v5325 = vpop.xlane.xlu0 %5324
    %v5326 = vsub.f32 %v5322, %v5325
    %v5327 = vmul.f32 %v5326, 1.442695
    %v5328 = vpow.pop %v5327
    %v5329 = vsel %vm3004, %v5328, 0.0
    %5330 = vadd.xlane.f32.xlu0 %v5329
    %v5331 = vpop.xlane.xlu0 %5330
    %v5332 = vrcp.pop %v5331
    %v5333 = vmul.f32 %v5331, %v5332
    %v5334 = vsub.f32 1.0, %v5333
    %v5335 = vmul.f32 %v5332, %v5334
    %v5336 = vadd.f32 %v5332, %v5335
    %vm5337 = vweird.f32 %v5331
    %vm5338 = vweird.f32 %v5332
    %vm5339 = vmor %vm5337, %vm5338
    %v5340 = vsel %vm5339, %v5332, %v5336
    %v5341 = vand.u32 2147483647, %v5331
    %vm5342 = vcmp.eq.f32.partialorder %v5341, 8.507059e+37
    %v5343 = vand.u32 %v5331, 2147483648
    %v5344 = vor.u32 1.1754944e-38, %v5343
    %v5345 = vsel %vm5342, %v5344, %v5340
    %v5346 = vmul.f32 %v5328, %v5345
    %5347 = vrot.lane.b32.xlu0 %v4725, 72
    %v5348 = vpop.permute.xlu0 %5347
    %v5351 = vsel %vm306, %v5346, 0
    %5353 = vmatpush.msra.mxu0 0.0
    %5354 = vmatpush.msra.mxu0 0.0
    %5355 = vmatpush.msra.mxu0 0.0
    %5356 = vmatpush.msra.mxu0 0.0
    %5357 = vmatpush.msra.mxu0 0.0
    %5358 = vmatpush.msra.mxu0 0.0
    %5359 = vmatpush.msra.mxu0 0.0
    %5360 = vmatpush.msra.mxu0 0.0
    %5361 = vmatpush.msra.mxu0 0.0
    %5362 = vmatpush.msra.mxu0 0.0
    %5363 = vmatpush.msra.mxu0 0.0
    %5364 = vmatpush.msra.mxu0 0.0
    %5365 = vmatpush.msra.mxu0 0.0
    %5366 = vmatpush.msra.mxu0 0.0
    %5367 = vmatpush.msra.mxu0 0.0
    %5368 = vmatpush.msra.mxu0 %v5348
    %5369 = vmatmul.f32.gmra.mxu0 %v5351
    %v5370 = vpop.f32.mrf.mxu0
    %v5371 = vadd.f32 0.0, %v5370
    %5372 = vdwg.mxu0
    %5374 = vrot.lane.b32.xlu0 %v5213, 8
    %v5375 = vpop.permute.xlu0 %5374
    %5378 = vrot.lane.b32.xlu0 %v5292, 16
    %v5379 = vpop.permute.xlu0 %5378
    %5382 = vrot.lane.b32.xlu0 %v5371, 24
    %v5383 = vpop.permute.xlu0 %5382
    %v5385 = vsel %vm306, %v5134, %v5375
    %v5386 = vsel %vm635, %v5385, %v5379
    %v5387 = vsel %vm92, %v5386, %v5383
    %v5389 = vrot.slane %v5387, 1
    %v5391 = vsel %vm2193, %v5055, %v5389
    %v5393 = vsel %vm134, %v5391, 0
    %v5395 = vsel %vm134, %v5389, 0
    %5397 = vmatpush.msra.mxu0 0.0
    %5398 = vmatpush.msra.mxu0 0.0
    %5399 = vmatpush.msra.mxu0 0.0
    %5400 = vmatpush.msra.mxu0 0.0
    %5401 = vmatpush.msra.mxu0 0.0
    %5402 = vmatpush.msra.mxu0 0.0
    %5403 = vmatpush.msra.mxu0 0.0
    %5404 = vmatpush.msra.mxu0 0.0
    %5405 = vmatpush.msra.mxu0 0.0
    %5406 = vmatpush.msra.mxu0 0.0
    %5407 = vmatpush.msra.mxu0 0.0
    %5408 = vmatpush.msra.mxu0 0.0
    %5409 = vmatpush.msra.mxu0 %v4658
    %5410 = vmatpush.msra.mxu0 %v4657
    %5411 = vmatpush.msra.mxu0 %v4656
    %5412 = vmatpush.msra.mxu0 %v4655
    %5413 = vmatmul.f32.gmra.mxu0 %v5393
    %v5414 = vpop.f32.mrf.mxu0
    %v5415 = vadd.f32 %v4647, %v5414
    %5416 = vmatmul.f32.gmra.mxu0 %v5395
    %v5417 = vpop.f32.mrf.mxu0
    %v5418 = vadd.f32 %v4648, %v5417
    %5419 = vdwg.mxu0
    %v5420 = vsel %vm134, %v5415, 0.0
    %5421 = vadd.xlane.f32.xlu0 %v5420
    %v5422 = vpop.xlane.xlu0 %5421
    %v5423 = vsel %vm197, %v5418, 0.0
    %5424 = vadd.xlane.f32.xlu0 %v5423
    %v5425 = vpop.xlane.xlu0 %5424
    %v5426 = vmul.f32 %v5422, %v147
    %v5427 = vmul.f32 %v5425, %v147
    %v5428 = vsub.f32 %v5415, %v5426
    %v5429 = vsub.f32 %v5418, %v5427
    %v5430 = vmul.f32 %v5428, %v5428
    %v5431 = vmul.f32 %v5429, %v5429
    %v5432 = vsel %vm134, %v5430, 0.0
    %5433 = vadd.xlane.f32.xlu0 %v5432
    %v5434 = vpop.xlane.xlu0 %5433
    %v5435 = vsel %vm197, %v5431, 0.0
    %5436 = vadd.xlane.f32.xlu0 %v5435
    %v5437 = vpop.xlane.xlu0 %5436
    %v5438 = vmul.f32 %v5434, %v147
    %v5439 = vmul.f32 %v5437, %v147
    %v5440 = vadd.f32 %v5438, 1e-06
    %v5441 = vadd.f32 %v5439, 1e-06
    %v5442 = vrsqrt.pop %v5440
    %v5443 = vmul.f32 %v5442, %v5440
    %v5444 = vmul.f32 %v5443, %v5442
    %v5445 = vmul.f32 0.5, %v5444
    %v5446 = vsub.f32 1.5, %v5445
    %v5447 = vmul.f32 %v5442, %v5446
    %vm5448 = vweird.f32 %v5440
    %vm5449 = vweird.f32 %v5442
    %vm5450 = vmor %vm5448, %vm5449
    %v5451 = vsel %vm5450, %v5442, %v5447
    %v5452 = vrsqrt.pop %v5441
    %v5453 = vmul.f32 %v5452, %v5441
    %v5454 = vmul.f32 %v5453, %v5452
    %v5455 = vmul.f32 0.5, %v5454
    %v5456 = vsub.f32 1.5, %v5455
    %v5457 = vmul.f32 %v5452, %v5456
    %vm5458 = vweird.f32 %v5441
    %vm5459 = vweird.f32 %v5452
    %vm5460 = vmor %vm5458, %vm5459
    %v5461 = vsel %vm5460, %v5452, %v5457
    %v5462 = vmul.f32 %v5428, %v5451
    %v5463 = vmul.f32 %v5429, %v5461
    %v5464 = vld [vmem:[%s3 + $0x17] sm:$0x1]
    %v5465 = vperm.slane %v5464, 0
    %v5466 = vmul.f32 %v5462, %v5465
    %v5467 = vmul.f32 %v5463, %v5465
    %v5468 = vld [vmem:[%s3 + $0x18] sm:$0x1]
    %v5469 = vperm.slane %v5468, 0
    %v5470 = vadd.f32 %v5466, %v5469
    %v5471 = vadd.f32 %v5467, %v5469
    %s5472 = scalar_lea.vmem %s7, 96
    %v5473 = vld [vmem:[%s5472] sm:$0xff]
    %v5474 = vld [vmem:[%s5472 + $0x8] sm:$0xff]
    %v5475 = vld [vmem:[%s5472 + $0x10] sm:$0xff]
    %v5476 = vld [vmem:[%s5472 + $0x18] sm:$0xff]
    %s5477 = scalar_lea.vmem %s8, 192
    %v5478 = vld [vmem:[%s5477] sm:$0xff]
    %v5479 = vld [vmem:[%s5477 + $0x8] sm:$0xff]
    %v5480 = vld [vmem:[%s5477 + $0x10] sm:$0xff]
    %v5481 = vld [vmem:[%s5477 + $0x18] sm:$0xff]
    %v5482 = vld [vmem:[%s5477 + $0x20] sm:$0xff]
    %v5483 = vld [vmem:[%s5477 + $0x28] sm:$0xff]
    %v5484 = vld [vmem:[%s5477 + $0x30] sm:$0xff]
    %v5485 = vld [vmem:[%s5477 + $0x38] sm:$0xff]
    %v5486 = vld [vmem:[%s4 + $0x3] sm:$0x1]
    %v5487 = vperm.slane %v5486, 0
    %v5489 = vsel %vm134, %v5470, 0
    %v5492 = vsel %vm134, %v5471, 0
    %5494 = vmatpush.msra.mxu0 0.0
    %5495 = vmatpush.msra.mxu0 0.0
    %5496 = vmatpush.msra.mxu0 0.0
    %5497 = vmatpush.msra.mxu0 0.0
    %5498 = vmatpush.msra.mxu0 0.0
    %5499 = vmatpush.msra.mxu0 0.0
    %5500 = vmatpush.msra.mxu0 0.0
    %5501 = vmatpush.msra.mxu0 0.0
    %5502 = vmatpush.msra.mxu0 0.0
    %5503 = vmatpush.msra.mxu0 0.0
    %5504 = vmatpush.msra.mxu0 0.0
    %5505 = vmatpush.msra.mxu0 0.0
    %5506 = vmatpush.msra.mxu0 %v5476
    %5507 = vmatpush.msra.mxu0 %v5475
    %5508 = vmatpush.msra.mxu0 %v5474
    %5509 = vmatpush.msra.mxu0 %v5473
    %5510 = vmatmul.f32.gmra.mxu0 %v5489
    %v5511 = vpop.f32.mrf.mxu0
    %v5512 = vadd.f32 %v5487, %v5511
    %5513 = vmatmul.f32.gmra.mxu0 %v5492
    %v5514 = vpop.f32.mrf.mxu0
    %v5515 = vadd.f32 %v5487, %v5514
    %5516 = vdwg.mxu0
    %v5517 = vmax.f32 %v5512, 0.0
    %v5518 = vmax.f32 %v5515, 0.0
    %v5519 = vld [vmem:[%s3 + $0x19] sm:$0x1]
    %v5520 = vperm.slane %v5519, 0
    %v5522 = vsel %vm1099, %v5517, 0
    %v5525 = vsel %vm1099, %v5518, 0
    %5527 = vmatpush.msra.mxu0 0.0
    %5528 = vmatpush.msra.mxu0 0.0
    %5529 = vmatpush.msra.mxu0 0.0
    %5530 = vmatpush.msra.mxu0 0.0
    %5531 = vmatpush.msra.mxu0 0.0
    %5532 = vmatpush.msra.mxu0 0.0
    %5533 = vmatpush.msra.mxu0 0.0
    %5534 = vmatpush.msra.mxu0 0.0
    %5535 = vmatpush.msra.mxu0 %v5485
    %5536 = vmatpush.msra.mxu0 %v5484
    %5537 = vmatpush.msra.mxu0 %v5483
    %5538 = vmatpush.msra.mxu0 %v5482
    %5539 = vmatpush.msra.mxu0 %v5481
    %5540 = vmatpush.msra.mxu0 %v5480
    %5541 = vmatpush.msra.mxu0 %v5479
    %5542 = vmatpush.msra.mxu0 %v5478
    %5543 = vmatmul.f32.gmra.mxu0 %v5522
    %v5544 = vpop.f32.mrf.mxu0
    %v5545 = vadd.f32 %v5520, %v5544
    %5546 = vmatmul.f32.gmra.mxu0 %v5525
    %v5547 = vpop.f32.mrf.mxu0
    %v5548 = vadd.f32 %v5520, %v5547
    %5549 = vdwg.mxu0
    %v5550 = vadd.f32 %v5545, %v5470
    %v5551 = vadd.f32 %v5548, %v5471
    %v5552 = vsel %vm134, %v5550, 0.0
    %5553 = vadd.xlane.f32.xlu0 %v5552
    %v5554 = vpop.xlane.xlu0 %5553
    %v5555 = vsel %vm197, %v5551, 0.0
    %5556 = vadd.xlane.f32.xlu0 %v5555
    %v5557 = vpop.xlane.xlu0 %5556
    %v5558 = vmul.f32 %v5554, %v147
    %v5559 = vmul.f32 %v5557, %v147
    %v5560 = vsub.f32 %v5550, %v5558
    %v5561 = vsub.f32 %v5551, %v5559
    %v5562 = vmul.f32 %v5560, %v5560
    %v5563 = vmul.f32 %v5561, %v5561
    %v5564 = vsel %vm134, %v5562, 0.0
    %5565 = vadd.xlane.f32.xlu0 %v5564
    %v5566 = vpop.xlane.xlu0 %5565
    %v5567 = vsel %vm197, %v5563, 0.0
    %5568 = vadd.xlane.f32.xlu0 %v5567
    %v5569 = vpop.xlane.xlu0 %5568
    %v5570 = vmul.f32 %v5566, %v147
    %v5571 = vmul.f32 %v5569, %v147
    %v5572 = vadd.f32 %v5570, 1e-06
    %v5573 = vadd.f32 %v5571, 1e-06
    %v5574 = vrsqrt.pop %v5572
    %v5575 = vmul.f32 %v5574, %v5572
    %v5576 = vmul.f32 %v5575, %v5574
    %v5577 = vmul.f32 0.5, %v5576
    %v5578 = vsub.f32 1.5, %v5577
    %v5579 = vmul.f32 %v5574, %v5578
    %vm5580 = vweird.f32 %v5572
    %vm5581 = vweird.f32 %v5574
    %vm5582 = vmor %vm5580, %vm5581
    %v5583 = vsel %vm5582, %v5574, %v5579
    %v5584 = vrsqrt.pop %v5573
    %v5585 = vmul.f32 %v5584, %v5573
    %v5586 = vmul.f32 %v5585, %v5584
    %v5587 = vmul.f32 0.5, %v5586
    %v5588 = vsub.f32 1.5, %v5587
    %v5589 = vmul.f32 %v5584, %v5588
    %vm5590 = vweird.f32 %v5573
    %vm5591 = vweird.f32 %v5584
    %vm5592 = vmor %vm5590, %vm5591
    %v5593 = vsel %vm5592, %v5584, %v5589
    %v5594 = vmul.f32 %v5560, %v5583
    %v5595 = vmul.f32 %v5561, %v5593
    %v5596 = vld [vmem:[%s3 + $0x1a] sm:$0x1]
    %v5597 = vperm.slane %v5596, 0
    %v5598 = vmul.f32 %v5594, %v5597
    %v5599 = vmul.f32 %v5595, %v5597
    %v5600 = vld [vmem:[%s3 + $0x1b] sm:$0x1]
    %v5601 = vperm.slane %v5600, 0
    %v5602 = vadd.f32 %v5598, %v5601
    %v5603 = vadd.f32 %v5599, %v5601
    %v5605 = vsel %vm134, %v5602, 0
    %v5608 = vsel %vm134, %v5603, 0
    %v5611 = vsel %vm134, %v36, 0
    %v5614 = vsel %vm134, %v37, 0
    %5616 = vmatpush.xpose.msra.mxu0 0.0
    %5617 = vmatpush.xpose.msra.mxu0 0.0
    %5618 = vmatpush.xpose.msra.mxu0 0.0
    %5619 = vmatpush.xpose.msra.mxu0 0.0
    %5620 = vmatpush.xpose.msra.mxu0 0.0
    %5621 = vmatpush.xpose.msra.mxu0 0.0
    %5622 = vmatpush.xpose.msra.mxu0 0.0
    %5623 = vmatpush.xpose.msra.mxu0 0.0
    %5624 = vmatpush.xpose.msra.mxu0 0.0
    %5625 = vmatpush.xpose.msra.mxu0 0.0
    %5626 = vmatpush.xpose.msra.mxu0 0.0
    %5627 = vmatpush.xpose.msra.mxu0 0.0
    %5628 = vmatpush.xpose.msra.mxu0 0.0
    %5629 = vmatpush.xpose.msra.mxu0 0.0
    %5630 = vmatpush.xpose.msra.mxu0 %v5614
    %5631 = vmatpush.xpose.msra.mxu0 %v5611
    %5632 = vmatmul.f32.gmra.mxu0 %v5605
    %v5633 = vpop.f32.mrf.mxu0
    %v5634 = vadd.f32 0.0, %v5633
    %5635 = vmatmul.f32.gmra.mxu0 %v5608
    %v5636 = vpop.f32.mrf.mxu0
    %v5637 = vadd.f32 0.0, %v5636
    %5638 = vdwg.mxu0
    %v5639 = vsel %vm635, %v5634, -inf
    %5640 = vmax.xlane.f32.xlu0 %v5639
    %v5641 = vpop.xlane.xlu0 %5640
    %vm5642 = vcmask 128000
    %v5643 = vsel %vm5642, %v5637, -inf
    %5644 = vmax.xlane.f32.xlu0 %v5643
    %v5645 = vpop.xlane.xlu0 %5644
    %v5646 = vsub.f32 %v5634, %v5641
    %v5647 = vsub.f32 %v5637, %v5645
    %v5648 = vmul.f32 %v5646, 1.442695
    %v5649 = vpow.pop %v5648
    %v5650 = vmul.f32 %v5647, 1.442695
    %v5651 = vpow.pop %v5650
    %v5652 = vsel %vm635, %v5649, 0.0
    %5653 = vadd.xlane.f32.xlu0 %v5652
    %v5654 = vpop.xlane.xlu0 %5653
    %v5655 = vsel %vm5642, %v5651, 0.0
    %5656 = vadd.xlane.f32.xlu0 %v5655
    %v5657 = vpop.xlane.xlu0 %5656
    %v5658 = vlog2.pop %v5654
    %v5659 = vmul.f32 %v5658, 0.6931472
    %v5660 = vlog2.pop %v5657
    %v5661 = vmul.f32 %v5660, 0.6931472
    %v5662 = vsub.f32 %v5646, %v5659
    %v5663 = vsub.f32 %v5647, %v5661
    %v5664 = vld [vmem:[%s0 + $0x40] sm:$0xff]
    %v5665 = vld [vmem:[%s0 + $0x48] sm:$0x3f]
    %5666 = vset.pattern.permute.xlu0 0
    %5667 = vperm.xlu0 %5666, %v5664
    %v5668 = vpop.permute.xlu0 %5667
    %5669 = vset.pattern.permute.xlu0 0
    %5670 = vperm.xlu0 %5669, %v5665
    %v5671 = vpop.permute.xlu0 %5670
    %vm5672 = vcmp.eq.s32.totalorder %v47, %v5668
    %vm5673 = vcmp.eq.s32.totalorder %v47, %v5671
    %v5674 = vsel %vm5672, %v5662, 0.0
    %v5675 = vsel %vm5673, %v5663, 0.0
    %v5676 = vsel %vm635, %v5674, 0.0
    %5677 = vadd.xlane.f32.xlu0 %v5676
    %v5678 = vpop.xlane.xlu0 %5677
    %v5679 = vsel %vm5642, %v5675, 0.0
    %5680 = vadd.xlane.f32.xlu0 %v5679
    %v5681 = vpop.xlane.xlu0 %5680
    %5682 = vxpose.xlu0.b32.start [1/16] %v5678, 128
    %5683 = vxpose.xlu0.b32.cont [2/16] 0.0, 128
    %5684 = vxpose.xlu0.b32.cont [3/16] 0.0, 128
    %5685 = vxpose.xlu0.b32.cont [4/16] 0.0, 128
    %5686 = vxpose.xlu0.b32.cont [5/16] 0.0, 128
    %5687 = vxpose.xlu0.b32.cont [6/16] 0.0, 128
    %5688 = vxpose.xlu0.b32.cont [7/16] 0.0, 128
    %5689 = vxpose.xlu0.b32.cont [8/16] 0.0, 128
    %5690 = vxpose.xlu0.b32.cont [9/16] 0.0, 128
    %5691 = vxpose.xlu0.b32.cont [10/16] 0.0, 128
    %5692 = vxpose.xlu0.b32.cont [11/16] 0.0, 128
    %5693 = vxpose.xlu0.b32.cont [12/16] 0.0, 128
    %5694 = vxpose.xlu0.b32.cont [13/16] 0.0, 128
    %5695 = vxpose.xlu0.b32.cont [14/16] 0.0, 128
    %5696 = vxpose.xlu0.b32.cont [15/16] 0.0, 128
    %5697 = vxpose.xlu0.b32.end [16/16] 0.0, 128
    %v5698 = vpop.trf.xlu0
    %v5699 = vpop.trf.xlu0
    %v5700 = vpop.trf.xlu0
    %v5701 = vpop.trf.xlu0
    %v5702 = vpop.trf.xlu0
    %v5703 = vpop.trf.xlu0
    %v5704 = vpop.trf.xlu0
    %v5705 = vpop.trf.xlu0
    %v5706 = vpop.trf.xlu0
    %v5707 = vpop.trf.xlu0
    %v5708 = vpop.trf.xlu0
    %v5709 = vpop.trf.xlu0
    %v5710 = vpop.trf.xlu0
    %v5711 = vpop.trf.xlu0
    %v5712 = vpop.trf.xlu0
    %v5713 = vpop.trf.xlu0
    %v5716 = vrot.slane %v5678, 7
    %v5717 = vrot.slane %v5681, 7
    %v5718 = vsel %vm2472, %v5716, %v5717
    %5720 = vxpose.xlu0.b32.start [1/16] %v5718, 128
    %5721 = vxpose.xlu0.b32.cont [2/16] 0.0, 128
    %5722 = vxpose.xlu0.b32.cont [3/16] 0.0, 128
    %5723 = vxpose.xlu0.b32.cont [4/16] 0.0, 128
    %5724 = vxpose.xlu0.b32.cont [5/16] 0.0, 128
    %5725 = vxpose.xlu0.b32.cont [6/16] 0.0, 128
    %5726 = vxpose.xlu0.b32.cont [7/16] 0.0, 128
    %5727 = vxpose.xlu0.b32.cont [8/16] 0.0, 128
    %5728 = vxpose.xlu0.b32.cont [9/16] 0.0, 128
    %5729 = vxpose.xlu0.b32.cont [10/16] 0.0, 128
    %5730 = vxpose.xlu0.b32.cont [11/16] 0.0, 128
    %5731 = vxpose.xlu0.b32.cont [12/16] 0.0, 128
    %5732 = vxpose.xlu0.b32.cont [13/16] 0.0, 128
    %5733 = vxpose.xlu0.b32.cont [14/16] 0.0, 128
    %5734 = vxpose.xlu0.b32.cont [15/16] 0.0, 128
    %5735 = vxpose.xlu0.b32.end [16/16] 0.0, 128
    %v5736 = vpop.trf.xlu0
    %v5737 = vpop.trf.xlu0
    %v5738 = vpop.trf.xlu0
    %v5739 = vpop.trf.xlu0
    %v5740 = vpop.trf.xlu0
    %v5741 = vpop.trf.xlu0
    %v5742 = vpop.trf.xlu0
    %v5743 = vpop.trf.xlu0
    %v5744 = vpop.trf.xlu0
    %v5745 = vpop.trf.xlu0
    %v5746 = vpop.trf.xlu0
    %v5747 = vpop.trf.xlu0
    %v5748 = vpop.trf.xlu0
    %v5749 = vpop.trf.xlu0
    %v5750 = vpop.trf.xlu0
    %v5751 = vpop.trf.xlu0
    %v5753 = vrot.slane %v5736, 7
    %v5755 = vsel %vm2472, %v5698, %v5753
    %vm5756 = vcmask 50176
    %5757 = vst.msk [vmem:[#allocation2] sm:$0x3] %vm5756, %v5755
    // Predicated region
    $region38: #{transformer_forward.1} parent=1 // pred_check
      _
    $region39: #{transformer_forward.1} parent=1 // pred_check_branch
      %5759 = sbr.rel (0) target = $region41
    $region40: #{transformer_forward.1} parent=1 // pred_region
      %5761 = vsyncadd [#allocation3], 0
      %s5763 = sshll.u32 [#allocation2], 4
      %s5764 = int_to_ptr.vmem [resolvable:$true] %s5763
      %s5765 = sshll.u32 %s9, 4
      %s5766 = int_to_ptr.hbm [resolvable:$true] %s5765
      %5768 = dma.vmem_to_hbm [thread:$0]  %s5764, 32, %s5766, [#allocation3]
    $region41: #{transformer_forward.1} parent=1 // pred_fallthru
      _
    // Predicated region
    $region42: #{transformer_forward.1} parent=1 // pred_check
      _
    $region43: #{transformer_forward.1} parent=1 // pred_check_branch
      %5770 = sbr.rel (0) target = $region45
    $region44: #{transformer_forward.1} parent=1 // pred_region
      %5772 = dma.done [#allocation3], 32
    $region45: #{transformer_forward.1} parent=1 // pred_fallthru
      _
    %5773 = vsyncpa [#allocation3], 1

</llo_original>
